<compile_context>
chip_gen: v5e
topology: v5e:2x2
jax: 0.10.0
libtpu: 0.0.40
codegen_flags: <defaults>
</compile_context>

<pallas_src>
import jax
import jax.numpy as jnp
import numpy as np
from jax.experimental import pallas as pl
from jax.experimental.pallas import tpu as pltpu

HEADS = 2
F_IN = 256
F_HEAD = 256                     # per-head output dim of GATConv
F_CAT = HEADS * F_HEAD           # 512 (concat=True)
LOGIT_PAD = 128                  # attention-logit columns padded to one lane tile
LOGIT_USED = 8                   # 4 meaningful logit lanes, kept 8-wide
W_AUG_COLS = F_CAT + LOGIT_PAD   # 640
OUT_PAD = 128                    # dense4 output padded 3 -> 128 lanes
NEG_SLOPE = 0.2                  # PyG GATConv default LeakyReLU slope
LANE = 128
TM = 256                         # row tile (matches v6e/v7x 2x256^2 MXU)


def _vmem_limit_bytes():
    """Generation-aware VMEM budget: ~48 MiB on v7x (64 MiB phys), ~100 MiB on v5e/v6e."""
    try:
        cap = int(pltpu.get_tpu_info().vmem_capacity_bytes)
        return int(max(32 * 1024 * 1024, min(cap - 16 * 1024 * 1024, 100 * 1024 * 1024)))
    except Exception:
        return 48 * 1024 * 1024


VMEM_LIMIT_BYTES = _vmem_limit_bytes()


# --------------------------------------------------------------------------- #
# kernels
# --------------------------------------------------------------------------- #
def _proj_kernel(x_ref, w_ref, h_ref, logit_ref):
    """h_aug = x @ W_aug (bf16 MXU, f32 accumulation); split features / logits."""
    h_aug = jnp.dot(x_ref[...], w_ref[...], preferred_element_type=jnp.float32)
    h_ref[...] = h_aug[:, :F_CAT].astype(jnp.bfloat16)
    logit_ref[...] = h_aug[:, F_CAT:]


def _gat_dense_kernel(
    h_ref, dlogit_ref, slogit_t_ref, adj_ref,
    bgat_ref, wa_ref, ba_ref, w1_ref, b1_ref,
    w2_ref, b2_ref, w3_ref, b3_ref, w4_ref, b4_ref,
    y_ref, o_cat,
):
    """One row-tile of target nodes: attention softmax + aggregation + dense stack."""
    mask = adj_ref[...] != 0                                     # (TM, N) bool (int8 compare)

    for hd in range(HEADS):
        a_dst = dlogit_ref[:, 2 * hd + 1:2 * hd + 2]             # (TM, 1) f32
        a_src = slogit_t_ref[2 * hd:2 * hd + 1, :]               # (1, N)  f32
        e = a_dst + a_src                                        # (TM, N)
        e = jnp.where(e >= 0.0, e, NEG_SLOPE * e)                # LeakyReLU
        e = jnp.where(mask, e, -1e30)                            # scalar fill (no full_like)
        m = jnp.max(e, axis=1, keepdims=True)
        p = jnp.exp(e - m)                                       # masked entries -> exactly 0
        s = jnp.sum(p, axis=1, keepdims=True)
        hh = h_ref[:, hd * F_HEAD:(hd + 1) * F_HEAD]             # (N, 256) bf16
        agg = jnp.dot(p.astype(jnp.bfloat16), hh,
                      preferred_element_type=jnp.float32)        # (TM, 256) f32
        # normalize AFTER the matmul: N EUP reciprocals instead of N^2 divides
        agg = agg * pl.reciprocal(s, approx=True)
        # write straight into the concat slot (no jnp.concatenate copy); bf16 scratch
        o_cat[:, hd * F_HEAD:(hd + 1) * F_HEAD] = jnp.maximum(
            agg + bgat_ref[:, hd * F_HEAD:(hd + 1) * F_HEAD], 0.0
        ).astype(jnp.bfloat16)

    # dropout(p=0.3): identity in eval mode
    def dense_relu(o, w_ref, b_ref):
        z = jnp.dot(o, w_ref[...], preferred_element_type=jnp.float32) + b_ref[...]
        return jnp.maximum(z, 0.0).astype(jnp.bfloat16)

    o = o_cat[...]                                               # (TM, 512) bf16, relu'd
    o = dense_relu(o, wa_ref, ba_ref)                            # 512 -> 256
    o = dense_relu(o, w1_ref, b1_ref)                            # 256 -> 128
    o = dense_relu(o, w2_ref, b2_ref)                            # 128 -> 64 (padded 128)
    o = dense_relu(o, w3_ref, b3_ref)                            # 64 -> 32 (padded 128)
    y_ref[...] = jnp.dot(o, w4_ref[...], preferred_element_type=jnp.float32) + b4_ref[...]


def _cdist_kernel(yi_ref, yjt_ref, out_ref):
    """Exact pairwise L2 (diff form, diagonal exactly 0) on one (TC, TC) tile."""
    yi = yi_ref[...]                                             # (TC, 8), 3 lanes meaningful
    d2 = None
    for k in range(3):
        diff = yi[:, k:k + 1] - yjt_ref[k:k + 1, :]              # (TC, TC)
        term = diff * diff
        d2 = term if d2 is None else d2 + term
    out_ref[...] = jnp.sqrt(d2)


# --------------------------------------------------------------------------- #
# wrapper helpers
# --------------------------------------------------------------------------- #
def _pack_gat_weight(params):
    """W_gat with per-head attention-logit columns appended (lane-padded to 640)."""
    w = params["w_gat"]                                   # (256, 512) = lin.weight.T
    cols = []
    for hd in range(HEADS):
        wh = w[:, hd * F_HEAD:(hd + 1) * F_HEAD]          # (256, 256)
        cols.append(wh @ params["att_src"][hd])           # x @ (W a) == (x @ W) a
        cols.append(wh @ params["att_dst"][hd])
    logit_cols = jnp.stack(cols, axis=1)                  # (256, 4): [s0, d0, s1, d1]
    pad = jnp.zeros((F_IN, LOGIT_PAD - 2 * HEADS), jnp.float32)
    return jnp.concatenate([w, logit_cols, pad], axis=1)  # (256, 640)


def _pad_block(a, rows, cols):
    r, c = a.shape
    return jnp.zeros((rows, cols), a.dtype).at[:r, :c].set(a)


def _resident(block_shape):
    """BlockSpec for a grid-invariant (resident) operand: single buffer, no re-DMA."""
    return pl.BlockSpec(block_shape, lambda i: (0, 0), pipeline_mode=pl.Buffered(1))


@jax.jit
def gat_forward(x, edge_index, params):
    """Pallas implementation of GATNetHeadsChanged4LayerEmbedding256Dense.forward."""
    n = x.shape[0]
    n_pad = ((n + TM - 1) // TM) * TM                     # multiple of 256 -> tm=256 tiles
    tm = TM
    grid_rows = n_pad // tm

    x_pad = jnp.zeros((n_pad, F_IN), jnp.float32).at[:n].set(x.astype(jnp.float32))
    x_pad = x_pad.astype(jnp.bfloat16)

    # Dense adjacency mask (int8, 4x less HBM/VMEM than f32): adj[target, source]=1,
    # self-loops for every (incl. padded) node so each softmax row is nonempty.
    adj = jnp.zeros((n_pad, n_pad), jnp.int8)
    adj = adj.at[edge_index[1], edge_index[0]].set(1)
    adj = adj.at[jnp.arange(n_pad), jnp.arange(n_pad)].set(1)

    w_aug = _pack_gat_weight(params).astype(jnp.bfloat16)        # (256, 640)

    cparams_rows = pltpu.CompilerParams(
        dimension_semantics=("parallel",),
        vmem_limit_bytes=VMEM_LIMIT_BYTES,
    )

    # ---- phase 0: projection + fused attention-logit columns -------------- #
    h_feat, logits = pl.pallas_call(
        _proj_kernel,
        grid=(grid_rows,),
        in_specs=[
            pl.BlockSpec((tm, F_IN), lambda i: (i, 0)),
            _resident((F_IN, W_AUG_COLS)),                       # weights resident, 1 buffer
        ],
        out_specs=(
            pl.BlockSpec((tm, F_CAT), lambda i: (i, 0)),
            pl.BlockSpec((tm, LOGIT_PAD), lambda i: (i, 0)),
        ),
        out_shape=(
            jax.ShapeDtypeStruct((n_pad, F_CAT), jnp.bfloat16),
            jax.ShapeDtypeStruct((n_pad, LOGIT_PAD), jnp.float32),
        ),
        compiler_params=cparams_rows,
    )(x_pad, w_aug)

    # Only the 8 meaningful logit lanes feed phase 1 (16x less DMA than 128 lanes).
    dst_logits = logits[:, :LOGIT_USED]                          # (n_pad, 8)
    # Source-side logits transposed once in the wrapper (layout plumbing) so the
    # kernel never transposes an (N,1) column: row 2h = att_src, row 2h+1 = att_dst.
    att_t = jnp.transpose(dst_logits)                            # (8, n_pad)

    # Lane-dense (128-wide) zero-padding of the narrow dense layers; bf16 for the MXU.
    wa = params["wa"].astype(jnp.bfloat16)
    w1 = params["w1"].astype(jnp.bfloat16)
    w2p = _pad_block(params["w2"], 128, 128).astype(jnp.bfloat16)
    w3p = _pad_block(params["w3"], 128, 128).astype(jnp.bfloat16)
    w4p = _pad_block(params["w4"], 128, OUT_PAD).astype(jnp.bfloat16)
    b2p = _pad_block(params["b2"], 1, 128)
    b3p = _pad_block(params["b3"], 1, 128)
    b4p = _pad_block(params["b4"], 1, OUT_PAD)

    # ---- phase 1: attention + aggregation + dense stack ------------------- #
    y = pl.pallas_call(
        _gat_dense_kernel,
        grid=(grid_rows,),
        in_specs=[
            _resident((n_pad, F_CAT)),                           # h (resident bf16, 1 buffer)
            pl.BlockSpec((tm, LOGIT_USED), lambda i: (i, 0)),    # dst logits row slab
            _resident((LOGIT_USED, n_pad)),                      # src logits^T (resident)
            pl.BlockSpec((tm, n_pad), lambda i: (i, 0)),         # adj row slab (int8, pipelined)
            _resident((1, F_CAT)),                               # GAT bias
            _resident((F_CAT, 256)),                             # densea
            _resident((1, 256)),
            _resident((256, 128)),                               # dense1
            _resident((1, 128)),
            _resident((128, 128)),                               # dense2 (padded)
            _resident((1, 128)),
            _resident((128, 128)),                               # dense3 (padded)
            _resident((1, 128)),
            _resident((128, OUT_PAD)),                           # dense4 (padded)
            _resident((1, OUT_PAD)),
        ],
        out_specs=pl.BlockSpec((tm, OUT_PAD), lambda i: (i, 0)),
        out_shape=jax.ShapeDtypeStruct((n_pad, OUT_PAD), jnp.float32),
        scratch_shapes=[pltpu.VMEM((tm, F_CAT), jnp.bfloat16)],  # bf16 concat buffer
        compiler_params=cparams_rows,
    )(h_feat, dst_logits, att_t, adj, params["b_gat"],
      wa, params["ba"], w1, params["b1"],
      w2p, b2p, w3p, b3p, w4p, b4p)

    # ---- phase 2: 2-D tiled pairwise L2 (HBM-store-bound -> big tiles) ---- #
    tc = 512 if (n_pad % 512 == 0) else 256
    grid_c = n_pad // tc
    y8 = y[:, :LOGIT_USED]                                       # (n_pad, 8)
    y8_t = jnp.transpose(y8)                                     # (8, n_pad)
    dist = pl.pallas_call(
        _cdist_kernel,
        grid=(grid_c, grid_c),
        in_specs=[
            pl.BlockSpec((tc, LOGIT_USED), lambda i, j: (i, 0)),
            pl.BlockSpec((LOGIT_USED, tc), lambda i, j: (0, j)),
        ],
        out_specs=pl.BlockSpec((tc, tc), lambda i, j: (i, j)),
        out_shape=jax.ShapeDtypeStruct((n_pad, n_pad), jnp.float32),
        compiler_params=pltpu.CompilerParams(
            dimension_semantics=("parallel", "parallel"),
            vmem_limit_bytes=VMEM_LIMIT_BYTES,
        ),
    )(y8, y8_t)

    return dist[:n, :n]


# --------------------------------------------------------------------------- #
# parameters / reference
# --------------------------------------------------------------------------- #
def init_params(key):
    """Deterministic synthetic parameters (PyTorch shapes, pre-transposed to [in, out])."""
    ks = jax.random.split(key, 16)

    def w(k, shape):
        fan_in = shape[0]
        return (jax.random.normal(k, shape, jnp.float32) / np.sqrt(fan_in)).astype(jnp.float32)

    def b(k, dim):
        return (0.01 * jax.random.normal(k, (1, dim), jnp.float32)).astype(jnp.float32)

    return {
        # GATConv(256, 256, heads=2, concat=True)
        "w_gat": w(ks[0], (F_IN, F_CAT)),                 # lin.weight.T
        "att_src": w(ks[1], (HEADS, F_HEAD)),
        "att_dst": w(ks[2], (HEADS, F_HEAD)),
        "b_gat": b(ks[3], F_CAT),
        # dense layers (Linear(out,in) stored transposed as [in, out])
        "wa": w(ks[4], (512, 256)), "ba": b(ks[5], 256),
        "w1": w(ks[6], (256, 128)), "b1": b(ks[7], 128),
        "w2": w(ks[8], (128, 64)),  "b2": b(ks[9], 64),
        "w3": w(ks[10], (64, 32)),  "b3": b(ks[11], 32),
        "w4": w(ks[12], (32, 3)),   "b4": b(ks[13], 3),
    }


def reference_forward(x, edge_index, params):
    """Pure-JAX reference mirroring the kernel math (bf16 MXU inputs, f32 accumulation)."""
    n = x.shape[0]
    adj = jnp.zeros((n, n), jnp.float32)
    adj = adj.at[edge_index[1], edge_index[0]].set(1.0)
    adj = adj.at[jnp.arange(n), jnp.arange(n)].set(1.0)

    w_aug = _pack_gat_weight(params)
    h_aug = jnp.dot(x.astype(jnp.bfloat16), w_aug.astype(jnp.bfloat16),
                    preferred_element_type=jnp.float32)
    h = h_aug[:, :F_CAT].astype(jnp.bfloat16)
    outs = []
    for hd in range(HEADS):
        hh = h[:, hd * F_HEAD:(hd + 1) * F_HEAD]
        a_s = h_aug[:, F_CAT + 2 * hd]
        a_d = h_aug[:, F_CAT + 2 * hd + 1]
        e = a_d[:, None] + a_s[None, :]
        e = jnp.where(e >= 0, e, NEG_SLOPE * e)
        e = jnp.where(adj > 0, e, -1e30)
        p = jnp.exp(e - jnp.max(e, axis=1, keepdims=True)) * adj
        agg = jnp.dot(p.astype(jnp.bfloat16), hh,
                      preferred_element_type=jnp.float32)
        outs.append(agg / jnp.sum(p, axis=1, keepdims=True))
    o = jnp.concatenate(outs, axis=1) + params["b_gat"][0]
    o = jax.nn.relu(o).astype(jnp.bfloat16)

    def dense_relu(o, w, b):
        z = jnp.dot(o, w.astype(jnp.bfloat16), preferred_element_type=jnp.float32) + b[0]
        return jax.nn.relu(z).astype(jnp.bfloat16)

    o = dense_relu(o, params["wa"], params["ba"])
    o = dense_relu(o, params["w1"], params["b1"])
    o = dense_relu(o, params["w2"], params["b2"])
    o = dense_relu(o, params["w3"], params["b3"])
    y = jnp.dot(o, params["w4"].astype(jnp.bfloat16),
                preferred_element_type=jnp.float32) + params["b4"][0]
    diff = y[:, None, :] - y[None, :, :]
    return jnp.sqrt(jnp.sum(diff * diff, axis=-1))


if __name__ == "__main__":
    key = jax.random.PRNGKey(0)
    k_param, k_x, k_e, k_x2, k_e2 = jax.random.split(key, 5)

    params = init_params(k_param)

    # small case (single row tile)
    N, E = 8, 16
    x = jax.random.normal(k_x, (N, F_IN), jnp.float32)
    edge_index = jax.random.randint(k_e, (2, E), 0, N, dtype=jnp.int32)
    out = jax.block_until_ready(gat_forward(x, edge_index, params))
    ref = reference_forward(x, edge_index, params)
    np.testing.assert_allclose(np.asarray(out), np.asarray(ref), rtol=5e-3, atol=1e-2)

    # still-small case exercising multi-tile grids (n_pad=512 -> 2 row tiles, 512-wide cdist)
    N2, E2 = 300, 900
    x2 = jax.random.normal(k_x2, (N2, F_IN), jnp.float32)
    edge_index2 = jax.random.randint(k_e2, (2, E2), 0, N2, dtype=jnp.int32)
    out2 = jax.block_until_ready(gat_forward(x2, edge_index2, params))
    ref2 = reference_forward(x2, edge_index2, params)
    np.testing.assert_allclose(np.asarray(out2), np.asarray(ref2), rtol=5e-3, atol=1e-2)

    print("KERNEL_OK")
</pallas_src>

<mosaic_0001>
module attributes {stable_mosaic.version = 11 : i64} {
  func.func @_proj_kernel(%arg0: i32, %arg1: memref<256x256xbf16, #tpu.memory_space<vmem>>, %arg2: memref<256x640xbf16, #tpu.memory_space<vmem>>, %arg3: memref<256x512xbf16, #tpu.memory_space<vmem>>, %arg4: memref<256x128xf32, #tpu.memory_space<vmem>>) attributes {dimension_semantics = [#tpu.dimension_semantics<parallel>], iteration_bounds = array<i64: 1>, scalar_prefetch = 0 : i64, scratch_operands = 0 : i64, tpu.core_type = #tpu.core_type<tc>, window_params = [{transform_indices = @transform_0, window_bounds = array<i64: 256, 256>}, {pipeline_mode = #tpu.pipeline_mode<synchronous>, transform_indices = @transform_1, window_bounds = array<i64: 256, 640>}, {transform_indices = @transform_2, window_bounds = array<i64: 256, 512>}, {transform_indices = @transform_3, window_bounds = array<i64: 256, 128>}]} {
    %c0 = arith.constant 0 : index
    %c0_0 = arith.constant 0 : index
    %0 = vector.load %arg1[%c0, %c0_0] : memref<256x256xbf16, #tpu.memory_space<vmem>>, vector<256x256xbf16>
    %c0_1 = arith.constant 0 : index
    %c0_2 = arith.constant 0 : index
    %1 = vector.load %arg2[%c0_1, %c0_2] : memref<256x640xbf16, #tpu.memory_space<vmem>>, vector<256x640xbf16>
    %cst = arith.constant dense<0.000000e+00> : vector<256x640xf32>
    %2 = tpu.matmul %0, %1, %cst {dimension_numbers = #tpu.dot_dimension_numbers<[1], [0], [0], [1], [0, 0, 1, 1], [], []>} : vector<256x256xbf16>, vector<256x640xbf16>, vector<256x640xf32> -> vector<256x640xf32>
    %3 = vector.extract_strided_slice %2 {offsets = [0, 0], sizes = [256, 512], strides = [1, 1]} : vector<256x640xf32> to vector<256x512xf32>
    %4 = arith.truncf %3 : vector<256x512xf32> to vector<256x512xbf16>
    %c0_3 = arith.constant 0 : index
    %c0_4 = arith.constant 0 : index
    %5 = vector.load %arg3[%c0_3, %c0_4] : memref<256x512xbf16, #tpu.memory_space<vmem>>, vector<256x512xbf16>
    tpu.vector_store %arg3[%c0_3, %c0_4], %4 {strides = array<i32>} : memref<256x512xbf16, #tpu.memory_space<vmem>>, vector<256x512xbf16>,
    %6 = vector.extract_strided_slice %2 {offsets = [0, 512], sizes = [256, 128], strides = [1, 1]} : vector<256x640xf32> to vector<256x128xf32>
    %c0_5 = arith.constant 0 : index
    %c0_6 = arith.constant 0 : index
    %7 = vector.load %arg4[%c0_5, %c0_6] : memref<256x128xf32, #tpu.memory_space<vmem>>, vector<256x128xf32>
    tpu.vector_store %arg4[%c0_5, %c0_6], %6 {strides = array<i32>} : memref<256x128xf32, #tpu.memory_space<vmem>>, vector<256x128xf32>,
    return
  }
  func.func @transform_0(%arg0: i32) -> (i32, i32) {
    %c0_i32 = arith.constant 0 : i32
    %c0_i32_0 = arith.constant 0 : i32
    return %arg0, %c0_i32 : i32, i32
  }
  func.func @transform_1(%arg0: i32) -> (i32, i32) {
    %c0_i32 = arith.constant 0 : i32
    %c0_i32_0 = arith.constant 0 : i32
    %c0_i32_1 = arith.constant 0 : i32
    return %c0_i32, %c0_i32_0 : i32, i32
  }
  func.func @transform_2(%arg0: i32) -> (i32, i32) {
    %c0_i32 = arith.constant 0 : i32
    %c0_i32_0 = arith.constant 0 : i32
    return %arg0, %c0_i32 : i32, i32
  }
  func.func @transform_3(%arg0: i32) -> (i32, i32) {
    %c0_i32 = arith.constant 0 : i32
    %c0_i32_0 = arith.constant 0 : i32
    return %arg0, %c0_i32 : i32, i32
  }
}

module attributes {stable_mosaic.version = 11 : i64} {
  func.func @_gat_dense_kernel(%arg0: i32, %arg1: memref<256x512xbf16, #tpu.memory_space<vmem>>, %arg2: memref<256x8xf32, #tpu.memory_space<vmem>>, %arg3: memref<8x256xf32, #tpu.memory_space<vmem>>, %arg4: memref<256x256xi8, #tpu.memory_space<vmem>>, %arg5: memref<1x512xf32, #tpu.memory_space<vmem>>, %arg6: memref<512x256xbf16, #tpu.memory_space<vmem>>, %arg7: memref<1x256xf32, #tpu.memory_space<vmem>>, %arg8: memref<256x128xbf16, #tpu.memory_space<vmem>>, %arg9: memref<1x128xf32, #tpu.memory_space<vmem>>, %arg10: memref<128x128xbf16, #tpu.memory_space<vmem>>, %arg11: memref<1x128xf32, #tpu.memory_space<vmem>>, %arg12: memref<128x128xbf16, #tpu.memory_space<vmem>>, %arg13: memref<1x128xf32, #tpu.memory_space<vmem>>, %arg14: memref<128x128xbf16, #tpu.memory_space<vmem>>, %arg15: memref<1x128xf32, #tpu.memory_space<vmem>>, %arg16: memref<256x128xf32, #tpu.memory_space<vmem>>, %arg17: memref<256x512xbf16, #tpu.memory_space<vmem>>) attributes {dimension_semantics = [#tpu.dimension_semantics<parallel>], iteration_bounds = array<i64: 1>, scalar_prefetch = 0 : i64, scratch_operands = 1 : i64, tpu.core_type = #tpu.core_type<tc>, window_params = [{pipeline_mode = #tpu.pipeline_mode<synchronous>, transform_indices = @transform_0, window_bounds = array<i64: 256, 512>}, {transform_indices = @transform_1, window_bounds = array<i64: 256, 8>}, {pipeline_mode = #tpu.pipeline_mode<synchronous>, transform_indices = @transform_2, window_bounds = array<i64: 8, 256>}, {transform_indices = @transform_3, window_bounds = array<i64: 256, 256>}, {pipeline_mode = #tpu.pipeline_mode<synchronous>, transform_indices = @transform_4, window_bounds = array<i64: 1, 512>}, {pipeline_mode = #tpu.pipeline_mode<synchronous>, transform_indices = @transform_5, window_bounds = array<i64: 512, 256>}, {pipeline_mode = #tpu.pipeline_mode<synchronous>, transform_indices = @transform_6, window_bounds = array<i64: 1, 256>}, {pipeline_mode = #tpu.pipeline_mode<synchronous>, transform_indices = @transform_7, window_bounds = array<i64: 256, 128>}, {pipeline_mode = #tpu.pipeline_mode<synchronous>, transform_indices = @transform_8, window_bounds = array<i64: 1, 128>}, {pipeline_mode = #tpu.pipeline_mode<synchronous>, transform_indices = @transform_9, window_bounds = array<i64: 128, 128>}, {pipeline_mode = #tpu.pipeline_mode<synchronous>, transform_indices = @transform_10, window_bounds = array<i64: 1, 128>}, {pipeline_mode = #tpu.pipeline_mode<synchronous>, transform_indices = @transform_11, window_bounds = array<i64: 128, 128>}, {pipeline_mode = #tpu.pipeline_mode<synchronous>, transform_indices = @transform_12, window_bounds = array<i64: 1, 128>}, {pipeline_mode = #tpu.pipeline_mode<synchronous>, transform_indices = @transform_13, window_bounds = array<i64: 128, 128>}, {pipeline_mode = #tpu.pipeline_mode<synchronous>, transform_indices = @transform_14, window_bounds = array<i64: 1, 128>}, {transform_indices = @transform_15, window_bounds = array<i64: 256, 128>}]} {
    %c0 = arith.constant 0 : index
    %c0_0 = arith.constant 0 : index
    %0 = vector.load %arg4[%c0, %c0_0] : memref<256x256xi8, #tpu.memory_space<vmem>>, vector<256x256xi8>
    %c0_i8 = arith.constant 0 : i8
    %1 = vector.broadcast %c0_i8 : i8 to vector<256x256xi8>
    %2 = arith.cmpi ne, %0, %1 : vector<256x256xi8>
    %c0_1 = arith.constant 0 : index
    %c1 = arith.constant 1 : index
    %3 = vector.load %arg2[%c0_1, %c1] : memref<256x8xf32, #tpu.memory_space<vmem>>, vector<256x1xf32>
    %c0_2 = arith.constant 0 : index
    %c0_3 = arith.constant 0 : index
    %4 = vector.load %arg3[%c0_2, %c0_3] : memref<8x256xf32, #tpu.memory_space<vmem>>, vector<1x256xf32>
    %5 = vector.broadcast %3 : vector<256x1xf32> to vector<256x256xf32>
    %6 = vector.broadcast %4 : vector<1x256xf32> to vector<256x256xf32>
    %7 = arith.addf %5, %6 : vector<256x256xf32>
    %cst = arith.constant 0.000000e+00 : f32
    %8 = vector.broadcast %cst : f32 to vector<256x256xf32>
    %9 = arith.cmpf oge, %7, %8 : vector<256x256xf32>
    %cst_4 = arith.constant 2.000000e-01 : f32
    %10 = vector.broadcast %cst_4 : f32 to vector<256x256xf32>
    %11 = arith.mulf %10, %7 : vector<256x256xf32>
    %12 = arith.select %9, %7, %11 : vector<256x256xi1>, vector<256x256xf32>
    %cst_5 = arith.constant -1.000000e+30 : f32
    %13 = vector.broadcast %cst_5 : f32 to vector<256x256xf32>
    %14 = arith.select %2, %12, %13 : vector<256x256xi1>, vector<256x256xf32>
    %cst_6 = arith.constant dense<0xFF800000> : vector<256xf32>
    %15 = vector.multi_reduction <maximumf>, %14, %cst_6 [1] : vector<256x256xf32> to vector<256xf32>
    %16 = vector.shape_cast %15 : vector<256xf32> to vector<256x1xf32>
    %17 = vector.broadcast %16 : vector<256x1xf32> to vector<256x256xf32>
    %18 = arith.subf %14, %17 : vector<256x256xf32>
    %19 = math.exp %18 : vector<256x256xf32>
    %cst_7 = arith.constant dense<0.000000e+00> : vector<256xf32>
    %20 = vector.multi_reduction <add>, %19, %cst_7 [1] : vector<256x256xf32> to vector<256xf32>
    %21 = vector.shape_cast %20 : vector<256xf32> to vector<256x1xf32>
    %c0_8 = arith.constant 0 : index
    %c0_9 = arith.constant 0 : index
    %22 = vector.load %arg1[%c0_8, %c0_9] : memref<256x512xbf16, #tpu.memory_space<vmem>>, vector<256x256xbf16>
    %23 = arith.truncf %19 : vector<256x256xf32> to vector<256x256xbf16>
    %cst_10 = arith.constant dense<0.000000e+00> : vector<256x256xf32>
    %24 = tpu.matmul %23, %22, %cst_10 {dimension_numbers = #tpu.dot_dimension_numbers<[1], [0], [0], [1], [0, 0, 1, 1], [], []>} : vector<256x256xbf16>, vector<256x256xbf16>, vector<256x256xf32> -> vector<256x256xf32>
    %25 = tpu.reciprocal %21 {approx = true} : vector<256x1xf32> -> vector<256x1xf32>
    %26 = vector.broadcast %25 : vector<256x1xf32> to vector<256x256xf32>
    %27 = arith.mulf %24, %26 : vector<256x256xf32>
    %c0_11 = arith.constant 0 : index
    %c0_12 = arith.constant 0 : index
    %28 = vector.load %arg5[%c0_11, %c0_12] : memref<1x512xf32, #tpu.memory_space<vmem>>, vector<1x256xf32>
    %29 = vector.broadcast %28 : vector<1x256xf32> to vector<256x256xf32>
    %30 = arith.addf %27, %29 : vector<256x256xf32>
    %cst_13 = arith.constant 0.000000e+00 : f32
    %31 = vector.broadcast %cst_13 : f32 to vector<256x256xf32>
    %32 = arith.maximumf %30, %31 : vector<256x256xf32>
    %33 = arith.truncf %32 : vector<256x256xf32> to vector<256x256xbf16>
    %c0_14 = arith.constant 0 : index
    %c0_15 = arith.constant 0 : index
    %34 = vector.load %arg17[%c0_14, %c0_15] : memref<256x512xbf16, #tpu.memory_space<vmem>>, vector<256x256xbf16>
    tpu.vector_store %arg17[%c0_14, %c0_15], %33 {strides = array<i32>} : memref<256x512xbf16, #tpu.memory_space<vmem>>, vector<256x256xbf16>,
    %c0_16 = arith.constant 0 : index
    %c3 = arith.constant 3 : index
    %35 = vector.load %arg2[%c0_16, %c3] : memref<256x8xf32, #tpu.memory_space<vmem>>, vector<256x1xf32>
    %c2 = arith.constant 2 : index
    %c0_17 = arith.constant 0 : index
    %36 = vector.load %arg3[%c2, %c0_17] : memref<8x256xf32, #tpu.memory_space<vmem>>, vector<1x256xf32>
    %37 = vector.broadcast %35 : vector<256x1xf32> to vector<256x256xf32>
    %38 = vector.broadcast %36 : vector<1x256xf32> to vector<256x256xf32>
    %39 = arith.addf %37, %38 : vector<256x256xf32>
    %cst_18 = arith.constant 0.000000e+00 : f32
    %40 = vector.broadcast %cst_18 : f32 to vector<256x256xf32>
    %41 = arith.cmpf oge, %39, %40 : vector<256x256xf32>
    %cst_19 = arith.constant 2.000000e-01 : f32
    %42 = vector.broadcast %cst_19 : f32 to vector<256x256xf32>
    %43 = arith.mulf %42, %39 : vector<256x256xf32>
    %44 = arith.select %41, %39, %43 : vector<256x256xi1>, vector<256x256xf32>
    %cst_20 = arith.constant -1.000000e+30 : f32
    %45 = vector.broadcast %cst_20 : f32 to vector<256x256xf32>
    %46 = arith.select %2, %44, %45 : vector<256x256xi1>, vector<256x256xf32>
    %cst_21 = arith.constant dense<0xFF800000> : vector<256xf32>
    %47 = vector.multi_reduction <maximumf>, %46, %cst_21 [1] : vector<256x256xf32> to vector<256xf32>
    %48 = vector.shape_cast %47 : vector<256xf32> to vector<256x1xf32>
    %49 = vector.broadcast %48 : vector<256x1xf32> to vector<256x256xf32>
    %50 = arith.subf %46, %49 : vector<256x256xf32>
    %51 = math.exp %50 : vector<256x256xf32>
    %cst_22 = arith.constant dense<0.000000e+00> : vector<256xf32>
    %52 = vector.multi_reduction <add>, %51, %cst_22 [1] : vector<256x256xf32> to vector<256xf32>
    %53 = vector.shape_cast %52 : vector<256xf32> to vector<256x1xf32>
    %c0_23 = arith.constant 0 : index
    %c256 = arith.constant 256 : index
    %54 = vector.load %arg1[%c0_23, %c256] : memref<256x512xbf16, #tpu.memory_space<vmem>>, vector<256x256xbf16>
    %55 = arith.truncf %51 : vector<256x256xf32> to vector<256x256xbf16>
    %cst_24 = arith.constant dense<0.000000e+00> : vector<256x256xf32>
    %56 = tpu.matmul %55, %54, %cst_24 {dimension_numbers = #tpu.dot_dimension_numbers<[1], [0], [0], [1], [0, 0, 1, 1], [], []>} : vector<256x256xbf16>, vector<256x256xbf16>, vector<256x256xf32> -> vector<256x256xf32>
    %57 = tpu.reciprocal %53 {approx = true} : vector<256x1xf32> -> vector<256x1xf32>
    %58 = vector.broadcast %57 : vector<256x1xf32> to vector<256x256xf32>
    %59 = arith.mulf %56, %58 : vector<256x256xf32>
    %c0_25 = arith.constant 0 : index
    %c256_26 = arith.constant 256 : index
    %60 = vector.load %arg5[%c0_25, %c256_26] : memref<1x512xf32, #tpu.memory_space<vmem>>, vector<1x256xf32>
    %61 = vector.broadcast %60 : vector<1x256xf32> to vector<256x256xf32>
    %62 = arith.addf %59, %61 : vector<256x256xf32>
    %cst_27 = arith.constant 0.000000e+00 : f32
    %63 = vector.broadcast %cst_27 : f32 to vector<256x256xf32>
    %64 = arith.maximumf %62, %63 : vector<256x256xf32>
    %65 = arith.truncf %64 : vector<256x256xf32> to vector<256x256xbf16>
    %c0_28 = arith.constant 0 : index
    %c256_29 = arith.constant 256 : index
    %66 = vector.load %arg17[%c0_28, %c256_29] : memref<256x512xbf16, #tpu.memory_space<vmem>>, vector<256x256xbf16>
    tpu.vector_store %arg17[%c0_28, %c256_29], %65 {strides = array<i32>} : memref<256x512xbf16, #tpu.memory_space<vmem>>, vector<256x256xbf16>,
    %c0_30 = arith.constant 0 : index
    %c0_31 = arith.constant 0 : index
    %67 = vector.load %arg17[%c0_30, %c0_31] : memref<256x512xbf16, #tpu.memory_space<vmem>>, vector<256x512xbf16>
    %c0_32 = arith.constant 0 : index
    %c0_33 = arith.constant 0 : index
    %68 = vector.load %arg6[%c0_32, %c0_33] : memref<512x256xbf16, #tpu.memory_space<vmem>>, vector<512x256xbf16>
    %cst_34 = arith.constant dense<0.000000e+00> : vector<256x256xf32>
    %69 = tpu.matmul %67, %68, %cst_34 {dimension_numbers = #tpu.dot_dimension_numbers<[1], [0], [0], [1], [0, 0, 1, 1], [], []>} : vector<256x512xbf16>, vector<512x256xbf16>, vector<256x256xf32> -> vector<256x256xf32>
    %c0_35 = arith.constant 0 : index
    %c0_36 = arith.constant 0 : index
    %70 = vector.load %arg7[%c0_35, %c0_36] : memref<1x256xf32, #tpu.memory_space<vmem>>, vector<1x256xf32>
    %71 = vector.broadcast %70 : vector<1x256xf32> to vector<256x256xf32>
    %72 = arith.addf %69, %71 : vector<256x256xf32>
    %cst_37 = arith.constant 0.000000e+00 : f32
    %73 = vector.broadcast %cst_37 : f32 to vector<256x256xf32>
    %74 = arith.maximumf %72, %73 : vector<256x256xf32>
    %75 = arith.truncf %74 : vector<256x256xf32> to vector<256x256xbf16>
    %c0_38 = arith.constant 0 : index
    %c0_39 = arith.constant 0 : index
    %76 = vector.load %arg8[%c0_38, %c0_39] : memref<256x128xbf16, #tpu.memory_space<vmem>>, vector<256x128xbf16>
    %cst_40 = arith.constant dense<0.000000e+00> : vector<256x128xf32>
    %77 = tpu.matmul %75, %76, %cst_40 {dimension_numbers = #tpu.dot_dimension_numbers<[1], [0], [0], [1], [0, 0, 1, 1], [], []>} : vector<256x256xbf16>, vector<256x128xbf16>, vector<256x128xf32> -> vector<256x128xf32>
    %c0_41 = arith.constant 0 : index
    %c0_42 = arith.constant 0 : index
    %78 = vector.load %arg9[%c0_41, %c0_42] : memref<1x128xf32, #tpu.memory_space<vmem>>, vector<1x128xf32>
    %79 = vector.broadcast %78 : vector<1x128xf32> to vector<256x128xf32>
    %80 = arith.addf %77, %79 : vector<256x128xf32>
    %cst_43 = arith.constant 0.000000e+00 : f32
    %81 = vector.broadcast %cst_43 : f32 to vector<256x128xf32>
    %82 = arith.maximumf %80, %81 : vector<256x128xf32>
    %83 = arith.truncf %82 : vector<256x128xf32> to vector<256x128xbf16>
    %c0_44 = arith.constant 0 : index
    %c0_45 = arith.constant 0 : index
    %84 = vector.load %arg10[%c0_44, %c0_45] : memref<128x128xbf16, #tpu.memory_space<vmem>>, vector<128x128xbf16>
    %cst_46 = arith.constant dense<0.000000e+00> : vector<256x128xf32>
    %85 = tpu.matmul %83, %84, %cst_46 {dimension_numbers = #tpu.dot_dimension_numbers<[1], [0], [0], [1], [0, 0, 1, 1], [], []>} : vector<256x128xbf16>, vector<128x128xbf16>, vector<256x128xf32> -> vector<256x128xf32>
    %c0_47 = arith.constant 0 : index
    %c0_48 = arith.constant 0 : index
    %86 = vector.load %arg11[%c0_47, %c0_48] : memref<1x128xf32, #tpu.memory_space<vmem>>, vector<1x128xf32>
    %87 = vector.broadcast %86 : vector<1x128xf32> to vector<256x128xf32>
    %88 = arith.addf %85, %87 : vector<256x128xf32>
    %cst_49 = arith.constant 0.000000e+00 : f32
    %89 = vector.broadcast %cst_49 : f32 to vector<256x128xf32>
    %90 = arith.maximumf %88, %89 : vector<256x128xf32>
    %91 = arith.truncf %90 : vector<256x128xf32> to vector<256x128xbf16>
    %c0_50 = arith.constant 0 : index
    %c0_51 = arith.constant 0 : index
    %92 = vector.load %arg12[%c0_50, %c0_51] : memref<128x128xbf16, #tpu.memory_space<vmem>>, vector<128x128xbf16>
    %cst_52 = arith.constant dense<0.000000e+00> : vector<256x128xf32>
    %93 = tpu.matmul %91, %92, %cst_52 {dimension_numbers = #tpu.dot_dimension_numbers<[1], [0], [0], [1], [0, 0, 1, 1], [], []>} : vector<256x128xbf16>, vector<128x128xbf16>, vector<256x128xf32> -> vector<256x128xf32>
    %c0_53 = arith.constant 0 : index
    %c0_54 = arith.constant 0 : index
    %94 = vector.load %arg13[%c0_53, %c0_54] : memref<1x128xf32, #tpu.memory_space<vmem>>, vector<1x128xf32>
    %95 = vector.broadcast %94 : vector<1x128xf32> to vector<256x128xf32>
    %96 = arith.addf %93, %95 : vector<256x128xf32>
    %cst_55 = arith.constant 0.000000e+00 : f32
    %97 = vector.broadcast %cst_55 : f32 to vector<256x128xf32>
    %98 = arith.maximumf %96, %97 : vector<256x128xf32>
    %99 = arith.truncf %98 : vector<256x128xf32> to vector<256x128xbf16>
    %c0_56 = arith.constant 0 : index
    %c0_57 = arith.constant 0 : index
    %100 = vector.load %arg14[%c0_56, %c0_57] : memref<128x128xbf16, #tpu.memory_space<vmem>>, vector<128x128xbf16>
    %cst_58 = arith.constant dense<0.000000e+00> : vector<256x128xf32>
    %101 = tpu.matmul %99, %100, %cst_58 {dimension_numbers = #tpu.dot_dimension_numbers<[1], [0], [0], [1], [0, 0, 1, 1], [], []>} : vector<256x128xbf16>, vector<128x128xbf16>, vector<256x128xf32> -> vector<256x128xf32>
    %c0_59 = arith.constant 0 : index
    %c0_60 = arith.constant 0 : index
    %102 = vector.load %arg15[%c0_59, %c0_60] : memref<1x128xf32, #tpu.memory_space<vmem>>, vector<1x128xf32>
    %103 = vector.broadcast %102 : vector<1x128xf32> to vector<256x128xf32>
    %104 = arith.addf %101, %103 : vector<256x128xf32>
    %c0_61 = arith.constant 0 : index
    %c0_62 = arith.constant 0 : index
    %105 = vector.load %arg16[%c0_61, %c0_62] : memref<256x128xf32, #tpu.memory_space<vmem>>, vector<256x128xf32>
    tpu.vector_store %arg16[%c0_61, %c0_62], %104 {strides = array<i32>} : memref<256x128xf32, #tpu.memory_space<vmem>>, vector<256x128xf32>,
    return
  }
  func.func @transform_0(%arg0: i32) -> (i32, i32) {
    %c0_i32 = arith.constant 0 : i32
    %c0_i32_0 = arith.constant 0 : i32
    %c0_i32_1 = arith.constant 0 : i32
    return %c0_i32, %c0_i32_0 : i32, i32
  }
  func.func @transform_1(%arg0: i32) -> (i32, i32) {
    %c0_i32 = arith.constant 0 : i32
    %c0_i32_0 = arith.constant 0 : i32
    return %arg0, %c0_i32 : i32, i32
  }
  func.func @transform_2(%arg0: i32) -> (i32, i32) {
    %c0_i32 = arith.constant 0 : i32
    %c0_i32_0 = arith.constant 0 : i32
    %c0_i32_1 = arith.constant 0 : i32
    return %c0_i32, %c0_i32_0 : i32, i32
  }
  func.func @transform_3(%arg0: i32) -> (i32, i32) {
    %c0_i32 = arith.constant 0 : i32
    %c0_i32_0 = arith.constant 0 : i32
    return %arg0, %c0_i32 : i32, i32
  }
  func.func @transform_4(%arg0: i32) -> (i32, i32) {
    %c0_i32 = arith.constant 0 : i32
    %c0_i32_0 = arith.constant 0 : i32
    %c0_i32_1 = arith.constant 0 : i32
    return %c0_i32, %c0_i32_0 : i32, i32
  }
  func.func @transform_5(%arg0: i32) -> (i32, i32) {
    %c0_i32 = arith.constant 0 : i32
    %c0_i32_0 = arith.constant 0 : i32
    %c0_i32_1 = arith.constant 0 : i32
    return %c0_i32, %c0_i32_0 : i32, i32
  }
  func.func @transform_6(%arg0: i32) -> (i32, i32) {
    %c0_i32 = arith.constant 0 : i32
    %c0_i32_0 = arith.constant 0 : i32
    %c0_i32_1 = arith.constant 0 : i32
    return %c0_i32, %c0_i32_0 : i32, i32
  }
  func.func @transform_7(%arg0: i32) -> (i32, i32) {
    %c0_i32 = arith.constant 0 : i32
    %c0_i32_0 = arith.constant 0 : i32
    %c0_i32_1 = arith.constant 0 : i32
    return %c0_i32, %c0_i32_0 : i32, i32
  }
  func.func @transform_8(%arg0: i32) -> (i32, i32) {
    %c0_i32 = arith.constant 0 : i32
    %c0_i32_0 = arith.constant 0 : i32
    %c0_i32_1 = arith.constant 0 : i32
    return %c0_i32, %c0_i32_0 : i32, i32
  }
  func.func @transform_9(%arg0: i32) -> (i32, i32) {
    %c0_i32 = arith.constant 0 : i32
    %c0_i32_0 = arith.constant 0 : i32
    %c0_i32_1 = arith.constant 0 : i32
    return %c0_i32, %c0_i32_0 : i32, i32
  }
  func.func @transform_10(%arg0: i32) -> (i32, i32) {
    %c0_i32 = arith.constant 0 : i32
    %c0_i32_0 = arith.constant 0 : i32
    %c0_i32_1 = arith.constant 0 : i32
    return %c0_i32, %c0_i32_0 : i32, i32
  }
  func.func @transform_11(%arg0: i32) -> (i32, i32) {
    %c0_i32 = arith.constant 0 : i32
    %c0_i32_0 = arith.constant 0 : i32
    %c0_i32_1 = arith.constant 0 : i32
    return %c0_i32, %c0_i32_0 : i32, i32
  }
  func.func @transform_12(%arg0: i32) -> (i32, i32) {
    %c0_i32 = arith.constant 0 : i32
    %c0_i32_0 = arith.constant 0 : i32
    %c0_i32_1 = arith.constant 0 : i32
    return %c0_i32, %c0_i32_0 : i32, i32
  }
  func.func @transform_13(%arg0: i32) -> (i32, i32) {
    %c0_i32 = arith.constant 0 : i32
    %c0_i32_0 = arith.constant 0 : i32
    %c0_i32_1 = arith.constant 0 : i32
    return %c0_i32, %c0_i32_0 : i32, i32
  }
  func.func @transform_14(%arg0: i32) -> (i32, i32) {
    %c0_i32 = arith.constant 0 : i32
    %c0_i32_0 = arith.constant 0 : i32
    %c0_i32_1 = arith.constant 0 : i32
    return %c0_i32, %c0_i32_0 : i32, i32
  }
  func.func @transform_15(%arg0: i32) -> (i32, i32) {
    %c0_i32 = arith.constant 0 : i32
    %c0_i32_0 = arith.constant 0 : i32
    return %arg0, %c0_i32 : i32, i32
  }
}

module attributes {stable_mosaic.version = 11 : i64} {
  func.func @_cdist_kernel(%arg0: i32, %arg1: i32, %arg2: memref<256x8xf32, #tpu.memory_space<vmem>>, %arg3: memref<8x256xf32, #tpu.memory_space<vmem>>, %arg4: memref<256x256xf32, #tpu.memory_space<vmem>>) attributes {dimension_semantics = [#tpu.dimension_semantics<parallel>, #tpu.dimension_semantics<parallel>], iteration_bounds = array<i64: 1, 1>, scalar_prefetch = 0 : i64, scratch_operands = 0 : i64, tpu.core_type = #tpu.core_type<tc>, window_params = [{transform_indices = @transform_0, window_bounds = array<i64: 256, 8>}, {transform_indices = @transform_1, window_bounds = array<i64: 8, 256>}, {transform_indices = @transform_2, window_bounds = array<i64: 256, 256>}]} {
    %c0 = arith.constant 0 : index
    %c0_0 = arith.constant 0 : index
    %0 = vector.load %arg2[%c0, %c0_0] : memref<256x8xf32, #tpu.memory_space<vmem>>, vector<256x8xf32>
    %1 = vector.extract_strided_slice %0 {offsets = [0, 0], sizes = [256, 1], strides = [1, 1]} : vector<256x8xf32> to vector<256x1xf32>
    %c0_1 = arith.constant 0 : index
    %c0_2 = arith.constant 0 : index
    %2 = vector.load %arg3[%c0_1, %c0_2] : memref<8x256xf32, #tpu.memory_space<vmem>>, vector<1x256xf32>
    %3 = vector.broadcast %1 : vector<256x1xf32> to vector<256x256xf32>
    %4 = vector.broadcast %2 : vector<1x256xf32> to vector<256x256xf32>
    %5 = arith.subf %3, %4 : vector<256x256xf32>
    %6 = arith.mulf %5, %5 : vector<256x256xf32>
    %7 = vector.extract_strided_slice %0 {offsets = [0, 1], sizes = [256, 1], strides = [1, 1]} : vector<256x8xf32> to vector<256x1xf32>
    %c1 = arith.constant 1 : index
    %c0_3 = arith.constant 0 : index
    %8 = vector.load %arg3[%c1, %c0_3] : memref<8x256xf32, #tpu.memory_space<vmem>>, vector<1x256xf32>
    %9 = vector.broadcast %7 : vector<256x1xf32> to vector<256x256xf32>
    %10 = vector.broadcast %8 : vector<1x256xf32> to vector<256x256xf32>
    %11 = arith.subf %9, %10 : vector<256x256xf32>
    %12 = arith.mulf %11, %11 : vector<256x256xf32>
    %13 = arith.addf %6, %12 : vector<256x256xf32>
    %14 = vector.extract_strided_slice %0 {offsets = [0, 2], sizes = [256, 1], strides = [1, 1]} : vector<256x8xf32> to vector<256x1xf32>
    %c2 = arith.constant 2 : index
    %c0_4 = arith.constant 0 : index
    %15 = vector.load %arg3[%c2, %c0_4] : memref<8x256xf32, #tpu.memory_space<vmem>>, vector<1x256xf32>
    %16 = vector.broadcast %14 : vector<256x1xf32> to vector<256x256xf32>
    %17 = vector.broadcast %15 : vector<1x256xf32> to vector<256x256xf32>
    %18 = arith.subf %16, %17 : vector<256x256xf32>
    %19 = arith.mulf %18, %18 : vector<256x256xf32>
    %20 = arith.addf %13, %19 : vector<256x256xf32>
    %21 = math.sqrt %20 : vector<256x256xf32>
    %c0_5 = arith.constant 0 : index
    %c0_6 = arith.constant 0 : index
    %22 = vector.load %arg4[%c0_5, %c0_6] : memref<256x256xf32, #tpu.memory_space<vmem>>, vector<256x256xf32>
    tpu.vector_store %arg4[%c0_5, %c0_6], %21 {strides = array<i32>} : memref<256x256xf32, #tpu.memory_space<vmem>>, vector<256x256xf32>,
    return
  }
  func.func @transform_0(%arg0: i32, %arg1: i32) -> (i32, i32) {
    %c0_i32 = arith.constant 0 : i32
    %c0_i32_0 = arith.constant 0 : i32
    return %arg0, %c0_i32 : i32, i32
  }
  func.func @transform_1(%arg0: i32, %arg1: i32) -> (i32, i32) {
    %c0_i32 = arith.constant 0 : i32
    %c0_i32_0 = arith.constant 0 : i32
    return %c0_i32, %arg1 : i32, i32
  }
  func.func @transform_2(%arg0: i32, %arg1: i32) -> (i32, i32) {
    %c0_i32 = arith.constant 0 : i32
    return %arg0, %arg1 : i32, i32
  }
}

</mosaic_0001>

<llo_original>
// kernel: gat_forward.3
$region0: #{gat_forward.3}
  #allocation0 [shape = 'u32[]', space=smem, size = 0x4, offset = 0x4, fixed_abs, tag = 'smem constant byte address 0x4 - core index']
  #allocation1 [shape = 'u32[72,128]{1,0:T(1,128)}', space=vmem, size = 0x9000, scoped, tag = 'internal scratch']
  %s0 = inlined_call_operand.vmem [shape: bf16[256,256], index: 0, kind: input, shape index: {}]
  %s1 = inlined_call_operand.vmem [shape: bf16[256,640], index: 1, kind: input, shape index: {}]
  %s2 = inlined_call_operand.vmem [shape: bf16[256,512], index: 2, kind: output, shape index: {0}]
  %s3 = inlined_call_operand.vmem [shape: f32[256,128], index: 3, kind: output, shape index: {1}]
  %4 = xla_tuple %s2, %s3
  %s5 = sld [smem:[#allocation0]]
  $region26: #{gat_forward.3} parent=0
    _
  %s7 = ssub.s32 1, %s5
  %s8 = scalar_select 0, %s7, %s5
  // Predicated region
  $region2: #{gat_forward.3} parent=0 // pred_check
    _
  $region3: #{gat_forward.3} parent=0 // pred_check_branch
    %10 = sbr.rel (0) target = $region5
  $region4: #{gat_forward.3} parent=0 // pred_region
    _
  $region5: #{gat_forward.3} parent=0 // pred_fallthru
    _
  // Predicated region
  $region6: #{gat_forward.3} parent=0 // pred_check
    _
  $region7: #{gat_forward.3} parent=0 // pred_check_branch
    %12 = sbr.rel (0) target = $region9
  $region8: #{gat_forward.3} parent=0 // pred_region
    _
  $region9: #{gat_forward.3} parent=0 // pred_fallthru
    _
  %v13 = vld [vmem:[%s0] sm:$0xff]
  %v14 = vld [vmem:[%s0 + $0x8] sm:$0xff]
  %v15 = vld [vmem:[%s0 + $0x10] sm:$0xff]
  %v16 = vld [vmem:[%s0 + $0x18] sm:$0xff]
  %v17 = vld [vmem:[%s0 + $0x20] sm:$0xff]
  %v18 = vld [vmem:[%s0 + $0x28] sm:$0xff]
  %v19 = vld [vmem:[%s0 + $0x30] sm:$0xff]
  %v20 = vld [vmem:[%s0 + $0x38] sm:$0xff]
  %v21 = vld [vmem:[%s0 + $0x40] sm:$0xff]
  %v22 = vld [vmem:[%s0 + $0x48] sm:$0xff]
  %v23 = vld [vmem:[%s0 + $0x50] sm:$0xff]
  %v24 = vld [vmem:[%s0 + $0x58] sm:$0xff]
  %v25 = vld [vmem:[%s0 + $0x60] sm:$0xff]
  %v26 = vld [vmem:[%s0 + $0x68] sm:$0xff]
  %v27 = vld [vmem:[%s0 + $0x70] sm:$0xff]
  %v28 = vld [vmem:[%s0 + $0x78] sm:$0xff]
  %v29 = vld [vmem:[%s0 + $0x80] sm:$0xff]
  %v30 = vld [vmem:[%s0 + $0x88] sm:$0xff]
  %v31 = vld [vmem:[%s0 + $0x90] sm:$0xff]
  %v32 = vld [vmem:[%s0 + $0x98] sm:$0xff]
  %v33 = vld [vmem:[%s0 + $0xa0] sm:$0xff]
  %v34 = vld [vmem:[%s0 + $0xa8] sm:$0xff]
  %v35 = vld [vmem:[%s0 + $0xb0] sm:$0xff]
  %v36 = vld [vmem:[%s0 + $0xb8] sm:$0xff]
  %v37 = vld [vmem:[%s0 + $0xc0] sm:$0xff]
  %v38 = vld [vmem:[%s0 + $0xc8] sm:$0xff]
  %v39 = vld [vmem:[%s0 + $0xd0] sm:$0xff]
  %v40 = vld [vmem:[%s0 + $0xd8] sm:$0xff]
  %v41 = vld [vmem:[%s0 + $0xe0] sm:$0xff]
  %v42 = vld [vmem:[%s0 + $0xe8] sm:$0xff]
  %v43 = vld [vmem:[%s0 + $0xf0] sm:$0xff]
  %v44 = vld [vmem:[%s0 + $0xf8] sm:$0xff]
  %v45 = vld [vmem:[%s1] sm:$0xff]
  %v46 = vld [vmem:[%s1 + $0x8] sm:$0xff]
  %v47 = vld [vmem:[%s1 + $0x10] sm:$0xf]
  %v48 = vld [vmem:[%s1 + $0x14] sm:$0xff]
  %v49 = vld [vmem:[%s1 + $0x1c] sm:$0xff]
  %v50 = vld [vmem:[%s1 + $0x24] sm:$0xf]
  %v51 = vld [vmem:[%s1 + $0x28] sm:$0xff]
  %v52 = vld [vmem:[%s1 + $0x30] sm:$0xff]
  %v53 = vld [vmem:[%s1 + $0x38] sm:$0xf]
  %v54 = vld [vmem:[%s1 + $0x3c] sm:$0xff]
  %v55 = vld [vmem:[%s1 + $0x44] sm:$0xff]
  %v56 = vld [vmem:[%s1 + $0x4c] sm:$0xf]
  %v57 = vld [vmem:[%s1 + $0x50] sm:$0xff]
  %v58 = vld [vmem:[%s1 + $0x58] sm:$0xff]
  %v59 = vld [vmem:[%s1 + $0x60] sm:$0xf]
  %v60 = vld [vmem:[%s1 + $0x64] sm:$0xff]
  %v61 = vld [vmem:[%s1 + $0x6c] sm:$0xff]
  %v62 = vld [vmem:[%s1 + $0x74] sm:$0xf]
  %v63 = vld [vmem:[%s1 + $0x78] sm:$0xff]
  %v64 = vld [vmem:[%s1 + $0x80] sm:$0xff]
  %v65 = vld [vmem:[%s1 + $0x88] sm:$0xf]
  %v66 = vld [vmem:[%s1 + $0x8c] sm:$0xff]
  %v67 = vld [vmem:[%s1 + $0x94] sm:$0xff]
  %v68 = vld [vmem:[%s1 + $0x9c] sm:$0xf]
  %v69 = vld [vmem:[%s1 + $0xa0] sm:$0xff]
  %v70 = vld [vmem:[%s1 + $0xa8] sm:$0xff]
  %v71 = vld [vmem:[%s1 + $0xb0] sm:$0xf]
  %v72 = vld [vmem:[%s1 + $0xb4] sm:$0xff]
  %v73 = vld [vmem:[%s1 + $0xbc] sm:$0xff]
  %v74 = vld [vmem:[%s1 + $0xc4] sm:$0xf]
  %v75 = vld [vmem:[%s1 + $0xc8] sm:$0xff]
  %v76 = vld [vmem:[%s1 + $0xd0] sm:$0xff]
  %v77 = vld [vmem:[%s1 + $0xd8] sm:$0xf]
  %v78 = vld [vmem:[%s1 + $0xdc] sm:$0xff]
  %v79 = vld [vmem:[%s1 + $0xe4] sm:$0xff]
  %v80 = vld [vmem:[%s1 + $0xec] sm:$0xf]
  %v81 = vld [vmem:[%s1 + $0xf0] sm:$0xff]
  %v82 = vld [vmem:[%s1 + $0xf8] sm:$0xff]
  %v83 = vld [vmem:[%s1 + $0x100] sm:$0xf]
  %v84 = vld [vmem:[%s1 + $0x104] sm:$0xff]
  %v85 = vld [vmem:[%s1 + $0x10c] sm:$0xff]
  %v86 = vld [vmem:[%s1 + $0x114] sm:$0xf]
  %v87 = vld [vmem:[%s1 + $0x118] sm:$0xff]
  %v88 = vld [vmem:[%s1 + $0x120] sm:$0xff]
  %v89 = vld [vmem:[%s1 + $0x128] sm:$0xf]
  %v90 = vld [vmem:[%s1 + $0x12c] sm:$0xff]
  %v91 = vld [vmem:[%s1 + $0x134] sm:$0xff]
  %v92 = vld [vmem:[%s1 + $0x13c] sm:$0xf]
  %v93 = vld [vmem:[%s1 + $0x140] sm:$0xff]
  %v94 = vld [vmem:[%s1 + $0x148] sm:$0xff]
  %v95 = vld [vmem:[%s1 + $0x150] sm:$0xf]
  %v96 = vld [vmem:[%s1 + $0x154] sm:$0xff]
  %v97 = vld [vmem:[%s1 + $0x15c] sm:$0xff]
  %v98 = vld [vmem:[%s1 + $0x164] sm:$0xf]
  %v99 = vld [vmem:[%s1 + $0x168] sm:$0xff]
  %v100 = vld [vmem:[%s1 + $0x170] sm:$0xff]
  %v101 = vld [vmem:[%s1 + $0x178] sm:$0xf]
  %v102 = vld [vmem:[%s1 + $0x17c] sm:$0xff]
  %v103 = vld [vmem:[%s1 + $0x184] sm:$0xff]
  %v104 = vld [vmem:[%s1 + $0x18c] sm:$0xf]
  %v105 = vld [vmem:[%s1 + $0x190] sm:$0xff]
  %v106 = vld [vmem:[%s1 + $0x198] sm:$0xff]
  %v107 = vld [vmem:[%s1 + $0x1a0] sm:$0xf]
  %v108 = vld [vmem:[%s1 + $0x1a4] sm:$0xff]
  %v109 = vld [vmem:[%s1 + $0x1ac] sm:$0xff]
  %v110 = vld [vmem:[%s1 + $0x1b4] sm:$0xf]
  %v111 = vld [vmem:[%s1 + $0x1b8] sm:$0xff]
  %v112 = vld [vmem:[%s1 + $0x1c0] sm:$0xff]
  %v113 = vld [vmem:[%s1 + $0x1c8] sm:$0xf]
  %v114 = vld [vmem:[%s1 + $0x1cc] sm:$0xff]
  %v115 = vld [vmem:[%s1 + $0x1d4] sm:$0xff]
  %v116 = vld [vmem:[%s1 + $0x1dc] sm:$0xf]
  %v117 = vld [vmem:[%s1 + $0x1e0] sm:$0xff]
  %v118 = vld [vmem:[%s1 + $0x1e8] sm:$0xff]
  %v119 = vld [vmem:[%s1 + $0x1f0] sm:$0xf]
  %v120 = vld [vmem:[%s1 + $0x1f4] sm:$0xff]
  %v121 = vld [vmem:[%s1 + $0x1fc] sm:$0xff]
  %v122 = vld [vmem:[%s1 + $0x204] sm:$0xf]
  %v123 = vld [vmem:[%s1 + $0x208] sm:$0xff]
  %v124 = vld [vmem:[%s1 + $0x210] sm:$0xff]
  %v125 = vld [vmem:[%s1 + $0x218] sm:$0xf]
  %v126 = vld [vmem:[%s1 + $0x21c] sm:$0xff]
  %v127 = vld [vmem:[%s1 + $0x224] sm:$0xff]
  %v128 = vld [vmem:[%s1 + $0x22c] sm:$0xf]
  %v129 = vld [vmem:[%s1 + $0x230] sm:$0xff]
  %v130 = vld [vmem:[%s1 + $0x238] sm:$0xff]
  %v131 = vld [vmem:[%s1 + $0x240] sm:$0xf]
  %v132 = vld [vmem:[%s1 + $0x244] sm:$0xff]
  %v133 = vld [vmem:[%s1 + $0x24c] sm:$0xff]
  %v134 = vld [vmem:[%s1 + $0x254] sm:$0xf]
  %v135 = vld [vmem:[%s1 + $0x258] sm:$0xff]
  %v136 = vld [vmem:[%s1 + $0x260] sm:$0xff]
  %v137 = vld [vmem:[%s1 + $0x268] sm:$0xf]
  %v138 = vld [vmem:[%s1 + $0x26c] sm:$0xff]
  %v139 = vld [vmem:[%s1 + $0x274] sm:$0xff]
  %v140 = vld [vmem:[%s1 + $0x27c] sm:$0xf]
  %v173 = vunpack.c.l.b16 %v13
  %v174 = vunpack.c.h.b16 %v13
  %v175 = vunpack.c.l.b16 %v14
  %v176 = vunpack.c.h.b16 %v14
  %v177 = vunpack.c.l.b16 %v15
  %v178 = vunpack.c.h.b16 %v15
  %v179 = vunpack.c.l.b16 %v16
  %v180 = vunpack.c.h.b16 %v16
  %v181 = vunpack.c.l.b16 %v17
  %v182 = vunpack.c.h.b16 %v17
  %v183 = vunpack.c.l.b16 %v18
  %v184 = vunpack.c.h.b16 %v18
  %v185 = vunpack.c.l.b16 %v19
  %v186 = vunpack.c.h.b16 %v19
  %v187 = vunpack.c.l.b16 %v20
  %v188 = vunpack.c.h.b16 %v20
  %v189 = vunpack.c.l.b16 %v21
  %v190 = vunpack.c.h.b16 %v21
  %v191 = vunpack.c.l.b16 %v22
  %v192 = vunpack.c.h.b16 %v22
  %v193 = vunpack.c.l.b16 %v23
  %v194 = vunpack.c.h.b16 %v23
  %v195 = vunpack.c.l.b16 %v24
  %v196 = vunpack.c.h.b16 %v24
  %v197 = vunpack.c.l.b16 %v25
  %v198 = vunpack.c.h.b16 %v25
  %v199 = vunpack.c.l.b16 %v26
  %v200 = vunpack.c.h.b16 %v26
  %v201 = vunpack.c.l.b16 %v27
  %v202 = vunpack.c.h.b16 %v27
  %v203 = vunpack.c.l.b16 %v28
  %v204 = vunpack.c.h.b16 %v28
  %v205 = vunpack.c.l.b16 %v29
  %v206 = vunpack.c.h.b16 %v29
  %v207 = vunpack.c.l.b16 %v30
  %v208 = vunpack.c.h.b16 %v30
  %v209 = vunpack.c.l.b16 %v31
  %v210 = vunpack.c.h.b16 %v31
  %v211 = vunpack.c.l.b16 %v32
  %v212 = vunpack.c.h.b16 %v32
  %v213 = vunpack.c.l.b16 %v33
  %v214 = vunpack.c.h.b16 %v33
  %v215 = vunpack.c.l.b16 %v34
  %v216 = vunpack.c.h.b16 %v34
  %v217 = vunpack.c.l.b16 %v35
  %v218 = vunpack.c.h.b16 %v35
  %v219 = vunpack.c.l.b16 %v36
  %v220 = vunpack.c.h.b16 %v36
  %v221 = vunpack.c.l.b16 %v37
  %v222 = vunpack.c.h.b16 %v37
  %v223 = vunpack.c.l.b16 %v38
  %v224 = vunpack.c.h.b16 %v38
  %v225 = vunpack.c.l.b16 %v39
  %v226 = vunpack.c.h.b16 %v39
  %v227 = vunpack.c.l.b16 %v40
  %v228 = vunpack.c.h.b16 %v40
  %v229 = vunpack.c.l.b16 %v41
  %v230 = vunpack.c.h.b16 %v41
  %v231 = vunpack.c.l.b16 %v42
  %v232 = vunpack.c.h.b16 %v42
  %v233 = vunpack.c.l.b16 %v43
  %v234 = vunpack.c.h.b16 %v43
  %v235 = vunpack.c.l.b16 %v44
  %v236 = vunpack.c.h.b16 %v44
  %v237 = vpack.c.b16 %v175, %v173
  %v238 = vpack.c.b16 %v176, %v174
  %v239 = vpack.c.b16 %v179, %v177
  %v240 = vpack.c.b16 %v180, %v178
  %v241 = vpack.c.b16 %v183, %v181
  %v242 = vpack.c.b16 %v184, %v182
  %v243 = vpack.c.b16 %v187, %v185
  %v244 = vpack.c.b16 %v188, %v186
  %v245 = vpack.c.b16 %v191, %v189
  %v246 = vpack.c.b16 %v192, %v190
  %v247 = vpack.c.b16 %v195, %v193
  %v248 = vpack.c.b16 %v196, %v194
  %v249 = vpack.c.b16 %v199, %v197
  %v250 = vpack.c.b16 %v200, %v198
  %v251 = vpack.c.b16 %v203, %v201
  %v252 = vpack.c.b16 %v204, %v202
  %v253 = vpack.c.b16 %v207, %v205
  %v254 = vpack.c.b16 %v208, %v206
  %v255 = vpack.c.b16 %v211, %v209
  %v256 = vpack.c.b16 %v212, %v210
  %v257 = vpack.c.b16 %v215, %v213
  %v258 = vpack.c.b16 %v216, %v214
  %v259 = vpack.c.b16 %v219, %v217
  %v260 = vpack.c.b16 %v220, %v218
  %v261 = vpack.c.b16 %v223, %v221
  %v262 = vpack.c.b16 %v224, %v222
  %v263 = vpack.c.b16 %v227, %v225
  %v264 = vpack.c.b16 %v228, %v226
  %v265 = vpack.c.b16 %v231, %v229
  %v266 = vpack.c.b16 %v232, %v230
  %v267 = vpack.c.b16 %v235, %v233
  %v268 = vpack.c.b16 %v236, %v234
  %v397 = vunpack.c.l.b16 %v45
  %v398 = vunpack.c.h.b16 %v45
  %v399 = vunpack.c.l.b16 %v46
  %v400 = vunpack.c.h.b16 %v46
  %v401 = vunpack.c.l.b16 %v47
  %v402 = vunpack.c.l.b16 %v48
  %v403 = vunpack.c.h.b16 %v48
  %v404 = vunpack.c.l.b16 %v49
  %v405 = vunpack.c.h.b16 %v49
  %v406 = vunpack.c.l.b16 %v50
  %v407 = vunpack.c.l.b16 %v51
  %v408 = vunpack.c.h.b16 %v51
  %v409 = vunpack.c.l.b16 %v52
  %v410 = vunpack.c.h.b16 %v52
  %v411 = vunpack.c.l.b16 %v53
  %v412 = vunpack.c.l.b16 %v54
  %v413 = vunpack.c.h.b16 %v54
  %v414 = vunpack.c.l.b16 %v55
  %v415 = vunpack.c.h.b16 %v55
  %v416 = vunpack.c.l.b16 %v56
  %v417 = vunpack.c.l.b16 %v57
  %v418 = vunpack.c.h.b16 %v57
  %v419 = vunpack.c.l.b16 %v58
  %v420 = vunpack.c.h.b16 %v58
  %v421 = vunpack.c.l.b16 %v59
  %v422 = vunpack.c.l.b16 %v60
  %v423 = vunpack.c.h.b16 %v60
  %v424 = vunpack.c.l.b16 %v61
  %v425 = vunpack.c.h.b16 %v61
  %v426 = vunpack.c.l.b16 %v62
  %v427 = vunpack.c.l.b16 %v63
  %v428 = vunpack.c.h.b16 %v63
  %v429 = vunpack.c.l.b16 %v64
  %v430 = vunpack.c.h.b16 %v64
  %v431 = vunpack.c.l.b16 %v65
  %v432 = vunpack.c.l.b16 %v66
  %v433 = vunpack.c.h.b16 %v66
  %v434 = vunpack.c.l.b16 %v67
  %v435 = vunpack.c.h.b16 %v67
  %v436 = vunpack.c.l.b16 %v68
  %v437 = vunpack.c.l.b16 %v69
  %v438 = vunpack.c.h.b16 %v69
  %v439 = vunpack.c.l.b16 %v70
  %v440 = vunpack.c.h.b16 %v70
  %v441 = vunpack.c.l.b16 %v71
  %v442 = vunpack.c.l.b16 %v72
  %v443 = vunpack.c.h.b16 %v72
  %v444 = vunpack.c.l.b16 %v73
  %v445 = vunpack.c.h.b16 %v73
  %v446 = vunpack.c.l.b16 %v74
  %v447 = vunpack.c.l.b16 %v75
  %v448 = vunpack.c.h.b16 %v75
  %v449 = vunpack.c.l.b16 %v76
  %v450 = vunpack.c.h.b16 %v76
  %v451 = vunpack.c.l.b16 %v77
  %v452 = vunpack.c.l.b16 %v78
  %v453 = vunpack.c.h.b16 %v78
  %v454 = vunpack.c.l.b16 %v79
  %v455 = vunpack.c.h.b16 %v79
  %v456 = vunpack.c.l.b16 %v80
  %v457 = vunpack.c.l.b16 %v81
  %v458 = vunpack.c.h.b16 %v81
  %v459 = vunpack.c.l.b16 %v82
  %v460 = vunpack.c.h.b16 %v82
  %v461 = vunpack.c.l.b16 %v83
  %v462 = vunpack.c.l.b16 %v84
  %v463 = vunpack.c.h.b16 %v84
  %v464 = vunpack.c.l.b16 %v85
  %v465 = vunpack.c.h.b16 %v85
  %v466 = vunpack.c.l.b16 %v86
  %v467 = vunpack.c.l.b16 %v87
  %v468 = vunpack.c.h.b16 %v87
  %v469 = vunpack.c.l.b16 %v88
  %v470 = vunpack.c.h.b16 %v88
  %v471 = vunpack.c.l.b16 %v89
  %v472 = vunpack.c.l.b16 %v90
  %v473 = vunpack.c.h.b16 %v90
  %v474 = vunpack.c.l.b16 %v91
  %v475 = vunpack.c.h.b16 %v91
  %v476 = vunpack.c.l.b16 %v92
  %v477 = vunpack.c.l.b16 %v93
  %v478 = vunpack.c.h.b16 %v93
  %v479 = vunpack.c.l.b16 %v94
  %v480 = vunpack.c.h.b16 %v94
  %v481 = vunpack.c.l.b16 %v95
  %v482 = vunpack.c.l.b16 %v96
  %v483 = vunpack.c.h.b16 %v96
  %v484 = vunpack.c.l.b16 %v97
  %v485 = vunpack.c.h.b16 %v97
  %v486 = vunpack.c.l.b16 %v98
  %v487 = vunpack.c.l.b16 %v99
  %v488 = vunpack.c.h.b16 %v99
  %v489 = vunpack.c.l.b16 %v100
  %v490 = vunpack.c.h.b16 %v100
  %v491 = vunpack.c.l.b16 %v101
  %v492 = vunpack.c.l.b16 %v102
  %v493 = vunpack.c.h.b16 %v102
  %v494 = vunpack.c.l.b16 %v103
  %v495 = vunpack.c.h.b16 %v103
  %v496 = vunpack.c.l.b16 %v104
  %v497 = vunpack.c.l.b16 %v105
  %v498 = vunpack.c.h.b16 %v105
  %v499 = vunpack.c.l.b16 %v106
  %v500 = vunpack.c.h.b16 %v106
  %v501 = vunpack.c.l.b16 %v107
  %v502 = vunpack.c.l.b16 %v108
  %v503 = vunpack.c.h.b16 %v108
  %v504 = vunpack.c.l.b16 %v109
  %v505 = vunpack.c.h.b16 %v109
  %v506 = vunpack.c.l.b16 %v110
  %v507 = vunpack.c.l.b16 %v111
  %v508 = vunpack.c.h.b16 %v111
  %v509 = vunpack.c.l.b16 %v112
  %v510 = vunpack.c.h.b16 %v112
  %v511 = vunpack.c.l.b16 %v113
  %v512 = vunpack.c.l.b16 %v114
  %v513 = vunpack.c.h.b16 %v114
  %v514 = vunpack.c.l.b16 %v115
  %v515 = vunpack.c.h.b16 %v115
  %v516 = vunpack.c.l.b16 %v116
  %v517 = vunpack.c.l.b16 %v117
  %v518 = vunpack.c.h.b16 %v117
  %v519 = vunpack.c.l.b16 %v118
  %v520 = vunpack.c.h.b16 %v118
  %v521 = vunpack.c.l.b16 %v119
  %v522 = vunpack.c.l.b16 %v120
  %v523 = vunpack.c.h.b16 %v120
  %v524 = vunpack.c.l.b16 %v121
  %v525 = vunpack.c.h.b16 %v121
  %v526 = vunpack.c.l.b16 %v122
  %v527 = vunpack.c.l.b16 %v123
  %v528 = vunpack.c.h.b16 %v123
  %v529 = vunpack.c.l.b16 %v124
  %v530 = vunpack.c.h.b16 %v124
  %v531 = vunpack.c.l.b16 %v125
  %v532 = vunpack.c.l.b16 %v126
  %v533 = vunpack.c.h.b16 %v126
  %v534 = vunpack.c.l.b16 %v127
  %v535 = vunpack.c.h.b16 %v127
  %v536 = vunpack.c.l.b16 %v128
  %v537 = vunpack.c.l.b16 %v129
  %v538 = vunpack.c.h.b16 %v129
  %v539 = vunpack.c.l.b16 %v130
  %v540 = vunpack.c.h.b16 %v130
  %v541 = vunpack.c.l.b16 %v131
  %v542 = vunpack.c.l.b16 %v132
  %v543 = vunpack.c.h.b16 %v132
  %v544 = vunpack.c.l.b16 %v133
  %v545 = vunpack.c.h.b16 %v133
  %v546 = vunpack.c.l.b16 %v134
  %v547 = vunpack.c.l.b16 %v135
  %v548 = vunpack.c.h.b16 %v135
  %v549 = vunpack.c.l.b16 %v136
  %v550 = vunpack.c.h.b16 %v136
  %v551 = vunpack.c.l.b16 %v137
  %v552 = vunpack.c.l.b16 %v138
  %v553 = vunpack.c.h.b16 %v138
  %v554 = vunpack.c.l.b16 %v139
  %v555 = vunpack.c.h.b16 %v139
  %v556 = vunpack.c.l.b16 %v140
  %v557 = vpack.c.b16 %v402, %v397
  %v558 = vpack.c.b16 %v403, %v398
  %v559 = vpack.c.b16 %v404, %v399
  %v560 = vpack.c.b16 %v405, %v400
  %v561 = vpack.c.b16 %v406, %v401
  %v562 = vpack.c.b16 %v412, %v407
  %v563 = vpack.c.b16 %v413, %v408
  %v564 = vpack.c.b16 %v414, %v409
  %v565 = vpack.c.b16 %v415, %v410
  %v566 = vpack.c.b16 %v416, %v411
  %v567 = vpack.c.b16 %v422, %v417
  %v568 = vpack.c.b16 %v423, %v418
  %v569 = vpack.c.b16 %v424, %v419
  %v570 = vpack.c.b16 %v425, %v420
  %v571 = vpack.c.b16 %v426, %v421
  %v572 = vpack.c.b16 %v432, %v427
  %v573 = vpack.c.b16 %v433, %v428
  %v574 = vpack.c.b16 %v434, %v429
  %v575 = vpack.c.b16 %v435, %v430
  %v576 = vpack.c.b16 %v436, %v431
  %v577 = vpack.c.b16 %v442, %v437
  %v578 = vpack.c.b16 %v443, %v438
  %v579 = vpack.c.b16 %v444, %v439
  %v580 = vpack.c.b16 %v445, %v440
  %v581 = vpack.c.b16 %v446, %v441
  %v582 = vpack.c.b16 %v452, %v447
  %v583 = vpack.c.b16 %v453, %v448
  %v584 = vpack.c.b16 %v454, %v449
  %v585 = vpack.c.b16 %v455, %v450
  %v586 = vpack.c.b16 %v456, %v451
  %v587 = vpack.c.b16 %v462, %v457
  %v588 = vpack.c.b16 %v463, %v458
  %v589 = vpack.c.b16 %v464, %v459
  %v590 = vpack.c.b16 %v465, %v460
  %v591 = vpack.c.b16 %v466, %v461
  %v592 = vpack.c.b16 %v472, %v467
  %v593 = vpack.c.b16 %v473, %v468
  %v594 = vpack.c.b16 %v474, %v469
  %v595 = vpack.c.b16 %v475, %v470
  %v596 = vpack.c.b16 %v476, %v471
  %v597 = vpack.c.b16 %v482, %v477
  %v598 = vpack.c.b16 %v483, %v478
  %v599 = vpack.c.b16 %v484, %v479
  %v600 = vpack.c.b16 %v485, %v480
  %v601 = vpack.c.b16 %v486, %v481
  %v602 = vpack.c.b16 %v492, %v487
  %v603 = vpack.c.b16 %v493, %v488
  %v604 = vpack.c.b16 %v494, %v489
  %v605 = vpack.c.b16 %v495, %v490
  %v606 = vpack.c.b16 %v496, %v491
  %v607 = vpack.c.b16 %v502, %v497
  %v608 = vpack.c.b16 %v503, %v498
  %v609 = vpack.c.b16 %v504, %v499
  %v610 = vpack.c.b16 %v505, %v500
  %v611 = vpack.c.b16 %v506, %v501
  %v612 = vpack.c.b16 %v512, %v507
  %v613 = vpack.c.b16 %v513, %v508
  %v614 = vpack.c.b16 %v514, %v509
  %v615 = vpack.c.b16 %v515, %v510
  %v616 = vpack.c.b16 %v516, %v511
  %v617 = vpack.c.b16 %v522, %v517
  %v618 = vpack.c.b16 %v523, %v518
  %v619 = vpack.c.b16 %v524, %v519
  %v620 = vpack.c.b16 %v525, %v520
  %v621 = vpack.c.b16 %v526, %v521
  %v622 = vpack.c.b16 %v532, %v527
  %v623 = vpack.c.b16 %v533, %v528
  %v624 = vpack.c.b16 %v534, %v529
  %v625 = vpack.c.b16 %v535, %v530
  %v626 = vpack.c.b16 %v536, %v531
  %v627 = vpack.c.b16 %v542, %v537
  %v628 = vpack.c.b16 %v543, %v538
  %v629 = vpack.c.b16 %v544, %v539
  %v630 = vpack.c.b16 %v545, %v540
  %v631 = vpack.c.b16 %v546, %v541
  %v632 = vpack.c.b16 %v552, %v547
  %v633 = vpack.c.b16 %v553, %v548
  %v634 = vpack.c.b16 %v554, %v549
  %v635 = vpack.c.b16 %v555, %v550
  %v636 = vpack.c.b16 %v556, %v551
  %717 = vmatpush.bf16.msra.mxu0 %v592
  %718 = vmatpush.bf16.msra.mxu0 %v587
  %719 = vmatpush.bf16.msra.mxu0 %v582
  %720 = vmatpush.bf16.msra.mxu0 %v577
  %721 = vmatpush.bf16.msra.mxu0 %v572
  %722 = vmatpush.bf16.msra.mxu0 %v567
  %723 = vmatpush.bf16.msra.mxu0 %v562
  %724 = vmatpush.bf16.msra.mxu0 %v557
  %725 = vmatmul.bf16.gmra.mxu0 %v237
  %v726 = vpop.f32.mrf.mxu0
  %v727 = vadd.f32 0.0, %v726
  %v728 = vpop.f32.mrf.mxu0
  %v729 = vadd.f32 0.0, %v728
  %730 = vmatmul.bf16.gmra.mxu0 %v239
  %v731 = vpop.f32.mrf.mxu0
  %v732 = vadd.f32 0.0, %v731
  %v733 = vpop.f32.mrf.mxu0
  %v734 = vadd.f32 0.0, %v733
  %735 = vmatmul.bf16.gmra.mxu0 %v241
  %v736 = vpop.f32.mrf.mxu0
  %v737 = vadd.f32 0.0, %v736
  %v738 = vpop.f32.mrf.mxu0
  %v739 = vadd.f32 0.0, %v738
  %740 = vmatmul.bf16.gmra.mxu0 %v243
  %v741 = vpop.f32.mrf.mxu0
  %v742 = vadd.f32 0.0, %v741
  %v743 = vpop.f32.mrf.mxu0
  %v744 = vadd.f32 0.0, %v743
  %745 = vmatmul.bf16.gmra.mxu0 %v245
  %v746 = vpop.f32.mrf.mxu0
  %v747 = vadd.f32 0.0, %v746
  %v748 = vpop.f32.mrf.mxu0
  %v749 = vadd.f32 0.0, %v748
  %750 = vmatmul.bf16.gmra.mxu0 %v247
  %v751 = vpop.f32.mrf.mxu0
  %v752 = vadd.f32 0.0, %v751
  %v753 = vpop.f32.mrf.mxu0
  %v754 = vadd.f32 0.0, %v753
  %755 = vmatmul.bf16.gmra.mxu0 %v249
  %v756 = vpop.f32.mrf.mxu0
  %v757 = vadd.f32 0.0, %v756
  %v758 = vpop.f32.mrf.mxu0
  %v759 = vadd.f32 0.0, %v758
  %760 = vmatmul.bf16.gmra.mxu0 %v251
  %v761 = vpop.f32.mrf.mxu0
  %v762 = vadd.f32 0.0, %v761
  %v763 = vpop.f32.mrf.mxu0
  %v764 = vadd.f32 0.0, %v763
  %765 = vmatmul.bf16.gmra.mxu0 %v253
  %v766 = vpop.f32.mrf.mxu0
  %v767 = vadd.f32 0.0, %v766
  %v768 = vpop.f32.mrf.mxu0
  %v769 = vadd.f32 0.0, %v768
  %770 = vmatmul.bf16.gmra.mxu0 %v255
  %v771 = vpop.f32.mrf.mxu0
  %v772 = vadd.f32 0.0, %v771
  %v773 = vpop.f32.mrf.mxu0
  %v774 = vadd.f32 0.0, %v773
  %775 = vmatmul.bf16.gmra.mxu0 %v257
  %v776 = vpop.f32.mrf.mxu0
  %v777 = vadd.f32 0.0, %v776
  %v778 = vpop.f32.mrf.mxu0
  %v779 = vadd.f32 0.0, %v778
  %780 = vmatmul.bf16.gmra.mxu0 %v259
  %v781 = vpop.f32.mrf.mxu0
  %v782 = vadd.f32 0.0, %v781
  %v783 = vpop.f32.mrf.mxu0
  %v784 = vadd.f32 0.0, %v783
  %785 = vmatmul.bf16.gmra.mxu0 %v261
  %v786 = vpop.f32.mrf.mxu0
  %v787 = vadd.f32 0.0, %v786
  %v788 = vpop.f32.mrf.mxu0
  %v789 = vadd.f32 0.0, %v788
  %790 = vmatmul.bf16.gmra.mxu0 %v263
  %v791 = vpop.f32.mrf.mxu0
  %v792 = vadd.f32 0.0, %v791
  %v793 = vpop.f32.mrf.mxu0
  %v794 = vadd.f32 0.0, %v793
  %795 = vmatmul.bf16.gmra.mxu0 %v265
  %v796 = vpop.f32.mrf.mxu0
  %v797 = vadd.f32 0.0, %v796
  %v798 = vpop.f32.mrf.mxu0
  %v799 = vadd.f32 0.0, %v798
  %800 = vmatmul.bf16.gmra.mxu0 %v267
  %v801 = vpop.f32.mrf.mxu0
  %v802 = vadd.f32 0.0, %v801
  %v803 = vpop.f32.mrf.mxu0
  %v804 = vadd.f32 0.0, %v803
  %805 = vdwg.mxu0
  %806 = vmatpush.bf16.msra.mxu0 %v632
  %807 = vmatpush.bf16.msra.mxu0 %v627
  %808 = vmatpush.bf16.msra.mxu0 %v622
  %809 = vmatpush.bf16.msra.mxu0 %v617
  %810 = vmatpush.bf16.msra.mxu0 %v612
  %811 = vmatpush.bf16.msra.mxu0 %v607
  %812 = vmatpush.bf16.msra.mxu0 %v602
  %813 = vmatpush.bf16.msra.mxu0 %v597
  %814 = vmatmul.bf16.gmra.mxu0 %v238
  %v815 = vpop.f32.mrf.mxu0
  %v816 = vadd.f32 %v727, %v815
  %v817 = vpop.f32.mrf.mxu0
  %v818 = vadd.f32 %v729, %v817
  %819 = vmatmul.bf16.gmra.mxu0 %v240
  %v820 = vpop.f32.mrf.mxu0
  %v821 = vadd.f32 %v732, %v820
  %v822 = vpop.f32.mrf.mxu0
  %v823 = vadd.f32 %v734, %v822
  %824 = vmatmul.bf16.gmra.mxu0 %v242
  %v825 = vpop.f32.mrf.mxu0
  %v826 = vadd.f32 %v737, %v825
  %v827 = vpop.f32.mrf.mxu0
  %v828 = vadd.f32 %v739, %v827
  %829 = vmatmul.bf16.gmra.mxu0 %v244
  %v830 = vpop.f32.mrf.mxu0
  %v831 = vadd.f32 %v742, %v830
  %v832 = vpop.f32.mrf.mxu0
  %v833 = vadd.f32 %v744, %v832
  %834 = vmatmul.bf16.gmra.mxu0 %v246
  %v835 = vpop.f32.mrf.mxu0
  %v836 = vadd.f32 %v747, %v835
  %v837 = vpop.f32.mrf.mxu0
  %v838 = vadd.f32 %v749, %v837
  %839 = vmatmul.bf16.gmra.mxu0 %v248
  %v840 = vpop.f32.mrf.mxu0
  %v841 = vadd.f32 %v752, %v840
  %v842 = vpop.f32.mrf.mxu0
  %v843 = vadd.f32 %v754, %v842
  %844 = vmatmul.bf16.gmra.mxu0 %v250
  %v845 = vpop.f32.mrf.mxu0
  %v846 = vadd.f32 %v757, %v845
  %v847 = vpop.f32.mrf.mxu0
  %v848 = vadd.f32 %v759, %v847
  %849 = vmatmul.bf16.gmra.mxu0 %v252
  %v850 = vpop.f32.mrf.mxu0
  %v851 = vadd.f32 %v762, %v850
  %v852 = vpop.f32.mrf.mxu0
  %v853 = vadd.f32 %v764, %v852
  %854 = vmatmul.bf16.gmra.mxu0 %v254
  %v855 = vpop.f32.mrf.mxu0
  %v856 = vadd.f32 %v767, %v855
  %v857 = vpop.f32.mrf.mxu0
  %v858 = vadd.f32 %v769, %v857
  %859 = vmatmul.bf16.gmra.mxu0 %v256
  %v860 = vpop.f32.mrf.mxu0
  %v861 = vadd.f32 %v772, %v860
  %v862 = vpop.f32.mrf.mxu0
  %v863 = vadd.f32 %v774, %v862
  %864 = vmatmul.bf16.gmra.mxu0 %v258
  %v865 = vpop.f32.mrf.mxu0
  %v866 = vadd.f32 %v777, %v865
  %v867 = vpop.f32.mrf.mxu0
  %v868 = vadd.f32 %v779, %v867
  %869 = vmatmul.bf16.gmra.mxu0 %v260
  %v870 = vpop.f32.mrf.mxu0
  %v871 = vadd.f32 %v782, %v870
  %v872 = vpop.f32.mrf.mxu0
  %v873 = vadd.f32 %v784, %v872
  %874 = vmatmul.bf16.gmra.mxu0 %v262
  %v875 = vpop.f32.mrf.mxu0
  %v876 = vadd.f32 %v787, %v875
  %v877 = vpop.f32.mrf.mxu0
  %v878 = vadd.f32 %v789, %v877
  %879 = vmatmul.bf16.gmra.mxu0 %v264
  %v880 = vpop.f32.mrf.mxu0
  %v881 = vadd.f32 %v792, %v880
  %v882 = vpop.f32.mrf.mxu0
  %v883 = vadd.f32 %v794, %v882
  %884 = vmatmul.bf16.gmra.mxu0 %v266
  %v885 = vpop.f32.mrf.mxu0
  %v886 = vadd.f32 %v797, %v885
  %v887 = vpop.f32.mrf.mxu0
  %v888 = vadd.f32 %v799, %v887
  %889 = vmatmul.bf16.gmra.mxu0 %v268
  %v890 = vpop.f32.mrf.mxu0
  %v891 = vadd.f32 %v802, %v890
  %v892 = vpop.f32.mrf.mxu0
  %v893 = vadd.f32 %v804, %v892
  %894 = vdwg.mxu0
  %895 = vmatpush.bf16.msra.mxu0 %v593
  %896 = vmatpush.bf16.msra.mxu0 %v588
  %897 = vmatpush.bf16.msra.mxu0 %v583
  %898 = vmatpush.bf16.msra.mxu0 %v578
  %899 = vmatpush.bf16.msra.mxu0 %v573
  %900 = vmatpush.bf16.msra.mxu0 %v568
  %901 = vmatpush.bf16.msra.mxu0 %v563
  %902 = vmatpush.bf16.msra.mxu0 %v558
  %903 = vmatmul.bf16.gmra.mxu0 %v237
  %v904 = vpop.f32.mrf.mxu0
  %v905 = vadd.f32 0.0, %v904
  %v906 = vpop.f32.mrf.mxu0
  %v907 = vadd.f32 0.0, %v906
  %908 = vmatmul.bf16.gmra.mxu0 %v239
  %v909 = vpop.f32.mrf.mxu0
  %v910 = vadd.f32 0.0, %v909
  %v911 = vpop.f32.mrf.mxu0
  %v912 = vadd.f32 0.0, %v911
  %913 = vmatmul.bf16.gmra.mxu0 %v241
  %v914 = vpop.f32.mrf.mxu0
  %v915 = vadd.f32 0.0, %v914
  %v916 = vpop.f32.mrf.mxu0
  %v917 = vadd.f32 0.0, %v916
  %918 = vmatmul.bf16.gmra.mxu0 %v243
  %v919 = vpop.f32.mrf.mxu0
  %v920 = vadd.f32 0.0, %v919
  %v921 = vpop.f32.mrf.mxu0
  %v922 = vadd.f32 0.0, %v921
  %923 = vmatmul.bf16.gmra.mxu0 %v245
  %v924 = vpop.f32.mrf.mxu0
  %v925 = vadd.f32 0.0, %v924
  %v926 = vpop.f32.mrf.mxu0
  %v927 = vadd.f32 0.0, %v926
  %928 = vmatmul.bf16.gmra.mxu0 %v247
  %v929 = vpop.f32.mrf.mxu0
  %v930 = vadd.f32 0.0, %v929
  %v931 = vpop.f32.mrf.mxu0
  %v932 = vadd.f32 0.0, %v931
  %933 = vmatmul.bf16.gmra.mxu0 %v249
  %v934 = vpop.f32.mrf.mxu0
  %v935 = vadd.f32 0.0, %v934
  %v936 = vpop.f32.mrf.mxu0
  %v937 = vadd.f32 0.0, %v936
  %938 = vmatmul.bf16.gmra.mxu0 %v251
  %v939 = vpop.f32.mrf.mxu0
  %v940 = vadd.f32 0.0, %v939
  %v941 = vpop.f32.mrf.mxu0
  %v942 = vadd.f32 0.0, %v941
  %943 = vmatmul.bf16.gmra.mxu0 %v253
  %v944 = vpop.f32.mrf.mxu0
  %v945 = vadd.f32 0.0, %v944
  %v946 = vpop.f32.mrf.mxu0
  %v947 = vadd.f32 0.0, %v946
  %948 = vmatmul.bf16.gmra.mxu0 %v255
  %v949 = vpop.f32.mrf.mxu0
  %v950 = vadd.f32 0.0, %v949
  %v951 = vpop.f32.mrf.mxu0
  %v952 = vadd.f32 0.0, %v951
  %953 = vmatmul.bf16.gmra.mxu0 %v257
  %v954 = vpop.f32.mrf.mxu0
  %v955 = vadd.f32 0.0, %v954
  %v956 = vpop.f32.mrf.mxu0
  %v957 = vadd.f32 0.0, %v956
  %958 = vmatmul.bf16.gmra.mxu0 %v259
  %v959 = vpop.f32.mrf.mxu0
  %v960 = vadd.f32 0.0, %v959
  %v961 = vpop.f32.mrf.mxu0
  %v962 = vadd.f32 0.0, %v961
  %963 = vmatmul.bf16.gmra.mxu0 %v261
  %v964 = vpop.f32.mrf.mxu0
  %v965 = vadd.f32 0.0, %v964
  %v966 = vpop.f32.mrf.mxu0
  %v967 = vadd.f32 0.0, %v966
  %968 = vmatmul.bf16.gmra.mxu0 %v263
  %v969 = vpop.f32.mrf.mxu0
  %v970 = vadd.f32 0.0, %v969
  %v971 = vpop.f32.mrf.mxu0
  %v972 = vadd.f32 0.0, %v971
  %973 = vmatmul.bf16.gmra.mxu0 %v265
  %v974 = vpop.f32.mrf.mxu0
  %v975 = vadd.f32 0.0, %v974
  %v976 = vpop.f32.mrf.mxu0
  %v977 = vadd.f32 0.0, %v976
  %978 = vmatmul.bf16.gmra.mxu0 %v267
  %v979 = vpop.f32.mrf.mxu0
  %v980 = vadd.f32 0.0, %v979
  %v981 = vpop.f32.mrf.mxu0
  %v982 = vadd.f32 0.0, %v981
  %983 = vdwg.mxu0
  %984 = vmatpush.bf16.msra.mxu0 %v633
  %985 = vmatpush.bf16.msra.mxu0 %v628
  %986 = vmatpush.bf16.msra.mxu0 %v623
  %987 = vmatpush.bf16.msra.mxu0 %v618
  %988 = vmatpush.bf16.msra.mxu0 %v613
  %989 = vmatpush.bf16.msra.mxu0 %v608
  %990 = vmatpush.bf16.msra.mxu0 %v603
  %991 = vmatpush.bf16.msra.mxu0 %v598
  %992 = vmatmul.bf16.gmra.mxu0 %v238
  %v993 = vpop.f32.mrf.mxu0
  %v994 = vadd.f32 %v905, %v993
  %v995 = vpop.f32.mrf.mxu0
  %v996 = vadd.f32 %v907, %v995
  %997 = vmatmul.bf16.gmra.mxu0 %v240
  %v998 = vpop.f32.mrf.mxu0
  %v999 = vadd.f32 %v910, %v998
  %v1000 = vpop.f32.mrf.mxu0
  %v1001 = vadd.f32 %v912, %v1000
  %1002 = vmatmul.bf16.gmra.mxu0 %v242
  %v1003 = vpop.f32.mrf.mxu0
  %v1004 = vadd.f32 %v915, %v1003
  %v1005 = vpop.f32.mrf.mxu0
  %v1006 = vadd.f32 %v917, %v1005
  %1007 = vmatmul.bf16.gmra.mxu0 %v244
  %v1008 = vpop.f32.mrf.mxu0
  %v1009 = vadd.f32 %v920, %v1008
  %v1010 = vpop.f32.mrf.mxu0
  %v1011 = vadd.f32 %v922, %v1010
  %1012 = vmatmul.bf16.gmra.mxu0 %v246
  %v1013 = vpop.f32.mrf.mxu0
  %v1014 = vadd.f32 %v925, %v1013
  %v1015 = vpop.f32.mrf.mxu0
  %v1016 = vadd.f32 %v927, %v1015
  %1017 = vmatmul.bf16.gmra.mxu0 %v248
  %v1018 = vpop.f32.mrf.mxu0
  %v1019 = vadd.f32 %v930, %v1018
  %v1020 = vpop.f32.mrf.mxu0
  %v1021 = vadd.f32 %v932, %v1020
  %1022 = vmatmul.bf16.gmra.mxu0 %v250
  %v1023 = vpop.f32.mrf.mxu0
  %v1024 = vadd.f32 %v935, %v1023
  %v1025 = vpop.f32.mrf.mxu0
  %v1026 = vadd.f32 %v937, %v1025
  %1027 = vmatmul.bf16.gmra.mxu0 %v252
  %v1028 = vpop.f32.mrf.mxu0
  %v1029 = vadd.f32 %v940, %v1028
  %v1030 = vpop.f32.mrf.mxu0
  %v1031 = vadd.f32 %v942, %v1030
  %1032 = vmatmul.bf16.gmra.mxu0 %v254
  %v1033 = vpop.f32.mrf.mxu0
  %v1034 = vadd.f32 %v945, %v1033
  %v1035 = vpop.f32.mrf.mxu0
  %v1036 = vadd.f32 %v947, %v1035
  %1037 = vmatmul.bf16.gmra.mxu0 %v256
  %v1038 = vpop.f32.mrf.mxu0
  %v1039 = vadd.f32 %v950, %v1038
  %v1040 = vpop.f32.mrf.mxu0
  %v1041 = vadd.f32 %v952, %v1040
  %1042 = vmatmul.bf16.gmra.mxu0 %v258
  %v1043 = vpop.f32.mrf.mxu0
  %v1044 = vadd.f32 %v955, %v1043
  %v1045 = vpop.f32.mrf.mxu0
  %v1046 = vadd.f32 %v957, %v1045
  %1047 = vmatmul.bf16.gmra.mxu0 %v260
  %v1048 = vpop.f32.mrf.mxu0
  %v1049 = vadd.f32 %v960, %v1048
  %v1050 = vpop.f32.mrf.mxu0
  %v1051 = vadd.f32 %v962, %v1050
  %1052 = vmatmul.bf16.gmra.mxu0 %v262
  %v1053 = vpop.f32.mrf.mxu0
  %v1054 = vadd.f32 %v965, %v1053
  %v1055 = vpop.f32.mrf.mxu0
  %v1056 = vadd.f32 %v967, %v1055
  %1057 = vmatmul.bf16.gmra.mxu0 %v264
  %v1058 = vpop.f32.mrf.mxu0
  %v1059 = vadd.f32 %v970, %v1058
  %v1060 = vpop.f32.mrf.mxu0
  %v1061 = vadd.f32 %v972, %v1060
  %1062 = vmatmul.bf16.gmra.mxu0 %v266
  %v1063 = vpop.f32.mrf.mxu0
  %v1064 = vadd.f32 %v975, %v1063
  %v1065 = vpop.f32.mrf.mxu0
  %v1066 = vadd.f32 %v977, %v1065
  %1067 = vmatmul.bf16.gmra.mxu0 %v268
  %v1068 = vpop.f32.mrf.mxu0
  %v1069 = vadd.f32 %v980, %v1068
  %v1070 = vpop.f32.mrf.mxu0
  %v1071 = vadd.f32 %v982, %v1070
  %1072 = vdwg.mxu0
  %1073 = vmatpush.bf16.msra.mxu0 %v594
  %1074 = vmatpush.bf16.msra.mxu0 %v589
  %1075 = vmatpush.bf16.msra.mxu0 %v584
  %1076 = vmatpush.bf16.msra.mxu0 %v579
  %1077 = vmatpush.bf16.msra.mxu0 %v574
  %1078 = vmatpush.bf16.msra.mxu0 %v569
  %1079 = vmatpush.bf16.msra.mxu0 %v564
  %1080 = vmatpush.bf16.msra.mxu0 %v559
  %1081 = vmatmul.bf16.gmra.mxu0 %v237
  %v1082 = vpop.f32.mrf.mxu0
  %v1083 = vadd.f32 0.0, %v1082
  %v1084 = vpop.f32.mrf.mxu0
  %v1085 = vadd.f32 0.0, %v1084
  %1086 = vmatmul.bf16.gmra.mxu0 %v239
  %v1087 = vpop.f32.mrf.mxu0
  %v1088 = vadd.f32 0.0, %v1087
  %v1089 = vpop.f32.mrf.mxu0
  %v1090 = vadd.f32 0.0, %v1089
  %1091 = vmatmul.bf16.gmra.mxu0 %v241
  %v1092 = vpop.f32.mrf.mxu0
  %v1093 = vadd.f32 0.0, %v1092
  %v1094 = vpop.f32.mrf.mxu0
  %v1095 = vadd.f32 0.0, %v1094
  %1096 = vmatmul.bf16.gmra.mxu0 %v243
  %v1097 = vpop.f32.mrf.mxu0
  %v1098 = vadd.f32 0.0, %v1097
  %v1099 = vpop.f32.mrf.mxu0
  %v1100 = vadd.f32 0.0, %v1099
  %1101 = vmatmul.bf16.gmra.mxu0 %v245
  %v1102 = vpop.f32.mrf.mxu0
  %v1103 = vadd.f32 0.0, %v1102
  %v1104 = vpop.f32.mrf.mxu0
  %v1105 = vadd.f32 0.0, %v1104
  %1106 = vmatmul.bf16.gmra.mxu0 %v247
  %v1107 = vpop.f32.mrf.mxu0
  %v1108 = vadd.f32 0.0, %v1107
  %v1109 = vpop.f32.mrf.mxu0
  %v1110 = vadd.f32 0.0, %v1109
  %1111 = vmatmul.bf16.gmra.mxu0 %v249
  %v1112 = vpop.f32.mrf.mxu0
  %v1113 = vadd.f32 0.0, %v1112
  %v1114 = vpop.f32.mrf.mxu0
  %v1115 = vadd.f32 0.0, %v1114
  %1116 = vmatmul.bf16.gmra.mxu0 %v251
  %v1117 = vpop.f32.mrf.mxu0
  %v1118 = vadd.f32 0.0, %v1117
  %v1119 = vpop.f32.mrf.mxu0
  %v1120 = vadd.f32 0.0, %v1119
  %1121 = vmatmul.bf16.gmra.mxu0 %v253
  %v1122 = vpop.f32.mrf.mxu0
  %v1123 = vadd.f32 0.0, %v1122
  %v1124 = vpop.f32.mrf.mxu0
  %v1125 = vadd.f32 0.0, %v1124
  %1126 = vmatmul.bf16.gmra.mxu0 %v255
  %v1127 = vpop.f32.mrf.mxu0
  %v1128 = vadd.f32 0.0, %v1127
  %v1129 = vpop.f32.mrf.mxu0
  %v1130 = vadd.f32 0.0, %v1129
  %1131 = vmatmul.bf16.gmra.mxu0 %v257
  %v1132 = vpop.f32.mrf.mxu0
  %v1133 = vadd.f32 0.0, %v1132
  %v1134 = vpop.f32.mrf.mxu0
  %v1135 = vadd.f32 0.0, %v1134
  %1136 = vmatmul.bf16.gmra.mxu0 %v259
  %v1137 = vpop.f32.mrf.mxu0
  %v1138 = vadd.f32 0.0, %v1137
  %v1139 = vpop.f32.mrf.mxu0
  %v1140 = vadd.f32 0.0, %v1139
  %1141 = vmatmul.bf16.gmra.mxu0 %v261
  %v1142 = vpop.f32.mrf.mxu0
  %v1143 = vadd.f32 0.0, %v1142
  %v1144 = vpop.f32.mrf.mxu0
  %v1145 = vadd.f32 0.0, %v1144
  %1146 = vmatmul.bf16.gmra.mxu0 %v263
  %v1147 = vpop.f32.mrf.mxu0
  %v1148 = vadd.f32 0.0, %v1147
  %v1149 = vpop.f32.mrf.mxu0
  %v1150 = vadd.f32 0.0, %v1149
  %1151 = vmatmul.bf16.gmra.mxu0 %v265
  %v1152 = vpop.f32.mrf.mxu0
  %v1153 = vadd.f32 0.0, %v1152
  %v1154 = vpop.f32.mrf.mxu0
  %v1155 = vadd.f32 0.0, %v1154
  %1156 = vmatmul.bf16.gmra.mxu0 %v267
  %v1157 = vpop.f32.mrf.mxu0
  %v1158 = vadd.f32 0.0, %v1157
  %v1159 = vpop.f32.mrf.mxu0
  %v1160 = vadd.f32 0.0, %v1159
  %1161 = vdwg.mxu0
  %1162 = vmatpush.bf16.msra.mxu0 %v634
  %1163 = vmatpush.bf16.msra.mxu0 %v629
  %1164 = vmatpush.bf16.msra.mxu0 %v624
  %1165 = vmatpush.bf16.msra.mxu0 %v619
  %1166 = vmatpush.bf16.msra.mxu0 %v614
  %1167 = vmatpush.bf16.msra.mxu0 %v609
  %1168 = vmatpush.bf16.msra.mxu0 %v604
  %1169 = vmatpush.bf16.msra.mxu0 %v599
  %1170 = vmatmul.bf16.gmra.mxu0 %v238
  %v1171 = vpop.f32.mrf.mxu0
  %v1172 = vadd.f32 %v1083, %v1171
  %v1173 = vpop.f32.mrf.mxu0
  %v1174 = vadd.f32 %v1085, %v1173
  %1175 = vmatmul.bf16.gmra.mxu0 %v240
  %v1176 = vpop.f32.mrf.mxu0
  %v1177 = vadd.f32 %v1088, %v1176
  %v1178 = vpop.f32.mrf.mxu0
  %v1179 = vadd.f32 %v1090, %v1178
  %1180 = vmatmul.bf16.gmra.mxu0 %v242
  %v1181 = vpop.f32.mrf.mxu0
  %v1182 = vadd.f32 %v1093, %v1181
  %v1183 = vpop.f32.mrf.mxu0
  %v1184 = vadd.f32 %v1095, %v1183
  %1185 = vmatmul.bf16.gmra.mxu0 %v244
  %v1186 = vpop.f32.mrf.mxu0
  %v1187 = vadd.f32 %v1098, %v1186
  %v1188 = vpop.f32.mrf.mxu0
  %v1189 = vadd.f32 %v1100, %v1188
  %1190 = vmatmul.bf16.gmra.mxu0 %v246
  %v1191 = vpop.f32.mrf.mxu0
  %v1192 = vadd.f32 %v1103, %v1191
  %v1193 = vpop.f32.mrf.mxu0
  %v1194 = vadd.f32 %v1105, %v1193
  %1195 = vmatmul.bf16.gmra.mxu0 %v248
  %v1196 = vpop.f32.mrf.mxu0
  %v1197 = vadd.f32 %v1108, %v1196
  %v1198 = vpop.f32.mrf.mxu0
  %v1199 = vadd.f32 %v1110, %v1198
  %1200 = vmatmul.bf16.gmra.mxu0 %v250
  %v1201 = vpop.f32.mrf.mxu0
  %v1202 = vadd.f32 %v1113, %v1201
  %v1203 = vpop.f32.mrf.mxu0
  %v1204 = vadd.f32 %v1115, %v1203
  %1205 = vmatmul.bf16.gmra.mxu0 %v252
  %v1206 = vpop.f32.mrf.mxu0
  %v1207 = vadd.f32 %v1118, %v1206
  %v1208 = vpop.f32.mrf.mxu0
  %v1209 = vadd.f32 %v1120, %v1208
  %1210 = vmatmul.bf16.gmra.mxu0 %v254
  %v1211 = vpop.f32.mrf.mxu0
  %v1212 = vadd.f32 %v1123, %v1211
  %v1213 = vpop.f32.mrf.mxu0
  %v1214 = vadd.f32 %v1125, %v1213
  %1215 = vmatmul.bf16.gmra.mxu0 %v256
  %v1216 = vpop.f32.mrf.mxu0
  %v1217 = vadd.f32 %v1128, %v1216
  %v1218 = vpop.f32.mrf.mxu0
  %v1219 = vadd.f32 %v1130, %v1218
  %1220 = vmatmul.bf16.gmra.mxu0 %v258
  %v1221 = vpop.f32.mrf.mxu0
  %v1222 = vadd.f32 %v1133, %v1221
  %v1223 = vpop.f32.mrf.mxu0
  %v1224 = vadd.f32 %v1135, %v1223
  %1225 = vmatmul.bf16.gmra.mxu0 %v260
  %v1226 = vpop.f32.mrf.mxu0
  %v1227 = vadd.f32 %v1138, %v1226
  %v1228 = vpop.f32.mrf.mxu0
  %v1229 = vadd.f32 %v1140, %v1228
  %1230 = vmatmul.bf16.gmra.mxu0 %v262
  %v1231 = vpop.f32.mrf.mxu0
  %v1232 = vadd.f32 %v1143, %v1231
  %v1233 = vpop.f32.mrf.mxu0
  %v1234 = vadd.f32 %v1145, %v1233
  %1235 = vmatmul.bf16.gmra.mxu0 %v264
  %v1236 = vpop.f32.mrf.mxu0
  %v1237 = vadd.f32 %v1148, %v1236
  %v1238 = vpop.f32.mrf.mxu0
  %v1239 = vadd.f32 %v1150, %v1238
  %1240 = vmatmul.bf16.gmra.mxu0 %v266
  %v1241 = vpop.f32.mrf.mxu0
  %v1242 = vadd.f32 %v1153, %v1241
  %v1243 = vpop.f32.mrf.mxu0
  %v1244 = vadd.f32 %v1155, %v1243
  %1245 = vmatmul.bf16.gmra.mxu0 %v268
  %v1246 = vpop.f32.mrf.mxu0
  %v1247 = vadd.f32 %v1158, %v1246
  %v1248 = vpop.f32.mrf.mxu0
  %v1249 = vadd.f32 %v1160, %v1248
  %1250 = vdwg.mxu0
  %1251 = vmatpush.bf16.msra.mxu0 %v595
  %1252 = vmatpush.bf16.msra.mxu0 %v590
  %1253 = vmatpush.bf16.msra.mxu0 %v585
  %1254 = vmatpush.bf16.msra.mxu0 %v580
  %1255 = vmatpush.bf16.msra.mxu0 %v575
  %1256 = vmatpush.bf16.msra.mxu0 %v570
  %1257 = vmatpush.bf16.msra.mxu0 %v565
  %1258 = vmatpush.bf16.msra.mxu0 %v560
  %1259 = vmatmul.bf16.gmra.mxu0 %v237
  %v1260 = vpop.f32.mrf.mxu0
  %v1261 = vadd.f32 0.0, %v1260
  %v1262 = vpop.f32.mrf.mxu0
  %v1263 = vadd.f32 0.0, %v1262
  %1264 = vmatmul.bf16.gmra.mxu0 %v239
  %v1265 = vpop.f32.mrf.mxu0
  %v1266 = vadd.f32 0.0, %v1265
  %v1267 = vpop.f32.mrf.mxu0
  %v1268 = vadd.f32 0.0, %v1267
  %1269 = vmatmul.bf16.gmra.mxu0 %v241
  %v1270 = vpop.f32.mrf.mxu0
  %v1271 = vadd.f32 0.0, %v1270
  %v1272 = vpop.f32.mrf.mxu0
  %v1273 = vadd.f32 0.0, %v1272
  %1274 = vmatmul.bf16.gmra.mxu0 %v243
  %v1275 = vpop.f32.mrf.mxu0
  %v1276 = vadd.f32 0.0, %v1275
  %v1277 = vpop.f32.mrf.mxu0
  %v1278 = vadd.f32 0.0, %v1277
  %1279 = vmatmul.bf16.gmra.mxu0 %v245
  %v1280 = vpop.f32.mrf.mxu0
  %v1281 = vadd.f32 0.0, %v1280
  %v1282 = vpop.f32.mrf.mxu0
  %v1283 = vadd.f32 0.0, %v1282
  %1284 = vmatmul.bf16.gmra.mxu0 %v247
  %v1285 = vpop.f32.mrf.mxu0
  %v1286 = vadd.f32 0.0, %v1285
  %v1287 = vpop.f32.mrf.mxu0
  %v1288 = vadd.f32 0.0, %v1287
  %1289 = vmatmul.bf16.gmra.mxu0 %v249
  %v1290 = vpop.f32.mrf.mxu0
  %v1291 = vadd.f32 0.0, %v1290
  %v1292 = vpop.f32.mrf.mxu0
  %v1293 = vadd.f32 0.0, %v1292
  %1294 = vmatmul.bf16.gmra.mxu0 %v251
  %v1295 = vpop.f32.mrf.mxu0
  %v1296 = vadd.f32 0.0, %v1295
  %v1297 = vpop.f32.mrf.mxu0
  %v1298 = vadd.f32 0.0, %v1297
  %1299 = vmatmul.bf16.gmra.mxu0 %v253
  %v1300 = vpop.f32.mrf.mxu0
  %v1301 = vadd.f32 0.0, %v1300
  %v1302 = vpop.f32.mrf.mxu0
  %v1303 = vadd.f32 0.0, %v1302
  %1304 = vmatmul.bf16.gmra.mxu0 %v255
  %v1305 = vpop.f32.mrf.mxu0
  %v1306 = vadd.f32 0.0, %v1305
  %v1307 = vpop.f32.mrf.mxu0
  %v1308 = vadd.f32 0.0, %v1307
  %1309 = vmatmul.bf16.gmra.mxu0 %v257
  %v1310 = vpop.f32.mrf.mxu0
  %v1311 = vadd.f32 0.0, %v1310
  %v1312 = vpop.f32.mrf.mxu0
  %v1313 = vadd.f32 0.0, %v1312
  %1314 = vmatmul.bf16.gmra.mxu0 %v259
  %v1315 = vpop.f32.mrf.mxu0
  %v1316 = vadd.f32 0.0, %v1315
  %v1317 = vpop.f32.mrf.mxu0
  %v1318 = vadd.f32 0.0, %v1317
  %1319 = vmatmul.bf16.gmra.mxu0 %v261
  %v1320 = vpop.f32.mrf.mxu0
  %v1321 = vadd.f32 0.0, %v1320
  %v1322 = vpop.f32.mrf.mxu0
  %v1323 = vadd.f32 0.0, %v1322
  %1324 = vmatmul.bf16.gmra.mxu0 %v263
  %v1325 = vpop.f32.mrf.mxu0
  %v1326 = vadd.f32 0.0, %v1325
  %v1327 = vpop.f32.mrf.mxu0
  %v1328 = vadd.f32 0.0, %v1327
  %1329 = vmatmul.bf16.gmra.mxu0 %v265
  %v1330 = vpop.f32.mrf.mxu0
  %v1331 = vadd.f32 0.0, %v1330
  %v1332 = vpop.f32.mrf.mxu0
  %v1333 = vadd.f32 0.0, %v1332
  %1334 = vmatmul.bf16.gmra.mxu0 %v267
  %v1335 = vpop.f32.mrf.mxu0
  %v1336 = vadd.f32 0.0, %v1335
  %v1337 = vpop.f32.mrf.mxu0
  %v1338 = vadd.f32 0.0, %v1337
  %1339 = vdwg.mxu0
  %1340 = vmatpush.bf16.msra.mxu0 %v635
  %1341 = vmatpush.bf16.msra.mxu0 %v630
  %1342 = vmatpush.bf16.msra.mxu0 %v625
  %1343 = vmatpush.bf16.msra.mxu0 %v620
  %1344 = vmatpush.bf16.msra.mxu0 %v615
  %1345 = vmatpush.bf16.msra.mxu0 %v610
  %1346 = vmatpush.bf16.msra.mxu0 %v605
  %1347 = vmatpush.bf16.msra.mxu0 %v600
  %1348 = vmatmul.bf16.gmra.mxu0 %v238
  %v1349 = vpop.f32.mrf.mxu0
  %v1350 = vadd.f32 %v1261, %v1349
  %v1351 = vpop.f32.mrf.mxu0
  %v1352 = vadd.f32 %v1263, %v1351
  %1353 = vmatmul.bf16.gmra.mxu0 %v240
  %v1354 = vpop.f32.mrf.mxu0
  %v1355 = vadd.f32 %v1266, %v1354
  %v1356 = vpop.f32.mrf.mxu0
  %v1357 = vadd.f32 %v1268, %v1356
  %1358 = vmatmul.bf16.gmra.mxu0 %v242
  %v1359 = vpop.f32.mrf.mxu0
  %v1360 = vadd.f32 %v1271, %v1359
  %v1361 = vpop.f32.mrf.mxu0
  %v1362 = vadd.f32 %v1273, %v1361
  %1363 = vmatmul.bf16.gmra.mxu0 %v244
  %v1364 = vpop.f32.mrf.mxu0
  %v1365 = vadd.f32 %v1276, %v1364
  %v1366 = vpop.f32.mrf.mxu0
  %v1367 = vadd.f32 %v1278, %v1366
  %1368 = vmatmul.bf16.gmra.mxu0 %v246
  %v1369 = vpop.f32.mrf.mxu0
  %v1370 = vadd.f32 %v1281, %v1369
  %v1371 = vpop.f32.mrf.mxu0
  %v1372 = vadd.f32 %v1283, %v1371
  %1373 = vmatmul.bf16.gmra.mxu0 %v248
  %v1374 = vpop.f32.mrf.mxu0
  %v1375 = vadd.f32 %v1286, %v1374
  %v1376 = vpop.f32.mrf.mxu0
  %v1377 = vadd.f32 %v1288, %v1376
  %1378 = vmatmul.bf16.gmra.mxu0 %v250
  %v1379 = vpop.f32.mrf.mxu0
  %v1380 = vadd.f32 %v1291, %v1379
  %v1381 = vpop.f32.mrf.mxu0
  %v1382 = vadd.f32 %v1293, %v1381
  %1383 = vmatmul.bf16.gmra.mxu0 %v252
  %v1384 = vpop.f32.mrf.mxu0
  %v1385 = vadd.f32 %v1296, %v1384
  %v1386 = vpop.f32.mrf.mxu0
  %v1387 = vadd.f32 %v1298, %v1386
  %1388 = vmatmul.bf16.gmra.mxu0 %v254
  %v1389 = vpop.f32.mrf.mxu0
  %v1390 = vadd.f32 %v1301, %v1389
  %v1391 = vpop.f32.mrf.mxu0
  %v1392 = vadd.f32 %v1303, %v1391
  %1393 = vmatmul.bf16.gmra.mxu0 %v256
  %v1394 = vpop.f32.mrf.mxu0
  %v1395 = vadd.f32 %v1306, %v1394
  %v1396 = vpop.f32.mrf.mxu0
  %v1397 = vadd.f32 %v1308, %v1396
  %1398 = vmatmul.bf16.gmra.mxu0 %v258
  %v1399 = vpop.f32.mrf.mxu0
  %v1400 = vadd.f32 %v1311, %v1399
  %v1401 = vpop.f32.mrf.mxu0
  %v1402 = vadd.f32 %v1313, %v1401
  %1403 = vmatmul.bf16.gmra.mxu0 %v260
  %v1404 = vpop.f32.mrf.mxu0
  %v1405 = vadd.f32 %v1316, %v1404
  %v1406 = vpop.f32.mrf.mxu0
  %v1407 = vadd.f32 %v1318, %v1406
  %1408 = vmatmul.bf16.gmra.mxu0 %v262
  %v1409 = vpop.f32.mrf.mxu0
  %v1410 = vadd.f32 %v1321, %v1409
  %v1411 = vpop.f32.mrf.mxu0
  %v1412 = vadd.f32 %v1323, %v1411
  %1413 = vmatmul.bf16.gmra.mxu0 %v264
  %v1414 = vpop.f32.mrf.mxu0
  %v1415 = vadd.f32 %v1326, %v1414
  %v1416 = vpop.f32.mrf.mxu0
  %v1417 = vadd.f32 %v1328, %v1416
  %1418 = vmatmul.bf16.gmra.mxu0 %v266
  %v1419 = vpop.f32.mrf.mxu0
  %v1420 = vadd.f32 %v1331, %v1419
  %v1421 = vpop.f32.mrf.mxu0
  %v1422 = vadd.f32 %v1333, %v1421
  %1423 = vmatmul.bf16.gmra.mxu0 %v268
  %v1424 = vpop.f32.mrf.mxu0
  %v1425 = vadd.f32 %v1336, %v1424
  %v1426 = vpop.f32.mrf.mxu0
  %v1427 = vadd.f32 %v1338, %v1426
  %1428 = vdwg.mxu0
  %1429 = vmatpush.bf16.msra.mxu0 %v596
  %1430 = vmatpush.bf16.msra.mxu0 %v591
  %1431 = vmatpush.bf16.msra.mxu0 %v586
  %1432 = vmatpush.bf16.msra.mxu0 %v581
  %1433 = vmatpush.bf16.msra.mxu0 %v576
  %1434 = vmatpush.bf16.msra.mxu0 %v571
  %1435 = vmatpush.bf16.msra.mxu0 %v566
  %1436 = vmatpush.bf16.msra.mxu0 %v561
  %1437 = vmatmul.bf16.gmra.mxu0 %v237
  %v1438 = vpop.f32.mrf.mxu0
  %v1439 = vadd.f32 0.0, %v1438
  %v1440 = vpop.f32.mrf.mxu0
  %v1441 = vadd.f32 0.0, %v1440
  %1442 = vmatmul.bf16.gmra.mxu0 %v239
  %v1443 = vpop.f32.mrf.mxu0
  %v1444 = vadd.f32 0.0, %v1443
  %v1445 = vpop.f32.mrf.mxu0
  %v1446 = vadd.f32 0.0, %v1445
  %1447 = vmatmul.bf16.gmra.mxu0 %v241
  %v1448 = vpop.f32.mrf.mxu0
  %v1449 = vadd.f32 0.0, %v1448
  %v1450 = vpop.f32.mrf.mxu0
  %v1451 = vadd.f32 0.0, %v1450
  %1452 = vmatmul.bf16.gmra.mxu0 %v243
  %v1453 = vpop.f32.mrf.mxu0
  %v1454 = vadd.f32 0.0, %v1453
  %v1455 = vpop.f32.mrf.mxu0
  %v1456 = vadd.f32 0.0, %v1455
  %1457 = vmatmul.bf16.gmra.mxu0 %v245
  %v1458 = vpop.f32.mrf.mxu0
  %v1459 = vadd.f32 0.0, %v1458
  %v1460 = vpop.f32.mrf.mxu0
  %v1461 = vadd.f32 0.0, %v1460
  %1462 = vmatmul.bf16.gmra.mxu0 %v247
  %v1463 = vpop.f32.mrf.mxu0
  %v1464 = vadd.f32 0.0, %v1463
  %v1465 = vpop.f32.mrf.mxu0
  %v1466 = vadd.f32 0.0, %v1465
  %1467 = vmatmul.bf16.gmra.mxu0 %v249
  %v1468 = vpop.f32.mrf.mxu0
  %v1469 = vadd.f32 0.0, %v1468
  %v1470 = vpop.f32.mrf.mxu0
  %v1471 = vadd.f32 0.0, %v1470
  %1472 = vmatmul.bf16.gmra.mxu0 %v251
  %v1473 = vpop.f32.mrf.mxu0
  %v1474 = vadd.f32 0.0, %v1473
  %v1475 = vpop.f32.mrf.mxu0
  %v1476 = vadd.f32 0.0, %v1475
  %1477 = vmatmul.bf16.gmra.mxu0 %v253
  %v1478 = vpop.f32.mrf.mxu0
  %v1479 = vadd.f32 0.0, %v1478
  %v1480 = vpop.f32.mrf.mxu0
  %v1481 = vadd.f32 0.0, %v1480
  %1482 = vmatmul.bf16.gmra.mxu0 %v255
  %v1483 = vpop.f32.mrf.mxu0
  %v1484 = vadd.f32 0.0, %v1483
  %v1485 = vpop.f32.mrf.mxu0
  %v1486 = vadd.f32 0.0, %v1485
  %1487 = vmatmul.bf16.gmra.mxu0 %v257
  %v1488 = vpop.f32.mrf.mxu0
  %v1489 = vadd.f32 0.0, %v1488
  %v1490 = vpop.f32.mrf.mxu0
  %v1491 = vadd.f32 0.0, %v1490
  %1492 = vmatmul.bf16.gmra.mxu0 %v259
  %v1493 = vpop.f32.mrf.mxu0
  %v1494 = vadd.f32 0.0, %v1493
  %v1495 = vpop.f32.mrf.mxu0
  %v1496 = vadd.f32 0.0, %v1495
  %1497 = vmatmul.bf16.gmra.mxu0 %v261
  %v1498 = vpop.f32.mrf.mxu0
  %v1499 = vadd.f32 0.0, %v1498
  %v1500 = vpop.f32.mrf.mxu0
  %v1501 = vadd.f32 0.0, %v1500
  %1502 = vmatmul.bf16.gmra.mxu0 %v263
  %v1503 = vpop.f32.mrf.mxu0
  %v1504 = vadd.f32 0.0, %v1503
  %v1505 = vpop.f32.mrf.mxu0
  %v1506 = vadd.f32 0.0, %v1505
  %1507 = vmatmul.bf16.gmra.mxu0 %v265
  %v1508 = vpop.f32.mrf.mxu0
  %v1509 = vadd.f32 0.0, %v1508
  %v1510 = vpop.f32.mrf.mxu0
  %v1511 = vadd.f32 0.0, %v1510
  %1512 = vmatmul.bf16.gmra.mxu0 %v267
  %v1513 = vpop.f32.mrf.mxu0
  %v1514 = vadd.f32 0.0, %v1513
  %v1515 = vpop.f32.mrf.mxu0
  %v1516 = vadd.f32 0.0, %v1515
  %1517 = vdwg.mxu0
  %1518 = vmatpush.bf16.msra.mxu0 %v636
  %1519 = vmatpush.bf16.msra.mxu0 %v631
  %1520 = vmatpush.bf16.msra.mxu0 %v626
  %1521 = vmatpush.bf16.msra.mxu0 %v621
  %1522 = vmatpush.bf16.msra.mxu0 %v616
  %1523 = vmatpush.bf16.msra.mxu0 %v611
  %1524 = vmatpush.bf16.msra.mxu0 %v606
  %1525 = vmatpush.bf16.msra.mxu0 %v601
  %1526 = vmatmul.bf16.gmra.mxu0 %v238
  %v1527 = vpop.f32.mrf.mxu0
  %v1528 = vadd.f32 %v1439, %v1527
  %v1529 = vpop.f32.mrf.mxu0
  %v1530 = vadd.f32 %v1441, %v1529
  %1531 = vmatmul.bf16.gmra.mxu0 %v240
  %v1532 = vpop.f32.mrf.mxu0
  %v1533 = vadd.f32 %v1444, %v1532
  %v1534 = vpop.f32.mrf.mxu0
  %v1535 = vadd.f32 %v1446, %v1534
  %1536 = vmatmul.bf16.gmra.mxu0 %v242
  %v1537 = vpop.f32.mrf.mxu0
  %v1538 = vadd.f32 %v1449, %v1537
  %v1539 = vpop.f32.mrf.mxu0
  %v1540 = vadd.f32 %v1451, %v1539
  %1541 = vmatmul.bf16.gmra.mxu0 %v244
  %v1542 = vpop.f32.mrf.mxu0
  %v1543 = vadd.f32 %v1454, %v1542
  %v1544 = vpop.f32.mrf.mxu0
  %v1545 = vadd.f32 %v1456, %v1544
  %1546 = vmatmul.bf16.gmra.mxu0 %v246
  %v1547 = vpop.f32.mrf.mxu0
  %v1548 = vadd.f32 %v1459, %v1547
  %v1549 = vpop.f32.mrf.mxu0
  %v1550 = vadd.f32 %v1461, %v1549
  %1551 = vmatmul.bf16.gmra.mxu0 %v248
  %v1552 = vpop.f32.mrf.mxu0
  %v1553 = vadd.f32 %v1464, %v1552
  %v1554 = vpop.f32.mrf.mxu0
  %v1555 = vadd.f32 %v1466, %v1554
  %1556 = vmatmul.bf16.gmra.mxu0 %v250
  %v1557 = vpop.f32.mrf.mxu0
  %v1558 = vadd.f32 %v1469, %v1557
  %v1559 = vpop.f32.mrf.mxu0
  %v1560 = vadd.f32 %v1471, %v1559
  %1561 = vmatmul.bf16.gmra.mxu0 %v252
  %v1562 = vpop.f32.mrf.mxu0
  %v1563 = vadd.f32 %v1474, %v1562
  %v1564 = vpop.f32.mrf.mxu0
  %v1565 = vadd.f32 %v1476, %v1564
  %1566 = vmatmul.bf16.gmra.mxu0 %v254
  %v1567 = vpop.f32.mrf.mxu0
  %v1568 = vadd.f32 %v1479, %v1567
  %v1569 = vpop.f32.mrf.mxu0
  %v1570 = vadd.f32 %v1481, %v1569
  %1571 = vmatmul.bf16.gmra.mxu0 %v256
  %v1572 = vpop.f32.mrf.mxu0
  %v1573 = vadd.f32 %v1484, %v1572
  %v1574 = vpop.f32.mrf.mxu0
  %v1575 = vadd.f32 %v1486, %v1574
  %1576 = vmatmul.bf16.gmra.mxu0 %v258
  %v1577 = vpop.f32.mrf.mxu0
  %v1578 = vadd.f32 %v1489, %v1577
  %v1579 = vpop.f32.mrf.mxu0
  %v1580 = vadd.f32 %v1491, %v1579
  %1581 = vmatmul.bf16.gmra.mxu0 %v260
  %v1582 = vpop.f32.mrf.mxu0
  %v1583 = vadd.f32 %v1494, %v1582
  %v1584 = vpop.f32.mrf.mxu0
  %v1585 = vadd.f32 %v1496, %v1584
  %1586 = vmatmul.bf16.gmra.mxu0 %v262
  %v1587 = vpop.f32.mrf.mxu0
  %v1588 = vadd.f32 %v1499, %v1587
  %v1589 = vpop.f32.mrf.mxu0
  %v1590 = vadd.f32 %v1501, %v1589
  %1591 = vmatmul.bf16.gmra.mxu0 %v264
  %v1592 = vpop.f32.mrf.mxu0
  %v1593 = vadd.f32 %v1504, %v1592
  %v1594 = vpop.f32.mrf.mxu0
  %v1595 = vadd.f32 %v1506, %v1594
  %1596 = vmatmul.bf16.gmra.mxu0 %v266
  %v1597 = vpop.f32.mrf.mxu0
  %v1598 = vadd.f32 %v1509, %v1597
  %v1599 = vpop.f32.mrf.mxu0
  %v1600 = vadd.f32 %v1511, %v1599
  %1601 = vmatmul.bf16.gmra.mxu0 %v268
  %v1602 = vpop.f32.mrf.mxu0
  %v1603 = vadd.f32 %v1514, %v1602
  %v1604 = vpop.f32.mrf.mxu0
  %v1605 = vadd.f32 %v1516, %v1604
  %1606 = vdwg.mxu0
  %v1607 = vpack.c.bf16 %v994, %v816
  %v1608 = vpack.c.bf16 %v1350, %v1172
  %v1609 = vpack.c.bf16 %v996, %v818
  %v1610 = vpack.c.bf16 %v1352, %v1174
  %v1611 = vpack.c.bf16 %v999, %v821
  %v1612 = vpack.c.bf16 %v1355, %v1177
  %v1613 = vpack.c.bf16 %v1001, %v823
  %v1614 = vpack.c.bf16 %v1357, %v1179
  %v1615 = vpack.c.bf16 %v1004, %v826
  %v1616 = vpack.c.bf16 %v1360, %v1182
  %v1617 = vpack.c.bf16 %v1006, %v828
  %v1618 = vpack.c.bf16 %v1362, %v1184
  %v1619 = vpack.c.bf16 %v1009, %v831
  %v1620 = vpack.c.bf16 %v1365, %v1187
  %v1621 = vpack.c.bf16 %v1011, %v833
  %v1622 = vpack.c.bf16 %v1367, %v1189
  %v1623 = vpack.c.bf16 %v1014, %v836
  %v1624 = vpack.c.bf16 %v1370, %v1192
  %v1625 = vpack.c.bf16 %v1016, %v838
  %v1626 = vpack.c.bf16 %v1372, %v1194
  %v1627 = vpack.c.bf16 %v1019, %v841
  %v1628 = vpack.c.bf16 %v1375, %v1197
  %v1629 = vpack.c.bf16 %v1021, %v843
  %v1630 = vpack.c.bf16 %v1377, %v1199
  %v1631 = vpack.c.bf16 %v1024, %v846
  %v1632 = vpack.c.bf16 %v1380, %v1202
  %v1633 = vpack.c.bf16 %v1026, %v848
  %v1634 = vpack.c.bf16 %v1382, %v1204
  %v1635 = vpack.c.bf16 %v1029, %v851
  %v1636 = vpack.c.bf16 %v1385, %v1207
  %v1637 = vpack.c.bf16 %v1031, %v853
  %v1638 = vpack.c.bf16 %v1387, %v1209
  %v1639 = vpack.c.bf16 %v1034, %v856
  %v1640 = vpack.c.bf16 %v1390, %v1212
  %v1641 = vpack.c.bf16 %v1036, %v858
  %v1642 = vpack.c.bf16 %v1392, %v1214
  %v1643 = vpack.c.bf16 %v1039, %v861
  %v1644 = vpack.c.bf16 %v1395, %v1217
  %v1645 = vpack.c.bf16 %v1041, %v863
  %v1646 = vpack.c.bf16 %v1397, %v1219
  %v1647 = vpack.c.bf16 %v1044, %v866
  %v1648 = vpack.c.bf16 %v1400, %v1222
  %v1649 = vpack.c.bf16 %v1046, %v868
  %v1650 = vpack.c.bf16 %v1402, %v1224
  %v1651 = vpack.c.bf16 %v1049, %v871
  %v1652 = vpack.c.bf16 %v1405, %v1227
  %v1653 = vpack.c.bf16 %v1051, %v873
  %v1654 = vpack.c.bf16 %v1407, %v1229
  %v1655 = vpack.c.bf16 %v1054, %v876
  %v1656 = vpack.c.bf16 %v1410, %v1232
  %v1657 = vpack.c.bf16 %v1056, %v878
  %v1658 = vpack.c.bf16 %v1412, %v1234
  %v1659 = vpack.c.bf16 %v1059, %v881
  %v1660 = vpack.c.bf16 %v1415, %v1237
  %v1661 = vpack.c.bf16 %v1061, %v883
  %v1662 = vpack.c.bf16 %v1417, %v1239
  %v1663 = vpack.c.bf16 %v1064, %v886
  %v1664 = vpack.c.bf16 %v1420, %v1242
  %v1665 = vpack.c.bf16 %v1066, %v888
  %v1666 = vpack.c.bf16 %v1422, %v1244
  %v1667 = vpack.c.bf16 %v1069, %v891
  %v1668 = vpack.c.bf16 %v1425, %v1247
  %v1669 = vpack.c.bf16 %v1071, %v893
  %v1670 = vpack.c.bf16 %v1427, %v1249
  %1671 = vst [vmem:[%s2] sm:$0xff] %v1607
  %1672 = vst [vmem:[%s2 + $0x8] sm:$0xff] %v1608
  %1673 = vst [vmem:[%s2 + $0x10] sm:$0xff] %v1609
  %1674 = vst [vmem:[%s2 + $0x18] sm:$0xff] %v1610
  %1675 = vst [vmem:[%s2 + $0x20] sm:$0xff] %v1611
  %1676 = vst [vmem:[%s2 + $0x28] sm:$0xff] %v1612
  %1677 = vst [vmem:[%s2 + $0x30] sm:$0xff] %v1613
  %1678 = vst [vmem:[%s2 + $0x38] sm:$0xff] %v1614
  %1679 = vst [vmem:[%s2 + $0x40] sm:$0xff] %v1615
  %1680 = vst [vmem:[%s2 + $0x48] sm:$0xff] %v1616
  %1681 = vst [vmem:[%s2 + $0x50] sm:$0xff] %v1617
  %1682 = vst [vmem:[%s2 + $0x58] sm:$0xff] %v1618
  %1683 = vst [vmem:[%s2 + $0x60] sm:$0xff] %v1619
  %1684 = vst [vmem:[%s2 + $0x68] sm:$0xff] %v1620
  %1685 = vst [vmem:[%s2 + $0x70] sm:$0xff] %v1621
  %1686 = vst [vmem:[%s2 + $0x78] sm:$0xff] %v1622
  %1687 = vst [vmem:[%s2 + $0x80] sm:$0xff] %v1623
  %1688 = vst [vmem:[%s2 + $0x88] sm:$0xff] %v1624
  %1689 = vst [vmem:[%s2 + $0x90] sm:$0xff] %v1625
  %1690 = vst [vmem:[%s2 + $0x98] sm:$0xff] %v1626
  %1691 = vst [vmem:[%s2 + $0xa0] sm:$0xff] %v1627
  %1692 = vst [vmem:[%s2 + $0xa8] sm:$0xff] %v1628
  %1693 = vst [vmem:[%s2 + $0xb0] sm:$0xff] %v1629
  %1694 = vst [vmem:[%s2 + $0xb8] sm:$0xff] %v1630
  %1695 = vst [vmem:[%s2 + $0xc0] sm:$0xff] %v1631
  %1696 = vst [vmem:[%s2 + $0xc8] sm:$0xff] %v1632
  %1697 = vst [vmem:[%s2 + $0xd0] sm:$0xff] %v1633
  %1698 = vst [vmem:[%s2 + $0xd8] sm:$0xff] %v1634
  %1699 = vst [vmem:[%s2 + $0xe0] sm:$0xff] %v1635
  %1700 = vst [vmem:[%s2 + $0xe8] sm:$0xff] %v1636
  %1701 = vst [vmem:[%s2 + $0xf0] sm:$0xff] %v1637
  %1702 = vst [vmem:[%s2 + $0xf8] sm:$0xff] %v1638
  %1703 = vst [vmem:[%s2 + $0x100] sm:$0xff] %v1639
  %1704 = vst [vmem:[%s2 + $0x108] sm:$0xff] %v1640
  %1705 = vst [vmem:[%s2 + $0x110] sm:$0xff] %v1641
  %1706 = vst [vmem:[%s2 + $0x118] sm:$0xff] %v1642
  %1707 = vst [vmem:[%s2 + $0x120] sm:$0xff] %v1643
  %1708 = vst [vmem:[%s2 + $0x128] sm:$0xff] %v1644
  %1709 = vst [vmem:[%s2 + $0x130] sm:$0xff] %v1645
  %1710 = vst [vmem:[%s2 + $0x138] sm:$0xff] %v1646
  %1711 = vst [vmem:[%s2 + $0x140] sm:$0xff] %v1647
  %1712 = vst [vmem:[%s2 + $0x148] sm:$0xff] %v1648
  %1713 = vst [vmem:[%s2 + $0x150] sm:$0xff] %v1649
  %1714 = vst [vmem:[%s2 + $0x158] sm:$0xff] %v1650
  %1715 = vst [vmem:[%s2 + $0x160] sm:$0xff] %v1651
  %1716 = vst [vmem:[%s2 + $0x168] sm:$0xff] %v1652
  %1717 = vst [vmem:[%s2 + $0x170] sm:$0xff] %v1653
  %1718 = vst [vmem:[%s2 + $0x178] sm:$0xff] %v1654
  %1719 = vst [vmem:[%s2 + $0x180] sm:$0xff] %v1655
  %1720 = vst [vmem:[%s2 + $0x188] sm:$0xff] %v1656
  %1721 = vst [vmem:[%s2 + $0x190] sm:$0xff] %v1657
  %1722 = vst [vmem:[%s2 + $0x198] sm:$0xff] %v1658
  %1723 = vst [vmem:[%s2 + $0x1a0] sm:$0xff] %v1659
  %1724 = vst [vmem:[%s2 + $0x1a8] sm:$0xff] %v1660
  %1725 = vst [vmem:[%s2 + $0x1b0] sm:$0xff] %v1661
  %1726 = vst [vmem:[%s2 + $0x1b8] sm:$0xff] %v1662
  %1727 = vst [vmem:[%s2 + $0x1c0] sm:$0xff] %v1663
  %1728 = vst [vmem:[%s2 + $0x1c8] sm:$0xff] %v1664
  %1729 = vst [vmem:[%s2 + $0x1d0] sm:$0xff] %v1665
  %1730 = vst [vmem:[%s2 + $0x1d8] sm:$0xff] %v1666
  %1731 = vst [vmem:[%s2 + $0x1e0] sm:$0xff] %v1667
  %1732 = vst [vmem:[%s2 + $0x1e8] sm:$0xff] %v1668
  %1733 = vst [vmem:[%s2 + $0x1f0] sm:$0xff] %v1669
  %1734 = vst [vmem:[%s2 + $0x1f8] sm:$0xff] %v1670
  %1735 = vst [vmem:[%s3] sm:$0xff] %v1528
  %1736 = vst [vmem:[%s3 + $0x8] sm:$0xff] %v1530
  %1737 = vst [vmem:[%s3 + $0x10] sm:$0xff] %v1533
  %1738 = vst [vmem:[%s3 + $0x18] sm:$0xff] %v1535
  %1739 = vst [vmem:[%s3 + $0x20] sm:$0xff] %v1538
  %1740 = vst [vmem:[%s3 + $0x28] sm:$0xff] %v1540
  %1741 = vst [vmem:[%s3 + $0x30] sm:$0xff] %v1543
  %1742 = vst [vmem:[%s3 + $0x38] sm:$0xff] %v1545
  %1743 = vst [vmem:[%s3 + $0x40] sm:$0xff] %v1548
  %1744 = vst [vmem:[%s3 + $0x48] sm:$0xff] %v1550
  %1745 = vst [vmem:[%s3 + $0x50] sm:$0xff] %v1553
  %1746 = vst [vmem:[%s3 + $0x58] sm:$0xff] %v1555
  %1747 = vst [vmem:[%s3 + $0x60] sm:$0xff] %v1558
  %1748 = vst [vmem:[%s3 + $0x68] sm:$0xff] %v1560
  %1749 = vst [vmem:[%s3 + $0x70] sm:$0xff] %v1563
  %1750 = vst [vmem:[%s3 + $0x78] sm:$0xff] %v1565
  %1751 = vst [vmem:[%s3 + $0x80] sm:$0xff] %v1568
  %1752 = vst [vmem:[%s3 + $0x88] sm:$0xff] %v1570
  %1753 = vst [vmem:[%s3 + $0x90] sm:$0xff] %v1573
  %1754 = vst [vmem:[%s3 + $0x98] sm:$0xff] %v1575
  %1755 = vst [vmem:[%s3 + $0xa0] sm:$0xff] %v1578
  %1756 = vst [vmem:[%s3 + $0xa8] sm:$0xff] %v1580
  %1757 = vst [vmem:[%s3 + $0xb0] sm:$0xff] %v1583
  %1758 = vst [vmem:[%s3 + $0xb8] sm:$0xff] %v1585
  %1759 = vst [vmem:[%s3 + $0xc0] sm:$0xff] %v1588
  %1760 = vst [vmem:[%s3 + $0xc8] sm:$0xff] %v1590
  %1761 = vst [vmem:[%s3 + $0xd0] sm:$0xff] %v1593
  %1762 = vst [vmem:[%s3 + $0xd8] sm:$0xff] %v1595
  %1763 = vst [vmem:[%s3 + $0xe0] sm:$0xff] %v1598
  %1764 = vst [vmem:[%s3 + $0xe8] sm:$0xff] %v1600
  %1765 = vst [vmem:[%s3 + $0xf0] sm:$0xff] %v1603
  %1766 = vst [vmem:[%s3 + $0xf8] sm:$0xff] %v1605
  // Predicated region
  $region10: #{gat_forward.3} parent=0 // pred_check
    _
  $region11: #{gat_forward.3} parent=0 // pred_check_branch
    %1768 = sbr.rel (0) target = $region13
  $region12: #{gat_forward.3} parent=0 // pred_region
    _
  $region13: #{gat_forward.3} parent=0 // pred_fallthru
    _
  // Predicated region
  $region14: #{gat_forward.3} parent=0 // pred_check
    _
  $region15: #{gat_forward.3} parent=0 // pred_check_branch
    %1770 = sbr.rel (0) target = $region17
  $region16: #{gat_forward.3} parent=0 // pred_region
    _
  $region17: #{gat_forward.3} parent=0 // pred_fallthru
    _
  // Predicated region
  $region18: #{gat_forward.3} parent=0 // pred_check
    _
  $region19: #{gat_forward.3} parent=0 // pred_check_branch
    %1772 = sbr.rel (0) target = $region21
  $region20: #{gat_forward.3} parent=0 // pred_region
    _
  $region21: #{gat_forward.3} parent=0 // pred_fallthru
    _
  // Predicated region
  $region22: #{gat_forward.3} parent=0 // pred_check
    _
  $region23: #{gat_forward.3} parent=0 // pred_check_branch
    %1774 = sbr.rel (0) target = $region25
  $region24: #{gat_forward.3} parent=0 // pred_region
    _
  $region25: #{gat_forward.3} parent=0 // pred_fallthru
    _

// kernel: gat_forward.5
$region0: #{gat_forward.5}
  #allocation0 [shape = 'u32[]', space=smem, size = 0x4, offset = 0x4, fixed_abs, tag = 'smem constant byte address 0x4 - core index']
  #allocation1 [shape = 'u32[72,128]{1,0:T(1,128)}', space=vmem, size = 0x9000, scoped, tag = 'internal scratch']
  %s0 = inlined_call_operand.vmem [shape: f32[256,8], index: 0, kind: input, shape index: {}]
  %s1 = inlined_call_operand.vmem [shape: f32[8,256], index: 1, kind: input, shape index: {}]
  %s2 = inlined_call_operand.vmem [shape: f32[256,256], index: 2, kind: output, shape index: {}]
  %s3 = sld [smem:[#allocation0]]
  $region18: #{gat_forward.5} parent=0
    _
  %s5 = ssub.s32 1, %s3
  %s6 = scalar_select 0, %s5, %s3
  // Predicated region
  $region2: #{gat_forward.5} parent=0 // pred_check
    _
  $region3: #{gat_forward.5} parent=0 // pred_check_branch
    %8 = sbr.rel (0) target = $region5
  $region4: #{gat_forward.5} parent=0 // pred_region
    _
  $region5: #{gat_forward.5} parent=0 // pred_fallthru
    _
  // Predicated region
  $region6: #{gat_forward.5} parent=0 // pred_check
    _
  $region7: #{gat_forward.5} parent=0 // pred_check_branch
    %10 = sbr.rel (0) target = $region9
  $region8: #{gat_forward.5} parent=0 // pred_region
    _
  $region9: #{gat_forward.5} parent=0 // pred_fallthru
    _
  %v11 = vld [vmem:[%s0] sm:$0xff]
  %v12 = vld [vmem:[%s0 + $0x8] sm:$0xff]
  %v13 = vld [vmem:[%s0 + $0x10] sm:$0xff]
  %v14 = vld [vmem:[%s0 + $0x18] sm:$0xff]
  %v15 = vld [vmem:[%s0 + $0x20] sm:$0xff]
  %v16 = vld [vmem:[%s0 + $0x28] sm:$0xff]
  %v17 = vld [vmem:[%s0 + $0x30] sm:$0xff]
  %v18 = vld [vmem:[%s0 + $0x38] sm:$0xff]
  %v19 = vld [vmem:[%s0 + $0x40] sm:$0xff]
  %v20 = vld [vmem:[%s0 + $0x48] sm:$0xff]
  %v21 = vld [vmem:[%s0 + $0x50] sm:$0xff]
  %v22 = vld [vmem:[%s0 + $0x58] sm:$0xff]
  %v23 = vld [vmem:[%s0 + $0x60] sm:$0xff]
  %v24 = vld [vmem:[%s0 + $0x68] sm:$0xff]
  %v25 = vld [vmem:[%s0 + $0x70] sm:$0xff]
  %v26 = vld [vmem:[%s0 + $0x78] sm:$0xff]
  %v27 = vld [vmem:[%s0 + $0x80] sm:$0xff]
  %v28 = vld [vmem:[%s0 + $0x88] sm:$0xff]
  %v29 = vld [vmem:[%s0 + $0x90] sm:$0xff]
  %v30 = vld [vmem:[%s0 + $0x98] sm:$0xff]
  %v31 = vld [vmem:[%s0 + $0xa0] sm:$0xff]
  %v32 = vld [vmem:[%s0 + $0xa8] sm:$0xff]
  %v33 = vld [vmem:[%s0 + $0xb0] sm:$0xff]
  %v34 = vld [vmem:[%s0 + $0xb8] sm:$0xff]
  %v35 = vld [vmem:[%s0 + $0xc0] sm:$0xff]
  %v36 = vld [vmem:[%s0 + $0xc8] sm:$0xff]
  %v37 = vld [vmem:[%s0 + $0xd0] sm:$0xff]
  %v38 = vld [vmem:[%s0 + $0xd8] sm:$0xff]
  %v39 = vld [vmem:[%s0 + $0xe0] sm:$0xff]
  %v40 = vld [vmem:[%s0 + $0xe8] sm:$0xff]
  %v41 = vld [vmem:[%s0 + $0xf0] sm:$0xff]
  %v42 = vld [vmem:[%s0 + $0xf8] sm:$0xff]
  %v43 = vld [vmem:[%s1] ss:$8 sm:$0x3]
  %45 = vset.pattern.permute.xlu0 0
  %46 = vperm.xlu0 %45, %v11
  %v47 = vpop.permute.xlu0 %46
  %50 = vset.pattern.permute.xlu0 0
  %51 = vperm.xlu0 %50, %v12
  %v52 = vpop.permute.xlu0 %51
  %55 = vset.pattern.permute.xlu0 0
  %56 = vperm.xlu0 %55, %v13
  %v57 = vpop.permute.xlu0 %56
  %60 = vset.pattern.permute.xlu0 0
  %61 = vperm.xlu0 %60, %v14
  %v62 = vpop.permute.xlu0 %61
  %65 = vset.pattern.permute.xlu0 0
  %66 = vperm.xlu0 %65, %v15
  %v67 = vpop.permute.xlu0 %66
  %70 = vset.pattern.permute.xlu0 0
  %71 = vperm.xlu0 %70, %v16
  %v72 = vpop.permute.xlu0 %71
  %75 = vset.pattern.permute.xlu0 0
  %76 = vperm.xlu0 %75, %v17
  %v77 = vpop.permute.xlu0 %76
  %80 = vset.pattern.permute.xlu0 0
  %81 = vperm.xlu0 %80, %v18
  %v82 = vpop.permute.xlu0 %81
  %85 = vset.pattern.permute.xlu0 0
  %86 = vperm.xlu0 %85, %v19
  %v87 = vpop.permute.xlu0 %86
  %90 = vset.pattern.permute.xlu0 0
  %91 = vperm.xlu0 %90, %v20
  %v92 = vpop.permute.xlu0 %91
  %95 = vset.pattern.permute.xlu0 0
  %96 = vperm.xlu0 %95, %v21
  %v97 = vpop.permute.xlu0 %96
  %100 = vset.pattern.permute.xlu0 0
  %101 = vperm.xlu0 %100, %v22
  %v102 = vpop.permute.xlu0 %101
  %105 = vset.pattern.permute.xlu0 0
  %106 = vperm.xlu0 %105, %v23
  %v107 = vpop.permute.xlu0 %106
  %110 = vset.pattern.permute.xlu0 0
  %111 = vperm.xlu0 %110, %v24
  %v112 = vpop.permute.xlu0 %111
  %115 = vset.pattern.permute.xlu0 0
  %116 = vperm.xlu0 %115, %v25
  %v117 = vpop.permute.xlu0 %116
  %120 = vset.pattern.permute.xlu0 0
  %121 = vperm.xlu0 %120, %v26
  %v122 = vpop.permute.xlu0 %121
  %125 = vset.pattern.permute.xlu0 0
  %126 = vperm.xlu0 %125, %v27
  %v127 = vpop.permute.xlu0 %126
  %130 = vset.pattern.permute.xlu0 0
  %131 = vperm.xlu0 %130, %v28
  %v132 = vpop.permute.xlu0 %131
  %135 = vset.pattern.permute.xlu0 0
  %136 = vperm.xlu0 %135, %v29
  %v137 = vpop.permute.xlu0 %136
  %140 = vset.pattern.permute.xlu0 0
  %141 = vperm.xlu0 %140, %v30
  %v142 = vpop.permute.xlu0 %141
  %145 = vset.pattern.permute.xlu0 0
  %146 = vperm.xlu0 %145, %v31
  %v147 = vpop.permute.xlu0 %146
  %150 = vset.pattern.permute.xlu0 0
  %151 = vperm.xlu0 %150, %v32
  %v152 = vpop.permute.xlu0 %151
  %155 = vset.pattern.permute.xlu0 0
  %156 = vperm.xlu0 %155, %v33
  %v157 = vpop.permute.xlu0 %156
  %160 = vset.pattern.permute.xlu0 0
  %161 = vperm.xlu0 %160, %v34
  %v162 = vpop.permute.xlu0 %161
  %165 = vset.pattern.permute.xlu0 0
  %166 = vperm.xlu0 %165, %v35
  %v167 = vpop.permute.xlu0 %166
  %170 = vset.pattern.permute.xlu0 0
  %171 = vperm.xlu0 %170, %v36
  %v172 = vpop.permute.xlu0 %171
  %175 = vset.pattern.permute.xlu0 0
  %176 = vperm.xlu0 %175, %v37
  %v177 = vpop.permute.xlu0 %176
  %180 = vset.pattern.permute.xlu0 0
  %181 = vperm.xlu0 %180, %v38
  %v182 = vpop.permute.xlu0 %181
  %185 = vset.pattern.permute.xlu0 0
  %186 = vperm.xlu0 %185, %v39
  %v187 = vpop.permute.xlu0 %186
  %190 = vset.pattern.permute.xlu0 0
  %191 = vperm.xlu0 %190, %v40
  %v192 = vpop.permute.xlu0 %191
  %195 = vset.pattern.permute.xlu0 0
  %196 = vperm.xlu0 %195, %v41
  %v197 = vpop.permute.xlu0 %196
  %200 = vset.pattern.permute.xlu0 0
  %201 = vperm.xlu0 %200, %v42
  %v202 = vpop.permute.xlu0 %201
  %v205 = vperm.slane %v43, 0
  %v206 = vperm.slane %v43, 1
  %v209 = vsub.f32 %v47, %v205
  %v210 = vsub.f32 %v47, %v206
  %v211 = vsub.f32 %v52, %v205
  %v212 = vsub.f32 %v52, %v206
  %v213 = vsub.f32 %v57, %v205
  %v214 = vsub.f32 %v57, %v206
  %v215 = vsub.f32 %v62, %v205
  %v216 = vsub.f32 %v62, %v206
  %v217 = vsub.f32 %v67, %v205
  %v218 = vsub.f32 %v67, %v206
  %v219 = vsub.f32 %v72, %v205
  %v220 = vsub.f32 %v72, %v206
  %v221 = vsub.f32 %v77, %v205
  %v222 = vsub.f32 %v77, %v206
  %v223 = vsub.f32 %v82, %v205
  %v224 = vsub.f32 %v82, %v206
  %v225 = vsub.f32 %v87, %v205
  %v226 = vsub.f32 %v87, %v206
  %v227 = vsub.f32 %v92, %v205
  %v228 = vsub.f32 %v92, %v206
  %v229 = vsub.f32 %v97, %v205
  %v230 = vsub.f32 %v97, %v206
  %v231 = vsub.f32 %v102, %v205
  %v232 = vsub.f32 %v102, %v206
  %v233 = vsub.f32 %v107, %v205
  %v234 = vsub.f32 %v107, %v206
  %v235 = vsub.f32 %v112, %v205
  %v236 = vsub.f32 %v112, %v206
  %v237 = vsub.f32 %v117, %v205
  %v238 = vsub.f32 %v117, %v206
  %v239 = vsub.f32 %v122, %v205
  %v240 = vsub.f32 %v122, %v206
  %v241 = vsub.f32 %v127, %v205
  %v242 = vsub.f32 %v127, %v206
  %v243 = vsub.f32 %v132, %v205
  %v244 = vsub.f32 %v132, %v206
  %v245 = vsub.f32 %v137, %v205
  %v246 = vsub.f32 %v137, %v206
  %v247 = vsub.f32 %v142, %v205
  %v248 = vsub.f32 %v142, %v206
  %v249 = vsub.f32 %v147, %v205
  %v250 = vsub.f32 %v147, %v206
  %v251 = vsub.f32 %v152, %v205
  %v252 = vsub.f32 %v152, %v206
  %v253 = vsub.f32 %v157, %v205
  %v254 = vsub.f32 %v157, %v206
  %v255 = vsub.f32 %v162, %v205
  %v256 = vsub.f32 %v162, %v206
  %v257 = vsub.f32 %v167, %v205
  %v258 = vsub.f32 %v167, %v206
  %v259 = vsub.f32 %v172, %v205
  %v260 = vsub.f32 %v172, %v206
  %v261 = vsub.f32 %v177, %v205
  %v262 = vsub.f32 %v177, %v206
  %v263 = vsub.f32 %v182, %v205
  %v264 = vsub.f32 %v182, %v206
  %v265 = vsub.f32 %v187, %v205
  %v266 = vsub.f32 %v187, %v206
  %v267 = vsub.f32 %v192, %v205
  %v268 = vsub.f32 %v192, %v206
  %v269 = vsub.f32 %v197, %v205
  %v270 = vsub.f32 %v197, %v206
  %v271 = vsub.f32 %v202, %v205
  %v272 = vsub.f32 %v202, %v206
  %v273 = vmul.f32 %v209, %v209
  %v274 = vmul.f32 %v210, %v210
  %v275 = vmul.f32 %v211, %v211
  %v276 = vmul.f32 %v212, %v212
  %v277 = vmul.f32 %v213, %v213
  %v278 = vmul.f32 %v214, %v214
  %v279 = vmul.f32 %v215, %v215
  %v280 = vmul.f32 %v216, %v216
  %v281 = vmul.f32 %v217, %v217
  %v282 = vmul.f32 %v218, %v218
  %v283 = vmul.f32 %v219, %v219
  %v284 = vmul.f32 %v220, %v220
  %v285 = vmul.f32 %v221, %v221
  %v286 = vmul.f32 %v222, %v222
  %v287 = vmul.f32 %v223, %v223
  %v288 = vmul.f32 %v224, %v224
  %v289 = vmul.f32 %v225, %v225
  %v290 = vmul.f32 %v226, %v226
  %v291 = vmul.f32 %v227, %v227
  %v292 = vmul.f32 %v228, %v228
  %v293 = vmul.f32 %v229, %v229
  %v294 = vmul.f32 %v230, %v230
  %v295 = vmul.f32 %v231, %v231
  %v296 = vmul.f32 %v232, %v232
  %v297 = vmul.f32 %v233, %v233
  %v298 = vmul.f32 %v234, %v234
  %v299 = vmul.f32 %v235, %v235
  %v300 = vmul.f32 %v236, %v236
  %v301 = vmul.f32 %v237, %v237
  %v302 = vmul.f32 %v238, %v238
  %v303 = vmul.f32 %v239, %v239
  %v304 = vmul.f32 %v240, %v240
  %v305 = vmul.f32 %v241, %v241
  %v306 = vmul.f32 %v242, %v242
  %v307 = vmul.f32 %v243, %v243
  %v308 = vmul.f32 %v244, %v244
  %v309 = vmul.f32 %v245, %v245
  %v310 = vmul.f32 %v246, %v246
  %v311 = vmul.f32 %v247, %v247
  %v312 = vmul.f32 %v248, %v248
  %v313 = vmul.f32 %v249, %v249
  %v314 = vmul.f32 %v250, %v250
  %v315 = vmul.f32 %v251, %v251
  %v316 = vmul.f32 %v252, %v252
  %v317 = vmul.f32 %v253, %v253
  %v318 = vmul.f32 %v254, %v254
  %v319 = vmul.f32 %v255, %v255
  %v320 = vmul.f32 %v256, %v256
  %v321 = vmul.f32 %v257, %v257
  %v322 = vmul.f32 %v258, %v258
  %v323 = vmul.f32 %v259, %v259
  %v324 = vmul.f32 %v260, %v260
  %v325 = vmul.f32 %v261, %v261
  %v326 = vmul.f32 %v262, %v262
  %v327 = vmul.f32 %v263, %v263
  %v328 = vmul.f32 %v264, %v264
  %v329 = vmul.f32 %v265, %v265
  %v330 = vmul.f32 %v266, %v266
  %v331 = vmul.f32 %v267, %v267
  %v332 = vmul.f32 %v268, %v268
  %v333 = vmul.f32 %v269, %v269
  %v334 = vmul.f32 %v270, %v270
  %v335 = vmul.f32 %v271, %v271
  %v336 = vmul.f32 %v272, %v272
  %s337 = scalar_lea.vmem %s1, 1
  %v338 = vld [vmem:[%s337] ss:$8 sm:$0x3]
  %339 = vset.pattern.permute.xlu0 1
  %340 = vperm.xlu0 %339, %v11
  %v341 = vpop.permute.xlu0 %340
  %343 = vset.pattern.permute.xlu0 1
  %344 = vperm.xlu0 %343, %v12
  %v345 = vpop.permute.xlu0 %344
  %347 = vset.pattern.permute.xlu0 1
  %348 = vperm.xlu0 %347, %v13
  %v349 = vpop.permute.xlu0 %348
  %351 = vset.pattern.permute.xlu0 1
  %352 = vperm.xlu0 %351, %v14
  %v353 = vpop.permute.xlu0 %352
  %355 = vset.pattern.permute.xlu0 1
  %356 = vperm.xlu0 %355, %v15
  %v357 = vpop.permute.xlu0 %356
  %359 = vset.pattern.permute.xlu0 1
  %360 = vperm.xlu0 %359, %v16
  %v361 = vpop.permute.xlu0 %360
  %363 = vset.pattern.permute.xlu0 1
  %364 = vperm.xlu0 %363, %v17
  %v365 = vpop.permute.xlu0 %364
  %367 = vset.pattern.permute.xlu0 1
  %368 = vperm.xlu0 %367, %v18
  %v369 = vpop.permute.xlu0 %368
  %371 = vset.pattern.permute.xlu0 1
  %372 = vperm.xlu0 %371, %v19
  %v373 = vpop.permute.xlu0 %372
  %375 = vset.pattern.permute.xlu0 1
  %376 = vperm.xlu0 %375, %v20
  %v377 = vpop.permute.xlu0 %376
  %379 = vset.pattern.permute.xlu0 1
  %380 = vperm.xlu0 %379, %v21
  %v381 = vpop.permute.xlu0 %380
  %383 = vset.pattern.permute.xlu0 1
  %384 = vperm.xlu0 %383, %v22
  %v385 = vpop.permute.xlu0 %384
  %387 = vset.pattern.permute.xlu0 1
  %388 = vperm.xlu0 %387, %v23
  %v389 = vpop.permute.xlu0 %388
  %391 = vset.pattern.permute.xlu0 1
  %392 = vperm.xlu0 %391, %v24
  %v393 = vpop.permute.xlu0 %392
  %395 = vset.pattern.permute.xlu0 1
  %396 = vperm.xlu0 %395, %v25
  %v397 = vpop.permute.xlu0 %396
  %399 = vset.pattern.permute.xlu0 1
  %400 = vperm.xlu0 %399, %v26
  %v401 = vpop.permute.xlu0 %400
  %403 = vset.pattern.permute.xlu0 1
  %404 = vperm.xlu0 %403, %v27
  %v405 = vpop.permute.xlu0 %404
  %407 = vset.pattern.permute.xlu0 1
  %408 = vperm.xlu0 %407, %v28
  %v409 = vpop.permute.xlu0 %408
  %411 = vset.pattern.permute.xlu0 1
  %412 = vperm.xlu0 %411, %v29
  %v413 = vpop.permute.xlu0 %412
  %415 = vset.pattern.permute.xlu0 1
  %416 = vperm.xlu0 %415, %v30
  %v417 = vpop.permute.xlu0 %416
  %419 = vset.pattern.permute.xlu0 1
  %420 = vperm.xlu0 %419, %v31
  %v421 = vpop.permute.xlu0 %420
  %423 = vset.pattern.permute.xlu0 1
  %424 = vperm.xlu0 %423, %v32
  %v425 = vpop.permute.xlu0 %424
  %427 = vset.pattern.permute.xlu0 1
  %428 = vperm.xlu0 %427, %v33
  %v429 = vpop.permute.xlu0 %428
  %431 = vset.pattern.permute.xlu0 1
  %432 = vperm.xlu0 %431, %v34
  %v433 = vpop.permute.xlu0 %432
  %435 = vset.pattern.permute.xlu0 1
  %436 = vperm.xlu0 %435, %v35
  %v437 = vpop.permute.xlu0 %436
  %439 = vset.pattern.permute.xlu0 1
  %440 = vperm.xlu0 %439, %v36
  %v441 = vpop.permute.xlu0 %440
  %443 = vset.pattern.permute.xlu0 1
  %444 = vperm.xlu0 %443, %v37
  %v445 = vpop.permute.xlu0 %444
  %447 = vset.pattern.permute.xlu0 1
  %448 = vperm.xlu0 %447, %v38
  %v449 = vpop.permute.xlu0 %448
  %451 = vset.pattern.permute.xlu0 1
  %452 = vperm.xlu0 %451, %v39
  %v453 = vpop.permute.xlu0 %452
  %455 = vset.pattern.permute.xlu0 1
  %456 = vperm.xlu0 %455, %v40
  %v457 = vpop.permute.xlu0 %456
  %459 = vset.pattern.permute.xlu0 1
  %460 = vperm.xlu0 %459, %v41
  %v461 = vpop.permute.xlu0 %460
  %463 = vset.pattern.permute.xlu0 1
  %464 = vperm.xlu0 %463, %v42
  %v465 = vpop.permute.xlu0 %464
  %v468 = vperm.slane %v338, 0
  %v469 = vperm.slane %v338, 1
  %v472 = vsub.f32 %v341, %v468
  %v473 = vsub.f32 %v341, %v469
  %v474 = vsub.f32 %v345, %v468
  %v475 = vsub.f32 %v345, %v469
  %v476 = vsub.f32 %v349, %v468
  %v477 = vsub.f32 %v349, %v469
  %v478 = vsub.f32 %v353, %v468
  %v479 = vsub.f32 %v353, %v469
  %v480 = vsub.f32 %v357, %v468
  %v481 = vsub.f32 %v357, %v469
  %v482 = vsub.f32 %v361, %v468
  %v483 = vsub.f32 %v361, %v469
  %v484 = vsub.f32 %v365, %v468
  %v485 = vsub.f32 %v365, %v469
  %v486 = vsub.f32 %v369, %v468
  %v487 = vsub.f32 %v369, %v469
  %v488 = vsub.f32 %v373, %v468
  %v489 = vsub.f32 %v373, %v469
  %v490 = vsub.f32 %v377, %v468
  %v491 = vsub.f32 %v377, %v469
  %v492 = vsub.f32 %v381, %v468
  %v493 = vsub.f32 %v381, %v469
  %v494 = vsub.f32 %v385, %v468
  %v495 = vsub.f32 %v385, %v469
  %v496 = vsub.f32 %v389, %v468
  %v497 = vsub.f32 %v389, %v469
  %v498 = vsub.f32 %v393, %v468
  %v499 = vsub.f32 %v393, %v469
  %v500 = vsub.f32 %v397, %v468
  %v501 = vsub.f32 %v397, %v469
  %v502 = vsub.f32 %v401, %v468
  %v503 = vsub.f32 %v401, %v469
  %v504 = vsub.f32 %v405, %v468
  %v505 = vsub.f32 %v405, %v469
  %v506 = vsub.f32 %v409, %v468
  %v507 = vsub.f32 %v409, %v469
  %v508 = vsub.f32 %v413, %v468
  %v509 = vsub.f32 %v413, %v469
  %v510 = vsub.f32 %v417, %v468
  %v511 = vsub.f32 %v417, %v469
  %v512 = vsub.f32 %v421, %v468
  %v513 = vsub.f32 %v421, %v469
  %v514 = vsub.f32 %v425, %v468
  %v515 = vsub.f32 %v425, %v469
  %v516 = vsub.f32 %v429, %v468
  %v517 = vsub.f32 %v429, %v469
  %v518 = vsub.f32 %v433, %v468
  %v519 = vsub.f32 %v433, %v469
  %v520 = vsub.f32 %v437, %v468
  %v521 = vsub.f32 %v437, %v469
  %v522 = vsub.f32 %v441, %v468
  %v523 = vsub.f32 %v441, %v469
  %v524 = vsub.f32 %v445, %v468
  %v525 = vsub.f32 %v445, %v469
  %v526 = vsub.f32 %v449, %v468
  %v527 = vsub.f32 %v449, %v469
  %v528 = vsub.f32 %v453, %v468
  %v529 = vsub.f32 %v453, %v469
  %v530 = vsub.f32 %v457, %v468
  %v531 = vsub.f32 %v457, %v469
  %v532 = vsub.f32 %v461, %v468
  %v533 = vsub.f32 %v461, %v469
  %v534 = vsub.f32 %v465, %v468
  %v535 = vsub.f32 %v465, %v469
  %v536 = vmul.f32 %v472, %v472
  %v537 = vmul.f32 %v473, %v473
  %v538 = vmul.f32 %v474, %v474
  %v539 = vmul.f32 %v475, %v475
  %v540 = vmul.f32 %v476, %v476
  %v541 = vmul.f32 %v477, %v477
  %v542 = vmul.f32 %v478, %v478
  %v543 = vmul.f32 %v479, %v479
  %v544 = vmul.f32 %v480, %v480
  %v545 = vmul.f32 %v481, %v481
  %v546 = vmul.f32 %v482, %v482
  %v547 = vmul.f32 %v483, %v483
  %v548 = vmul.f32 %v484, %v484
  %v549 = vmul.f32 %v485, %v485
  %v550 = vmul.f32 %v486, %v486
  %v551 = vmul.f32 %v487, %v487
  %v552 = vmul.f32 %v488, %v488
  %v553 = vmul.f32 %v489, %v489
  %v554 = vmul.f32 %v490, %v490
  %v555 = vmul.f32 %v491, %v491
  %v556 = vmul.f32 %v492, %v492
  %v557 = vmul.f32 %v493, %v493
  %v558 = vmul.f32 %v494, %v494
  %v559 = vmul.f32 %v495, %v495
  %v560 = vmul.f32 %v496, %v496
  %v561 = vmul.f32 %v497, %v497
  %v562 = vmul.f32 %v498, %v498
  %v563 = vmul.f32 %v499, %v499
  %v564 = vmul.f32 %v500, %v500
  %v565 = vmul.f32 %v501, %v501
  %v566 = vmul.f32 %v502, %v502
  %v567 = vmul.f32 %v503, %v503
  %v568 = vmul.f32 %v504, %v504
  %v569 = vmul.f32 %v505, %v505
  %v570 = vmul.f32 %v506, %v506
  %v571 = vmul.f32 %v507, %v507
  %v572 = vmul.f32 %v508, %v508
  %v573 = vmul.f32 %v509, %v509
  %v574 = vmul.f32 %v510, %v510
  %v575 = vmul.f32 %v511, %v511
  %v576 = vmul.f32 %v512, %v512
  %v577 = vmul.f32 %v513, %v513
  %v578 = vmul.f32 %v514, %v514
  %v579 = vmul.f32 %v515, %v515
  %v580 = vmul.f32 %v516, %v516
  %v581 = vmul.f32 %v517, %v517
  %v582 = vmul.f32 %v518, %v518
  %v583 = vmul.f32 %v519, %v519
  %v584 = vmul.f32 %v520, %v520
  %v585 = vmul.f32 %v521, %v521
  %v586 = vmul.f32 %v522, %v522
  %v587 = vmul.f32 %v523, %v523
  %v588 = vmul.f32 %v524, %v524
  %v589 = vmul.f32 %v525, %v525
  %v590 = vmul.f32 %v526, %v526
  %v591 = vmul.f32 %v527, %v527
  %v592 = vmul.f32 %v528, %v528
  %v593 = vmul.f32 %v529, %v529
  %v594 = vmul.f32 %v530, %v530
  %v595 = vmul.f32 %v531, %v531
  %v596 = vmul.f32 %v532, %v532
  %v597 = vmul.f32 %v533, %v533
  %v598 = vmul.f32 %v534, %v534
  %v599 = vmul.f32 %v535, %v535
  %v600 = vadd.f32 %v273, %v536
  %v601 = vadd.f32 %v274, %v537
  %v602 = vadd.f32 %v275, %v538
  %v603 = vadd.f32 %v276, %v539
  %v604 = vadd.f32 %v277, %v540
  %v605 = vadd.f32 %v278, %v541
  %v606 = vadd.f32 %v279, %v542
  %v607 = vadd.f32 %v280, %v543
  %v608 = vadd.f32 %v281, %v544
  %v609 = vadd.f32 %v282, %v545
  %v610 = vadd.f32 %v283, %v546
  %v611 = vadd.f32 %v284, %v547
  %v612 = vadd.f32 %v285, %v548
  %v613 = vadd.f32 %v286, %v549
  %v614 = vadd.f32 %v287, %v550
  %v615 = vadd.f32 %v288, %v551
  %v616 = vadd.f32 %v289, %v552
  %v617 = vadd.f32 %v290, %v553
  %v618 = vadd.f32 %v291, %v554
  %v619 = vadd.f32 %v292, %v555
  %v620 = vadd.f32 %v293, %v556
  %v621 = vadd.f32 %v294, %v557
  %v622 = vadd.f32 %v295, %v558
  %v623 = vadd.f32 %v296, %v559
  %v624 = vadd.f32 %v297, %v560
  %v625 = vadd.f32 %v298, %v561
  %v626 = vadd.f32 %v299, %v562
  %v627 = vadd.f32 %v300, %v563
  %v628 = vadd.f32 %v301, %v564
  %v629 = vadd.f32 %v302, %v565
  %v630 = vadd.f32 %v303, %v566
  %v631 = vadd.f32 %v304, %v567
  %v632 = vadd.f32 %v305, %v568
  %v633 = vadd.f32 %v306, %v569
  %v634 = vadd.f32 %v307, %v570
  %v635 = vadd.f32 %v308, %v571
  %v636 = vadd.f32 %v309, %v572
  %v637 = vadd.f32 %v310, %v573
  %v638 = vadd.f32 %v311, %v574
  %v639 = vadd.f32 %v312, %v575
  %v640 = vadd.f32 %v313, %v576
  %v641 = vadd.f32 %v314, %v577
  %v642 = vadd.f32 %v315, %v578
  %v643 = vadd.f32 %v316, %v579
  %v644 = vadd.f32 %v317, %v580
  %v645 = vadd.f32 %v318, %v581
  %v646 = vadd.f32 %v319, %v582
  %v647 = vadd.f32 %v320, %v583
  %v648 = vadd.f32 %v321, %v584
  %v649 = vadd.f32 %v322, %v585
  %v650 = vadd.f32 %v323, %v586
  %v651 = vadd.f32 %v324, %v587
  %v652 = vadd.f32 %v325, %v588
  %v653 = vadd.f32 %v326, %v589
  %v654 = vadd.f32 %v327, %v590
  %v655 = vadd.f32 %v328, %v591
  %v656 = vadd.f32 %v329, %v592
  %v657 = vadd.f32 %v330, %v593
  %v658 = vadd.f32 %v331, %v594
  %v659 = vadd.f32 %v332, %v595
  %v660 = vadd.f32 %v333, %v596
  %v661 = vadd.f32 %v334, %v597
  %v662 = vadd.f32 %v335, %v598
  %v663 = vadd.f32 %v336, %v599
  %s664 = scalar_lea.vmem %s1, 2
  %v665 = vld [vmem:[%s664] ss:$8 sm:$0x3]
  %666 = vset.pattern.permute.xlu0 2
  %667 = vperm.xlu0 %666, %v11
  %v668 = vpop.permute.xlu0 %667
  %670 = vset.pattern.permute.xlu0 2
  %671 = vperm.xlu0 %670, %v12
  %v672 = vpop.permute.xlu0 %671
  %674 = vset.pattern.permute.xlu0 2
  %675 = vperm.xlu0 %674, %v13
  %v676 = vpop.permute.xlu0 %675
  %678 = vset.pattern.permute.xlu0 2
  %679 = vperm.xlu0 %678, %v14
  %v680 = vpop.permute.xlu0 %679
  %682 = vset.pattern.permute.xlu0 2
  %683 = vperm.xlu0 %682, %v15
  %v684 = vpop.permute.xlu0 %683
  %686 = vset.pattern.permute.xlu0 2
  %687 = vperm.xlu0 %686, %v16
  %v688 = vpop.permute.xlu0 %687
  %690 = vset.pattern.permute.xlu0 2
  %691 = vperm.xlu0 %690, %v17
  %v692 = vpop.permute.xlu0 %691
  %694 = vset.pattern.permute.xlu0 2
  %695 = vperm.xlu0 %694, %v18
  %v696 = vpop.permute.xlu0 %695
  %698 = vset.pattern.permute.xlu0 2
  %699 = vperm.xlu0 %698, %v19
  %v700 = vpop.permute.xlu0 %699
  %702 = vset.pattern.permute.xlu0 2
  %703 = vperm.xlu0 %702, %v20
  %v704 = vpop.permute.xlu0 %703
  %706 = vset.pattern.permute.xlu0 2
  %707 = vperm.xlu0 %706, %v21
  %v708 = vpop.permute.xlu0 %707
  %710 = vset.pattern.permute.xlu0 2
  %711 = vperm.xlu0 %710, %v22
  %v712 = vpop.permute.xlu0 %711
  %714 = vset.pattern.permute.xlu0 2
  %715 = vperm.xlu0 %714, %v23
  %v716 = vpop.permute.xlu0 %715
  %718 = vset.pattern.permute.xlu0 2
  %719 = vperm.xlu0 %718, %v24
  %v720 = vpop.permute.xlu0 %719
  %722 = vset.pattern.permute.xlu0 2
  %723 = vperm.xlu0 %722, %v25
  %v724 = vpop.permute.xlu0 %723
  %726 = vset.pattern.permute.xlu0 2
  %727 = vperm.xlu0 %726, %v26
  %v728 = vpop.permute.xlu0 %727
  %730 = vset.pattern.permute.xlu0 2
  %731 = vperm.xlu0 %730, %v27
  %v732 = vpop.permute.xlu0 %731
  %734 = vset.pattern.permute.xlu0 2
  %735 = vperm.xlu0 %734, %v28
  %v736 = vpop.permute.xlu0 %735
  %738 = vset.pattern.permute.xlu0 2
  %739 = vperm.xlu0 %738, %v29
  %v740 = vpop.permute.xlu0 %739
  %742 = vset.pattern.permute.xlu0 2
  %743 = vperm.xlu0 %742, %v30
  %v744 = vpop.permute.xlu0 %743
  %746 = vset.pattern.permute.xlu0 2
  %747 = vperm.xlu0 %746, %v31
  %v748 = vpop.permute.xlu0 %747
  %750 = vset.pattern.permute.xlu0 2
  %751 = vperm.xlu0 %750, %v32
  %v752 = vpop.permute.xlu0 %751
  %754 = vset.pattern.permute.xlu0 2
  %755 = vperm.xlu0 %754, %v33
  %v756 = vpop.permute.xlu0 %755
  %758 = vset.pattern.permute.xlu0 2
  %759 = vperm.xlu0 %758, %v34
  %v760 = vpop.permute.xlu0 %759
  %762 = vset.pattern.permute.xlu0 2
  %763 = vperm.xlu0 %762, %v35
  %v764 = vpop.permute.xlu0 %763
  %766 = vset.pattern.permute.xlu0 2
  %767 = vperm.xlu0 %766, %v36
  %v768 = vpop.permute.xlu0 %767
  %770 = vset.pattern.permute.xlu0 2
  %771 = vperm.xlu0 %770, %v37
  %v772 = vpop.permute.xlu0 %771
  %774 = vset.pattern.permute.xlu0 2
  %775 = vperm.xlu0 %774, %v38
  %v776 = vpop.permute.xlu0 %775
  %778 = vset.pattern.permute.xlu0 2
  %779 = vperm.xlu0 %778, %v39
  %v780 = vpop.permute.xlu0 %779
  %782 = vset.pattern.permute.xlu0 2
  %783 = vperm.xlu0 %782, %v40
  %v784 = vpop.permute.xlu0 %783
  %786 = vset.pattern.permute.xlu0 2
  %787 = vperm.xlu0 %786, %v41
  %v788 = vpop.permute.xlu0 %787
  %790 = vset.pattern.permute.xlu0 2
  %791 = vperm.xlu0 %790, %v42
  %v792 = vpop.permute.xlu0 %791
  %v795 = vperm.slane %v665, 0
  %v796 = vperm.slane %v665, 1
  %v799 = vsub.f32 %v668, %v795
  %v800 = vsub.f32 %v668, %v796
  %v801 = vsub.f32 %v672, %v795
  %v802 = vsub.f32 %v672, %v796
  %v803 = vsub.f32 %v676, %v795
  %v804 = vsub.f32 %v676, %v796
  %v805 = vsub.f32 %v680, %v795
  %v806 = vsub.f32 %v680, %v796
  %v807 = vsub.f32 %v684, %v795
  %v808 = vsub.f32 %v684, %v796
  %v809 = vsub.f32 %v688, %v795
  %v810 = vsub.f32 %v688, %v796
  %v811 = vsub.f32 %v692, %v795
  %v812 = vsub.f32 %v692, %v796
  %v813 = vsub.f32 %v696, %v795
  %v814 = vsub.f32 %v696, %v796
  %v815 = vsub.f32 %v700, %v795
  %v816 = vsub.f32 %v700, %v796
  %v817 = vsub.f32 %v704, %v795
  %v818 = vsub.f32 %v704, %v796
  %v819 = vsub.f32 %v708, %v795
  %v820 = vsub.f32 %v708, %v796
  %v821 = vsub.f32 %v712, %v795
  %v822 = vsub.f32 %v712, %v796
  %v823 = vsub.f32 %v716, %v795
  %v824 = vsub.f32 %v716, %v796
  %v825 = vsub.f32 %v720, %v795
  %v826 = vsub.f32 %v720, %v796
  %v827 = vsub.f32 %v724, %v795
  %v828 = vsub.f32 %v724, %v796
  %v829 = vsub.f32 %v728, %v795
  %v830 = vsub.f32 %v728, %v796
  %v831 = vsub.f32 %v732, %v795
  %v832 = vsub.f32 %v732, %v796
  %v833 = vsub.f32 %v736, %v795
  %v834 = vsub.f32 %v736, %v796
  %v835 = vsub.f32 %v740, %v795
  %v836 = vsub.f32 %v740, %v796
  %v837 = vsub.f32 %v744, %v795
  %v838 = vsub.f32 %v744, %v796
  %v839 = vsub.f32 %v748, %v795
  %v840 = vsub.f32 %v748, %v796
  %v841 = vsub.f32 %v752, %v795
  %v842 = vsub.f32 %v752, %v796
  %v843 = vsub.f32 %v756, %v795
  %v844 = vsub.f32 %v756, %v796
  %v845 = vsub.f32 %v760, %v795
  %v846 = vsub.f32 %v760, %v796
  %v847 = vsub.f32 %v764, %v795
  %v848 = vsub.f32 %v764, %v796
  %v849 = vsub.f32 %v768, %v795
  %v850 = vsub.f32 %v768, %v796
  %v851 = vsub.f32 %v772, %v795
  %v852 = vsub.f32 %v772, %v796
  %v853 = vsub.f32 %v776, %v795
  %v854 = vsub.f32 %v776, %v796
  %v855 = vsub.f32 %v780, %v795
  %v856 = vsub.f32 %v780, %v796
  %v857 = vsub.f32 %v784, %v795
  %v858 = vsub.f32 %v784, %v796
  %v859 = vsub.f32 %v788, %v795
  %v860 = vsub.f32 %v788, %v796
  %v861 = vsub.f32 %v792, %v795
  %v862 = vsub.f32 %v792, %v796
  %v863 = vmul.f32 %v799, %v799
  %v864 = vmul.f32 %v800, %v800
  %v865 = vmul.f32 %v801, %v801
  %v866 = vmul.f32 %v802, %v802
  %v867 = vmul.f32 %v803, %v803
  %v868 = vmul.f32 %v804, %v804
  %v869 = vmul.f32 %v805, %v805
  %v870 = vmul.f32 %v806, %v806
  %v871 = vmul.f32 %v807, %v807
  %v872 = vmul.f32 %v808, %v808
  %v873 = vmul.f32 %v809, %v809
  %v874 = vmul.f32 %v810, %v810
  %v875 = vmul.f32 %v811, %v811
  %v876 = vmul.f32 %v812, %v812
  %v877 = vmul.f32 %v813, %v813
  %v878 = vmul.f32 %v814, %v814
  %v879 = vmul.f32 %v815, %v815
  %v880 = vmul.f32 %v816, %v816
  %v881 = vmul.f32 %v817, %v817
  %v882 = vmul.f32 %v818, %v818
  %v883 = vmul.f32 %v819, %v819
  %v884 = vmul.f32 %v820, %v820
  %v885 = vmul.f32 %v821, %v821
  %v886 = vmul.f32 %v822, %v822
  %v887 = vmul.f32 %v823, %v823
  %v888 = vmul.f32 %v824, %v824
  %v889 = vmul.f32 %v825, %v825
  %v890 = vmul.f32 %v826, %v826
  %v891 = vmul.f32 %v827, %v827
  %v892 = vmul.f32 %v828, %v828
  %v893 = vmul.f32 %v829, %v829
  %v894 = vmul.f32 %v830, %v830
  %v895 = vmul.f32 %v831, %v831
  %v896 = vmul.f32 %v832, %v832
  %v897 = vmul.f32 %v833, %v833
  %v898 = vmul.f32 %v834, %v834
  %v899 = vmul.f32 %v835, %v835
  %v900 = vmul.f32 %v836, %v836
  %v901 = vmul.f32 %v837, %v837
  %v902 = vmul.f32 %v838, %v838
  %v903 = vmul.f32 %v839, %v839
  %v904 = vmul.f32 %v840, %v840
  %v905 = vmul.f32 %v841, %v841
  %v906 = vmul.f32 %v842, %v842
  %v907 = vmul.f32 %v843, %v843
  %v908 = vmul.f32 %v844, %v844
  %v909 = vmul.f32 %v845, %v845
  %v910 = vmul.f32 %v846, %v846
  %v911 = vmul.f32 %v847, %v847
  %v912 = vmul.f32 %v848, %v848
  %v913 = vmul.f32 %v849, %v849
  %v914 = vmul.f32 %v850, %v850
  %v915 = vmul.f32 %v851, %v851
  %v916 = vmul.f32 %v852, %v852
  %v917 = vmul.f32 %v853, %v853
  %v918 = vmul.f32 %v854, %v854
  %v919 = vmul.f32 %v855, %v855
  %v920 = vmul.f32 %v856, %v856
  %v921 = vmul.f32 %v857, %v857
  %v922 = vmul.f32 %v858, %v858
  %v923 = vmul.f32 %v859, %v859
  %v924 = vmul.f32 %v860, %v860
  %v925 = vmul.f32 %v861, %v861
  %v926 = vmul.f32 %v862, %v862
  %v927 = vadd.f32 %v600, %v863
  %v928 = vadd.f32 %v601, %v864
  %v929 = vadd.f32 %v602, %v865
  %v930 = vadd.f32 %v603, %v866
  %v931 = vadd.f32 %v604, %v867
  %v932 = vadd.f32 %v605, %v868
  %v933 = vadd.f32 %v606, %v869
  %v934 = vadd.f32 %v607, %v870
  %v935 = vadd.f32 %v608, %v871
  %v936 = vadd.f32 %v609, %v872
  %v937 = vadd.f32 %v610, %v873
  %v938 = vadd.f32 %v611, %v874
  %v939 = vadd.f32 %v612, %v875
  %v940 = vadd.f32 %v613, %v876
  %v941 = vadd.f32 %v614, %v877
  %v942 = vadd.f32 %v615, %v878
  %v943 = vadd.f32 %v616, %v879
  %v944 = vadd.f32 %v617, %v880
  %v945 = vadd.f32 %v618, %v881
  %v946 = vadd.f32 %v619, %v882
  %v947 = vadd.f32 %v620, %v883
  %v948 = vadd.f32 %v621, %v884
  %v949 = vadd.f32 %v622, %v885
  %v950 = vadd.f32 %v623, %v886
  %v951 = vadd.f32 %v624, %v887
  %v952 = vadd.f32 %v625, %v888
  %v953 = vadd.f32 %v626, %v889
  %v954 = vadd.f32 %v627, %v890
  %v955 = vadd.f32 %v628, %v891
  %v956 = vadd.f32 %v629, %v892
  %v957 = vadd.f32 %v630, %v893
  %v958 = vadd.f32 %v631, %v894
  %v959 = vadd.f32 %v632, %v895
  %v960 = vadd.f32 %v633, %v896
  %v961 = vadd.f32 %v634, %v897
  %v962 = vadd.f32 %v635, %v898
  %v963 = vadd.f32 %v636, %v899
  %v964 = vadd.f32 %v637, %v900
  %v965 = vadd.f32 %v638, %v901
  %v966 = vadd.f32 %v639, %v902
  %v967 = vadd.f32 %v640, %v903
  %v968 = vadd.f32 %v641, %v904
  %v969 = vadd.f32 %v642, %v905
  %v970 = vadd.f32 %v643, %v906
  %v971 = vadd.f32 %v644, %v907
  %v972 = vadd.f32 %v645, %v908
  %v973 = vadd.f32 %v646, %v909
  %v974 = vadd.f32 %v647, %v910
  %v975 = vadd.f32 %v648, %v911
  %v976 = vadd.f32 %v649, %v912
  %v977 = vadd.f32 %v650, %v913
  %v978 = vadd.f32 %v651, %v914
  %v979 = vadd.f32 %v652, %v915
  %v980 = vadd.f32 %v653, %v916
  %v981 = vadd.f32 %v654, %v917
  %v982 = vadd.f32 %v655, %v918
  %v983 = vadd.f32 %v656, %v919
  %v984 = vadd.f32 %v657, %v920
  %v985 = vadd.f32 %v658, %v921
  %v986 = vadd.f32 %v659, %v922
  %v987 = vadd.f32 %v660, %v923
  %v988 = vadd.f32 %v661, %v924
  %v989 = vadd.f32 %v662, %v925
  %v990 = vadd.f32 %v663, %v926
  %v991 = vrsqrt.pop %v927
  %v992 = vmul.f32 %v991, %v927
  %v993 = vmul.f32 %v992, %v991
  %v994 = vmul.f32 0.5, %v993
  %v995 = vsub.f32 1.5, %v994
  %v996 = vmul.f32 %v991, %v995
  %v997 = vmul.f32 %v927, %v996
  %vm998 = vcmp.eq.f32.partialorder %v927, inf
  %v999 = vsel %vm998, %v927, %v997
  %vm1000 = vcmp.eq.f32.partialorder %v927, 0.0
  %v1001 = vand.u32 %v927, 2147483648
  %v1002 = vsel %vm1000, %v1001, %v999
  %v1003 = vrsqrt.pop %v928
  %v1004 = vmul.f32 %v1003, %v928
  %v1005 = vmul.f32 %v1004, %v1003
  %v1006 = vmul.f32 0.5, %v1005
  %v1007 = vsub.f32 1.5, %v1006
  %v1008 = vmul.f32 %v1003, %v1007
  %v1009 = vmul.f32 %v928, %v1008
  %vm1010 = vcmp.eq.f32.partialorder %v928, inf
  %v1011 = vsel %vm1010, %v928, %v1009
  %vm1012 = vcmp.eq.f32.partialorder %v928, 0.0
  %v1013 = vand.u32 %v928, 2147483648
  %v1014 = vsel %vm1012, %v1013, %v1011
  %v1015 = vrsqrt.pop %v929
  %v1016 = vmul.f32 %v1015, %v929
  %v1017 = vmul.f32 %v1016, %v1015
  %v1018 = vmul.f32 0.5, %v1017
  %v1019 = vsub.f32 1.5, %v1018
  %v1020 = vmul.f32 %v1015, %v1019
  %v1021 = vmul.f32 %v929, %v1020
  %vm1022 = vcmp.eq.f32.partialorder %v929, inf
  %v1023 = vsel %vm1022, %v929, %v1021
  %vm1024 = vcmp.eq.f32.partialorder %v929, 0.0
  %v1025 = vand.u32 %v929, 2147483648
  %v1026 = vsel %vm1024, %v1025, %v1023
  %v1027 = vrsqrt.pop %v930
  %v1028 = vmul.f32 %v1027, %v930
  %v1029 = vmul.f32 %v1028, %v1027
  %v1030 = vmul.f32 0.5, %v1029
  %v1031 = vsub.f32 1.5, %v1030
  %v1032 = vmul.f32 %v1027, %v1031
  %v1033 = vmul.f32 %v930, %v1032
  %vm1034 = vcmp.eq.f32.partialorder %v930, inf
  %v1035 = vsel %vm1034, %v930, %v1033
  %vm1036 = vcmp.eq.f32.partialorder %v930, 0.0
  %v1037 = vand.u32 %v930, 2147483648
  %v1038 = vsel %vm1036, %v1037, %v1035
  %v1039 = vrsqrt.pop %v931
  %v1040 = vmul.f32 %v1039, %v931
  %v1041 = vmul.f32 %v1040, %v1039
  %v1042 = vmul.f32 0.5, %v1041
  %v1043 = vsub.f32 1.5, %v1042
  %v1044 = vmul.f32 %v1039, %v1043
  %v1045 = vmul.f32 %v931, %v1044
  %vm1046 = vcmp.eq.f32.partialorder %v931, inf
  %v1047 = vsel %vm1046, %v931, %v1045
  %vm1048 = vcmp.eq.f32.partialorder %v931, 0.0
  %v1049 = vand.u32 %v931, 2147483648
  %v1050 = vsel %vm1048, %v1049, %v1047
  %v1051 = vrsqrt.pop %v932
  %v1052 = vmul.f32 %v1051, %v932
  %v1053 = vmul.f32 %v1052, %v1051
  %v1054 = vmul.f32 0.5, %v1053
  %v1055 = vsub.f32 1.5, %v1054
  %v1056 = vmul.f32 %v1051, %v1055
  %v1057 = vmul.f32 %v932, %v1056
  %vm1058 = vcmp.eq.f32.partialorder %v932, inf
  %v1059 = vsel %vm1058, %v932, %v1057
  %vm1060 = vcmp.eq.f32.partialorder %v932, 0.0
  %v1061 = vand.u32 %v932, 2147483648
  %v1062 = vsel %vm1060, %v1061, %v1059
  %v1063 = vrsqrt.pop %v933
  %v1064 = vmul.f32 %v1063, %v933
  %v1065 = vmul.f32 %v1064, %v1063
  %v1066 = vmul.f32 0.5, %v1065
  %v1067 = vsub.f32 1.5, %v1066
  %v1068 = vmul.f32 %v1063, %v1067
  %v1069 = vmul.f32 %v933, %v1068
  %vm1070 = vcmp.eq.f32.partialorder %v933, inf
  %v1071 = vsel %vm1070, %v933, %v1069
  %vm1072 = vcmp.eq.f32.partialorder %v933, 0.0
  %v1073 = vand.u32 %v933, 2147483648
  %v1074 = vsel %vm1072, %v1073, %v1071
  %v1075 = vrsqrt.pop %v934
  %v1076 = vmul.f32 %v1075, %v934
  %v1077 = vmul.f32 %v1076, %v1075
  %v1078 = vmul.f32 0.5, %v1077
  %v1079 = vsub.f32 1.5, %v1078
  %v1080 = vmul.f32 %v1075, %v1079
  %v1081 = vmul.f32 %v934, %v1080
  %vm1082 = vcmp.eq.f32.partialorder %v934, inf
  %v1083 = vsel %vm1082, %v934, %v1081
  %vm1084 = vcmp.eq.f32.partialorder %v934, 0.0
  %v1085 = vand.u32 %v934, 2147483648
  %v1086 = vsel %vm1084, %v1085, %v1083
  %v1087 = vrsqrt.pop %v935
  %v1088 = vmul.f32 %v1087, %v935
  %v1089 = vmul.f32 %v1088, %v1087
  %v1090 = vmul.f32 0.5, %v1089
  %v1091 = vsub.f32 1.5, %v1090
  %v1092 = vmul.f32 %v1087, %v1091
  %v1093 = vmul.f32 %v935, %v1092
  %vm1094 = vcmp.eq.f32.partialorder %v935, inf
  %v1095 = vsel %vm1094, %v935, %v1093
  %vm1096 = vcmp.eq.f32.partialorder %v935, 0.0
  %v1097 = vand.u32 %v935, 2147483648
  %v1098 = vsel %vm1096, %v1097, %v1095
  %v1099 = vrsqrt.pop %v936
  %v1100 = vmul.f32 %v1099, %v936
  %v1101 = vmul.f32 %v1100, %v1099
  %v1102 = vmul.f32 0.5, %v1101
  %v1103 = vsub.f32 1.5, %v1102
  %v1104 = vmul.f32 %v1099, %v1103
  %v1105 = vmul.f32 %v936, %v1104
  %vm1106 = vcmp.eq.f32.partialorder %v936, inf
  %v1107 = vsel %vm1106, %v936, %v1105
  %vm1108 = vcmp.eq.f32.partialorder %v936, 0.0
  %v1109 = vand.u32 %v936, 2147483648
  %v1110 = vsel %vm1108, %v1109, %v1107
  %v1111 = vrsqrt.pop %v937
  %v1112 = vmul.f32 %v1111, %v937
  %v1113 = vmul.f32 %v1112, %v1111
  %v1114 = vmul.f32 0.5, %v1113
  %v1115 = vsub.f32 1.5, %v1114
  %v1116 = vmul.f32 %v1111, %v1115
  %v1117 = vmul.f32 %v937, %v1116
  %vm1118 = vcmp.eq.f32.partialorder %v937, inf
  %v1119 = vsel %vm1118, %v937, %v1117
  %vm1120 = vcmp.eq.f32.partialorder %v937, 0.0
  %v1121 = vand.u32 %v937, 2147483648
  %v1122 = vsel %vm1120, %v1121, %v1119
  %v1123 = vrsqrt.pop %v938
  %v1124 = vmul.f32 %v1123, %v938
  %v1125 = vmul.f32 %v1124, %v1123
  %v1126 = vmul.f32 0.5, %v1125
  %v1127 = vsub.f32 1.5, %v1126
  %v1128 = vmul.f32 %v1123, %v1127
  %v1129 = vmul.f32 %v938, %v1128
  %vm1130 = vcmp.eq.f32.partialorder %v938, inf
  %v1131 = vsel %vm1130, %v938, %v1129
  %vm1132 = vcmp.eq.f32.partialorder %v938, 0.0
  %v1133 = vand.u32 %v938, 2147483648
  %v1134 = vsel %vm1132, %v1133, %v1131
  %v1135 = vrsqrt.pop %v939
  %v1136 = vmul.f32 %v1135, %v939
  %v1137 = vmul.f32 %v1136, %v1135
  %v1138 = vmul.f32 0.5, %v1137
  %v1139 = vsub.f32 1.5, %v1138
  %v1140 = vmul.f32 %v1135, %v1139
  %v1141 = vmul.f32 %v939, %v1140
  %vm1142 = vcmp.eq.f32.partialorder %v939, inf
  %v1143 = vsel %vm1142, %v939, %v1141
  %vm1144 = vcmp.eq.f32.partialorder %v939, 0.0
  %v1145 = vand.u32 %v939, 2147483648
  %v1146 = vsel %vm1144, %v1145, %v1143
  %v1147 = vrsqrt.pop %v940
  %v1148 = vmul.f32 %v1147, %v940
  %v1149 = vmul.f32 %v1148, %v1147
  %v1150 = vmul.f32 0.5, %v1149
  %v1151 = vsub.f32 1.5, %v1150
  %v1152 = vmul.f32 %v1147, %v1151
  %v1153 = vmul.f32 %v940, %v1152
  %vm1154 = vcmp.eq.f32.partialorder %v940, inf
  %v1155 = vsel %vm1154, %v940, %v1153
  %vm1156 = vcmp.eq.f32.partialorder %v940, 0.0
  %v1157 = vand.u32 %v940, 2147483648
  %v1158 = vsel %vm1156, %v1157, %v1155
  %v1159 = vrsqrt.pop %v941
  %v1160 = vmul.f32 %v1159, %v941
  %v1161 = vmul.f32 %v1160, %v1159
  %v1162 = vmul.f32 0.5, %v1161
  %v1163 = vsub.f32 1.5, %v1162
  %v1164 = vmul.f32 %v1159, %v1163
  %v1165 = vmul.f32 %v941, %v1164
  %vm1166 = vcmp.eq.f32.partialorder %v941, inf
  %v1167 = vsel %vm1166, %v941, %v1165
  %vm1168 = vcmp.eq.f32.partialorder %v941, 0.0
  %v1169 = vand.u32 %v941, 2147483648
  %v1170 = vsel %vm1168, %v1169, %v1167
  %v1171 = vrsqrt.pop %v942
  %v1172 = vmul.f32 %v1171, %v942
  %v1173 = vmul.f32 %v1172, %v1171
  %v1174 = vmul.f32 0.5, %v1173
  %v1175 = vsub.f32 1.5, %v1174
  %v1176 = vmul.f32 %v1171, %v1175
  %v1177 = vmul.f32 %v942, %v1176
  %vm1178 = vcmp.eq.f32.partialorder %v942, inf
  %v1179 = vsel %vm1178, %v942, %v1177
  %vm1180 = vcmp.eq.f32.partialorder %v942, 0.0
  %v1181 = vand.u32 %v942, 2147483648
  %v1182 = vsel %vm1180, %v1181, %v1179
  %v1183 = vrsqrt.pop %v943
  %v1184 = vmul.f32 %v1183, %v943
  %v1185 = vmul.f32 %v1184, %v1183
  %v1186 = vmul.f32 0.5, %v1185
  %v1187 = vsub.f32 1.5, %v1186
  %v1188 = vmul.f32 %v1183, %v1187
  %v1189 = vmul.f32 %v943, %v1188
  %vm1190 = vcmp.eq.f32.partialorder %v943, inf
  %v1191 = vsel %vm1190, %v943, %v1189
  %vm1192 = vcmp.eq.f32.partialorder %v943, 0.0
  %v1193 = vand.u32 %v943, 2147483648
  %v1194 = vsel %vm1192, %v1193, %v1191
  %v1195 = vrsqrt.pop %v944
  %v1196 = vmul.f32 %v1195, %v944
  %v1197 = vmul.f32 %v1196, %v1195
  %v1198 = vmul.f32 0.5, %v1197
  %v1199 = vsub.f32 1.5, %v1198
  %v1200 = vmul.f32 %v1195, %v1199
  %v1201 = vmul.f32 %v944, %v1200
  %vm1202 = vcmp.eq.f32.partialorder %v944, inf
  %v1203 = vsel %vm1202, %v944, %v1201
  %vm1204 = vcmp.eq.f32.partialorder %v944, 0.0
  %v1205 = vand.u32 %v944, 2147483648
  %v1206 = vsel %vm1204, %v1205, %v1203
  %v1207 = vrsqrt.pop %v945
  %v1208 = vmul.f32 %v1207, %v945
  %v1209 = vmul.f32 %v1208, %v1207
  %v1210 = vmul.f32 0.5, %v1209
  %v1211 = vsub.f32 1.5, %v1210
  %v1212 = vmul.f32 %v1207, %v1211
  %v1213 = vmul.f32 %v945, %v1212
  %vm1214 = vcmp.eq.f32.partialorder %v945, inf
  %v1215 = vsel %vm1214, %v945, %v1213
  %vm1216 = vcmp.eq.f32.partialorder %v945, 0.0
  %v1217 = vand.u32 %v945, 2147483648
  %v1218 = vsel %vm1216, %v1217, %v1215
  %v1219 = vrsqrt.pop %v946
  %v1220 = vmul.f32 %v1219, %v946
  %v1221 = vmul.f32 %v1220, %v1219
  %v1222 = vmul.f32 0.5, %v1221
  %v1223 = vsub.f32 1.5, %v1222
  %v1224 = vmul.f32 %v1219, %v1223
  %v1225 = vmul.f32 %v946, %v1224
  %vm1226 = vcmp.eq.f32.partialorder %v946, inf
  %v1227 = vsel %vm1226, %v946, %v1225
  %vm1228 = vcmp.eq.f32.partialorder %v946, 0.0
  %v1229 = vand.u32 %v946, 2147483648
  %v1230 = vsel %vm1228, %v1229, %v1227
  %v1231 = vrsqrt.pop %v947
  %v1232 = vmul.f32 %v1231, %v947
  %v1233 = vmul.f32 %v1232, %v1231
  %v1234 = vmul.f32 0.5, %v1233
  %v1235 = vsub.f32 1.5, %v1234
  %v1236 = vmul.f32 %v1231, %v1235
  %v1237 = vmul.f32 %v947, %v1236
  %vm1238 = vcmp.eq.f32.partialorder %v947, inf
  %v1239 = vsel %vm1238, %v947, %v1237
  %vm1240 = vcmp.eq.f32.partialorder %v947, 0.0
  %v1241 = vand.u32 %v947, 2147483648
  %v1242 = vsel %vm1240, %v1241, %v1239
  %v1243 = vrsqrt.pop %v948
  %v1244 = vmul.f32 %v1243, %v948
  %v1245 = vmul.f32 %v1244, %v1243
  %v1246 = vmul.f32 0.5, %v1245
  %v1247 = vsub.f32 1.5, %v1246
  %v1248 = vmul.f32 %v1243, %v1247
  %v1249 = vmul.f32 %v948, %v1248
  %vm1250 = vcmp.eq.f32.partialorder %v948, inf
  %v1251 = vsel %vm1250, %v948, %v1249
  %vm1252 = vcmp.eq.f32.partialorder %v948, 0.0
  %v1253 = vand.u32 %v948, 2147483648
  %v1254 = vsel %vm1252, %v1253, %v1251
  %v1255 = vrsqrt.pop %v949
  %v1256 = vmul.f32 %v1255, %v949
  %v1257 = vmul.f32 %v1256, %v1255
  %v1258 = vmul.f32 0.5, %v1257
  %v1259 = vsub.f32 1.5, %v1258
  %v1260 = vmul.f32 %v1255, %v1259
  %v1261 = vmul.f32 %v949, %v1260
  %vm1262 = vcmp.eq.f32.partialorder %v949, inf
  %v1263 = vsel %vm1262, %v949, %v1261
  %vm1264 = vcmp.eq.f32.partialorder %v949, 0.0
  %v1265 = vand.u32 %v949, 2147483648
  %v1266 = vsel %vm1264, %v1265, %v1263
  %v1267 = vrsqrt.pop %v950
  %v1268 = vmul.f32 %v1267, %v950
  %v1269 = vmul.f32 %v1268, %v1267
  %v1270 = vmul.f32 0.5, %v1269
  %v1271 = vsub.f32 1.5, %v1270
  %v1272 = vmul.f32 %v1267, %v1271
  %v1273 = vmul.f32 %v950, %v1272
  %vm1274 = vcmp.eq.f32.partialorder %v950, inf
  %v1275 = vsel %vm1274, %v950, %v1273
  %vm1276 = vcmp.eq.f32.partialorder %v950, 0.0
  %v1277 = vand.u32 %v950, 2147483648
  %v1278 = vsel %vm1276, %v1277, %v1275
  %v1279 = vrsqrt.pop %v951
  %v1280 = vmul.f32 %v1279, %v951
  %v1281 = vmul.f32 %v1280, %v1279
  %v1282 = vmul.f32 0.5, %v1281
  %v1283 = vsub.f32 1.5, %v1282
  %v1284 = vmul.f32 %v1279, %v1283
  %v1285 = vmul.f32 %v951, %v1284
  %vm1286 = vcmp.eq.f32.partialorder %v951, inf
  %v1287 = vsel %vm1286, %v951, %v1285
  %vm1288 = vcmp.eq.f32.partialorder %v951, 0.0
  %v1289 = vand.u32 %v951, 2147483648
  %v1290 = vsel %vm1288, %v1289, %v1287
  %v1291 = vrsqrt.pop %v952
  %v1292 = vmul.f32 %v1291, %v952
  %v1293 = vmul.f32 %v1292, %v1291
  %v1294 = vmul.f32 0.5, %v1293
  %v1295 = vsub.f32 1.5, %v1294
  %v1296 = vmul.f32 %v1291, %v1295
  %v1297 = vmul.f32 %v952, %v1296
  %vm1298 = vcmp.eq.f32.partialorder %v952, inf
  %v1299 = vsel %vm1298, %v952, %v1297
  %vm1300 = vcmp.eq.f32.partialorder %v952, 0.0
  %v1301 = vand.u32 %v952, 2147483648
  %v1302 = vsel %vm1300, %v1301, %v1299
  %v1303 = vrsqrt.pop %v953
  %v1304 = vmul.f32 %v1303, %v953
  %v1305 = vmul.f32 %v1304, %v1303
  %v1306 = vmul.f32 0.5, %v1305
  %v1307 = vsub.f32 1.5, %v1306
  %v1308 = vmul.f32 %v1303, %v1307
  %v1309 = vmul.f32 %v953, %v1308
  %vm1310 = vcmp.eq.f32.partialorder %v953, inf
  %v1311 = vsel %vm1310, %v953, %v1309
  %vm1312 = vcmp.eq.f32.partialorder %v953, 0.0
  %v1313 = vand.u32 %v953, 2147483648
  %v1314 = vsel %vm1312, %v1313, %v1311
  %v1315 = vrsqrt.pop %v954
  %v1316 = vmul.f32 %v1315, %v954
  %v1317 = vmul.f32 %v1316, %v1315
  %v1318 = vmul.f32 0.5, %v1317
  %v1319 = vsub.f32 1.5, %v1318
  %v1320 = vmul.f32 %v1315, %v1319
  %v1321 = vmul.f32 %v954, %v1320
  %vm1322 = vcmp.eq.f32.partialorder %v954, inf
  %v1323 = vsel %vm1322, %v954, %v1321
  %vm1324 = vcmp.eq.f32.partialorder %v954, 0.0
  %v1325 = vand.u32 %v954, 2147483648
  %v1326 = vsel %vm1324, %v1325, %v1323
  %v1327 = vrsqrt.pop %v955
  %v1328 = vmul.f32 %v1327, %v955
  %v1329 = vmul.f32 %v1328, %v1327
  %v1330 = vmul.f32 0.5, %v1329
  %v1331 = vsub.f32 1.5, %v1330
  %v1332 = vmul.f32 %v1327, %v1331
  %v1333 = vmul.f32 %v955, %v1332
  %vm1334 = vcmp.eq.f32.partialorder %v955, inf
  %v1335 = vsel %vm1334, %v955, %v1333
  %vm1336 = vcmp.eq.f32.partialorder %v955, 0.0
  %v1337 = vand.u32 %v955, 2147483648
  %v1338 = vsel %vm1336, %v1337, %v1335
  %v1339 = vrsqrt.pop %v956
  %v1340 = vmul.f32 %v1339, %v956
  %v1341 = vmul.f32 %v1340, %v1339
  %v1342 = vmul.f32 0.5, %v1341
  %v1343 = vsub.f32 1.5, %v1342
  %v1344 = vmul.f32 %v1339, %v1343
  %v1345 = vmul.f32 %v956, %v1344
  %vm1346 = vcmp.eq.f32.partialorder %v956, inf
  %v1347 = vsel %vm1346, %v956, %v1345
  %vm1348 = vcmp.eq.f32.partialorder %v956, 0.0
  %v1349 = vand.u32 %v956, 2147483648
  %v1350 = vsel %vm1348, %v1349, %v1347
  %v1351 = vrsqrt.pop %v957
  %v1352 = vmul.f32 %v1351, %v957
  %v1353 = vmul.f32 %v1352, %v1351
  %v1354 = vmul.f32 0.5, %v1353
  %v1355 = vsub.f32 1.5, %v1354
  %v1356 = vmul.f32 %v1351, %v1355
  %v1357 = vmul.f32 %v957, %v1356
  %vm1358 = vcmp.eq.f32.partialorder %v957, inf
  %v1359 = vsel %vm1358, %v957, %v1357
  %vm1360 = vcmp.eq.f32.partialorder %v957, 0.0
  %v1361 = vand.u32 %v957, 2147483648
  %v1362 = vsel %vm1360, %v1361, %v1359
  %v1363 = vrsqrt.pop %v958
  %v1364 = vmul.f32 %v1363, %v958
  %v1365 = vmul.f32 %v1364, %v1363
  %v1366 = vmul.f32 0.5, %v1365
  %v1367 = vsub.f32 1.5, %v1366
  %v1368 = vmul.f32 %v1363, %v1367
  %v1369 = vmul.f32 %v958, %v1368
  %vm1370 = vcmp.eq.f32.partialorder %v958, inf
  %v1371 = vsel %vm1370, %v958, %v1369
  %vm1372 = vcmp.eq.f32.partialorder %v958, 0.0
  %v1373 = vand.u32 %v958, 2147483648
  %v1374 = vsel %vm1372, %v1373, %v1371
  %v1375 = vrsqrt.pop %v959
  %v1376 = vmul.f32 %v1375, %v959
  %v1377 = vmul.f32 %v1376, %v1375
  %v1378 = vmul.f32 0.5, %v1377
  %v1379 = vsub.f32 1.5, %v1378
  %v1380 = vmul.f32 %v1375, %v1379
  %v1381 = vmul.f32 %v959, %v1380
  %vm1382 = vcmp.eq.f32.partialorder %v959, inf
  %v1383 = vsel %vm1382, %v959, %v1381
  %vm1384 = vcmp.eq.f32.partialorder %v959, 0.0
  %v1385 = vand.u32 %v959, 2147483648
  %v1386 = vsel %vm1384, %v1385, %v1383
  %v1387 = vrsqrt.pop %v960
  %v1388 = vmul.f32 %v1387, %v960
  %v1389 = vmul.f32 %v1388, %v1387
  %v1390 = vmul.f32 0.5, %v1389
  %v1391 = vsub.f32 1.5, %v1390
  %v1392 = vmul.f32 %v1387, %v1391
  %v1393 = vmul.f32 %v960, %v1392
  %vm1394 = vcmp.eq.f32.partialorder %v960, inf
  %v1395 = vsel %vm1394, %v960, %v1393
  %vm1396 = vcmp.eq.f32.partialorder %v960, 0.0
  %v1397 = vand.u32 %v960, 2147483648
  %v1398 = vsel %vm1396, %v1397, %v1395
  %v1399 = vrsqrt.pop %v961
  %v1400 = vmul.f32 %v1399, %v961
  %v1401 = vmul.f32 %v1400, %v1399
  %v1402 = vmul.f32 0.5, %v1401
  %v1403 = vsub.f32 1.5, %v1402
  %v1404 = vmul.f32 %v1399, %v1403
  %v1405 = vmul.f32 %v961, %v1404
  %vm1406 = vcmp.eq.f32.partialorder %v961, inf
  %v1407 = vsel %vm1406, %v961, %v1405
  %vm1408 = vcmp.eq.f32.partialorder %v961, 0.0
  %v1409 = vand.u32 %v961, 2147483648
  %v1410 = vsel %vm1408, %v1409, %v1407
  %v1411 = vrsqrt.pop %v962
  %v1412 = vmul.f32 %v1411, %v962
  %v1413 = vmul.f32 %v1412, %v1411
  %v1414 = vmul.f32 0.5, %v1413
  %v1415 = vsub.f32 1.5, %v1414
  %v1416 = vmul.f32 %v1411, %v1415
  %v1417 = vmul.f32 %v962, %v1416
  %vm1418 = vcmp.eq.f32.partialorder %v962, inf
  %v1419 = vsel %vm1418, %v962, %v1417
  %vm1420 = vcmp.eq.f32.partialorder %v962, 0.0
  %v1421 = vand.u32 %v962, 2147483648
  %v1422 = vsel %vm1420, %v1421, %v1419
  %v1423 = vrsqrt.pop %v963
  %v1424 = vmul.f32 %v1423, %v963
  %v1425 = vmul.f32 %v1424, %v1423
  %v1426 = vmul.f32 0.5, %v1425
  %v1427 = vsub.f32 1.5, %v1426
  %v1428 = vmul.f32 %v1423, %v1427
  %v1429 = vmul.f32 %v963, %v1428
  %vm1430 = vcmp.eq.f32.partialorder %v963, inf
  %v1431 = vsel %vm1430, %v963, %v1429
  %vm1432 = vcmp.eq.f32.partialorder %v963, 0.0
  %v1433 = vand.u32 %v963, 2147483648
  %v1434 = vsel %vm1432, %v1433, %v1431
  %v1435 = vrsqrt.pop %v964
  %v1436 = vmul.f32 %v1435, %v964
  %v1437 = vmul.f32 %v1436, %v1435
  %v1438 = vmul.f32 0.5, %v1437
  %v1439 = vsub.f32 1.5, %v1438
  %v1440 = vmul.f32 %v1435, %v1439
  %v1441 = vmul.f32 %v964, %v1440
  %vm1442 = vcmp.eq.f32.partialorder %v964, inf
  %v1443 = vsel %vm1442, %v964, %v1441
  %vm1444 = vcmp.eq.f32.partialorder %v964, 0.0
  %v1445 = vand.u32 %v964, 2147483648
  %v1446 = vsel %vm1444, %v1445, %v1443
  %v1447 = vrsqrt.pop %v965
  %v1448 = vmul.f32 %v1447, %v965
  %v1449 = vmul.f32 %v1448, %v1447
  %v1450 = vmul.f32 0.5, %v1449
  %v1451 = vsub.f32 1.5, %v1450
  %v1452 = vmul.f32 %v1447, %v1451
  %v1453 = vmul.f32 %v965, %v1452
  %vm1454 = vcmp.eq.f32.partialorder %v965, inf
  %v1455 = vsel %vm1454, %v965, %v1453
  %vm1456 = vcmp.eq.f32.partialorder %v965, 0.0
  %v1457 = vand.u32 %v965, 2147483648
  %v1458 = vsel %vm1456, %v1457, %v1455
  %v1459 = vrsqrt.pop %v966
  %v1460 = vmul.f32 %v1459, %v966
  %v1461 = vmul.f32 %v1460, %v1459
  %v1462 = vmul.f32 0.5, %v1461
  %v1463 = vsub.f32 1.5, %v1462
  %v1464 = vmul.f32 %v1459, %v1463
  %v1465 = vmul.f32 %v966, %v1464
  %vm1466 = vcmp.eq.f32.partialorder %v966, inf
  %v1467 = vsel %vm1466, %v966, %v1465
  %vm1468 = vcmp.eq.f32.partialorder %v966, 0.0
  %v1469 = vand.u32 %v966, 2147483648
  %v1470 = vsel %vm1468, %v1469, %v1467
  %v1471 = vrsqrt.pop %v967
  %v1472 = vmul.f32 %v1471, %v967
  %v1473 = vmul.f32 %v1472, %v1471
  %v1474 = vmul.f32 0.5, %v1473
  %v1475 = vsub.f32 1.5, %v1474
  %v1476 = vmul.f32 %v1471, %v1475
  %v1477 = vmul.f32 %v967, %v1476
  %vm1478 = vcmp.eq.f32.partialorder %v967, inf
  %v1479 = vsel %vm1478, %v967, %v1477
  %vm1480 = vcmp.eq.f32.partialorder %v967, 0.0
  %v1481 = vand.u32 %v967, 2147483648
  %v1482 = vsel %vm1480, %v1481, %v1479
  %v1483 = vrsqrt.pop %v968
  %v1484 = vmul.f32 %v1483, %v968
  %v1485 = vmul.f32 %v1484, %v1483
  %v1486 = vmul.f32 0.5, %v1485
  %v1487 = vsub.f32 1.5, %v1486
  %v1488 = vmul.f32 %v1483, %v1487
  %v1489 = vmul.f32 %v968, %v1488
  %vm1490 = vcmp.eq.f32.partialorder %v968, inf
  %v1491 = vsel %vm1490, %v968, %v1489
  %vm1492 = vcmp.eq.f32.partialorder %v968, 0.0
  %v1493 = vand.u32 %v968, 2147483648
  %v1494 = vsel %vm1492, %v1493, %v1491
  %v1495 = vrsqrt.pop %v969
  %v1496 = vmul.f32 %v1495, %v969
  %v1497 = vmul.f32 %v1496, %v1495
  %v1498 = vmul.f32 0.5, %v1497
  %v1499 = vsub.f32 1.5, %v1498
  %v1500 = vmul.f32 %v1495, %v1499
  %v1501 = vmul.f32 %v969, %v1500
  %vm1502 = vcmp.eq.f32.partialorder %v969, inf
  %v1503 = vsel %vm1502, %v969, %v1501
  %vm1504 = vcmp.eq.f32.partialorder %v969, 0.0
  %v1505 = vand.u32 %v969, 2147483648
  %v1506 = vsel %vm1504, %v1505, %v1503
  %v1507 = vrsqrt.pop %v970
  %v1508 = vmul.f32 %v1507, %v970
  %v1509 = vmul.f32 %v1508, %v1507
  %v1510 = vmul.f32 0.5, %v1509
  %v1511 = vsub.f32 1.5, %v1510
  %v1512 = vmul.f32 %v1507, %v1511
  %v1513 = vmul.f32 %v970, %v1512
  %vm1514 = vcmp.eq.f32.partialorder %v970, inf
  %v1515 = vsel %vm1514, %v970, %v1513
  %vm1516 = vcmp.eq.f32.partialorder %v970, 0.0
  %v1517 = vand.u32 %v970, 2147483648
  %v1518 = vsel %vm1516, %v1517, %v1515
  %v1519 = vrsqrt.pop %v971
  %v1520 = vmul.f32 %v1519, %v971
  %v1521 = vmul.f32 %v1520, %v1519
  %v1522 = vmul.f32 0.5, %v1521
  %v1523 = vsub.f32 1.5, %v1522
  %v1524 = vmul.f32 %v1519, %v1523
  %v1525 = vmul.f32 %v971, %v1524
  %vm1526 = vcmp.eq.f32.partialorder %v971, inf
  %v1527 = vsel %vm1526, %v971, %v1525
  %vm1528 = vcmp.eq.f32.partialorder %v971, 0.0
  %v1529 = vand.u32 %v971, 2147483648
  %v1530 = vsel %vm1528, %v1529, %v1527
  %v1531 = vrsqrt.pop %v972
  %v1532 = vmul.f32 %v1531, %v972
  %v1533 = vmul.f32 %v1532, %v1531
  %v1534 = vmul.f32 0.5, %v1533
  %v1535 = vsub.f32 1.5, %v1534
  %v1536 = vmul.f32 %v1531, %v1535
  %v1537 = vmul.f32 %v972, %v1536
  %vm1538 = vcmp.eq.f32.partialorder %v972, inf
  %v1539 = vsel %vm1538, %v972, %v1537
  %vm1540 = vcmp.eq.f32.partialorder %v972, 0.0
  %v1541 = vand.u32 %v972, 2147483648
  %v1542 = vsel %vm1540, %v1541, %v1539
  %v1543 = vrsqrt.pop %v973
  %v1544 = vmul.f32 %v1543, %v973
  %v1545 = vmul.f32 %v1544, %v1543
  %v1546 = vmul.f32 0.5, %v1545
  %v1547 = vsub.f32 1.5, %v1546
  %v1548 = vmul.f32 %v1543, %v1547
  %v1549 = vmul.f32 %v973, %v1548
  %vm1550 = vcmp.eq.f32.partialorder %v973, inf
  %v1551 = vsel %vm1550, %v973, %v1549
  %vm1552 = vcmp.eq.f32.partialorder %v973, 0.0
  %v1553 = vand.u32 %v973, 2147483648
  %v1554 = vsel %vm1552, %v1553, %v1551
  %v1555 = vrsqrt.pop %v974
  %v1556 = vmul.f32 %v1555, %v974
  %v1557 = vmul.f32 %v1556, %v1555
  %v1558 = vmul.f32 0.5, %v1557
  %v1559 = vsub.f32 1.5, %v1558
  %v1560 = vmul.f32 %v1555, %v1559
  %v1561 = vmul.f32 %v974, %v1560
  %vm1562 = vcmp.eq.f32.partialorder %v974, inf
  %v1563 = vsel %vm1562, %v974, %v1561
  %vm1564 = vcmp.eq.f32.partialorder %v974, 0.0
  %v1565 = vand.u32 %v974, 2147483648
  %v1566 = vsel %vm1564, %v1565, %v1563
  %v1567 = vrsqrt.pop %v975
  %v1568 = vmul.f32 %v1567, %v975
  %v1569 = vmul.f32 %v1568, %v1567
  %v1570 = vmul.f32 0.5, %v1569
  %v1571 = vsub.f32 1.5, %v1570
  %v1572 = vmul.f32 %v1567, %v1571
  %v1573 = vmul.f32 %v975, %v1572
  %vm1574 = vcmp.eq.f32.partialorder %v975, inf
  %v1575 = vsel %vm1574, %v975, %v1573
  %vm1576 = vcmp.eq.f32.partialorder %v975, 0.0
  %v1577 = vand.u32 %v975, 2147483648
  %v1578 = vsel %vm1576, %v1577, %v1575
  %v1579 = vrsqrt.pop %v976
  %v1580 = vmul.f32 %v1579, %v976
  %v1581 = vmul.f32 %v1580, %v1579
  %v1582 = vmul.f32 0.5, %v1581
  %v1583 = vsub.f32 1.5, %v1582
  %v1584 = vmul.f32 %v1579, %v1583
  %v1585 = vmul.f32 %v976, %v1584
  %vm1586 = vcmp.eq.f32.partialorder %v976, inf
  %v1587 = vsel %vm1586, %v976, %v1585
  %vm1588 = vcmp.eq.f32.partialorder %v976, 0.0
  %v1589 = vand.u32 %v976, 2147483648
  %v1590 = vsel %vm1588, %v1589, %v1587
  %v1591 = vrsqrt.pop %v977
  %v1592 = vmul.f32 %v1591, %v977
  %v1593 = vmul.f32 %v1592, %v1591
  %v1594 = vmul.f32 0.5, %v1593
  %v1595 = vsub.f32 1.5, %v1594
  %v1596 = vmul.f32 %v1591, %v1595
  %v1597 = vmul.f32 %v977, %v1596
  %vm1598 = vcmp.eq.f32.partialorder %v977, inf
  %v1599 = vsel %vm1598, %v977, %v1597
  %vm1600 = vcmp.eq.f32.partialorder %v977, 0.0
  %v1601 = vand.u32 %v977, 2147483648
  %v1602 = vsel %vm1600, %v1601, %v1599
  %v1603 = vrsqrt.pop %v978
  %v1604 = vmul.f32 %v1603, %v978
  %v1605 = vmul.f32 %v1604, %v1603
  %v1606 = vmul.f32 0.5, %v1605
  %v1607 = vsub.f32 1.5, %v1606
  %v1608 = vmul.f32 %v1603, %v1607
  %v1609 = vmul.f32 %v978, %v1608
  %vm1610 = vcmp.eq.f32.partialorder %v978, inf
  %v1611 = vsel %vm1610, %v978, %v1609
  %vm1612 = vcmp.eq.f32.partialorder %v978, 0.0
  %v1613 = vand.u32 %v978, 2147483648
  %v1614 = vsel %vm1612, %v1613, %v1611
  %v1615 = vrsqrt.pop %v979
  %v1616 = vmul.f32 %v1615, %v979
  %v1617 = vmul.f32 %v1616, %v1615
  %v1618 = vmul.f32 0.5, %v1617
  %v1619 = vsub.f32 1.5, %v1618
  %v1620 = vmul.f32 %v1615, %v1619
  %v1621 = vmul.f32 %v979, %v1620
  %vm1622 = vcmp.eq.f32.partialorder %v979, inf
  %v1623 = vsel %vm1622, %v979, %v1621
  %vm1624 = vcmp.eq.f32.partialorder %v979, 0.0
  %v1625 = vand.u32 %v979, 2147483648
  %v1626 = vsel %vm1624, %v1625, %v1623
  %v1627 = vrsqrt.pop %v980
  %v1628 = vmul.f32 %v1627, %v980
  %v1629 = vmul.f32 %v1628, %v1627
  %v1630 = vmul.f32 0.5, %v1629
  %v1631 = vsub.f32 1.5, %v1630
  %v1632 = vmul.f32 %v1627, %v1631
  %v1633 = vmul.f32 %v980, %v1632
  %vm1634 = vcmp.eq.f32.partialorder %v980, inf
  %v1635 = vsel %vm1634, %v980, %v1633
  %vm1636 = vcmp.eq.f32.partialorder %v980, 0.0
  %v1637 = vand.u32 %v980, 2147483648
  %v1638 = vsel %vm1636, %v1637, %v1635
  %v1639 = vrsqrt.pop %v981
  %v1640 = vmul.f32 %v1639, %v981
  %v1641 = vmul.f32 %v1640, %v1639
  %v1642 = vmul.f32 0.5, %v1641
  %v1643 = vsub.f32 1.5, %v1642
  %v1644 = vmul.f32 %v1639, %v1643
  %v1645 = vmul.f32 %v981, %v1644
  %vm1646 = vcmp.eq.f32.partialorder %v981, inf
  %v1647 = vsel %vm1646, %v981, %v1645
  %vm1648 = vcmp.eq.f32.partialorder %v981, 0.0
  %v1649 = vand.u32 %v981, 2147483648
  %v1650 = vsel %vm1648, %v1649, %v1647
  %v1651 = vrsqrt.pop %v982
  %v1652 = vmul.f32 %v1651, %v982
  %v1653 = vmul.f32 %v1652, %v1651
  %v1654 = vmul.f32 0.5, %v1653
  %v1655 = vsub.f32 1.5, %v1654
  %v1656 = vmul.f32 %v1651, %v1655
  %v1657 = vmul.f32 %v982, %v1656
  %vm1658 = vcmp.eq.f32.partialorder %v982, inf
  %v1659 = vsel %vm1658, %v982, %v1657
  %vm1660 = vcmp.eq.f32.partialorder %v982, 0.0
  %v1661 = vand.u32 %v982, 2147483648
  %v1662 = vsel %vm1660, %v1661, %v1659
  %v1663 = vrsqrt.pop %v983
  %v1664 = vmul.f32 %v1663, %v983
  %v1665 = vmul.f32 %v1664, %v1663
  %v1666 = vmul.f32 0.5, %v1665
  %v1667 = vsub.f32 1.5, %v1666
  %v1668 = vmul.f32 %v1663, %v1667
  %v1669 = vmul.f32 %v983, %v1668
  %vm1670 = vcmp.eq.f32.partialorder %v983, inf
  %v1671 = vsel %vm1670, %v983, %v1669
  %vm1672 = vcmp.eq.f32.partialorder %v983, 0.0
  %v1673 = vand.u32 %v983, 2147483648
  %v1674 = vsel %vm1672, %v1673, %v1671
  %v1675 = vrsqrt.pop %v984
  %v1676 = vmul.f32 %v1675, %v984
  %v1677 = vmul.f32 %v1676, %v1675
  %v1678 = vmul.f32 0.5, %v1677
  %v1679 = vsub.f32 1.5, %v1678
  %v1680 = vmul.f32 %v1675, %v1679
  %v1681 = vmul.f32 %v984, %v1680
  %vm1682 = vcmp.eq.f32.partialorder %v984, inf
  %v1683 = vsel %vm1682, %v984, %v1681
  %vm1684 = vcmp.eq.f32.partialorder %v984, 0.0
  %v1685 = vand.u32 %v984, 2147483648
  %v1686 = vsel %vm1684, %v1685, %v1683
  %v1687 = vrsqrt.pop %v985
  %v1688 = vmul.f32 %v1687, %v985
  %v1689 = vmul.f32 %v1688, %v1687
  %v1690 = vmul.f32 0.5, %v1689
  %v1691 = vsub.f32 1.5, %v1690
  %v1692 = vmul.f32 %v1687, %v1691
  %v1693 = vmul.f32 %v985, %v1692
  %vm1694 = vcmp.eq.f32.partialorder %v985, inf
  %v1695 = vsel %vm1694, %v985, %v1693
  %vm1696 = vcmp.eq.f32.partialorder %v985, 0.0
  %v1697 = vand.u32 %v985, 2147483648
  %v1698 = vsel %vm1696, %v1697, %v1695
  %v1699 = vrsqrt.pop %v986
  %v1700 = vmul.f32 %v1699, %v986
  %v1701 = vmul.f32 %v1700, %v1699
  %v1702 = vmul.f32 0.5, %v1701
  %v1703 = vsub.f32 1.5, %v1702
  %v1704 = vmul.f32 %v1699, %v1703
  %v1705 = vmul.f32 %v986, %v1704
  %vm1706 = vcmp.eq.f32.partialorder %v986, inf
  %v1707 = vsel %vm1706, %v986, %v1705
  %vm1708 = vcmp.eq.f32.partialorder %v986, 0.0
  %v1709 = vand.u32 %v986, 2147483648
  %v1710 = vsel %vm1708, %v1709, %v1707
  %v1711 = vrsqrt.pop %v987
  %v1712 = vmul.f32 %v1711, %v987
  %v1713 = vmul.f32 %v1712, %v1711
  %v1714 = vmul.f32 0.5, %v1713
  %v1715 = vsub.f32 1.5, %v1714
  %v1716 = vmul.f32 %v1711, %v1715
  %v1717 = vmul.f32 %v987, %v1716
  %vm1718 = vcmp.eq.f32.partialorder %v987, inf
  %v1719 = vsel %vm1718, %v987, %v1717
  %vm1720 = vcmp.eq.f32.partialorder %v987, 0.0
  %v1721 = vand.u32 %v987, 2147483648
  %v1722 = vsel %vm1720, %v1721, %v1719
  %v1723 = vrsqrt.pop %v988
  %v1724 = vmul.f32 %v1723, %v988
  %v1725 = vmul.f32 %v1724, %v1723
  %v1726 = vmul.f32 0.5, %v1725
  %v1727 = vsub.f32 1.5, %v1726
  %v1728 = vmul.f32 %v1723, %v1727
  %v1729 = vmul.f32 %v988, %v1728
  %vm1730 = vcmp.eq.f32.partialorder %v988, inf
  %v1731 = vsel %vm1730, %v988, %v1729
  %vm1732 = vcmp.eq.f32.partialorder %v988, 0.0
  %v1733 = vand.u32 %v988, 2147483648
  %v1734 = vsel %vm1732, %v1733, %v1731
  %v1735 = vrsqrt.pop %v989
  %v1736 = vmul.f32 %v1735, %v989
  %v1737 = vmul.f32 %v1736, %v1735
  %v1738 = vmul.f32 0.5, %v1737
  %v1739 = vsub.f32 1.5, %v1738
  %v1740 = vmul.f32 %v1735, %v1739
  %v1741 = vmul.f32 %v989, %v1740
  %vm1742 = vcmp.eq.f32.partialorder %v989, inf
  %v1743 = vsel %vm1742, %v989, %v1741
  %vm1744 = vcmp.eq.f32.partialorder %v989, 0.0
  %v1745 = vand.u32 %v989, 2147483648
  %v1746 = vsel %vm1744, %v1745, %v1743
  %v1747 = vrsqrt.pop %v990
  %v1748 = vmul.f32 %v1747, %v990
  %v1749 = vmul.f32 %v1748, %v1747
  %v1750 = vmul.f32 0.5, %v1749
  %v1751 = vsub.f32 1.5, %v1750
  %v1752 = vmul.f32 %v1747, %v1751
  %v1753 = vmul.f32 %v990, %v1752
  %vm1754 = vcmp.eq.f32.partialorder %v990, inf
  %v1755 = vsel %vm1754, %v990, %v1753
  %vm1756 = vcmp.eq.f32.partialorder %v990, 0.0
  %v1757 = vand.u32 %v990, 2147483648
  %v1758 = vsel %vm1756, %v1757, %v1755
  %1759 = vst [vmem:[%s2] sm:$0xff] %v1002
  %1760 = vst [vmem:[%s2 + $0x8] sm:$0xff] %v1014
  %1761 = vst [vmem:[%s2 + $0x10] sm:$0xff] %v1026
  %1762 = vst [vmem:[%s2 + $0x18] sm:$0xff] %v1038
  %1763 = vst [vmem:[%s2 + $0x20] sm:$0xff] %v1050
  %1764 = vst [vmem:[%s2 + $0x28] sm:$0xff] %v1062
  %1765 = vst [vmem:[%s2 + $0x30] sm:$0xff] %v1074
  %1766 = vst [vmem:[%s2 + $0x38] sm:$0xff] %v1086
  %1767 = vst [vmem:[%s2 + $0x40] sm:$0xff] %v1098
  %1768 = vst [vmem:[%s2 + $0x48] sm:$0xff] %v1110
  %1769 = vst [vmem:[%s2 + $0x50] sm:$0xff] %v1122
  %1770 = vst [vmem:[%s2 + $0x58] sm:$0xff] %v1134
  %1771 = vst [vmem:[%s2 + $0x60] sm:$0xff] %v1146
  %1772 = vst [vmem:[%s2 + $0x68] sm:$0xff] %v1158
  %1773 = vst [vmem:[%s2 + $0x70] sm:$0xff] %v1170
  %1774 = vst [vmem:[%s2 + $0x78] sm:$0xff] %v1182
  %1775 = vst [vmem:[%s2 + $0x80] sm:$0xff] %v1194
  %1776 = vst [vmem:[%s2 + $0x88] sm:$0xff] %v1206
  %1777 = vst [vmem:[%s2 + $0x90] sm:$0xff] %v1218
  %1778 = vst [vmem:[%s2 + $0x98] sm:$0xff] %v1230
  %1779 = vst [vmem:[%s2 + $0xa0] sm:$0xff] %v1242
  %1780 = vst [vmem:[%s2 + $0xa8] sm:$0xff] %v1254
  %1781 = vst [vmem:[%s2 + $0xb0] sm:$0xff] %v1266
  %1782 = vst [vmem:[%s2 + $0xb8] sm:$0xff] %v1278
  %1783 = vst [vmem:[%s2 + $0xc0] sm:$0xff] %v1290
  %1784 = vst [vmem:[%s2 + $0xc8] sm:$0xff] %v1302
  %1785 = vst [vmem:[%s2 + $0xd0] sm:$0xff] %v1314
  %1786 = vst [vmem:[%s2 + $0xd8] sm:$0xff] %v1326
  %1787 = vst [vmem:[%s2 + $0xe0] sm:$0xff] %v1338
  %1788 = vst [vmem:[%s2 + $0xe8] sm:$0xff] %v1350
  %1789 = vst [vmem:[%s2 + $0xf0] sm:$0xff] %v1362
  %1790 = vst [vmem:[%s2 + $0xf8] sm:$0xff] %v1374
  %1791 = vst [vmem:[%s2 + $0x100] sm:$0xff] %v1386
  %1792 = vst [vmem:[%s2 + $0x108] sm:$0xff] %v1398
  %1793 = vst [vmem:[%s2 + $0x110] sm:$0xff] %v1410
  %1794 = vst [vmem:[%s2 + $0x118] sm:$0xff] %v1422
  %1795 = vst [vmem:[%s2 + $0x120] sm:$0xff] %v1434
  %1796 = vst [vmem:[%s2 + $0x128] sm:$0xff] %v1446
  %1797 = vst [vmem:[%s2 + $0x130] sm:$0xff] %v1458
  %1798 = vst [vmem:[%s2 + $0x138] sm:$0xff] %v1470
  %1799 = vst [vmem:[%s2 + $0x140] sm:$0xff] %v1482
  %1800 = vst [vmem:[%s2 + $0x148] sm:$0xff] %v1494
  %1801 = vst [vmem:[%s2 + $0x150] sm:$0xff] %v1506
  %1802 = vst [vmem:[%s2 + $0x158] sm:$0xff] %v1518
  %1803 = vst [vmem:[%s2 + $0x160] sm:$0xff] %v1530
  %1804 = vst [vmem:[%s2 + $0x168] sm:$0xff] %v1542
  %1805 = vst [vmem:[%s2 + $0x170] sm:$0xff] %v1554
  %1806 = vst [vmem:[%s2 + $0x178] sm:$0xff] %v1566
  %1807 = vst [vmem:[%s2 + $0x180] sm:$0xff] %v1578
  %1808 = vst [vmem:[%s2 + $0x188] sm:$0xff] %v1590
  %1809 = vst [vmem:[%s2 + $0x190] sm:$0xff] %v1602
  %1810 = vst [vmem:[%s2 + $0x198] sm:$0xff] %v1614
  %1811 = vst [vmem:[%s2 + $0x1a0] sm:$0xff] %v1626
  %1812 = vst [vmem:[%s2 + $0x1a8] sm:$0xff] %v1638
  %1813 = vst [vmem:[%s2 + $0x1b0] sm:$0xff] %v1650
  %1814 = vst [vmem:[%s2 + $0x1b8] sm:$0xff] %v1662
  %1815 = vst [vmem:[%s2 + $0x1c0] sm:$0xff] %v1674
  %1816 = vst [vmem:[%s2 + $0x1c8] sm:$0xff] %v1686
  %1817 = vst [vmem:[%s2 + $0x1d0] sm:$0xff] %v1698
  %1818 = vst [vmem:[%s2 + $0x1d8] sm:$0xff] %v1710
  %1819 = vst [vmem:[%s2 + $0x1e0] sm:$0xff] %v1722
  %1820 = vst [vmem:[%s2 + $0x1e8] sm:$0xff] %v1734
  %1821 = vst [vmem:[%s2 + $0x1f0] sm:$0xff] %v1746
  %1822 = vst [vmem:[%s2 + $0x1f8] sm:$0xff] %v1758
  // Predicated region
  $region10: #{gat_forward.5} parent=0 // pred_check
    _
  $region11: #{gat_forward.5} parent=0 // pred_check_branch
    %1824 = sbr.rel (0) target = $region13
  $region12: #{gat_forward.5} parent=0 // pred_region
    _
  $region13: #{gat_forward.5} parent=0 // pred_fallthru
    _
  // Predicated region
  $region14: #{gat_forward.5} parent=0 // pred_check
    _
  $region15: #{gat_forward.5} parent=0 // pred_check_branch
    %1826 = sbr.rel (0) target = $region17
  $region16: #{gat_forward.5} parent=0 // pred_region
    _
  $region17: #{gat_forward.5} parent=0 // pred_fallthru
    _

// kernel: gat_forward.4
$region0: #{gat_forward.4}
  #allocation0 [shape = 'u32[]', space=smem, size = 0x4, offset = 0x4, fixed_abs, tag = 'smem constant byte address 0x4 - core index']
  #allocation1 [shape = 'u32[72,128]{1,0:T(1,128)}', space=vmem, size = 0x9000, scoped, tag = 'internal scratch']
  #allocation2 [shape = 'bf16[256,512]{1,0:T(8,128)(2,1)}', space=vmem, size = 0x40000, scoped, tag = 'scratch operand']
  %s0 = inlined_call_operand.vmem [shape: bf16[256,512], index: 0, kind: input, shape index: {}]
  %s1 = inlined_call_operand.vmem [shape: f32[256,8], index: 1, kind: input, shape index: {}]
  %s2 = inlined_call_operand.vmem [shape: f32[8,256], index: 2, kind: input, shape index: {}]
  %s3 = inlined_call_operand.vmem [shape: s8[256,256], index: 3, kind: input, shape index: {}]
  %s4 = inlined_call_operand.vmem [shape: f32[1,512], index: 4, kind: input, shape index: {}]
  %s5 = inlined_call_operand.vmem [shape: bf16[512,256], index: 5, kind: input, shape index: {}]
  %s6 = inlined_call_operand.vmem [shape: f32[1,256], index: 6, kind: input, shape index: {}]
  %s7 = inlined_call_operand.vmem [shape: bf16[256,128], index: 7, kind: input, shape index: {}]
  %s8 = inlined_call_operand.vmem [shape: f32[1,128], index: 8, kind: input, shape index: {}]
  %s9 = inlined_call_operand.vmem [shape: bf16[128,128], index: 9, kind: input, shape index: {}]
  %s10 = inlined_call_operand.vmem [shape: f32[1,128], index: 10, kind: input, shape index: {}]
  %s11 = inlined_call_operand.vmem [shape: bf16[128,128], index: 11, kind: input, shape index: {}]
  %s12 = inlined_call_operand.vmem [shape: f32[1,128], index: 12, kind: input, shape index: {}]
  %s13 = inlined_call_operand.vmem [shape: bf16[128,128], index: 13, kind: input, shape index: {}]
  %s14 = inlined_call_operand.vmem [shape: f32[1,128], index: 14, kind: input, shape index: {}]
  %s15 = inlined_call_operand.vmem [shape: f32[256,128], index: 15, kind: output, shape index: {}]
  %s16 = sld [smem:[#allocation0]]
  $region70: #{gat_forward.4} parent=0
    _
  %s18 = ssub.s32 1, %s16
  %s19 = scalar_select 0, %s18, %s16
  // Predicated region
  $region2: #{gat_forward.4} parent=0 // pred_check
    _
  $region3: #{gat_forward.4} parent=0 // pred_check_branch
    %21 = sbr.rel (0) target = $region5
  $region4: #{gat_forward.4} parent=0 // pred_region
    _
  $region5: #{gat_forward.4} parent=0 // pred_fallthru
    _
  // Predicated region
  $region6: #{gat_forward.4} parent=0 // pred_check
    _
  $region7: #{gat_forward.4} parent=0 // pred_check_branch
    %23 = sbr.rel (0) target = $region9
  $region8: #{gat_forward.4} parent=0 // pred_region
    _
  $region9: #{gat_forward.4} parent=0 // pred_fallthru
    _
  // Predicated region
  $region10: #{gat_forward.4} parent=0 // pred_check
    _
  $region11: #{gat_forward.4} parent=0 // pred_check_branch
    %25 = sbr.rel (0) target = $region13
  $region12: #{gat_forward.4} parent=0 // pred_region
    _
  $region13: #{gat_forward.4} parent=0 // pred_fallthru
    _
  // Predicated region
  $region14: #{gat_forward.4} parent=0 // pred_check
    _
  $region15: #{gat_forward.4} parent=0 // pred_check_branch
    %27 = sbr.rel (0) target = $region17
  $region16: #{gat_forward.4} parent=0 // pred_region
    _
  $region17: #{gat_forward.4} parent=0 // pred_fallthru
    _
  // Predicated region
  $region18: #{gat_forward.4} parent=0 // pred_check
    _
  $region19: #{gat_forward.4} parent=0 // pred_check_branch
    %29 = sbr.rel (0) target = $region21
  $region20: #{gat_forward.4} parent=0 // pred_region
    _
  $region21: #{gat_forward.4} parent=0 // pred_fallthru
    _
  // Predicated region
  $region22: #{gat_forward.4} parent=0 // pred_check
    _
  $region23: #{gat_forward.4} parent=0 // pred_check_branch
    %31 = sbr.rel (0) target = $region25
  $region24: #{gat_forward.4} parent=0 // pred_region
    _
  $region25: #{gat_forward.4} parent=0 // pred_fallthru
    _
  // Predicated region
  $region26: #{gat_forward.4} parent=0 // pred_check
    _
  $region27: #{gat_forward.4} parent=0 // pred_check_branch
    %33 = sbr.rel (0) target = $region29
  $region28: #{gat_forward.4} parent=0 // pred_region
    _
  $region29: #{gat_forward.4} parent=0 // pred_fallthru
    _
  // Predicated region
  $region30: #{gat_forward.4} parent=0 // pred_check
    _
  $region31: #{gat_forward.4} parent=0 // pred_check_branch
    %35 = sbr.rel (0) target = $region33
  $region32: #{gat_forward.4} parent=0 // pred_region
    _
  $region33: #{gat_forward.4} parent=0 // pred_fallthru
    _
  // Predicated region
  $region34: #{gat_forward.4} parent=0 // pred_check
    _
  $region35: #{gat_forward.4} parent=0 // pred_check_branch
    %37 = sbr.rel (0) target = $region37
  $region36: #{gat_forward.4} parent=0 // pred_region
    _
  $region37: #{gat_forward.4} parent=0 // pred_fallthru
    _
  // Predicated region
  $region38: #{gat_forward.4} parent=0 // pred_check
    _
  $region39: #{gat_forward.4} parent=0 // pred_check_branch
    %39 = sbr.rel (0) target = $region41
  $region40: #{gat_forward.4} parent=0 // pred_region
    _
  $region41: #{gat_forward.4} parent=0 // pred_fallthru
    _
  // Predicated region
  $region42: #{gat_forward.4} parent=0 // pred_check
    _
  $region43: #{gat_forward.4} parent=0 // pred_check_branch
    %41 = sbr.rel (0) target = $region45
  $region44: #{gat_forward.4} parent=0 // pred_region
    _
  $region45: #{gat_forward.4} parent=0 // pred_fallthru
    _
  // Predicated region
  $region46: #{gat_forward.4} parent=0 // pred_check
    _
  $region47: #{gat_forward.4} parent=0 // pred_check_branch
    %43 = sbr.rel (0) target = $region49
  $region48: #{gat_forward.4} parent=0 // pred_region
    _
  $region49: #{gat_forward.4} parent=0 // pred_fallthru
    _
  // Predicated region
  $region50: #{gat_forward.4} parent=0 // pred_check
    _
  $region51: #{gat_forward.4} parent=0 // pred_check_branch
    %45 = sbr.rel (0) target = $region53
  $region52: #{gat_forward.4} parent=0 // pred_region
    _
  $region53: #{gat_forward.4} parent=0 // pred_fallthru
    _
  // Predicated region
  $region54: #{gat_forward.4} parent=0 // pred_check
    _
  $region55: #{gat_forward.4} parent=0 // pred_check_branch
    %47 = sbr.rel (0) target = $region57
  $region56: #{gat_forward.4} parent=0 // pred_region
    _
  $region57: #{gat_forward.4} parent=0 // pred_fallthru
    _
  // Predicated region
  $region58: #{gat_forward.4} parent=0 // pred_check
    _
  $region59: #{gat_forward.4} parent=0 // pred_check_branch
    %49 = sbr.rel (0) target = $region61
  $region60: #{gat_forward.4} parent=0 // pred_region
    _
  $region61: #{gat_forward.4} parent=0 // pred_fallthru
    _
  %v52 = vld [vmem:[%s3] sm:$0xf]
  %v53 = vld [vmem:[%s3 + $0x4] sm:$0xf]
  %v54 = vld [vmem:[%s3 + $0x8] sm:$0xf]
  %v55 = vld [vmem:[%s3 + $0xc] sm:$0xf]
  %v56 = vld [vmem:[%s3 + $0x10] sm:$0xf]
  %v57 = vld [vmem:[%s3 + $0x14] sm:$0xf]
  %v58 = vld [vmem:[%s3 + $0x18] sm:$0xf]
  %v59 = vld [vmem:[%s3 + $0x1c] sm:$0xf]
  %v60 = vld [vmem:[%s3 + $0x20] sm:$0xf]
  %v61 = vld [vmem:[%s3 + $0x24] sm:$0xf]
  %v62 = vld [vmem:[%s3 + $0x28] sm:$0xf]
  %v63 = vld [vmem:[%s3 + $0x2c] sm:$0xf]
  %v64 = vld [vmem:[%s3 + $0x30] sm:$0xf]
  %v65 = vld [vmem:[%s3 + $0x34] sm:$0xf]
  %v66 = vld [vmem:[%s3 + $0x38] sm:$0xf]
  %v67 = vld [vmem:[%s3 + $0x3c] sm:$0xf]
  %v68 = vld [vmem:[%s3 + $0x40] sm:$0xf]
  %v69 = vld [vmem:[%s3 + $0x44] sm:$0xf]
  %v70 = vld [vmem:[%s3 + $0x48] sm:$0xf]
  %v71 = vld [vmem:[%s3 + $0x4c] sm:$0xf]
  %v72 = vld [vmem:[%s3 + $0x50] sm:$0xf]
  %v73 = vld [vmem:[%s3 + $0x54] sm:$0xf]
  %v74 = vld [vmem:[%s3 + $0x58] sm:$0xf]
  %v75 = vld [vmem:[%s3 + $0x5c] sm:$0xf]
  %v76 = vld [vmem:[%s3 + $0x60] sm:$0xf]
  %v77 = vld [vmem:[%s3 + $0x64] sm:$0xf]
  %v78 = vld [vmem:[%s3 + $0x68] sm:$0xf]
  %v79 = vld [vmem:[%s3 + $0x6c] sm:$0xf]
  %v80 = vld [vmem:[%s3 + $0x70] sm:$0xf]
  %v81 = vld [vmem:[%s3 + $0x74] sm:$0xf]
  %v82 = vld [vmem:[%s3 + $0x78] sm:$0xf]
  %v83 = vld [vmem:[%s3 + $0x7c] sm:$0xf]
  %vm84 = vnez %v52
  %vm85 = vnez %v53
  %vm86 = vnez %v54
  %vm87 = vnez %v55
  %vm88 = vnez %v56
  %vm89 = vnez %v57
  %vm90 = vnez %v58
  %vm91 = vnez %v59
  %vm92 = vnez %v60
  %vm93 = vnez %v61
  %vm94 = vnez %v62
  %vm95 = vnez %v63
  %vm96 = vnez %v64
  %vm97 = vnez %v65
  %vm98 = vnez %v66
  %vm99 = vnez %v67
  %vm100 = vnez %v68
  %vm101 = vnez %v69
  %vm102 = vnez %v70
  %vm103 = vnez %v71
  %vm104 = vnez %v72
  %vm105 = vnez %v73
  %vm106 = vnez %v74
  %vm107 = vnez %v75
  %vm108 = vnez %v76
  %vm109 = vnez %v77
  %vm110 = vnez %v78
  %vm111 = vnez %v79
  %vm112 = vnez %v80
  %vm113 = vnez %v81
  %vm114 = vnez %v82
  %vm115 = vnez %v83
  %v116 = vld [vmem:[%s1] sm:$0xff]
  %v117 = vld [vmem:[%s1 + $0x8] sm:$0xff]
  %v118 = vld [vmem:[%s1 + $0x10] sm:$0xff]
  %v119 = vld [vmem:[%s1 + $0x18] sm:$0xff]
  %v120 = vld [vmem:[%s1 + $0x20] sm:$0xff]
  %v121 = vld [vmem:[%s1 + $0x28] sm:$0xff]
  %v122 = vld [vmem:[%s1 + $0x30] sm:$0xff]
  %v123 = vld [vmem:[%s1 + $0x38] sm:$0xff]
  %v124 = vld [vmem:[%s1 + $0x40] sm:$0xff]
  %v125 = vld [vmem:[%s1 + $0x48] sm:$0xff]
  %v126 = vld [vmem:[%s1 + $0x50] sm:$0xff]
  %v127 = vld [vmem:[%s1 + $0x58] sm:$0xff]
  %v128 = vld [vmem:[%s1 + $0x60] sm:$0xff]
  %v129 = vld [vmem:[%s1 + $0x68] sm:$0xff]
  %v130 = vld [vmem:[%s1 + $0x70] sm:$0xff]
  %v131 = vld [vmem:[%s1 + $0x78] sm:$0xff]
  %v132 = vld [vmem:[%s1 + $0x80] sm:$0xff]
  %v133 = vld [vmem:[%s1 + $0x88] sm:$0xff]
  %v134 = vld [vmem:[%s1 + $0x90] sm:$0xff]
  %v135 = vld [vmem:[%s1 + $0x98] sm:$0xff]
  %v136 = vld [vmem:[%s1 + $0xa0] sm:$0xff]
  %v137 = vld [vmem:[%s1 + $0xa8] sm:$0xff]
  %v138 = vld [vmem:[%s1 + $0xb0] sm:$0xff]
  %v139 = vld [vmem:[%s1 + $0xb8] sm:$0xff]
  %v140 = vld [vmem:[%s1 + $0xc0] sm:$0xff]
  %v141 = vld [vmem:[%s1 + $0xc8] sm:$0xff]
  %v142 = vld [vmem:[%s1 + $0xd0] sm:$0xff]
  %v143 = vld [vmem:[%s1 + $0xd8] sm:$0xff]
  %v144 = vld [vmem:[%s1 + $0xe0] sm:$0xff]
  %v145 = vld [vmem:[%s1 + $0xe8] sm:$0xff]
  %v146 = vld [vmem:[%s1 + $0xf0] sm:$0xff]
  %v147 = vld [vmem:[%s1 + $0xf8] sm:$0xff]
  %v148 = vld [vmem:[%s2] ss:$8 sm:$0x3]
  %150 = vset.pattern.permute.xlu0 1
  %151 = vperm.xlu0 %150, %v116
  %v152 = vpop.permute.xlu0 %151
  %155 = vset.pattern.permute.xlu0 1
  %156 = vperm.xlu0 %155, %v117
  %v157 = vpop.permute.xlu0 %156
  %160 = vset.pattern.permute.xlu0 1
  %161 = vperm.xlu0 %160, %v118
  %v162 = vpop.permute.xlu0 %161
  %165 = vset.pattern.permute.xlu0 1
  %166 = vperm.xlu0 %165, %v119
  %v167 = vpop.permute.xlu0 %166
  %170 = vset.pattern.permute.xlu0 1
  %171 = vperm.xlu0 %170, %v120
  %v172 = vpop.permute.xlu0 %171
  %175 = vset.pattern.permute.xlu0 1
  %176 = vperm.xlu0 %175, %v121
  %v177 = vpop.permute.xlu0 %176
  %180 = vset.pattern.permute.xlu0 1
  %181 = vperm.xlu0 %180, %v122
  %v182 = vpop.permute.xlu0 %181
  %185 = vset.pattern.permute.xlu0 1
  %186 = vperm.xlu0 %185, %v123
  %v187 = vpop.permute.xlu0 %186
  %190 = vset.pattern.permute.xlu0 1
  %191 = vperm.xlu0 %190, %v124
  %v192 = vpop.permute.xlu0 %191
  %195 = vset.pattern.permute.xlu0 1
  %196 = vperm.xlu0 %195, %v125
  %v197 = vpop.permute.xlu0 %196
  %200 = vset.pattern.permute.xlu0 1
  %201 = vperm.xlu0 %200, %v126
  %v202 = vpop.permute.xlu0 %201
  %205 = vset.pattern.permute.xlu0 1
  %206 = vperm.xlu0 %205, %v127
  %v207 = vpop.permute.xlu0 %206
  %210 = vset.pattern.permute.xlu0 1
  %211 = vperm.xlu0 %210, %v128
  %v212 = vpop.permute.xlu0 %211
  %215 = vset.pattern.permute.xlu0 1
  %216 = vperm.xlu0 %215, %v129
  %v217 = vpop.permute.xlu0 %216
  %220 = vset.pattern.permute.xlu0 1
  %221 = vperm.xlu0 %220, %v130
  %v222 = vpop.permute.xlu0 %221
  %225 = vset.pattern.permute.xlu0 1
  %226 = vperm.xlu0 %225, %v131
  %v227 = vpop.permute.xlu0 %226
  %230 = vset.pattern.permute.xlu0 1
  %231 = vperm.xlu0 %230, %v132
  %v232 = vpop.permute.xlu0 %231
  %235 = vset.pattern.permute.xlu0 1
  %236 = vperm.xlu0 %235, %v133
  %v237 = vpop.permute.xlu0 %236
  %240 = vset.pattern.permute.xlu0 1
  %241 = vperm.xlu0 %240, %v134
  %v242 = vpop.permute.xlu0 %241
  %245 = vset.pattern.permute.xlu0 1
  %246 = vperm.xlu0 %245, %v135
  %v247 = vpop.permute.xlu0 %246
  %250 = vset.pattern.permute.xlu0 1
  %251 = vperm.xlu0 %250, %v136
  %v252 = vpop.permute.xlu0 %251
  %255 = vset.pattern.permute.xlu0 1
  %256 = vperm.xlu0 %255, %v137
  %v257 = vpop.permute.xlu0 %256
  %260 = vset.pattern.permute.xlu0 1
  %261 = vperm.xlu0 %260, %v138
  %v262 = vpop.permute.xlu0 %261
  %265 = vset.pattern.permute.xlu0 1
  %266 = vperm.xlu0 %265, %v139
  %v267 = vpop.permute.xlu0 %266
  %270 = vset.pattern.permute.xlu0 1
  %271 = vperm.xlu0 %270, %v140
  %v272 = vpop.permute.xlu0 %271
  %275 = vset.pattern.permute.xlu0 1
  %276 = vperm.xlu0 %275, %v141
  %v277 = vpop.permute.xlu0 %276
  %280 = vset.pattern.permute.xlu0 1
  %281 = vperm.xlu0 %280, %v142
  %v282 = vpop.permute.xlu0 %281
  %285 = vset.pattern.permute.xlu0 1
  %286 = vperm.xlu0 %285, %v143
  %v287 = vpop.permute.xlu0 %286
  %290 = vset.pattern.permute.xlu0 1
  %291 = vperm.xlu0 %290, %v144
  %v292 = vpop.permute.xlu0 %291
  %295 = vset.pattern.permute.xlu0 1
  %296 = vperm.xlu0 %295, %v145
  %v297 = vpop.permute.xlu0 %296
  %300 = vset.pattern.permute.xlu0 1
  %301 = vperm.xlu0 %300, %v146
  %v302 = vpop.permute.xlu0 %301
  %305 = vset.pattern.permute.xlu0 1
  %306 = vperm.xlu0 %305, %v147
  %v307 = vpop.permute.xlu0 %306
  %v310 = vperm.slane %v148, 0
  %v311 = vperm.slane %v148, 1
  %v314 = vadd.f32 %v152, %v310
  %v315 = vadd.f32 %v152, %v311
  %v316 = vadd.f32 %v157, %v310
  %v317 = vadd.f32 %v157, %v311
  %v318 = vadd.f32 %v162, %v310
  %v319 = vadd.f32 %v162, %v311
  %v320 = vadd.f32 %v167, %v310
  %v321 = vadd.f32 %v167, %v311
  %v322 = vadd.f32 %v172, %v310
  %v323 = vadd.f32 %v172, %v311
  %v324 = vadd.f32 %v177, %v310
  %v325 = vadd.f32 %v177, %v311
  %v326 = vadd.f32 %v182, %v310
  %v327 = vadd.f32 %v182, %v311
  %v328 = vadd.f32 %v187, %v310
  %v329 = vadd.f32 %v187, %v311
  %v330 = vadd.f32 %v192, %v310
  %v331 = vadd.f32 %v192, %v311
  %v332 = vadd.f32 %v197, %v310
  %v333 = vadd.f32 %v197, %v311
  %v334 = vadd.f32 %v202, %v310
  %v335 = vadd.f32 %v202, %v311
  %v336 = vadd.f32 %v207, %v310
  %v337 = vadd.f32 %v207, %v311
  %v338 = vadd.f32 %v212, %v310
  %v339 = vadd.f32 %v212, %v311
  %v340 = vadd.f32 %v217, %v310
  %v341 = vadd.f32 %v217, %v311
  %v342 = vadd.f32 %v222, %v310
  %v343 = vadd.f32 %v222, %v311
  %v344 = vadd.f32 %v227, %v310
  %v345 = vadd.f32 %v227, %v311
  %v346 = vadd.f32 %v232, %v310
  %v347 = vadd.f32 %v232, %v311
  %v348 = vadd.f32 %v237, %v310
  %v349 = vadd.f32 %v237, %v311
  %v350 = vadd.f32 %v242, %v310
  %v351 = vadd.f32 %v242, %v311
  %v352 = vadd.f32 %v247, %v310
  %v353 = vadd.f32 %v247, %v311
  %v354 = vadd.f32 %v252, %v310
  %v355 = vadd.f32 %v252, %v311
  %v356 = vadd.f32 %v257, %v310
  %v357 = vadd.f32 %v257, %v311
  %v358 = vadd.f32 %v262, %v310
  %v359 = vadd.f32 %v262, %v311
  %v360 = vadd.f32 %v267, %v310
  %v361 = vadd.f32 %v267, %v311
  %v362 = vadd.f32 %v272, %v310
  %v363 = vadd.f32 %v272, %v311
  %v364 = vadd.f32 %v277, %v310
  %v365 = vadd.f32 %v277, %v311
  %v366 = vadd.f32 %v282, %v310
  %v367 = vadd.f32 %v282, %v311
  %v368 = vadd.f32 %v287, %v310
  %v369 = vadd.f32 %v287, %v311
  %v370 = vadd.f32 %v292, %v310
  %v371 = vadd.f32 %v292, %v311
  %v372 = vadd.f32 %v297, %v310
  %v373 = vadd.f32 %v297, %v311
  %v374 = vadd.f32 %v302, %v310
  %v375 = vadd.f32 %v302, %v311
  %v376 = vadd.f32 %v307, %v310
  %v377 = vadd.f32 %v307, %v311
  %vm378 = vcmp.ge.f32.partialorder %v314, 0.0
  %vm379 = vcmp.ge.f32.partialorder %v315, 0.0
  %vm380 = vcmp.ge.f32.partialorder %v316, 0.0
  %vm381 = vcmp.ge.f32.partialorder %v317, 0.0
  %vm382 = vcmp.ge.f32.partialorder %v318, 0.0
  %vm383 = vcmp.ge.f32.partialorder %v319, 0.0
  %vm384 = vcmp.ge.f32.partialorder %v320, 0.0
  %vm385 = vcmp.ge.f32.partialorder %v321, 0.0
  %vm386 = vcmp.ge.f32.partialorder %v322, 0.0
  %vm387 = vcmp.ge.f32.partialorder %v323, 0.0
  %vm388 = vcmp.ge.f32.partialorder %v324, 0.0
  %vm389 = vcmp.ge.f32.partialorder %v325, 0.0
  %vm390 = vcmp.ge.f32.partialorder %v326, 0.0
  %vm391 = vcmp.ge.f32.partialorder %v327, 0.0
  %vm392 = vcmp.ge.f32.partialorder %v328, 0.0
  %vm393 = vcmp.ge.f32.partialorder %v329, 0.0
  %vm394 = vcmp.ge.f32.partialorder %v330, 0.0
  %vm395 = vcmp.ge.f32.partialorder %v331, 0.0
  %vm396 = vcmp.ge.f32.partialorder %v332, 0.0
  %vm397 = vcmp.ge.f32.partialorder %v333, 0.0
  %vm398 = vcmp.ge.f32.partialorder %v334, 0.0
  %vm399 = vcmp.ge.f32.partialorder %v335, 0.0
  %vm400 = vcmp.ge.f32.partialorder %v336, 0.0
  %vm401 = vcmp.ge.f32.partialorder %v337, 0.0
  %vm402 = vcmp.ge.f32.partialorder %v338, 0.0
  %vm403 = vcmp.ge.f32.partialorder %v339, 0.0
  %vm404 = vcmp.ge.f32.partialorder %v340, 0.0
  %vm405 = vcmp.ge.f32.partialorder %v341, 0.0
  %vm406 = vcmp.ge.f32.partialorder %v342, 0.0
  %vm407 = vcmp.ge.f32.partialorder %v343, 0.0
  %vm408 = vcmp.ge.f32.partialorder %v344, 0.0
  %vm409 = vcmp.ge.f32.partialorder %v345, 0.0
  %vm410 = vcmp.ge.f32.partialorder %v346, 0.0
  %vm411 = vcmp.ge.f32.partialorder %v347, 0.0
  %vm412 = vcmp.ge.f32.partialorder %v348, 0.0
  %vm413 = vcmp.ge.f32.partialorder %v349, 0.0
  %vm414 = vcmp.ge.f32.partialorder %v350, 0.0
  %vm415 = vcmp.ge.f32.partialorder %v351, 0.0
  %vm416 = vcmp.ge.f32.partialorder %v352, 0.0
  %vm417 = vcmp.ge.f32.partialorder %v353, 0.0
  %vm418 = vcmp.ge.f32.partialorder %v354, 0.0
  %vm419 = vcmp.ge.f32.partialorder %v355, 0.0
  %vm420 = vcmp.ge.f32.partialorder %v356, 0.0
  %vm421 = vcmp.ge.f32.partialorder %v357, 0.0
  %vm422 = vcmp.ge.f32.partialorder %v358, 0.0
  %vm423 = vcmp.ge.f32.partialorder %v359, 0.0
  %vm424 = vcmp.ge.f32.partialorder %v360, 0.0
  %vm425 = vcmp.ge.f32.partialorder %v361, 0.0
  %vm426 = vcmp.ge.f32.partialorder %v362, 0.0
  %vm427 = vcmp.ge.f32.partialorder %v363, 0.0
  %vm428 = vcmp.ge.f32.partialorder %v364, 0.0
  %vm429 = vcmp.ge.f32.partialorder %v365, 0.0
  %vm430 = vcmp.ge.f32.partialorder %v366, 0.0
  %vm431 = vcmp.ge.f32.partialorder %v367, 0.0
  %vm432 = vcmp.ge.f32.partialorder %v368, 0.0
  %vm433 = vcmp.ge.f32.partialorder %v369, 0.0
  %vm434 = vcmp.ge.f32.partialorder %v370, 0.0
  %vm435 = vcmp.ge.f32.partialorder %v371, 0.0
  %vm436 = vcmp.ge.f32.partialorder %v372, 0.0
  %vm437 = vcmp.ge.f32.partialorder %v373, 0.0
  %vm438 = vcmp.ge.f32.partialorder %v374, 0.0
  %vm439 = vcmp.ge.f32.partialorder %v375, 0.0
  %vm440 = vcmp.ge.f32.partialorder %v376, 0.0
  %vm441 = vcmp.ge.f32.partialorder %v377, 0.0
  %v442 = vmul.f32 %v314, 0.2
  %v443 = vmul.f32 %v315, 0.2
  %v444 = vmul.f32 %v316, 0.2
  %v445 = vmul.f32 %v317, 0.2
  %v446 = vmul.f32 %v318, 0.2
  %v447 = vmul.f32 %v319, 0.2
  %v448 = vmul.f32 %v320, 0.2
  %v449 = vmul.f32 %v321, 0.2
  %v450 = vmul.f32 %v322, 0.2
  %v451 = vmul.f32 %v323, 0.2
  %v452 = vmul.f32 %v324, 0.2
  %v453 = vmul.f32 %v325, 0.2
  %v454 = vmul.f32 %v326, 0.2
  %v455 = vmul.f32 %v327, 0.2
  %v456 = vmul.f32 %v328, 0.2
  %v457 = vmul.f32 %v329, 0.2
  %v458 = vmul.f32 %v330, 0.2
  %v459 = vmul.f32 %v331, 0.2
  %v460 = vmul.f32 %v332, 0.2
  %v461 = vmul.f32 %v333, 0.2
  %v462 = vmul.f32 %v334, 0.2
  %v463 = vmul.f32 %v335, 0.2
  %v464 = vmul.f32 %v336, 0.2
  %v465 = vmul.f32 %v337, 0.2
  %v466 = vmul.f32 %v338, 0.2
  %v467 = vmul.f32 %v339, 0.2
  %v468 = vmul.f32 %v340, 0.2
  %v469 = vmul.f32 %v341, 0.2
  %v470 = vmul.f32 %v342, 0.2
  %v471 = vmul.f32 %v343, 0.2
  %v472 = vmul.f32 %v344, 0.2
  %v473 = vmul.f32 %v345, 0.2
  %v474 = vmul.f32 %v346, 0.2
  %v475 = vmul.f32 %v347, 0.2
  %v476 = vmul.f32 %v348, 0.2
  %v477 = vmul.f32 %v349, 0.2
  %v478 = vmul.f32 %v350, 0.2
  %v479 = vmul.f32 %v351, 0.2
  %v480 = vmul.f32 %v352, 0.2
  %v481 = vmul.f32 %v353, 0.2
  %v482 = vmul.f32 %v354, 0.2
  %v483 = vmul.f32 %v355, 0.2
  %v484 = vmul.f32 %v356, 0.2
  %v485 = vmul.f32 %v357, 0.2
  %v486 = vmul.f32 %v358, 0.2
  %v487 = vmul.f32 %v359, 0.2
  %v488 = vmul.f32 %v360, 0.2
  %v489 = vmul.f32 %v361, 0.2
  %v490 = vmul.f32 %v362, 0.2
  %v491 = vmul.f32 %v363, 0.2
  %v492 = vmul.f32 %v364, 0.2
  %v493 = vmul.f32 %v365, 0.2
  %v494 = vmul.f32 %v366, 0.2
  %v495 = vmul.f32 %v367, 0.2
  %v496 = vmul.f32 %v368, 0.2
  %v497 = vmul.f32 %v369, 0.2
  %v498 = vmul.f32 %v370, 0.2
  %v499 = vmul.f32 %v371, 0.2
  %v500 = vmul.f32 %v372, 0.2
  %v501 = vmul.f32 %v373, 0.2
  %v502 = vmul.f32 %v374, 0.2
  %v503 = vmul.f32 %v375, 0.2
  %v504 = vmul.f32 %v376, 0.2
  %v505 = vmul.f32 %v377, 0.2
  %v506 = vsel %vm378, %v314, %v442
  %v507 = vsel %vm379, %v315, %v443
  %v508 = vsel %vm380, %v316, %v444
  %v509 = vsel %vm381, %v317, %v445
  %v510 = vsel %vm382, %v318, %v446
  %v511 = vsel %vm383, %v319, %v447
  %v512 = vsel %vm384, %v320, %v448
  %v513 = vsel %vm385, %v321, %v449
  %v514 = vsel %vm386, %v322, %v450
  %v515 = vsel %vm387, %v323, %v451
  %v516 = vsel %vm388, %v324, %v452
  %v517 = vsel %vm389, %v325, %v453
  %v518 = vsel %vm390, %v326, %v454
  %v519 = vsel %vm391, %v327, %v455
  %v520 = vsel %vm392, %v328, %v456
  %v521 = vsel %vm393, %v329, %v457
  %v522 = vsel %vm394, %v330, %v458
  %v523 = vsel %vm395, %v331, %v459
  %v524 = vsel %vm396, %v332, %v460
  %v525 = vsel %vm397, %v333, %v461
  %v526 = vsel %vm398, %v334, %v462
  %v527 = vsel %vm399, %v335, %v463
  %v528 = vsel %vm400, %v336, %v464
  %v529 = vsel %vm401, %v337, %v465
  %v530 = vsel %vm402, %v338, %v466
  %v531 = vsel %vm403, %v339, %v467
  %v532 = vsel %vm404, %v340, %v468
  %v533 = vsel %vm405, %v341, %v469
  %v534 = vsel %vm406, %v342, %v470
  %v535 = vsel %vm407, %v343, %v471
  %v536 = vsel %vm408, %v344, %v472
  %v537 = vsel %vm409, %v345, %v473
  %v538 = vsel %vm410, %v346, %v474
  %v539 = vsel %vm411, %v347, %v475
  %v540 = vsel %vm412, %v348, %v476
  %v541 = vsel %vm413, %v349, %v477
  %v542 = vsel %vm414, %v350, %v478
  %v543 = vsel %vm415, %v351, %v479
  %v544 = vsel %vm416, %v352, %v480
  %v545 = vsel %vm417, %v353, %v481
  %v546 = vsel %vm418, %v354, %v482
  %v547 = vsel %vm419, %v355, %v483
  %v548 = vsel %vm420, %v356, %v484
  %v549 = vsel %vm421, %v357, %v485
  %v550 = vsel %vm422, %v358, %v486
  %v551 = vsel %vm423, %v359, %v487
  %v552 = vsel %vm424, %v360, %v488
  %v553 = vsel %vm425, %v361, %v489
  %v554 = vsel %vm426, %v362, %v490
  %v555 = vsel %vm427, %v363, %v491
  %v556 = vsel %vm428, %v364, %v492
  %v557 = vsel %vm429, %v365, %v493
  %v558 = vsel %vm430, %v366, %v494
  %v559 = vsel %vm431, %v367, %v495
  %v560 = vsel %vm432, %v368, %v496
  %v561 = vsel %vm433, %v369, %v497
  %v562 = vsel %vm434, %v370, %v498
  %v563 = vsel %vm435, %v371, %v499
  %v564 = vsel %vm436, %v372, %v500
  %v565 = vsel %vm437, %v373, %v501
  %v566 = vsel %vm438, %v374, %v502
  %v567 = vsel %vm439, %v375, %v503
  %v568 = vsel %vm440, %v376, %v504
  %v569 = vsel %vm441, %v377, %v505
  %v570 = vsel %vm84, 16843009, 0
  %v571 = vsel %vm85, 16843009, 0
  %v572 = vsel %vm86, 16843009, 0
  %v573 = vsel %vm87, 16843009, 0
  %v574 = vsel %vm88, 16843009, 0
  %v575 = vsel %vm89, 16843009, 0
  %v576 = vsel %vm90, 16843009, 0
  %v577 = vsel %vm91, 16843009, 0
  %v578 = vsel %vm92, 16843009, 0
  %v579 = vsel %vm93, 16843009, 0
  %v580 = vsel %vm94, 16843009, 0
  %v581 = vsel %vm95, 16843009, 0
  %v582 = vsel %vm96, 16843009, 0
  %v583 = vsel %vm97, 16843009, 0
  %v584 = vsel %vm98, 16843009, 0
  %v585 = vsel %vm99, 16843009, 0
  %v586 = vsel %vm100, 16843009, 0
  %v587 = vsel %vm101, 16843009, 0
  %v588 = vsel %vm102, 16843009, 0
  %v589 = vsel %vm103, 16843009, 0
  %v590 = vsel %vm104, 16843009, 0
  %v591 = vsel %vm105, 16843009, 0
  %v592 = vsel %vm106, 16843009, 0
  %v593 = vsel %vm107, 16843009, 0
  %v594 = vsel %vm108, 16843009, 0
  %v595 = vsel %vm109, 16843009, 0
  %v596 = vsel %vm110, 16843009, 0
  %v597 = vsel %vm111, 16843009, 0
  %v598 = vsel %vm112, 16843009, 0
  %v599 = vsel %vm113, 16843009, 0
  %v600 = vsel %vm114, 16843009, 0
  %v601 = vsel %vm115, 16843009, 0
  %v602 = vunpack.c.0.s8 %v570
  %v603 = vunpack.c.1.s8 %v570
  %v604 = vunpack.c.0.s8 %v571
  %v605 = vunpack.c.1.s8 %v571
  %v606 = vunpack.c.0.s8 %v572
  %v607 = vunpack.c.1.s8 %v572
  %v608 = vunpack.c.0.s8 %v573
  %v609 = vunpack.c.1.s8 %v573
  %v610 = vunpack.c.0.s8 %v574
  %v611 = vunpack.c.1.s8 %v574
  %v612 = vunpack.c.0.s8 %v575
  %v613 = vunpack.c.1.s8 %v575
  %v614 = vunpack.c.0.s8 %v576
  %v615 = vunpack.c.1.s8 %v576
  %v616 = vunpack.c.0.s8 %v577
  %v617 = vunpack.c.1.s8 %v577
  %v618 = vunpack.c.0.s8 %v578
  %v619 = vunpack.c.1.s8 %v578
  %v620 = vunpack.c.0.s8 %v579
  %v621 = vunpack.c.1.s8 %v579
  %v622 = vunpack.c.0.s8 %v580
  %v623 = vunpack.c.1.s8 %v580
  %v624 = vunpack.c.0.s8 %v581
  %v625 = vunpack.c.1.s8 %v581
  %v626 = vunpack.c.0.s8 %v582
  %v627 = vunpack.c.1.s8 %v582
  %v628 = vunpack.c.0.s8 %v583
  %v629 = vunpack.c.1.s8 %v583
  %v630 = vunpack.c.0.s8 %v584
  %v631 = vunpack.c.1.s8 %v584
  %v632 = vunpack.c.0.s8 %v585
  %v633 = vunpack.c.1.s8 %v585
  %v634 = vunpack.c.0.s8 %v586
  %v635 = vunpack.c.1.s8 %v586
  %v636 = vunpack.c.0.s8 %v587
  %v637 = vunpack.c.1.s8 %v587
  %v638 = vunpack.c.0.s8 %v588
  %v639 = vunpack.c.1.s8 %v588
  %v640 = vunpack.c.0.s8 %v589
  %v641 = vunpack.c.1.s8 %v589
  %v642 = vunpack.c.0.s8 %v590
  %v643 = vunpack.c.1.s8 %v590
  %v644 = vunpack.c.0.s8 %v591
  %v645 = vunpack.c.1.s8 %v591
  %v646 = vunpack.c.0.s8 %v592
  %v647 = vunpack.c.1.s8 %v592
  %v648 = vunpack.c.0.s8 %v593
  %v649 = vunpack.c.1.s8 %v593
  %v650 = vunpack.c.0.s8 %v594
  %v651 = vunpack.c.1.s8 %v594
  %v652 = vunpack.c.0.s8 %v595
  %v653 = vunpack.c.1.s8 %v595
  %v654 = vunpack.c.0.s8 %v596
  %v655 = vunpack.c.1.s8 %v596
  %v656 = vunpack.c.0.s8 %v597
  %v657 = vunpack.c.1.s8 %v597
  %v658 = vunpack.c.0.s8 %v598
  %v659 = vunpack.c.1.s8 %v598
  %v660 = vunpack.c.0.s8 %v599
  %v661 = vunpack.c.1.s8 %v599
  %v662 = vunpack.c.0.s8 %v600
  %v663 = vunpack.c.1.s8 %v600
  %v664 = vunpack.c.0.s8 %v601
  %v665 = vunpack.c.1.s8 %v601
  %vm666 = vcmp.ne.s32.totalorder %v602, 0
  %vm667 = vcmp.ne.s32.totalorder %v603, 0
  %vm668 = vcmp.ne.s32.totalorder %v604, 0
  %vm669 = vcmp.ne.s32.totalorder %v605, 0
  %vm670 = vcmp.ne.s32.totalorder %v606, 0
  %vm671 = vcmp.ne.s32.totalorder %v607, 0
  %vm672 = vcmp.ne.s32.totalorder %v608, 0
  %vm673 = vcmp.ne.s32.totalorder %v609, 0
  %vm674 = vcmp.ne.s32.totalorder %v610, 0
  %vm675 = vcmp.ne.s32.totalorder %v611, 0
  %vm676 = vcmp.ne.s32.totalorder %v612, 0
  %vm677 = vcmp.ne.s32.totalorder %v613, 0
  %vm678 = vcmp.ne.s32.totalorder %v614, 0
  %vm679 = vcmp.ne.s32.totalorder %v615, 0
  %vm680 = vcmp.ne.s32.totalorder %v616, 0
  %vm681 = vcmp.ne.s32.totalorder %v617, 0
  %vm682 = vcmp.ne.s32.totalorder %v618, 0
  %vm683 = vcmp.ne.s32.totalorder %v619, 0
  %vm684 = vcmp.ne.s32.totalorder %v620, 0
  %vm685 = vcmp.ne.s32.totalorder %v621, 0
  %vm686 = vcmp.ne.s32.totalorder %v622, 0
  %vm687 = vcmp.ne.s32.totalorder %v623, 0
  %vm688 = vcmp.ne.s32.totalorder %v624, 0
  %vm689 = vcmp.ne.s32.totalorder %v625, 0
  %vm690 = vcmp.ne.s32.totalorder %v626, 0
  %vm691 = vcmp.ne.s32.totalorder %v627, 0
  %vm692 = vcmp.ne.s32.totalorder %v628, 0
  %vm693 = vcmp.ne.s32.totalorder %v629, 0
  %vm694 = vcmp.ne.s32.totalorder %v630, 0
  %vm695 = vcmp.ne.s32.totalorder %v631, 0
  %vm696 = vcmp.ne.s32.totalorder %v632, 0
  %vm697 = vcmp.ne.s32.totalorder %v633, 0
  %vm698 = vcmp.ne.s32.totalorder %v634, 0
  %vm699 = vcmp.ne.s32.totalorder %v635, 0
  %vm700 = vcmp.ne.s32.totalorder %v636, 0
  %vm701 = vcmp.ne.s32.totalorder %v637, 0
  %vm702 = vcmp.ne.s32.totalorder %v638, 0
  %vm703 = vcmp.ne.s32.totalorder %v639, 0
  %vm704 = vcmp.ne.s32.totalorder %v640, 0
  %vm705 = vcmp.ne.s32.totalorder %v641, 0
  %vm706 = vcmp.ne.s32.totalorder %v642, 0
  %vm707 = vcmp.ne.s32.totalorder %v643, 0
  %vm708 = vcmp.ne.s32.totalorder %v644, 0
  %vm709 = vcmp.ne.s32.totalorder %v645, 0
  %vm710 = vcmp.ne.s32.totalorder %v646, 0
  %vm711 = vcmp.ne.s32.totalorder %v647, 0
  %vm712 = vcmp.ne.s32.totalorder %v648, 0
  %vm713 = vcmp.ne.s32.totalorder %v649, 0
  %vm714 = vcmp.ne.s32.totalorder %v650, 0
  %vm715 = vcmp.ne.s32.totalorder %v651, 0
  %vm716 = vcmp.ne.s32.totalorder %v652, 0
  %vm717 = vcmp.ne.s32.totalorder %v653, 0
  %vm718 = vcmp.ne.s32.totalorder %v654, 0
  %vm719 = vcmp.ne.s32.totalorder %v655, 0
  %vm720 = vcmp.ne.s32.totalorder %v656, 0
  %vm721 = vcmp.ne.s32.totalorder %v657, 0
  %vm722 = vcmp.ne.s32.totalorder %v658, 0
  %vm723 = vcmp.ne.s32.totalorder %v659, 0
  %vm724 = vcmp.ne.s32.totalorder %v660, 0
  %vm725 = vcmp.ne.s32.totalorder %v661, 0
  %vm726 = vcmp.ne.s32.totalorder %v662, 0
  %vm727 = vcmp.ne.s32.totalorder %v663, 0
  %vm728 = vcmp.ne.s32.totalorder %v664, 0
  %vm729 = vcmp.ne.s32.totalorder %v665, 0
  %v730 = vsel %vm666, %v506, -1e+30
  %v731 = vsel %vm667, %v507, -1e+30
  %v732 = vsel %vm668, %v508, -1e+30
  %v733 = vsel %vm669, %v509, -1e+30
  %v734 = vsel %vm670, %v510, -1e+30
  %v735 = vsel %vm671, %v511, -1e+30
  %v736 = vsel %vm672, %v512, -1e+30
  %v737 = vsel %vm673, %v513, -1e+30
  %v738 = vsel %vm674, %v514, -1e+30
  %v739 = vsel %vm675, %v515, -1e+30
  %v740 = vsel %vm676, %v516, -1e+30
  %v741 = vsel %vm677, %v517, -1e+30
  %v742 = vsel %vm678, %v518, -1e+30
  %v743 = vsel %vm679, %v519, -1e+30
  %v744 = vsel %vm680, %v520, -1e+30
  %v745 = vsel %vm681, %v521, -1e+30
  %v746 = vsel %vm682, %v522, -1e+30
  %v747 = vsel %vm683, %v523, -1e+30
  %v748 = vsel %vm684, %v524, -1e+30
  %v749 = vsel %vm685, %v525, -1e+30
  %v750 = vsel %vm686, %v526, -1e+30
  %v751 = vsel %vm687, %v527, -1e+30
  %v752 = vsel %vm688, %v528, -1e+30
  %v753 = vsel %vm689, %v529, -1e+30
  %v754 = vsel %vm690, %v530, -1e+30
  %v755 = vsel %vm691, %v531, -1e+30
  %v756 = vsel %vm692, %v532, -1e+30
  %v757 = vsel %vm693, %v533, -1e+30
  %v758 = vsel %vm694, %v534, -1e+30
  %v759 = vsel %vm695, %v535, -1e+30
  %v760 = vsel %vm696, %v536, -1e+30
  %v761 = vsel %vm697, %v537, -1e+30
  %v762 = vsel %vm698, %v538, -1e+30
  %v763 = vsel %vm699, %v539, -1e+30
  %v764 = vsel %vm700, %v540, -1e+30
  %v765 = vsel %vm701, %v541, -1e+30
  %v766 = vsel %vm702, %v542, -1e+30
  %v767 = vsel %vm703, %v543, -1e+30
  %v768 = vsel %vm704, %v544, -1e+30
  %v769 = vsel %vm705, %v545, -1e+30
  %v770 = vsel %vm706, %v546, -1e+30
  %v771 = vsel %vm707, %v547, -1e+30
  %v772 = vsel %vm708, %v548, -1e+30
  %v773 = vsel %vm709, %v549, -1e+30
  %v774 = vsel %vm710, %v550, -1e+30
  %v775 = vsel %vm711, %v551, -1e+30
  %v776 = vsel %vm712, %v552, -1e+30
  %v777 = vsel %vm713, %v553, -1e+30
  %v778 = vsel %vm714, %v554, -1e+30
  %v779 = vsel %vm715, %v555, -1e+30
  %v780 = vsel %vm716, %v556, -1e+30
  %v781 = vsel %vm717, %v557, -1e+30
  %v782 = vsel %vm718, %v558, -1e+30
  %v783 = vsel %vm719, %v559, -1e+30
  %v784 = vsel %vm720, %v560, -1e+30
  %v785 = vsel %vm721, %v561, -1e+30
  %v786 = vsel %vm722, %v562, -1e+30
  %v787 = vsel %vm723, %v563, -1e+30
  %v788 = vsel %vm724, %v564, -1e+30
  %v789 = vsel %vm725, %v565, -1e+30
  %v790 = vsel %vm726, %v566, -1e+30
  %v791 = vsel %vm727, %v567, -1e+30
  %v792 = vsel %vm728, %v568, -1e+30
  %v793 = vsel %vm729, %v569, -1e+30
  %v794 = vmax.f32 %v730, %v731
  %795 = vmax.xlane.f32.xlu0 %v794
  %v796 = vpop.xlane.xlu0 %795
  %v797 = vmax.f32 %v732, %v733
  %798 = vmax.xlane.f32.xlu0 %v797
  %v799 = vpop.xlane.xlu0 %798
  %v800 = vmax.f32 %v734, %v735
  %801 = vmax.xlane.f32.xlu0 %v800
  %v802 = vpop.xlane.xlu0 %801
  %v803 = vmax.f32 %v736, %v737
  %804 = vmax.xlane.f32.xlu0 %v803
  %v805 = vpop.xlane.xlu0 %804
  %v806 = vmax.f32 %v738, %v739
  %807 = vmax.xlane.f32.xlu0 %v806
  %v808 = vpop.xlane.xlu0 %807
  %v809 = vmax.f32 %v740, %v741
  %810 = vmax.xlane.f32.xlu0 %v809
  %v811 = vpop.xlane.xlu0 %810
  %v812 = vmax.f32 %v742, %v743
  %813 = vmax.xlane.f32.xlu0 %v812
  %v814 = vpop.xlane.xlu0 %813
  %v815 = vmax.f32 %v744, %v745
  %816 = vmax.xlane.f32.xlu0 %v815
  %v817 = vpop.xlane.xlu0 %816
  %v818 = vmax.f32 %v746, %v747
  %819 = vmax.xlane.f32.xlu0 %v818
  %v820 = vpop.xlane.xlu0 %819
  %v821 = vmax.f32 %v748, %v749
  %822 = vmax.xlane.f32.xlu0 %v821
  %v823 = vpop.xlane.xlu0 %822
  %v824 = vmax.f32 %v750, %v751
  %825 = vmax.xlane.f32.xlu0 %v824
  %v826 = vpop.xlane.xlu0 %825
  %v827 = vmax.f32 %v752, %v753
  %828 = vmax.xlane.f32.xlu0 %v827
  %v829 = vpop.xlane.xlu0 %828
  %v830 = vmax.f32 %v754, %v755
  %831 = vmax.xlane.f32.xlu0 %v830
  %v832 = vpop.xlane.xlu0 %831
  %v833 = vmax.f32 %v756, %v757
  %834 = vmax.xlane.f32.xlu0 %v833
  %v835 = vpop.xlane.xlu0 %834
  %v836 = vmax.f32 %v758, %v759
  %837 = vmax.xlane.f32.xlu0 %v836
  %v838 = vpop.xlane.xlu0 %837
  %v839 = vmax.f32 %v760, %v761
  %840 = vmax.xlane.f32.xlu0 %v839
  %v841 = vpop.xlane.xlu0 %840
  %v842 = vmax.f32 %v762, %v763
  %843 = vmax.xlane.f32.xlu0 %v842
  %v844 = vpop.xlane.xlu0 %843
  %v845 = vmax.f32 %v764, %v765
  %846 = vmax.xlane.f32.xlu0 %v845
  %v847 = vpop.xlane.xlu0 %846
  %v848 = vmax.f32 %v766, %v767
  %849 = vmax.xlane.f32.xlu0 %v848
  %v850 = vpop.xlane.xlu0 %849
  %v851 = vmax.f32 %v768, %v769
  %852 = vmax.xlane.f32.xlu0 %v851
  %v853 = vpop.xlane.xlu0 %852
  %v854 = vmax.f32 %v770, %v771
  %855 = vmax.xlane.f32.xlu0 %v854
  %v856 = vpop.xlane.xlu0 %855
  %v857 = vmax.f32 %v772, %v773
  %858 = vmax.xlane.f32.xlu0 %v857
  %v859 = vpop.xlane.xlu0 %858
  %v860 = vmax.f32 %v774, %v775
  %861 = vmax.xlane.f32.xlu0 %v860
  %v862 = vpop.xlane.xlu0 %861
  %v863 = vmax.f32 %v776, %v777
  %864 = vmax.xlane.f32.xlu0 %v863
  %v865 = vpop.xlane.xlu0 %864
  %v866 = vmax.f32 %v778, %v779
  %867 = vmax.xlane.f32.xlu0 %v866
  %v868 = vpop.xlane.xlu0 %867
  %v869 = vmax.f32 %v780, %v781
  %870 = vmax.xlane.f32.xlu0 %v869
  %v871 = vpop.xlane.xlu0 %870
  %v872 = vmax.f32 %v782, %v783
  %873 = vmax.xlane.f32.xlu0 %v872
  %v874 = vpop.xlane.xlu0 %873
  %v875 = vmax.f32 %v784, %v785
  %876 = vmax.xlane.f32.xlu0 %v875
  %v877 = vpop.xlane.xlu0 %876
  %v878 = vmax.f32 %v786, %v787
  %879 = vmax.xlane.f32.xlu0 %v878
  %v880 = vpop.xlane.xlu0 %879
  %v881 = vmax.f32 %v788, %v789
  %882 = vmax.xlane.f32.xlu0 %v881
  %v883 = vpop.xlane.xlu0 %882
  %v884 = vmax.f32 %v790, %v791
  %885 = vmax.xlane.f32.xlu0 %v884
  %v886 = vpop.xlane.xlu0 %885
  %v887 = vmax.f32 %v792, %v793
  %888 = vmax.xlane.f32.xlu0 %v887
  %v889 = vpop.xlane.xlu0 %888
  %v890 = vsub.f32 %v730, %v796
  %v891 = vsub.f32 %v731, %v796
  %v892 = vsub.f32 %v732, %v799
  %v893 = vsub.f32 %v733, %v799
  %v894 = vsub.f32 %v734, %v802
  %v895 = vsub.f32 %v735, %v802
  %v896 = vsub.f32 %v736, %v805
  %v897 = vsub.f32 %v737, %v805
  %v898 = vsub.f32 %v738, %v808
  %v899 = vsub.f32 %v739, %v808
  %v900 = vsub.f32 %v740, %v811
  %v901 = vsub.f32 %v741, %v811
  %v902 = vsub.f32 %v742, %v814
  %v903 = vsub.f32 %v743, %v814
  %v904 = vsub.f32 %v744, %v817
  %v905 = vsub.f32 %v745, %v817
  %v906 = vsub.f32 %v746, %v820
  %v907 = vsub.f32 %v747, %v820
  %v908 = vsub.f32 %v748, %v823
  %v909 = vsub.f32 %v749, %v823
  %v910 = vsub.f32 %v750, %v826
  %v911 = vsub.f32 %v751, %v826
  %v912 = vsub.f32 %v752, %v829
  %v913 = vsub.f32 %v753, %v829
  %v914 = vsub.f32 %v754, %v832
  %v915 = vsub.f32 %v755, %v832
  %v916 = vsub.f32 %v756, %v835
  %v917 = vsub.f32 %v757, %v835
  %v918 = vsub.f32 %v758, %v838
  %v919 = vsub.f32 %v759, %v838
  %v920 = vsub.f32 %v760, %v841
  %v921 = vsub.f32 %v761, %v841
  %v922 = vsub.f32 %v762, %v844
  %v923 = vsub.f32 %v763, %v844
  %v924 = vsub.f32 %v764, %v847
  %v925 = vsub.f32 %v765, %v847
  %v926 = vsub.f32 %v766, %v850
  %v927 = vsub.f32 %v767, %v850
  %v928 = vsub.f32 %v768, %v853
  %v929 = vsub.f32 %v769, %v853
  %v930 = vsub.f32 %v770, %v856
  %v931 = vsub.f32 %v771, %v856
  %v932 = vsub.f32 %v772, %v859
  %v933 = vsub.f32 %v773, %v859
  %v934 = vsub.f32 %v774, %v862
  %v935 = vsub.f32 %v775, %v862
  %v936 = vsub.f32 %v776, %v865
  %v937 = vsub.f32 %v777, %v865
  %v938 = vsub.f32 %v778, %v868
  %v939 = vsub.f32 %v779, %v868
  %v940 = vsub.f32 %v780, %v871
  %v941 = vsub.f32 %v781, %v871
  %v942 = vsub.f32 %v782, %v874
  %v943 = vsub.f32 %v783, %v874
  %v944 = vsub.f32 %v784, %v877
  %v945 = vsub.f32 %v785, %v877
  %v946 = vsub.f32 %v786, %v880
  %v947 = vsub.f32 %v787, %v880
  %v948 = vsub.f32 %v788, %v883
  %v949 = vsub.f32 %v789, %v883
  %v950 = vsub.f32 %v790, %v886
  %v951 = vsub.f32 %v791, %v886
  %v952 = vsub.f32 %v792, %v889
  %v953 = vsub.f32 %v793, %v889
  %v954 = vmul.f32 %v890, 1.442695
  %v955 = vpow.pop %v954
  %v956 = vmul.f32 %v891, 1.442695
  %v957 = vpow.pop %v956
  %v958 = vmul.f32 %v892, 1.442695
  %v959 = vpow.pop %v958
  %v960 = vmul.f32 %v893, 1.442695
  %v961 = vpow.pop %v960
  %v962 = vmul.f32 %v894, 1.442695
  %v963 = vpow.pop %v962
  %v964 = vmul.f32 %v895, 1.442695
  %v965 = vpow.pop %v964
  %v966 = vmul.f32 %v896, 1.442695
  %v967 = vpow.pop %v966
  %v968 = vmul.f32 %v897, 1.442695
  %v969 = vpow.pop %v968
  %v970 = vmul.f32 %v898, 1.442695
  %v971 = vpow.pop %v970
  %v972 = vmul.f32 %v899, 1.442695
  %v973 = vpow.pop %v972
  %v974 = vmul.f32 %v900, 1.442695
  %v975 = vpow.pop %v974
  %v976 = vmul.f32 %v901, 1.442695
  %v977 = vpow.pop %v976
  %v978 = vmul.f32 %v902, 1.442695
  %v979 = vpow.pop %v978
  %v980 = vmul.f32 %v903, 1.442695
  %v981 = vpow.pop %v980
  %v982 = vmul.f32 %v904, 1.442695
  %v983 = vpow.pop %v982
  %v984 = vmul.f32 %v905, 1.442695
  %v985 = vpow.pop %v984
  %v986 = vmul.f32 %v906, 1.442695
  %v987 = vpow.pop %v986
  %v988 = vmul.f32 %v907, 1.442695
  %v989 = vpow.pop %v988
  %v990 = vmul.f32 %v908, 1.442695
  %v991 = vpow.pop %v990
  %v992 = vmul.f32 %v909, 1.442695
  %v993 = vpow.pop %v992
  %v994 = vmul.f32 %v910, 1.442695
  %v995 = vpow.pop %v994
  %v996 = vmul.f32 %v911, 1.442695
  %v997 = vpow.pop %v996
  %v998 = vmul.f32 %v912, 1.442695
  %v999 = vpow.pop %v998
  %v1000 = vmul.f32 %v913, 1.442695
  %v1001 = vpow.pop %v1000
  %v1002 = vmul.f32 %v914, 1.442695
  %v1003 = vpow.pop %v1002
  %v1004 = vmul.f32 %v915, 1.442695
  %v1005 = vpow.pop %v1004
  %v1006 = vmul.f32 %v916, 1.442695
  %v1007 = vpow.pop %v1006
  %v1008 = vmul.f32 %v917, 1.442695
  %v1009 = vpow.pop %v1008
  %v1010 = vmul.f32 %v918, 1.442695
  %v1011 = vpow.pop %v1010
  %v1012 = vmul.f32 %v919, 1.442695
  %v1013 = vpow.pop %v1012
  %v1014 = vmul.f32 %v920, 1.442695
  %v1015 = vpow.pop %v1014
  %v1016 = vmul.f32 %v921, 1.442695
  %v1017 = vpow.pop %v1016
  %v1018 = vmul.f32 %v922, 1.442695
  %v1019 = vpow.pop %v1018
  %v1020 = vmul.f32 %v923, 1.442695
  %v1021 = vpow.pop %v1020
  %v1022 = vmul.f32 %v924, 1.442695
  %v1023 = vpow.pop %v1022
  %v1024 = vmul.f32 %v925, 1.442695
  %v1025 = vpow.pop %v1024
  %v1026 = vmul.f32 %v926, 1.442695
  %v1027 = vpow.pop %v1026
  %v1028 = vmul.f32 %v927, 1.442695
  %v1029 = vpow.pop %v1028
  %v1030 = vmul.f32 %v928, 1.442695
  %v1031 = vpow.pop %v1030
  %v1032 = vmul.f32 %v929, 1.442695
  %v1033 = vpow.pop %v1032
  %v1034 = vmul.f32 %v930, 1.442695
  %v1035 = vpow.pop %v1034
  %v1036 = vmul.f32 %v931, 1.442695
  %v1037 = vpow.pop %v1036
  %v1038 = vmul.f32 %v932, 1.442695
  %v1039 = vpow.pop %v1038
  %v1040 = vmul.f32 %v933, 1.442695
  %v1041 = vpow.pop %v1040
  %v1042 = vmul.f32 %v934, 1.442695
  %v1043 = vpow.pop %v1042
  %v1044 = vmul.f32 %v935, 1.442695
  %v1045 = vpow.pop %v1044
  %v1046 = vmul.f32 %v936, 1.442695
  %v1047 = vpow.pop %v1046
  %v1048 = vmul.f32 %v937, 1.442695
  %v1049 = vpow.pop %v1048
  %v1050 = vmul.f32 %v938, 1.442695
  %v1051 = vpow.pop %v1050
  %v1052 = vmul.f32 %v939, 1.442695
  %v1053 = vpow.pop %v1052
  %v1054 = vmul.f32 %v940, 1.442695
  %v1055 = vpow.pop %v1054
  %v1056 = vmul.f32 %v941, 1.442695
  %v1057 = vpow.pop %v1056
  %v1058 = vmul.f32 %v942, 1.442695
  %v1059 = vpow.pop %v1058
  %v1060 = vmul.f32 %v943, 1.442695
  %v1061 = vpow.pop %v1060
  %v1062 = vmul.f32 %v944, 1.442695
  %v1063 = vpow.pop %v1062
  %v1064 = vmul.f32 %v945, 1.442695
  %v1065 = vpow.pop %v1064
  %v1066 = vmul.f32 %v946, 1.442695
  %v1067 = vpow.pop %v1066
  %v1068 = vmul.f32 %v947, 1.442695
  %v1069 = vpow.pop %v1068
  %v1070 = vmul.f32 %v948, 1.442695
  %v1071 = vpow.pop %v1070
  %v1072 = vmul.f32 %v949, 1.442695
  %v1073 = vpow.pop %v1072
  %v1074 = vmul.f32 %v950, 1.442695
  %v1075 = vpow.pop %v1074
  %v1076 = vmul.f32 %v951, 1.442695
  %v1077 = vpow.pop %v1076
  %v1078 = vmul.f32 %v952, 1.442695
  %v1079 = vpow.pop %v1078
  %v1080 = vmul.f32 %v953, 1.442695
  %v1081 = vpow.pop %v1080
  %v1082 = vadd.f32 %v955, %v957
  %1083 = vadd.xlane.f32.xlu0 %v1082
  %v1084 = vpop.xlane.xlu0 %1083
  %v1085 = vadd.f32 %v959, %v961
  %1086 = vadd.xlane.f32.xlu0 %v1085
  %v1087 = vpop.xlane.xlu0 %1086
  %v1088 = vadd.f32 %v963, %v965
  %1089 = vadd.xlane.f32.xlu0 %v1088
  %v1090 = vpop.xlane.xlu0 %1089
  %v1091 = vadd.f32 %v967, %v969
  %1092 = vadd.xlane.f32.xlu0 %v1091
  %v1093 = vpop.xlane.xlu0 %1092
  %v1094 = vadd.f32 %v971, %v973
  %1095 = vadd.xlane.f32.xlu0 %v1094
  %v1096 = vpop.xlane.xlu0 %1095
  %v1097 = vadd.f32 %v975, %v977
  %1098 = vadd.xlane.f32.xlu0 %v1097
  %v1099 = vpop.xlane.xlu0 %1098
  %v1100 = vadd.f32 %v979, %v981
  %1101 = vadd.xlane.f32.xlu0 %v1100
  %v1102 = vpop.xlane.xlu0 %1101
  %v1103 = vadd.f32 %v983, %v985
  %1104 = vadd.xlane.f32.xlu0 %v1103
  %v1105 = vpop.xlane.xlu0 %1104
  %v1106 = vadd.f32 %v987, %v989
  %1107 = vadd.xlane.f32.xlu0 %v1106
  %v1108 = vpop.xlane.xlu0 %1107
  %v1109 = vadd.f32 %v991, %v993
  %1110 = vadd.xlane.f32.xlu0 %v1109
  %v1111 = vpop.xlane.xlu0 %1110
  %v1112 = vadd.f32 %v995, %v997
  %1113 = vadd.xlane.f32.xlu0 %v1112
  %v1114 = vpop.xlane.xlu0 %1113
  %v1115 = vadd.f32 %v999, %v1001
  %1116 = vadd.xlane.f32.xlu0 %v1115
  %v1117 = vpop.xlane.xlu0 %1116
  %v1118 = vadd.f32 %v1003, %v1005
  %1119 = vadd.xlane.f32.xlu0 %v1118
  %v1120 = vpop.xlane.xlu0 %1119
  %v1121 = vadd.f32 %v1007, %v1009
  %1122 = vadd.xlane.f32.xlu0 %v1121
  %v1123 = vpop.xlane.xlu0 %1122
  %v1124 = vadd.f32 %v1011, %v1013
  %1125 = vadd.xlane.f32.xlu0 %v1124
  %v1126 = vpop.xlane.xlu0 %1125
  %v1127 = vadd.f32 %v1015, %v1017
  %1128 = vadd.xlane.f32.xlu0 %v1127
  %v1129 = vpop.xlane.xlu0 %1128
  %v1130 = vadd.f32 %v1019, %v1021
  %1131 = vadd.xlane.f32.xlu0 %v1130
  %v1132 = vpop.xlane.xlu0 %1131
  %v1133 = vadd.f32 %v1023, %v1025
  %1134 = vadd.xlane.f32.xlu0 %v1133
  %v1135 = vpop.xlane.xlu0 %1134
  %v1136 = vadd.f32 %v1027, %v1029
  %1137 = vadd.xlane.f32.xlu0 %v1136
  %v1138 = vpop.xlane.xlu0 %1137
  %v1139 = vadd.f32 %v1031, %v1033
  %1140 = vadd.xlane.f32.xlu0 %v1139
  %v1141 = vpop.xlane.xlu0 %1140
  %v1142 = vadd.f32 %v1035, %v1037
  %1143 = vadd.xlane.f32.xlu0 %v1142
  %v1144 = vpop.xlane.xlu0 %1143
  %v1145 = vadd.f32 %v1039, %v1041
  %1146 = vadd.xlane.f32.xlu0 %v1145
  %v1147 = vpop.xlane.xlu0 %1146
  %v1148 = vadd.f32 %v1043, %v1045
  %1149 = vadd.xlane.f32.xlu0 %v1148
  %v1150 = vpop.xlane.xlu0 %1149
  %v1151 = vadd.f32 %v1047, %v1049
  %1152 = vadd.xlane.f32.xlu0 %v1151
  %v1153 = vpop.xlane.xlu0 %1152
  %v1154 = vadd.f32 %v1051, %v1053
  %1155 = vadd.xlane.f32.xlu0 %v1154
  %v1156 = vpop.xlane.xlu0 %1155
  %v1157 = vadd.f32 %v1055, %v1057
  %1158 = vadd.xlane.f32.xlu0 %v1157
  %v1159 = vpop.xlane.xlu0 %1158
  %v1160 = vadd.f32 %v1059, %v1061
  %1161 = vadd.xlane.f32.xlu0 %v1160
  %v1162 = vpop.xlane.xlu0 %1161
  %v1163 = vadd.f32 %v1063, %v1065
  %1164 = vadd.xlane.f32.xlu0 %v1163
  %v1165 = vpop.xlane.xlu0 %1164
  %v1166 = vadd.f32 %v1067, %v1069
  %1167 = vadd.xlane.f32.xlu0 %v1166
  %v1168 = vpop.xlane.xlu0 %1167
  %v1169 = vadd.f32 %v1071, %v1073
  %1170 = vadd.xlane.f32.xlu0 %v1169
  %v1171 = vpop.xlane.xlu0 %1170
  %v1172 = vadd.f32 %v1075, %v1077
  %1173 = vadd.xlane.f32.xlu0 %v1172
  %v1174 = vpop.xlane.xlu0 %1173
  %v1175 = vadd.f32 %v1079, %v1081
  %1176 = vadd.xlane.f32.xlu0 %v1175
  %v1177 = vpop.xlane.xlu0 %1176
  %v1178 = vld [vmem:[%s0] sm:$0xff]
  %v1179 = vld [vmem:[%s0 + $0x10] sm:$0xff]
  %v1180 = vld [vmem:[%s0 + $0x20] sm:$0xff]
  %v1181 = vld [vmem:[%s0 + $0x30] sm:$0xff]
  %v1182 = vld [vmem:[%s0 + $0x40] sm:$0xff]
  %v1183 = vld [vmem:[%s0 + $0x50] sm:$0xff]
  %v1184 = vld [vmem:[%s0 + $0x60] sm:$0xff]
  %v1185 = vld [vmem:[%s0 + $0x70] sm:$0xff]
  %v1186 = vld [vmem:[%s0 + $0x80] sm:$0xff]
  %v1187 = vld [vmem:[%s0 + $0x90] sm:$0xff]
  %v1188 = vld [vmem:[%s0 + $0xa0] sm:$0xff]
  %v1189 = vld [vmem:[%s0 + $0xb0] sm:$0xff]
  %v1190 = vld [vmem:[%s0 + $0xc0] sm:$0xff]
  %v1191 = vld [vmem:[%s0 + $0xd0] sm:$0xff]
  %v1192 = vld [vmem:[%s0 + $0xe0] sm:$0xff]
  %v1193 = vld [vmem:[%s0 + $0xf0] sm:$0xff]
  %v1194 = vld [vmem:[%s0 + $0x100] sm:$0xff]
  %v1195 = vld [vmem:[%s0 + $0x110] sm:$0xff]
  %v1196 = vld [vmem:[%s0 + $0x120] sm:$0xff]
  %v1197 = vld [vmem:[%s0 + $0x130] sm:$0xff]
  %v1198 = vld [vmem:[%s0 + $0x140] sm:$0xff]
  %v1199 = vld [vmem:[%s0 + $0x150] sm:$0xff]
  %v1200 = vld [vmem:[%s0 + $0x160] sm:$0xff]
  %v1201 = vld [vmem:[%s0 + $0x170] sm:$0xff]
  %v1202 = vld [vmem:[%s0 + $0x180] sm:$0xff]
  %v1203 = vld [vmem:[%s0 + $0x190] sm:$0xff]
  %v1204 = vld [vmem:[%s0 + $0x1a0] sm:$0xff]
  %v1205 = vld [vmem:[%s0 + $0x1b0] sm:$0xff]
  %v1206 = vld [vmem:[%s0 + $0x1c0] sm:$0xff]
  %v1207 = vld [vmem:[%s0 + $0x1d0] sm:$0xff]
  %v1208 = vld [vmem:[%s0 + $0x1e0] sm:$0xff]
  %v1209 = vld [vmem:[%s0 + $0x1f0] sm:$0xff]
  %v1210 = vpack.c.bf16 %v959, %v955
  %v1211 = vpack.c.bf16 %v961, %v957
  %v1212 = vpack.c.bf16 %v967, %v963
  %v1213 = vpack.c.bf16 %v969, %v965
  %v1214 = vpack.c.bf16 %v975, %v971
  %v1215 = vpack.c.bf16 %v977, %v973
  %v1216 = vpack.c.bf16 %v983, %v979
  %v1217 = vpack.c.bf16 %v985, %v981
  %v1218 = vpack.c.bf16 %v991, %v987
  %v1219 = vpack.c.bf16 %v993, %v989
  %v1220 = vpack.c.bf16 %v999, %v995
  %v1221 = vpack.c.bf16 %v1001, %v997
  %v1222 = vpack.c.bf16 %v1007, %v1003
  %v1223 = vpack.c.bf16 %v1009, %v1005
  %v1224 = vpack.c.bf16 %v1015, %v1011
  %v1225 = vpack.c.bf16 %v1017, %v1013
  %v1226 = vpack.c.bf16 %v1023, %v1019
  %v1227 = vpack.c.bf16 %v1025, %v1021
  %v1228 = vpack.c.bf16 %v1031, %v1027
  %v1229 = vpack.c.bf16 %v1033, %v1029
  %v1230 = vpack.c.bf16 %v1039, %v1035
  %v1231 = vpack.c.bf16 %v1041, %v1037
  %v1232 = vpack.c.bf16 %v1047, %v1043
  %v1233 = vpack.c.bf16 %v1049, %v1045
  %v1234 = vpack.c.bf16 %v1055, %v1051
  %v1235 = vpack.c.bf16 %v1057, %v1053
  %v1236 = vpack.c.bf16 %v1063, %v1059
  %v1237 = vpack.c.bf16 %v1065, %v1061
  %v1238 = vpack.c.bf16 %v1071, %v1067
  %v1239 = vpack.c.bf16 %v1073, %v1069
  %v1240 = vpack.c.bf16 %v1079, %v1075
  %v1241 = vpack.c.bf16 %v1081, %v1077
  %v1274 = vunpack.c.l.b16 %v1178
  %v1275 = vunpack.c.h.b16 %v1178
  %v1276 = vunpack.c.l.b16 %v1179
  %v1277 = vunpack.c.h.b16 %v1179
  %v1278 = vunpack.c.l.b16 %v1180
  %v1279 = vunpack.c.h.b16 %v1180
  %v1280 = vunpack.c.l.b16 %v1181
  %v1281 = vunpack.c.h.b16 %v1181
  %v1282 = vunpack.c.l.b16 %v1182
  %v1283 = vunpack.c.h.b16 %v1182
  %v1284 = vunpack.c.l.b16 %v1183
  %v1285 = vunpack.c.h.b16 %v1183
  %v1286 = vunpack.c.l.b16 %v1184
  %v1287 = vunpack.c.h.b16 %v1184
  %v1288 = vunpack.c.l.b16 %v1185
  %v1289 = vunpack.c.h.b16 %v1185
  %v1290 = vunpack.c.l.b16 %v1186
  %v1291 = vunpack.c.h.b16 %v1186
  %v1292 = vunpack.c.l.b16 %v1187
  %v1293 = vunpack.c.h.b16 %v1187
  %v1294 = vunpack.c.l.b16 %v1188
  %v1295 = vunpack.c.h.b16 %v1188
  %v1296 = vunpack.c.l.b16 %v1189
  %v1297 = vunpack.c.h.b16 %v1189
  %v1298 = vunpack.c.l.b16 %v1190
  %v1299 = vunpack.c.h.b16 %v1190
  %v1300 = vunpack.c.l.b16 %v1191
  %v1301 = vunpack.c.h.b16 %v1191
  %v1302 = vunpack.c.l.b16 %v1192
  %v1303 = vunpack.c.h.b16 %v1192
  %v1304 = vunpack.c.l.b16 %v1193
  %v1305 = vunpack.c.h.b16 %v1193
  %v1306 = vunpack.c.l.b16 %v1194
  %v1307 = vunpack.c.h.b16 %v1194
  %v1308 = vunpack.c.l.b16 %v1195
  %v1309 = vunpack.c.h.b16 %v1195
  %v1310 = vunpack.c.l.b16 %v1196
  %v1311 = vunpack.c.h.b16 %v1196
  %v1312 = vunpack.c.l.b16 %v1197
  %v1313 = vunpack.c.h.b16 %v1197
  %v1314 = vunpack.c.l.b16 %v1198
  %v1315 = vunpack.c.h.b16 %v1198
  %v1316 = vunpack.c.l.b16 %v1199
  %v1317 = vunpack.c.h.b16 %v1199
  %v1318 = vunpack.c.l.b16 %v1200
  %v1319 = vunpack.c.h.b16 %v1200
  %v1320 = vunpack.c.l.b16 %v1201
  %v1321 = vunpack.c.h.b16 %v1201
  %v1322 = vunpack.c.l.b16 %v1202
  %v1323 = vunpack.c.h.b16 %v1202
  %v1324 = vunpack.c.l.b16 %v1203
  %v1325 = vunpack.c.h.b16 %v1203
  %v1326 = vunpack.c.l.b16 %v1204
  %v1327 = vunpack.c.h.b16 %v1204
  %v1328 = vunpack.c.l.b16 %v1205
  %v1329 = vunpack.c.h.b16 %v1205
  %v1330 = vunpack.c.l.b16 %v1206
  %v1331 = vunpack.c.h.b16 %v1206
  %v1332 = vunpack.c.l.b16 %v1207
  %v1333 = vunpack.c.h.b16 %v1207
  %v1334 = vunpack.c.l.b16 %v1208
  %v1335 = vunpack.c.h.b16 %v1208
  %v1336 = vunpack.c.l.b16 %v1209
  %v1337 = vunpack.c.h.b16 %v1209
  %v1338 = vpack.c.b16 %v1276, %v1274
  %v1339 = vpack.c.b16 %v1277, %v1275
  %v1340 = vpack.c.b16 %v1280, %v1278
  %v1341 = vpack.c.b16 %v1281, %v1279
  %v1342 = vpack.c.b16 %v1284, %v1282
  %v1343 = vpack.c.b16 %v1285, %v1283
  %v1344 = vpack.c.b16 %v1288, %v1286
  %v1345 = vpack.c.b16 %v1289, %v1287
  %v1346 = vpack.c.b16 %v1292, %v1290
  %v1347 = vpack.c.b16 %v1293, %v1291
  %v1348 = vpack.c.b16 %v1296, %v1294
  %v1349 = vpack.c.b16 %v1297, %v1295
  %v1350 = vpack.c.b16 %v1300, %v1298
  %v1351 = vpack.c.b16 %v1301, %v1299
  %v1352 = vpack.c.b16 %v1304, %v1302
  %v1353 = vpack.c.b16 %v1305, %v1303
  %v1354 = vpack.c.b16 %v1308, %v1306
  %v1355 = vpack.c.b16 %v1309, %v1307
  %v1356 = vpack.c.b16 %v1312, %v1310
  %v1357 = vpack.c.b16 %v1313, %v1311
  %v1358 = vpack.c.b16 %v1316, %v1314
  %v1359 = vpack.c.b16 %v1317, %v1315
  %v1360 = vpack.c.b16 %v1320, %v1318
  %v1361 = vpack.c.b16 %v1321, %v1319
  %v1362 = vpack.c.b16 %v1324, %v1322
  %v1363 = vpack.c.b16 %v1325, %v1323
  %v1364 = vpack.c.b16 %v1328, %v1326
  %v1365 = vpack.c.b16 %v1329, %v1327
  %v1366 = vpack.c.b16 %v1332, %v1330
  %v1367 = vpack.c.b16 %v1333, %v1331
  %v1368 = vpack.c.b16 %v1336, %v1334
  %v1369 = vpack.c.b16 %v1337, %v1335
  %1402 = vmatpush.bf16.msra.mxu0 %v1352
  %1403 = vmatpush.bf16.msra.mxu0 %v1350
  %1404 = vmatpush.bf16.msra.mxu0 %v1348
  %1405 = vmatpush.bf16.msra.mxu0 %v1346
  %1406 = vmatpush.bf16.msra.mxu0 %v1344
  %1407 = vmatpush.bf16.msra.mxu0 %v1342
  %1408 = vmatpush.bf16.msra.mxu0 %v1340
  %1409 = vmatpush.bf16.msra.mxu0 %v1338
  %1410 = vmatmul.bf16.gmra.mxu0 %v1210
  %v1411 = vpop.f32.mrf.mxu0
  %v1412 = vadd.f32 0.0, %v1411
  %v1413 = vpop.f32.mrf.mxu0
  %v1414 = vadd.f32 0.0, %v1413
  %1415 = vmatmul.bf16.gmra.mxu0 %v1212
  %v1416 = vpop.f32.mrf.mxu0
  %v1417 = vadd.f32 0.0, %v1416
  %v1418 = vpop.f32.mrf.mxu0
  %v1419 = vadd.f32 0.0, %v1418
  %1420 = vmatmul.bf16.gmra.mxu0 %v1214
  %v1421 = vpop.f32.mrf.mxu0
  %v1422 = vadd.f32 0.0, %v1421
  %v1423 = vpop.f32.mrf.mxu0
  %v1424 = vadd.f32 0.0, %v1423
  %1425 = vmatmul.bf16.gmra.mxu0 %v1216
  %v1426 = vpop.f32.mrf.mxu0
  %v1427 = vadd.f32 0.0, %v1426
  %v1428 = vpop.f32.mrf.mxu0
  %v1429 = vadd.f32 0.0, %v1428
  %1430 = vmatmul.bf16.gmra.mxu0 %v1218
  %v1431 = vpop.f32.mrf.mxu0
  %v1432 = vadd.f32 0.0, %v1431
  %v1433 = vpop.f32.mrf.mxu0
  %v1434 = vadd.f32 0.0, %v1433
  %1435 = vmatmul.bf16.gmra.mxu0 %v1220
  %v1436 = vpop.f32.mrf.mxu0
  %v1437 = vadd.f32 0.0, %v1436
  %v1438 = vpop.f32.mrf.mxu0
  %v1439 = vadd.f32 0.0, %v1438
  %1440 = vmatmul.bf16.gmra.mxu0 %v1222
  %v1441 = vpop.f32.mrf.mxu0
  %v1442 = vadd.f32 0.0, %v1441
  %v1443 = vpop.f32.mrf.mxu0
  %v1444 = vadd.f32 0.0, %v1443
  %1445 = vmatmul.bf16.gmra.mxu0 %v1224
  %v1446 = vpop.f32.mrf.mxu0
  %v1447 = vadd.f32 0.0, %v1446
  %v1448 = vpop.f32.mrf.mxu0
  %v1449 = vadd.f32 0.0, %v1448
  %1450 = vmatmul.bf16.gmra.mxu0 %v1226
  %v1451 = vpop.f32.mrf.mxu0
  %v1452 = vadd.f32 0.0, %v1451
  %v1453 = vpop.f32.mrf.mxu0
  %v1454 = vadd.f32 0.0, %v1453
  %1455 = vmatmul.bf16.gmra.mxu0 %v1228
  %v1456 = vpop.f32.mrf.mxu0
  %v1457 = vadd.f32 0.0, %v1456
  %v1458 = vpop.f32.mrf.mxu0
  %v1459 = vadd.f32 0.0, %v1458
  %1460 = vmatmul.bf16.gmra.mxu0 %v1230
  %v1461 = vpop.f32.mrf.mxu0
  %v1462 = vadd.f32 0.0, %v1461
  %v1463 = vpop.f32.mrf.mxu0
  %v1464 = vadd.f32 0.0, %v1463
  %1465 = vmatmul.bf16.gmra.mxu0 %v1232
  %v1466 = vpop.f32.mrf.mxu0
  %v1467 = vadd.f32 0.0, %v1466
  %v1468 = vpop.f32.mrf.mxu0
  %v1469 = vadd.f32 0.0, %v1468
  %1470 = vmatmul.bf16.gmra.mxu0 %v1234
  %v1471 = vpop.f32.mrf.mxu0
  %v1472 = vadd.f32 0.0, %v1471
  %v1473 = vpop.f32.mrf.mxu0
  %v1474 = vadd.f32 0.0, %v1473
  %1475 = vmatmul.bf16.gmra.mxu0 %v1236
  %v1476 = vpop.f32.mrf.mxu0
  %v1477 = vadd.f32 0.0, %v1476
  %v1478 = vpop.f32.mrf.mxu0
  %v1479 = vadd.f32 0.0, %v1478
  %1480 = vmatmul.bf16.gmra.mxu0 %v1238
  %v1481 = vpop.f32.mrf.mxu0
  %v1482 = vadd.f32 0.0, %v1481
  %v1483 = vpop.f32.mrf.mxu0
  %v1484 = vadd.f32 0.0, %v1483
  %1485 = vmatmul.bf16.gmra.mxu0 %v1240
  %v1486 = vpop.f32.mrf.mxu0
  %v1487 = vadd.f32 0.0, %v1486
  %v1488 = vpop.f32.mrf.mxu0
  %v1489 = vadd.f32 0.0, %v1488
  %1490 = vdwg.mxu0
  %1491 = vmatpush.bf16.msra.mxu0 %v1368
  %1492 = vmatpush.bf16.msra.mxu0 %v1366
  %1493 = vmatpush.bf16.msra.mxu0 %v1364
  %1494 = vmatpush.bf16.msra.mxu0 %v1362
  %1495 = vmatpush.bf16.msra.mxu0 %v1360
  %1496 = vmatpush.bf16.msra.mxu0 %v1358
  %1497 = vmatpush.bf16.msra.mxu0 %v1356
  %1498 = vmatpush.bf16.msra.mxu0 %v1354
  %1499 = vmatmul.bf16.gmra.mxu0 %v1211
  %v1500 = vpop.f32.mrf.mxu0
  %v1501 = vadd.f32 %v1412, %v1500
  %v1502 = vpop.f32.mrf.mxu0
  %v1503 = vadd.f32 %v1414, %v1502
  %1504 = vmatmul.bf16.gmra.mxu0 %v1213
  %v1505 = vpop.f32.mrf.mxu0
  %v1506 = vadd.f32 %v1417, %v1505
  %v1507 = vpop.f32.mrf.mxu0
  %v1508 = vadd.f32 %v1419, %v1507
  %1509 = vmatmul.bf16.gmra.mxu0 %v1215
  %v1510 = vpop.f32.mrf.mxu0
  %v1511 = vadd.f32 %v1422, %v1510
  %v1512 = vpop.f32.mrf.mxu0
  %v1513 = vadd.f32 %v1424, %v1512
  %1514 = vmatmul.bf16.gmra.mxu0 %v1217
  %v1515 = vpop.f32.mrf.mxu0
  %v1516 = vadd.f32 %v1427, %v1515
  %v1517 = vpop.f32.mrf.mxu0
  %v1518 = vadd.f32 %v1429, %v1517
  %1519 = vmatmul.bf16.gmra.mxu0 %v1219
  %v1520 = vpop.f32.mrf.mxu0
  %v1521 = vadd.f32 %v1432, %v1520
  %v1522 = vpop.f32.mrf.mxu0
  %v1523 = vadd.f32 %v1434, %v1522
  %1524 = vmatmul.bf16.gmra.mxu0 %v1221
  %v1525 = vpop.f32.mrf.mxu0
  %v1526 = vadd.f32 %v1437, %v1525
  %v1527 = vpop.f32.mrf.mxu0
  %v1528 = vadd.f32 %v1439, %v1527
  %1529 = vmatmul.bf16.gmra.mxu0 %v1223
  %v1530 = vpop.f32.mrf.mxu0
  %v1531 = vadd.f32 %v1442, %v1530
  %v1532 = vpop.f32.mrf.mxu0
  %v1533 = vadd.f32 %v1444, %v1532
  %1534 = vmatmul.bf16.gmra.mxu0 %v1225
  %v1535 = vpop.f32.mrf.mxu0
  %v1536 = vadd.f32 %v1447, %v1535
  %v1537 = vpop.f32.mrf.mxu0
  %v1538 = vadd.f32 %v1449, %v1537
  %1539 = vmatmul.bf16.gmra.mxu0 %v1227
  %v1540 = vpop.f32.mrf.mxu0
  %v1541 = vadd.f32 %v1452, %v1540
  %v1542 = vpop.f32.mrf.mxu0
  %v1543 = vadd.f32 %v1454, %v1542
  %1544 = vmatmul.bf16.gmra.mxu0 %v1229
  %v1545 = vpop.f32.mrf.mxu0
  %v1546 = vadd.f32 %v1457, %v1545
  %v1547 = vpop.f32.mrf.mxu0
  %v1548 = vadd.f32 %v1459, %v1547
  %1549 = vmatmul.bf16.gmra.mxu0 %v1231
  %v1550 = vpop.f32.mrf.mxu0
  %v1551 = vadd.f32 %v1462, %v1550
  %v1552 = vpop.f32.mrf.mxu0
  %v1553 = vadd.f32 %v1464, %v1552
  %1554 = vmatmul.bf16.gmra.mxu0 %v1233
  %v1555 = vpop.f32.mrf.mxu0
  %v1556 = vadd.f32 %v1467, %v1555
  %v1557 = vpop.f32.mrf.mxu0
  %v1558 = vadd.f32 %v1469, %v1557
  %1559 = vmatmul.bf16.gmra.mxu0 %v1235
  %v1560 = vpop.f32.mrf.mxu0
  %v1561 = vadd.f32 %v1472, %v1560
  %v1562 = vpop.f32.mrf.mxu0
  %v1563 = vadd.f32 %v1474, %v1562
  %1564 = vmatmul.bf16.gmra.mxu0 %v1237
  %v1565 = vpop.f32.mrf.mxu0
  %v1566 = vadd.f32 %v1477, %v1565
  %v1567 = vpop.f32.mrf.mxu0
  %v1568 = vadd.f32 %v1479, %v1567
  %1569 = vmatmul.bf16.gmra.mxu0 %v1239
  %v1570 = vpop.f32.mrf.mxu0
  %v1571 = vadd.f32 %v1482, %v1570
  %v1572 = vpop.f32.mrf.mxu0
  %v1573 = vadd.f32 %v1484, %v1572
  %1574 = vmatmul.bf16.gmra.mxu0 %v1241
  %v1575 = vpop.f32.mrf.mxu0
  %v1576 = vadd.f32 %v1487, %v1575
  %v1577 = vpop.f32.mrf.mxu0
  %v1578 = vadd.f32 %v1489, %v1577
  %1579 = vdwg.mxu0
  %1580 = vmatpush.bf16.msra.mxu0 %v1353
  %1581 = vmatpush.bf16.msra.mxu0 %v1351
  %1582 = vmatpush.bf16.msra.mxu0 %v1349
  %1583 = vmatpush.bf16.msra.mxu0 %v1347
  %1584 = vmatpush.bf16.msra.mxu0 %v1345
  %1585 = vmatpush.bf16.msra.mxu0 %v1343
  %1586 = vmatpush.bf16.msra.mxu0 %v1341
  %1587 = vmatpush.bf16.msra.mxu0 %v1339
  %1588 = vmatmul.bf16.gmra.mxu0 %v1210
  %v1589 = vpop.f32.mrf.mxu0
  %v1590 = vadd.f32 0.0, %v1589
  %v1591 = vpop.f32.mrf.mxu0
  %v1592 = vadd.f32 0.0, %v1591
  %1593 = vmatmul.bf16.gmra.mxu0 %v1212
  %v1594 = vpop.f32.mrf.mxu0
  %v1595 = vadd.f32 0.0, %v1594
  %v1596 = vpop.f32.mrf.mxu0
  %v1597 = vadd.f32 0.0, %v1596
  %1598 = vmatmul.bf16.gmra.mxu0 %v1214
  %v1599 = vpop.f32.mrf.mxu0
  %v1600 = vadd.f32 0.0, %v1599
  %v1601 = vpop.f32.mrf.mxu0
  %v1602 = vadd.f32 0.0, %v1601
  %1603 = vmatmul.bf16.gmra.mxu0 %v1216
  %v1604 = vpop.f32.mrf.mxu0
  %v1605 = vadd.f32 0.0, %v1604
  %v1606 = vpop.f32.mrf.mxu0
  %v1607 = vadd.f32 0.0, %v1606
  %1608 = vmatmul.bf16.gmra.mxu0 %v1218
  %v1609 = vpop.f32.mrf.mxu0
  %v1610 = vadd.f32 0.0, %v1609
  %v1611 = vpop.f32.mrf.mxu0
  %v1612 = vadd.f32 0.0, %v1611
  %1613 = vmatmul.bf16.gmra.mxu0 %v1220
  %v1614 = vpop.f32.mrf.mxu0
  %v1615 = vadd.f32 0.0, %v1614
  %v1616 = vpop.f32.mrf.mxu0
  %v1617 = vadd.f32 0.0, %v1616
  %1618 = vmatmul.bf16.gmra.mxu0 %v1222
  %v1619 = vpop.f32.mrf.mxu0
  %v1620 = vadd.f32 0.0, %v1619
  %v1621 = vpop.f32.mrf.mxu0
  %v1622 = vadd.f32 0.0, %v1621
  %1623 = vmatmul.bf16.gmra.mxu0 %v1224
  %v1624 = vpop.f32.mrf.mxu0
  %v1625 = vadd.f32 0.0, %v1624
  %v1626 = vpop.f32.mrf.mxu0
  %v1627 = vadd.f32 0.0, %v1626
  %1628 = vmatmul.bf16.gmra.mxu0 %v1226
  %v1629 = vpop.f32.mrf.mxu0
  %v1630 = vadd.f32 0.0, %v1629
  %v1631 = vpop.f32.mrf.mxu0
  %v1632 = vadd.f32 0.0, %v1631
  %1633 = vmatmul.bf16.gmra.mxu0 %v1228
  %v1634 = vpop.f32.mrf.mxu0
  %v1635 = vadd.f32 0.0, %v1634
  %v1636 = vpop.f32.mrf.mxu0
  %v1637 = vadd.f32 0.0, %v1636
  %1638 = vmatmul.bf16.gmra.mxu0 %v1230
  %v1639 = vpop.f32.mrf.mxu0
  %v1640 = vadd.f32 0.0, %v1639
  %v1641 = vpop.f32.mrf.mxu0
  %v1642 = vadd.f32 0.0, %v1641
  %1643 = vmatmul.bf16.gmra.mxu0 %v1232
  %v1644 = vpop.f32.mrf.mxu0
  %v1645 = vadd.f32 0.0, %v1644
  %v1646 = vpop.f32.mrf.mxu0
  %v1647 = vadd.f32 0.0, %v1646
  %1648 = vmatmul.bf16.gmra.mxu0 %v1234
  %v1649 = vpop.f32.mrf.mxu0
  %v1650 = vadd.f32 0.0, %v1649
  %v1651 = vpop.f32.mrf.mxu0
  %v1652 = vadd.f32 0.0, %v1651
  %1653 = vmatmul.bf16.gmra.mxu0 %v1236
  %v1654 = vpop.f32.mrf.mxu0
  %v1655 = vadd.f32 0.0, %v1654
  %v1656 = vpop.f32.mrf.mxu0
  %v1657 = vadd.f32 0.0, %v1656
  %1658 = vmatmul.bf16.gmra.mxu0 %v1238
  %v1659 = vpop.f32.mrf.mxu0
  %v1660 = vadd.f32 0.0, %v1659
  %v1661 = vpop.f32.mrf.mxu0
  %v1662 = vadd.f32 0.0, %v1661
  %1663 = vmatmul.bf16.gmra.mxu0 %v1240
  %v1664 = vpop.f32.mrf.mxu0
  %v1665 = vadd.f32 0.0, %v1664
  %v1666 = vpop.f32.mrf.mxu0
  %v1667 = vadd.f32 0.0, %v1666
  %1668 = vdwg.mxu0
  %1669 = vmatpush.bf16.msra.mxu0 %v1369
  %1670 = vmatpush.bf16.msra.mxu0 %v1367
  %1671 = vmatpush.bf16.msra.mxu0 %v1365
  %1672 = vmatpush.bf16.msra.mxu0 %v1363
  %1673 = vmatpush.bf16.msra.mxu0 %v1361
  %1674 = vmatpush.bf16.msra.mxu0 %v1359
  %1675 = vmatpush.bf16.msra.mxu0 %v1357
  %1676 = vmatpush.bf16.msra.mxu0 %v1355
  %1677 = vmatmul.bf16.gmra.mxu0 %v1211
  %v1678 = vpop.f32.mrf.mxu0
  %v1679 = vadd.f32 %v1590, %v1678
  %v1680 = vpop.f32.mrf.mxu0
  %v1681 = vadd.f32 %v1592, %v1680
  %1682 = vmatmul.bf16.gmra.mxu0 %v1213
  %v1683 = vpop.f32.mrf.mxu0
  %v1684 = vadd.f32 %v1595, %v1683
  %v1685 = vpop.f32.mrf.mxu0
  %v1686 = vadd.f32 %v1597, %v1685
  %1687 = vmatmul.bf16.gmra.mxu0 %v1215
  %v1688 = vpop.f32.mrf.mxu0
  %v1689 = vadd.f32 %v1600, %v1688
  %v1690 = vpop.f32.mrf.mxu0
  %v1691 = vadd.f32 %v1602, %v1690
  %1692 = vmatmul.bf16.gmra.mxu0 %v1217
  %v1693 = vpop.f32.mrf.mxu0
  %v1694 = vadd.f32 %v1605, %v1693
  %v1695 = vpop.f32.mrf.mxu0
  %v1696 = vadd.f32 %v1607, %v1695
  %1697 = vmatmul.bf16.gmra.mxu0 %v1219
  %v1698 = vpop.f32.mrf.mxu0
  %v1699 = vadd.f32 %v1610, %v1698
  %v1700 = vpop.f32.mrf.mxu0
  %v1701 = vadd.f32 %v1612, %v1700
  %1702 = vmatmul.bf16.gmra.mxu0 %v1221
  %v1703 = vpop.f32.mrf.mxu0
  %v1704 = vadd.f32 %v1615, %v1703
  %v1705 = vpop.f32.mrf.mxu0
  %v1706 = vadd.f32 %v1617, %v1705
  %1707 = vmatmul.bf16.gmra.mxu0 %v1223
  %v1708 = vpop.f32.mrf.mxu0
  %v1709 = vadd.f32 %v1620, %v1708
  %v1710 = vpop.f32.mrf.mxu0
  %v1711 = vadd.f32 %v1622, %v1710
  %1712 = vmatmul.bf16.gmra.mxu0 %v1225
  %v1713 = vpop.f32.mrf.mxu0
  %v1714 = vadd.f32 %v1625, %v1713
  %v1715 = vpop.f32.mrf.mxu0
  %v1716 = vadd.f32 %v1627, %v1715
  %1717 = vmatmul.bf16.gmra.mxu0 %v1227
  %v1718 = vpop.f32.mrf.mxu0
  %v1719 = vadd.f32 %v1630, %v1718
  %v1720 = vpop.f32.mrf.mxu0
  %v1721 = vadd.f32 %v1632, %v1720
  %1722 = vmatmul.bf16.gmra.mxu0 %v1229
  %v1723 = vpop.f32.mrf.mxu0
  %v1724 = vadd.f32 %v1635, %v1723
  %v1725 = vpop.f32.mrf.mxu0
  %v1726 = vadd.f32 %v1637, %v1725
  %1727 = vmatmul.bf16.gmra.mxu0 %v1231
  %v1728 = vpop.f32.mrf.mxu0
  %v1729 = vadd.f32 %v1640, %v1728
  %v1730 = vpop.f32.mrf.mxu0
  %v1731 = vadd.f32 %v1642, %v1730
  %1732 = vmatmul.bf16.gmra.mxu0 %v1233
  %v1733 = vpop.f32.mrf.mxu0
  %v1734 = vadd.f32 %v1645, %v1733
  %v1735 = vpop.f32.mrf.mxu0
  %v1736 = vadd.f32 %v1647, %v1735
  %1737 = vmatmul.bf16.gmra.mxu0 %v1235
  %v1738 = vpop.f32.mrf.mxu0
  %v1739 = vadd.f32 %v1650, %v1738
  %v1740 = vpop.f32.mrf.mxu0
  %v1741 = vadd.f32 %v1652, %v1740
  %1742 = vmatmul.bf16.gmra.mxu0 %v1237
  %v1743 = vpop.f32.mrf.mxu0
  %v1744 = vadd.f32 %v1655, %v1743
  %v1745 = vpop.f32.mrf.mxu0
  %v1746 = vadd.f32 %v1657, %v1745
  %1747 = vmatmul.bf16.gmra.mxu0 %v1239
  %v1748 = vpop.f32.mrf.mxu0
  %v1749 = vadd.f32 %v1660, %v1748
  %v1750 = vpop.f32.mrf.mxu0
  %v1751 = vadd.f32 %v1662, %v1750
  %1752 = vmatmul.bf16.gmra.mxu0 %v1241
  %v1753 = vpop.f32.mrf.mxu0
  %v1754 = vadd.f32 %v1665, %v1753
  %v1755 = vpop.f32.mrf.mxu0
  %v1756 = vadd.f32 %v1667, %v1755
  %1757 = vdwg.mxu0
  %v1758 = vrcp.pop %v1084
  %v1759 = vrcp.pop %v1087
  %v1760 = vrcp.pop %v1090
  %v1761 = vrcp.pop %v1093
  %v1762 = vrcp.pop %v1096
  %v1763 = vrcp.pop %v1099
  %v1764 = vrcp.pop %v1102
  %v1765 = vrcp.pop %v1105
  %v1766 = vrcp.pop %v1108
  %v1767 = vrcp.pop %v1111
  %v1768 = vrcp.pop %v1114
  %v1769 = vrcp.pop %v1117
  %v1770 = vrcp.pop %v1120
  %v1771 = vrcp.pop %v1123
  %v1772 = vrcp.pop %v1126
  %v1773 = vrcp.pop %v1129
  %v1774 = vrcp.pop %v1132
  %v1775 = vrcp.pop %v1135
  %v1776 = vrcp.pop %v1138
  %v1777 = vrcp.pop %v1141
  %v1778 = vrcp.pop %v1144
  %v1779 = vrcp.pop %v1147
  %v1780 = vrcp.pop %v1150
  %v1781 = vrcp.pop %v1153
  %v1782 = vrcp.pop %v1156
  %v1783 = vrcp.pop %v1159
  %v1784 = vrcp.pop %v1162
  %v1785 = vrcp.pop %v1165
  %v1786 = vrcp.pop %v1168
  %v1787 = vrcp.pop %v1171
  %v1788 = vrcp.pop %v1174
  %v1789 = vrcp.pop %v1177
  %v1790 = vmul.f32 %v1501, %v1758
  %v1791 = vmul.f32 %v1679, %v1758
  %v1792 = vmul.f32 %v1503, %v1759
  %v1793 = vmul.f32 %v1681, %v1759
  %v1794 = vmul.f32 %v1506, %v1760
  %v1795 = vmul.f32 %v1684, %v1760
  %v1796 = vmul.f32 %v1508, %v1761
  %v1797 = vmul.f32 %v1686, %v1761
  %v1798 = vmul.f32 %v1511, %v1762
  %v1799 = vmul.f32 %v1689, %v1762
  %v1800 = vmul.f32 %v1513, %v1763
  %v1801 = vmul.f32 %v1691, %v1763
  %v1802 = vmul.f32 %v1516, %v1764
  %v1803 = vmul.f32 %v1694, %v1764
  %v1804 = vmul.f32 %v1518, %v1765
  %v1805 = vmul.f32 %v1696, %v1765
  %v1806 = vmul.f32 %v1521, %v1766
  %v1807 = vmul.f32 %v1699, %v1766
  %v1808 = vmul.f32 %v1523, %v1767
  %v1809 = vmul.f32 %v1701, %v1767
  %v1810 = vmul.f32 %v1526, %v1768
  %v1811 = vmul.f32 %v1704, %v1768
  %v1812 = vmul.f32 %v1528, %v1769
  %v1813 = vmul.f32 %v1706, %v1769
  %v1814 = vmul.f32 %v1531, %v1770
  %v1815 = vmul.f32 %v1709, %v1770
  %v1816 = vmul.f32 %v1533, %v1771
  %v1817 = vmul.f32 %v1711, %v1771
  %v1818 = vmul.f32 %v1536, %v1772
  %v1819 = vmul.f32 %v1714, %v1772
  %v1820 = vmul.f32 %v1538, %v1773
  %v1821 = vmul.f32 %v1716, %v1773
  %v1822 = vmul.f32 %v1541, %v1774
  %v1823 = vmul.f32 %v1719, %v1774
  %v1824 = vmul.f32 %v1543, %v1775
  %v1825 = vmul.f32 %v1721, %v1775
  %v1826 = vmul.f32 %v1546, %v1776
  %v1827 = vmul.f32 %v1724, %v1776
  %v1828 = vmul.f32 %v1548, %v1777
  %v1829 = vmul.f32 %v1726, %v1777
  %v1830 = vmul.f32 %v1551, %v1778
  %v1831 = vmul.f32 %v1729, %v1778
  %v1832 = vmul.f32 %v1553, %v1779
  %v1833 = vmul.f32 %v1731, %v1779
  %v1834 = vmul.f32 %v1556, %v1780
  %v1835 = vmul.f32 %v1734, %v1780
  %v1836 = vmul.f32 %v1558, %v1781
  %v1837 = vmul.f32 %v1736, %v1781
  %v1838 = vmul.f32 %v1561, %v1782
  %v1839 = vmul.f32 %v1739, %v1782
  %v1840 = vmul.f32 %v1563, %v1783
  %v1841 = vmul.f32 %v1741, %v1783
  %v1842 = vmul.f32 %v1566, %v1784
  %v1843 = vmul.f32 %v1744, %v1784
  %v1844 = vmul.f32 %v1568, %v1785
  %v1845 = vmul.f32 %v1746, %v1785
  %v1846 = vmul.f32 %v1571, %v1786
  %v1847 = vmul.f32 %v1749, %v1786
  %v1848 = vmul.f32 %v1573, %v1787
  %v1849 = vmul.f32 %v1751, %v1787
  %v1850 = vmul.f32 %v1576, %v1788
  %v1851 = vmul.f32 %v1754, %v1788
  %v1852 = vmul.f32 %v1578, %v1789
  %v1853 = vmul.f32 %v1756, %v1789
  %v1854 = vld [vmem:[%s4] sm:$0x3]
  %v1856 = vperm.slane %v1854, 0
  %v1857 = vperm.slane %v1854, 1
  %v1860 = vadd.f32 %v1790, %v1856
  %v1861 = vadd.f32 %v1791, %v1857
  %v1862 = vadd.f32 %v1792, %v1856
  %v1863 = vadd.f32 %v1793, %v1857
  %v1864 = vadd.f32 %v1794, %v1856
  %v1865 = vadd.f32 %v1795, %v1857
  %v1866 = vadd.f32 %v1796, %v1856
  %v1867 = vadd.f32 %v1797, %v1857
  %v1868 = vadd.f32 %v1798, %v1856
  %v1869 = vadd.f32 %v1799, %v1857
  %v1870 = vadd.f32 %v1800, %v1856
  %v1871 = vadd.f32 %v1801, %v1857
  %v1872 = vadd.f32 %v1802, %v1856
  %v1873 = vadd.f32 %v1803, %v1857
  %v1874 = vadd.f32 %v1804, %v1856
  %v1875 = vadd.f32 %v1805, %v1857
  %v1876 = vadd.f32 %v1806, %v1856
  %v1877 = vadd.f32 %v1807, %v1857
  %v1878 = vadd.f32 %v1808, %v1856
  %v1879 = vadd.f32 %v1809, %v1857
  %v1880 = vadd.f32 %v1810, %v1856
  %v1881 = vadd.f32 %v1811, %v1857
  %v1882 = vadd.f32 %v1812, %v1856
  %v1883 = vadd.f32 %v1813, %v1857
  %v1884 = vadd.f32 %v1814, %v1856
  %v1885 = vadd.f32 %v1815, %v1857
  %v1886 = vadd.f32 %v1816, %v1856
  %v1887 = vadd.f32 %v1817, %v1857
  %v1888 = vadd.f32 %v1818, %v1856
  %v1889 = vadd.f32 %v1819, %v1857
  %v1890 = vadd.f32 %v1820, %v1856
  %v1891 = vadd.f32 %v1821, %v1857
  %v1892 = vadd.f32 %v1822, %v1856
  %v1893 = vadd.f32 %v1823, %v1857
  %v1894 = vadd.f32 %v1824, %v1856
  %v1895 = vadd.f32 %v1825, %v1857
  %v1896 = vadd.f32 %v1826, %v1856
  %v1897 = vadd.f32 %v1827, %v1857
  %v1898 = vadd.f32 %v1828, %v1856
  %v1899 = vadd.f32 %v1829, %v1857
  %v1900 = vadd.f32 %v1830, %v1856
  %v1901 = vadd.f32 %v1831, %v1857
  %v1902 = vadd.f32 %v1832, %v1856
  %v1903 = vadd.f32 %v1833, %v1857
  %v1904 = vadd.f32 %v1834, %v1856
  %v1905 = vadd.f32 %v1835, %v1857
  %v1906 = vadd.f32 %v1836, %v1856
  %v1907 = vadd.f32 %v1837, %v1857
  %v1908 = vadd.f32 %v1838, %v1856
  %v1909 = vadd.f32 %v1839, %v1857
  %v1910 = vadd.f32 %v1840, %v1856
  %v1911 = vadd.f32 %v1841, %v1857
  %v1912 = vadd.f32 %v1842, %v1856
  %v1913 = vadd.f32 %v1843, %v1857
  %v1914 = vadd.f32 %v1844, %v1856
  %v1915 = vadd.f32 %v1845, %v1857
  %v1916 = vadd.f32 %v1846, %v1856
  %v1917 = vadd.f32 %v1847, %v1857
  %v1918 = vadd.f32 %v1848, %v1856
  %v1919 = vadd.f32 %v1849, %v1857
  %v1920 = vadd.f32 %v1850, %v1856
  %v1921 = vadd.f32 %v1851, %v1857
  %v1922 = vadd.f32 %v1852, %v1856
  %v1923 = vadd.f32 %v1853, %v1857
  %v1924 = vmax.f32 %v1860, 0.0
  %v1925 = vmax.f32 %v1861, 0.0
  %v1926 = vmax.f32 %v1862, 0.0
  %v1927 = vmax.f32 %v1863, 0.0
  %v1928 = vmax.f32 %v1864, 0.0
  %v1929 = vmax.f32 %v1865, 0.0
  %v1930 = vmax.f32 %v1866, 0.0
  %v1931 = vmax.f32 %v1867, 0.0
  %v1932 = vmax.f32 %v1868, 0.0
  %v1933 = vmax.f32 %v1869, 0.0
  %v1934 = vmax.f32 %v1870, 0.0
  %v1935 = vmax.f32 %v1871, 0.0
  %v1936 = vmax.f32 %v1872, 0.0
  %v1937 = vmax.f32 %v1873, 0.0
  %v1938 = vmax.f32 %v1874, 0.0
  %v1939 = vmax.f32 %v1875, 0.0
  %v1940 = vmax.f32 %v1876, 0.0
  %v1941 = vmax.f32 %v1877, 0.0
  %v1942 = vmax.f32 %v1878, 0.0
  %v1943 = vmax.f32 %v1879, 0.0
  %v1944 = vmax.f32 %v1880, 0.0
  %v1945 = vmax.f32 %v1881, 0.0
  %v1946 = vmax.f32 %v1882, 0.0
  %v1947 = vmax.f32 %v1883, 0.0
  %v1948 = vmax.f32 %v1884, 0.0
  %v1949 = vmax.f32 %v1885, 0.0
  %v1950 = vmax.f32 %v1886, 0.0
  %v1951 = vmax.f32 %v1887, 0.0
  %v1952 = vmax.f32 %v1888, 0.0
  %v1953 = vmax.f32 %v1889, 0.0
  %v1954 = vmax.f32 %v1890, 0.0
  %v1955 = vmax.f32 %v1891, 0.0
  %v1956 = vmax.f32 %v1892, 0.0
  %v1957 = vmax.f32 %v1893, 0.0
  %v1958 = vmax.f32 %v1894, 0.0
  %v1959 = vmax.f32 %v1895, 0.0
  %v1960 = vmax.f32 %v1896, 0.0
  %v1961 = vmax.f32 %v1897, 0.0
  %v1962 = vmax.f32 %v1898, 0.0
  %v1963 = vmax.f32 %v1899, 0.0
  %v1964 = vmax.f32 %v1900, 0.0
  %v1965 = vmax.f32 %v1901, 0.0
  %v1966 = vmax.f32 %v1902, 0.0
  %v1967 = vmax.f32 %v1903, 0.0
  %v1968 = vmax.f32 %v1904, 0.0
  %v1969 = vmax.f32 %v1905, 0.0
  %v1970 = vmax.f32 %v1906, 0.0
  %v1971 = vmax.f32 %v1907, 0.0
  %v1972 = vmax.f32 %v1908, 0.0
  %v1973 = vmax.f32 %v1909, 0.0
  %v1974 = vmax.f32 %v1910, 0.0
  %v1975 = vmax.f32 %v1911, 0.0
  %v1976 = vmax.f32 %v1912, 0.0
  %v1977 = vmax.f32 %v1913, 0.0
  %v1978 = vmax.f32 %v1914, 0.0
  %v1979 = vmax.f32 %v1915, 0.0
  %v1980 = vmax.f32 %v1916, 0.0
  %v1981 = vmax.f32 %v1917, 0.0
  %v1982 = vmax.f32 %v1918, 0.0
  %v1983 = vmax.f32 %v1919, 0.0
  %v1984 = vmax.f32 %v1920, 0.0
  %v1985 = vmax.f32 %v1921, 0.0
  %v1986 = vmax.f32 %v1922, 0.0
  %v1987 = vmax.f32 %v1923, 0.0
  %v1988 = vpack.c.bf16 %v1925, %v1924
  %v1989 = vpack.c.bf16 %v1927, %v1926
  %v1990 = vpack.c.bf16 %v1929, %v1928
  %v1991 = vpack.c.bf16 %v1931, %v1930
  %v1992 = vpack.c.bf16 %v1933, %v1932
  %v1993 = vpack.c.bf16 %v1935, %v1934
  %v1994 = vpack.c.bf16 %v1937, %v1936
  %v1995 = vpack.c.bf16 %v1939, %v1938
  %v1996 = vpack.c.bf16 %v1941, %v1940
  %v1997 = vpack.c.bf16 %v1943, %v1942
  %v1998 = vpack.c.bf16 %v1945, %v1944
  %v1999 = vpack.c.bf16 %v1947, %v1946
  %v2000 = vpack.c.bf16 %v1949, %v1948
  %v2001 = vpack.c.bf16 %v1951, %v1950
  %v2002 = vpack.c.bf16 %v1953, %v1952
  %v2003 = vpack.c.bf16 %v1955, %v1954
  %v2004 = vpack.c.bf16 %v1957, %v1956
  %v2005 = vpack.c.bf16 %v1959, %v1958
  %v2006 = vpack.c.bf16 %v1961, %v1960
  %v2007 = vpack.c.bf16 %v1963, %v1962
  %v2008 = vpack.c.bf16 %v1965, %v1964
  %v2009 = vpack.c.bf16 %v1967, %v1966
  %v2010 = vpack.c.bf16 %v1969, %v1968
  %v2011 = vpack.c.bf16 %v1971, %v1970
  %v2012 = vpack.c.bf16 %v1973, %v1972
  %v2013 = vpack.c.bf16 %v1975, %v1974
  %v2014 = vpack.c.bf16 %v1977, %v1976
  %v2015 = vpack.c.bf16 %v1979, %v1978
  %v2016 = vpack.c.bf16 %v1981, %v1980
  %v2017 = vpack.c.bf16 %v1983, %v1982
  %v2018 = vpack.c.bf16 %v1985, %v1984
  %v2019 = vpack.c.bf16 %v1987, %v1986
  %2020 = vst [vmem:[#allocation2] sm:$0xff] %v1988
  %2021 = vst [vmem:[#allocation2 + $0x10] sm:$0xff] %v1989
  %2022 = vst [vmem:[#allocation2 + $0x20] sm:$0xff] %v1990
  %2023 = vst [vmem:[#allocation2 + $0x30] sm:$0xff] %v1991
  %2024 = vst [vmem:[#allocation2 + $0x40] sm:$0xff] %v1992
  %2025 = vst [vmem:[#allocation2 + $0x50] sm:$0xff] %v1993
  %2026 = vst [vmem:[#allocation2 + $0x60] sm:$0xff] %v1994
  %2027 = vst [vmem:[#allocation2 + $0x70] sm:$0xff] %v1995
  %2028 = vst [vmem:[#allocation2 + $0x80] sm:$0xff] %v1996
  %2029 = vst [vmem:[#allocation2 + $0x90] sm:$0xff] %v1997
  %2030 = vst [vmem:[#allocation2 + $0xa0] sm:$0xff] %v1998
  %2031 = vst [vmem:[#allocation2 + $0xb0] sm:$0xff] %v1999
  %2032 = vst [vmem:[#allocation2 + $0xc0] sm:$0xff] %v2000
  %2033 = vst [vmem:[#allocation2 + $0xd0] sm:$0xff] %v2001
  %2034 = vst [vmem:[#allocation2 + $0xe0] sm:$0xff] %v2002
  %2035 = vst [vmem:[#allocation2 + $0xf0] sm:$0xff] %v2003
  %2036 = vst [vmem:[#allocation2 + $0x100] sm:$0xff] %v2004
  %2037 = vst [vmem:[#allocation2 + $0x110] sm:$0xff] %v2005
  %2038 = vst [vmem:[#allocation2 + $0x120] sm:$0xff] %v2006
  %2039 = vst [vmem:[#allocation2 + $0x130] sm:$0xff] %v2007
  %2040 = vst [vmem:[#allocation2 + $0x140] sm:$0xff] %v2008
  %2041 = vst [vmem:[#allocation2 + $0x150] sm:$0xff] %v2009
  %2042 = vst [vmem:[#allocation2 + $0x160] sm:$0xff] %v2010
  %2043 = vst [vmem:[#allocation2 + $0x170] sm:$0xff] %v2011
  %2044 = vst [vmem:[#allocation2 + $0x180] sm:$0xff] %v2012
  %2045 = vst [vmem:[#allocation2 + $0x190] sm:$0xff] %v2013
  %2046 = vst [vmem:[#allocation2 + $0x1a0] sm:$0xff] %v2014
  %2047 = vst [vmem:[#allocation2 + $0x1b0] sm:$0xff] %v2015
  %2048 = vst [vmem:[#allocation2 + $0x1c0] sm:$0xff] %v2016
  %2049 = vst [vmem:[#allocation2 + $0x1d0] sm:$0xff] %v2017
  %2050 = vst [vmem:[#allocation2 + $0x1e0] sm:$0xff] %v2018
  %2051 = vst [vmem:[#allocation2 + $0x1f0] sm:$0xff] %v2019
  %v2052 = vld [vmem:[%s1] sm:$0xff]
  %v2053 = vld [vmem:[%s1 + $0x8] sm:$0xff]
  %v2054 = vld [vmem:[%s1 + $0x10] sm:$0xff]
  %v2055 = vld [vmem:[%s1 + $0x18] sm:$0xff]
  %v2056 = vld [vmem:[%s1 + $0x20] sm:$0xff]
  %v2057 = vld [vmem:[%s1 + $0x28] sm:$0xff]
  %v2058 = vld [vmem:[%s1 + $0x30] sm:$0xff]
  %v2059 = vld [vmem:[%s1 + $0x38] sm:$0xff]
  %v2060 = vld [vmem:[%s1 + $0x40] sm:$0xff]
  %v2061 = vld [vmem:[%s1 + $0x48] sm:$0xff]
  %v2062 = vld [vmem:[%s1 + $0x50] sm:$0xff]
  %v2063 = vld [vmem:[%s1 + $0x58] sm:$0xff]
  %v2064 = vld [vmem:[%s1 + $0x60] sm:$0xff]
  %v2065 = vld [vmem:[%s1 + $0x68] sm:$0xff]
  %v2066 = vld [vmem:[%s1 + $0x70] sm:$0xff]
  %v2067 = vld [vmem:[%s1 + $0x78] sm:$0xff]
  %v2068 = vld [vmem:[%s1 + $0x80] sm:$0xff]
  %v2069 = vld [vmem:[%s1 + $0x88] sm:$0xff]
  %v2070 = vld [vmem:[%s1 + $0x90] sm:$0xff]
  %v2071 = vld [vmem:[%s1 + $0x98] sm:$0xff]
  %v2072 = vld [vmem:[%s1 + $0xa0] sm:$0xff]
  %v2073 = vld [vmem:[%s1 + $0xa8] sm:$0xff]
  %v2074 = vld [vmem:[%s1 + $0xb0] sm:$0xff]
  %v2075 = vld [vmem:[%s1 + $0xb8] sm:$0xff]
  %v2076 = vld [vmem:[%s1 + $0xc0] sm:$0xff]
  %v2077 = vld [vmem:[%s1 + $0xc8] sm:$0xff]
  %v2078 = vld [vmem:[%s1 + $0xd0] sm:$0xff]
  %v2079 = vld [vmem:[%s1 + $0xd8] sm:$0xff]
  %v2080 = vld [vmem:[%s1 + $0xe0] sm:$0xff]
  %v2081 = vld [vmem:[%s1 + $0xe8] sm:$0xff]
  %v2082 = vld [vmem:[%s1 + $0xf0] sm:$0xff]
  %v2083 = vld [vmem:[%s1 + $0xf8] sm:$0xff]
  %s2084 = scalar_lea.vmem %s2, 2
  %v2085 = vld [vmem:[%s2084] ss:$8 sm:$0x3]
  %2087 = vset.pattern.permute.xlu0 3
  %2088 = vperm.xlu0 %2087, %v2052
  %v2089 = vpop.permute.xlu0 %2088
  %2092 = vset.pattern.permute.xlu0 3
  %2093 = vperm.xlu0 %2092, %v2053
  %v2094 = vpop.permute.xlu0 %2093
  %2097 = vset.pattern.permute.xlu0 3
  %2098 = vperm.xlu0 %2097, %v2054
  %v2099 = vpop.permute.xlu0 %2098
  %2102 = vset.pattern.permute.xlu0 3
  %2103 = vperm.xlu0 %2102, %v2055
  %v2104 = vpop.permute.xlu0 %2103
  %2107 = vset.pattern.permute.xlu0 3
  %2108 = vperm.xlu0 %2107, %v2056
  %v2109 = vpop.permute.xlu0 %2108
  %2112 = vset.pattern.permute.xlu0 3
  %2113 = vperm.xlu0 %2112, %v2057
  %v2114 = vpop.permute.xlu0 %2113
  %2117 = vset.pattern.permute.xlu0 3
  %2118 = vperm.xlu0 %2117, %v2058
  %v2119 = vpop.permute.xlu0 %2118
  %2122 = vset.pattern.permute.xlu0 3
  %2123 = vperm.xlu0 %2122, %v2059
  %v2124 = vpop.permute.xlu0 %2123
  %2127 = vset.pattern.permute.xlu0 3
  %2128 = vperm.xlu0 %2127, %v2060
  %v2129 = vpop.permute.xlu0 %2128
  %2132 = vset.pattern.permute.xlu0 3
  %2133 = vperm.xlu0 %2132, %v2061
  %v2134 = vpop.permute.xlu0 %2133
  %2137 = vset.pattern.permute.xlu0 3
  %2138 = vperm.xlu0 %2137, %v2062
  %v2139 = vpop.permute.xlu0 %2138
  %2142 = vset.pattern.permute.xlu0 3
  %2143 = vperm.xlu0 %2142, %v2063
  %v2144 = vpop.permute.xlu0 %2143
  %2147 = vset.pattern.permute.xlu0 3
  %2148 = vperm.xlu0 %2147, %v2064
  %v2149 = vpop.permute.xlu0 %2148
  %2152 = vset.pattern.permute.xlu0 3
  %2153 = vperm.xlu0 %2152, %v2065
  %v2154 = vpop.permute.xlu0 %2153
  %2157 = vset.pattern.permute.xlu0 3
  %2158 = vperm.xlu0 %2157, %v2066
  %v2159 = vpop.permute.xlu0 %2158
  %2162 = vset.pattern.permute.xlu0 3
  %2163 = vperm.xlu0 %2162, %v2067
  %v2164 = vpop.permute.xlu0 %2163
  %2167 = vset.pattern.permute.xlu0 3
  %2168 = vperm.xlu0 %2167, %v2068
  %v2169 = vpop.permute.xlu0 %2168
  %2172 = vset.pattern.permute.xlu0 3
  %2173 = vperm.xlu0 %2172, %v2069
  %v2174 = vpop.permute.xlu0 %2173
  %2177 = vset.pattern.permute.xlu0 3
  %2178 = vperm.xlu0 %2177, %v2070
  %v2179 = vpop.permute.xlu0 %2178
  %2182 = vset.pattern.permute.xlu0 3
  %2183 = vperm.xlu0 %2182, %v2071
  %v2184 = vpop.permute.xlu0 %2183
  %2187 = vset.pattern.permute.xlu0 3
  %2188 = vperm.xlu0 %2187, %v2072
  %v2189 = vpop.permute.xlu0 %2188
  %2192 = vset.pattern.permute.xlu0 3
  %2193 = vperm.xlu0 %2192, %v2073
  %v2194 = vpop.permute.xlu0 %2193
  %2197 = vset.pattern.permute.xlu0 3
  %2198 = vperm.xlu0 %2197, %v2074
  %v2199 = vpop.permute.xlu0 %2198
  %2202 = vset.pattern.permute.xlu0 3
  %2203 = vperm.xlu0 %2202, %v2075
  %v2204 = vpop.permute.xlu0 %2203
  %2207 = vset.pattern.permute.xlu0 3
  %2208 = vperm.xlu0 %2207, %v2076
  %v2209 = vpop.permute.xlu0 %2208
  %2212 = vset.pattern.permute.xlu0 3
  %2213 = vperm.xlu0 %2212, %v2077
  %v2214 = vpop.permute.xlu0 %2213
  %2217 = vset.pattern.permute.xlu0 3
  %2218 = vperm.xlu0 %2217, %v2078
  %v2219 = vpop.permute.xlu0 %2218
  %2222 = vset.pattern.permute.xlu0 3
  %2223 = vperm.xlu0 %2222, %v2079
  %v2224 = vpop.permute.xlu0 %2223
  %2227 = vset.pattern.permute.xlu0 3
  %2228 = vperm.xlu0 %2227, %v2080
  %v2229 = vpop.permute.xlu0 %2228
  %2232 = vset.pattern.permute.xlu0 3
  %2233 = vperm.xlu0 %2232, %v2081
  %v2234 = vpop.permute.xlu0 %2233
  %2237 = vset.pattern.permute.xlu0 3
  %2238 = vperm.xlu0 %2237, %v2082
  %v2239 = vpop.permute.xlu0 %2238
  %2242 = vset.pattern.permute.xlu0 3
  %2243 = vperm.xlu0 %2242, %v2083
  %v2244 = vpop.permute.xlu0 %2243
  %v2247 = vperm.slane %v2085, 0
  %v2248 = vperm.slane %v2085, 1
  %v2251 = vadd.f32 %v2089, %v2247
  %v2252 = vadd.f32 %v2089, %v2248
  %v2253 = vadd.f32 %v2094, %v2247
  %v2254 = vadd.f32 %v2094, %v2248
  %v2255 = vadd.f32 %v2099, %v2247
  %v2256 = vadd.f32 %v2099, %v2248
  %v2257 = vadd.f32 %v2104, %v2247
  %v2258 = vadd.f32 %v2104, %v2248
  %v2259 = vadd.f32 %v2109, %v2247
  %v2260 = vadd.f32 %v2109, %v2248
  %v2261 = vadd.f32 %v2114, %v2247
  %v2262 = vadd.f32 %v2114, %v2248
  %v2263 = vadd.f32 %v2119, %v2247
  %v2264 = vadd.f32 %v2119, %v2248
  %v2265 = vadd.f32 %v2124, %v2247
  %v2266 = vadd.f32 %v2124, %v2248
  %v2267 = vadd.f32 %v2129, %v2247
  %v2268 = vadd.f32 %v2129, %v2248
  %v2269 = vadd.f32 %v2134, %v2247
  %v2270 = vadd.f32 %v2134, %v2248
  %v2271 = vadd.f32 %v2139, %v2247
  %v2272 = vadd.f32 %v2139, %v2248
  %v2273 = vadd.f32 %v2144, %v2247
  %v2274 = vadd.f32 %v2144, %v2248
  %v2275 = vadd.f32 %v2149, %v2247
  %v2276 = vadd.f32 %v2149, %v2248
  %v2277 = vadd.f32 %v2154, %v2247
  %v2278 = vadd.f32 %v2154, %v2248
  %v2279 = vadd.f32 %v2159, %v2247
  %v2280 = vadd.f32 %v2159, %v2248
  %v2281 = vadd.f32 %v2164, %v2247
  %v2282 = vadd.f32 %v2164, %v2248
  %v2283 = vadd.f32 %v2169, %v2247
  %v2284 = vadd.f32 %v2169, %v2248
  %v2285 = vadd.f32 %v2174, %v2247
  %v2286 = vadd.f32 %v2174, %v2248
  %v2287 = vadd.f32 %v2179, %v2247
  %v2288 = vadd.f32 %v2179, %v2248
  %v2289 = vadd.f32 %v2184, %v2247
  %v2290 = vadd.f32 %v2184, %v2248
  %v2291 = vadd.f32 %v2189, %v2247
  %v2292 = vadd.f32 %v2189, %v2248
  %v2293 = vadd.f32 %v2194, %v2247
  %v2294 = vadd.f32 %v2194, %v2248
  %v2295 = vadd.f32 %v2199, %v2247
  %v2296 = vadd.f32 %v2199, %v2248
  %v2297 = vadd.f32 %v2204, %v2247
  %v2298 = vadd.f32 %v2204, %v2248
  %v2299 = vadd.f32 %v2209, %v2247
  %v2300 = vadd.f32 %v2209, %v2248
  %v2301 = vadd.f32 %v2214, %v2247
  %v2302 = vadd.f32 %v2214, %v2248
  %v2303 = vadd.f32 %v2219, %v2247
  %v2304 = vadd.f32 %v2219, %v2248
  %v2305 = vadd.f32 %v2224, %v2247
  %v2306 = vadd.f32 %v2224, %v2248
  %v2307 = vadd.f32 %v2229, %v2247
  %v2308 = vadd.f32 %v2229, %v2248
  %v2309 = vadd.f32 %v2234, %v2247
  %v2310 = vadd.f32 %v2234, %v2248
  %v2311 = vadd.f32 %v2239, %v2247
  %v2312 = vadd.f32 %v2239, %v2248
  %v2313 = vadd.f32 %v2244, %v2247
  %v2314 = vadd.f32 %v2244, %v2248
  %vm2315 = vcmp.ge.f32.partialorder %v2251, 0.0
  %vm2316 = vcmp.ge.f32.partialorder %v2252, 0.0
  %vm2317 = vcmp.ge.f32.partialorder %v2253, 0.0
  %vm2318 = vcmp.ge.f32.partialorder %v2254, 0.0
  %vm2319 = vcmp.ge.f32.partialorder %v2255, 0.0
  %vm2320 = vcmp.ge.f32.partialorder %v2256, 0.0
  %vm2321 = vcmp.ge.f32.partialorder %v2257, 0.0
  %vm2322 = vcmp.ge.f32.partialorder %v2258, 0.0
  %vm2323 = vcmp.ge.f32.partialorder %v2259, 0.0
  %vm2324 = vcmp.ge.f32.partialorder %v2260, 0.0
  %vm2325 = vcmp.ge.f32.partialorder %v2261, 0.0
  %vm2326 = vcmp.ge.f32.partialorder %v2262, 0.0
  %vm2327 = vcmp.ge.f32.partialorder %v2263, 0.0
  %vm2328 = vcmp.ge.f32.partialorder %v2264, 0.0
  %vm2329 = vcmp.ge.f32.partialorder %v2265, 0.0
  %vm2330 = vcmp.ge.f32.partialorder %v2266, 0.0
  %vm2331 = vcmp.ge.f32.partialorder %v2267, 0.0
  %vm2332 = vcmp.ge.f32.partialorder %v2268, 0.0
  %vm2333 = vcmp.ge.f32.partialorder %v2269, 0.0
  %vm2334 = vcmp.ge.f32.partialorder %v2270, 0.0
  %vm2335 = vcmp.ge.f32.partialorder %v2271, 0.0
  %vm2336 = vcmp.ge.f32.partialorder %v2272, 0.0
  %vm2337 = vcmp.ge.f32.partialorder %v2273, 0.0
  %vm2338 = vcmp.ge.f32.partialorder %v2274, 0.0
  %vm2339 = vcmp.ge.f32.partialorder %v2275, 0.0
  %vm2340 = vcmp.ge.f32.partialorder %v2276, 0.0
  %vm2341 = vcmp.ge.f32.partialorder %v2277, 0.0
  %vm2342 = vcmp.ge.f32.partialorder %v2278, 0.0
  %vm2343 = vcmp.ge.f32.partialorder %v2279, 0.0
  %vm2344 = vcmp.ge.f32.partialorder %v2280, 0.0
  %vm2345 = vcmp.ge.f32.partialorder %v2281, 0.0
  %vm2346 = vcmp.ge.f32.partialorder %v2282, 0.0
  %vm2347 = vcmp.ge.f32.partialorder %v2283, 0.0
  %vm2348 = vcmp.ge.f32.partialorder %v2284, 0.0
  %vm2349 = vcmp.ge.f32.partialorder %v2285, 0.0
  %vm2350 = vcmp.ge.f32.partialorder %v2286, 0.0
  %vm2351 = vcmp.ge.f32.partialorder %v2287, 0.0
  %vm2352 = vcmp.ge.f32.partialorder %v2288, 0.0
  %vm2353 = vcmp.ge.f32.partialorder %v2289, 0.0
  %vm2354 = vcmp.ge.f32.partialorder %v2290, 0.0
  %vm2355 = vcmp.ge.f32.partialorder %v2291, 0.0
  %vm2356 = vcmp.ge.f32.partialorder %v2292, 0.0
  %vm2357 = vcmp.ge.f32.partialorder %v2293, 0.0
  %vm2358 = vcmp.ge.f32.partialorder %v2294, 0.0
  %vm2359 = vcmp.ge.f32.partialorder %v2295, 0.0
  %vm2360 = vcmp.ge.f32.partialorder %v2296, 0.0
  %vm2361 = vcmp.ge.f32.partialorder %v2297, 0.0
  %vm2362 = vcmp.ge.f32.partialorder %v2298, 0.0
  %vm2363 = vcmp.ge.f32.partialorder %v2299, 0.0
  %vm2364 = vcmp.ge.f32.partialorder %v2300, 0.0
  %vm2365 = vcmp.ge.f32.partialorder %v2301, 0.0
  %vm2366 = vcmp.ge.f32.partialorder %v2302, 0.0
  %vm2367 = vcmp.ge.f32.partialorder %v2303, 0.0
  %vm2368 = vcmp.ge.f32.partialorder %v2304, 0.0
  %vm2369 = vcmp.ge.f32.partialorder %v2305, 0.0
  %vm2370 = vcmp.ge.f32.partialorder %v2306, 0.0
  %vm2371 = vcmp.ge.f32.partialorder %v2307, 0.0
  %vm2372 = vcmp.ge.f32.partialorder %v2308, 0.0
  %vm2373 = vcmp.ge.f32.partialorder %v2309, 0.0
  %vm2374 = vcmp.ge.f32.partialorder %v2310, 0.0
  %vm2375 = vcmp.ge.f32.partialorder %v2311, 0.0
  %vm2376 = vcmp.ge.f32.partialorder %v2312, 0.0
  %vm2377 = vcmp.ge.f32.partialorder %v2313, 0.0
  %vm2378 = vcmp.ge.f32.partialorder %v2314, 0.0
  %v2379 = vmul.f32 %v2251, 0.2
  %v2380 = vmul.f32 %v2252, 0.2
  %v2381 = vmul.f32 %v2253, 0.2
  %v2382 = vmul.f32 %v2254, 0.2
  %v2383 = vmul.f32 %v2255, 0.2
  %v2384 = vmul.f32 %v2256, 0.2
  %v2385 = vmul.f32 %v2257, 0.2
  %v2386 = vmul.f32 %v2258, 0.2
  %v2387 = vmul.f32 %v2259, 0.2
  %v2388 = vmul.f32 %v2260, 0.2
  %v2389 = vmul.f32 %v2261, 0.2
  %v2390 = vmul.f32 %v2262, 0.2
  %v2391 = vmul.f32 %v2263, 0.2
  %v2392 = vmul.f32 %v2264, 0.2
  %v2393 = vmul.f32 %v2265, 0.2
  %v2394 = vmul.f32 %v2266, 0.2
  %v2395 = vmul.f32 %v2267, 0.2
  %v2396 = vmul.f32 %v2268, 0.2
  %v2397 = vmul.f32 %v2269, 0.2
  %v2398 = vmul.f32 %v2270, 0.2
  %v2399 = vmul.f32 %v2271, 0.2
  %v2400 = vmul.f32 %v2272, 0.2
  %v2401 = vmul.f32 %v2273, 0.2
  %v2402 = vmul.f32 %v2274, 0.2
  %v2403 = vmul.f32 %v2275, 0.2
  %v2404 = vmul.f32 %v2276, 0.2
  %v2405 = vmul.f32 %v2277, 0.2
  %v2406 = vmul.f32 %v2278, 0.2
  %v2407 = vmul.f32 %v2279, 0.2
  %v2408 = vmul.f32 %v2280, 0.2
  %v2409 = vmul.f32 %v2281, 0.2
  %v2410 = vmul.f32 %v2282, 0.2
  %v2411 = vmul.f32 %v2283, 0.2
  %v2412 = vmul.f32 %v2284, 0.2
  %v2413 = vmul.f32 %v2285, 0.2
  %v2414 = vmul.f32 %v2286, 0.2
  %v2415 = vmul.f32 %v2287, 0.2
  %v2416 = vmul.f32 %v2288, 0.2
  %v2417 = vmul.f32 %v2289, 0.2
  %v2418 = vmul.f32 %v2290, 0.2
  %v2419 = vmul.f32 %v2291, 0.2
  %v2420 = vmul.f32 %v2292, 0.2
  %v2421 = vmul.f32 %v2293, 0.2
  %v2422 = vmul.f32 %v2294, 0.2
  %v2423 = vmul.f32 %v2295, 0.2
  %v2424 = vmul.f32 %v2296, 0.2
  %v2425 = vmul.f32 %v2297, 0.2
  %v2426 = vmul.f32 %v2298, 0.2
  %v2427 = vmul.f32 %v2299, 0.2
  %v2428 = vmul.f32 %v2300, 0.2
  %v2429 = vmul.f32 %v2301, 0.2
  %v2430 = vmul.f32 %v2302, 0.2
  %v2431 = vmul.f32 %v2303, 0.2
  %v2432 = vmul.f32 %v2304, 0.2
  %v2433 = vmul.f32 %v2305, 0.2
  %v2434 = vmul.f32 %v2306, 0.2
  %v2435 = vmul.f32 %v2307, 0.2
  %v2436 = vmul.f32 %v2308, 0.2
  %v2437 = vmul.f32 %v2309, 0.2
  %v2438 = vmul.f32 %v2310, 0.2
  %v2439 = vmul.f32 %v2311, 0.2
  %v2440 = vmul.f32 %v2312, 0.2
  %v2441 = vmul.f32 %v2313, 0.2
  %v2442 = vmul.f32 %v2314, 0.2
  %v2443 = vsel %vm2315, %v2251, %v2379
  %v2444 = vsel %vm2316, %v2252, %v2380
  %v2445 = vsel %vm2317, %v2253, %v2381
  %v2446 = vsel %vm2318, %v2254, %v2382
  %v2447 = vsel %vm2319, %v2255, %v2383
  %v2448 = vsel %vm2320, %v2256, %v2384
  %v2449 = vsel %vm2321, %v2257, %v2385
  %v2450 = vsel %vm2322, %v2258, %v2386
  %v2451 = vsel %vm2323, %v2259, %v2387
  %v2452 = vsel %vm2324, %v2260, %v2388
  %v2453 = vsel %vm2325, %v2261, %v2389
  %v2454 = vsel %vm2326, %v2262, %v2390
  %v2455 = vsel %vm2327, %v2263, %v2391
  %v2456 = vsel %vm2328, %v2264, %v2392
  %v2457 = vsel %vm2329, %v2265, %v2393
  %v2458 = vsel %vm2330, %v2266, %v2394
  %v2459 = vsel %vm2331, %v2267, %v2395
  %v2460 = vsel %vm2332, %v2268, %v2396
  %v2461 = vsel %vm2333, %v2269, %v2397
  %v2462 = vsel %vm2334, %v2270, %v2398
  %v2463 = vsel %vm2335, %v2271, %v2399
  %v2464 = vsel %vm2336, %v2272, %v2400
  %v2465 = vsel %vm2337, %v2273, %v2401
  %v2466 = vsel %vm2338, %v2274, %v2402
  %v2467 = vsel %vm2339, %v2275, %v2403
  %v2468 = vsel %vm2340, %v2276, %v2404
  %v2469 = vsel %vm2341, %v2277, %v2405
  %v2470 = vsel %vm2342, %v2278, %v2406
  %v2471 = vsel %vm2343, %v2279, %v2407
  %v2472 = vsel %vm2344, %v2280, %v2408
  %v2473 = vsel %vm2345, %v2281, %v2409
  %v2474 = vsel %vm2346, %v2282, %v2410
  %v2475 = vsel %vm2347, %v2283, %v2411
  %v2476 = vsel %vm2348, %v2284, %v2412
  %v2477 = vsel %vm2349, %v2285, %v2413
  %v2478 = vsel %vm2350, %v2286, %v2414
  %v2479 = vsel %vm2351, %v2287, %v2415
  %v2480 = vsel %vm2352, %v2288, %v2416
  %v2481 = vsel %vm2353, %v2289, %v2417
  %v2482 = vsel %vm2354, %v2290, %v2418
  %v2483 = vsel %vm2355, %v2291, %v2419
  %v2484 = vsel %vm2356, %v2292, %v2420
  %v2485 = vsel %vm2357, %v2293, %v2421
  %v2486 = vsel %vm2358, %v2294, %v2422
  %v2487 = vsel %vm2359, %v2295, %v2423
  %v2488 = vsel %vm2360, %v2296, %v2424
  %v2489 = vsel %vm2361, %v2297, %v2425
  %v2490 = vsel %vm2362, %v2298, %v2426
  %v2491 = vsel %vm2363, %v2299, %v2427
  %v2492 = vsel %vm2364, %v2300, %v2428
  %v2493 = vsel %vm2365, %v2301, %v2429
  %v2494 = vsel %vm2366, %v2302, %v2430
  %v2495 = vsel %vm2367, %v2303, %v2431
  %v2496 = vsel %vm2368, %v2304, %v2432
  %v2497 = vsel %vm2369, %v2305, %v2433
  %v2498 = vsel %vm2370, %v2306, %v2434
  %v2499 = vsel %vm2371, %v2307, %v2435
  %v2500 = vsel %vm2372, %v2308, %v2436
  %v2501 = vsel %vm2373, %v2309, %v2437
  %v2502 = vsel %vm2374, %v2310, %v2438
  %v2503 = vsel %vm2375, %v2311, %v2439
  %v2504 = vsel %vm2376, %v2312, %v2440
  %v2505 = vsel %vm2377, %v2313, %v2441
  %v2506 = vsel %vm2378, %v2314, %v2442
  %v2507 = vsel %vm666, %v2443, -1e+30
  %v2508 = vsel %vm667, %v2444, -1e+30
  %v2509 = vsel %vm668, %v2445, -1e+30
  %v2510 = vsel %vm669, %v2446, -1e+30
  %v2511 = vsel %vm670, %v2447, -1e+30
  %v2512 = vsel %vm671, %v2448, -1e+30
  %v2513 = vsel %vm672, %v2449, -1e+30
  %v2514 = vsel %vm673, %v2450, -1e+30
  %v2515 = vsel %vm674, %v2451, -1e+30
  %v2516 = vsel %vm675, %v2452, -1e+30
  %v2517 = vsel %vm676, %v2453, -1e+30
  %v2518 = vsel %vm677, %v2454, -1e+30
  %v2519 = vsel %vm678, %v2455, -1e+30
  %v2520 = vsel %vm679, %v2456, -1e+30
  %v2521 = vsel %vm680, %v2457, -1e+30
  %v2522 = vsel %vm681, %v2458, -1e+30
  %v2523 = vsel %vm682, %v2459, -1e+30
  %v2524 = vsel %vm683, %v2460, -1e+30
  %v2525 = vsel %vm684, %v2461, -1e+30
  %v2526 = vsel %vm685, %v2462, -1e+30
  %v2527 = vsel %vm686, %v2463, -1e+30
  %v2528 = vsel %vm687, %v2464, -1e+30
  %v2529 = vsel %vm688, %v2465, -1e+30
  %v2530 = vsel %vm689, %v2466, -1e+30
  %v2531 = vsel %vm690, %v2467, -1e+30
  %v2532 = vsel %vm691, %v2468, -1e+30
  %v2533 = vsel %vm692, %v2469, -1e+30
  %v2534 = vsel %vm693, %v2470, -1e+30
  %v2535 = vsel %vm694, %v2471, -1e+30
  %v2536 = vsel %vm695, %v2472, -1e+30
  %v2537 = vsel %vm696, %v2473, -1e+30
  %v2538 = vsel %vm697, %v2474, -1e+30
  %v2539 = vsel %vm698, %v2475, -1e+30
  %v2540 = vsel %vm699, %v2476, -1e+30
  %v2541 = vsel %vm700, %v2477, -1e+30
  %v2542 = vsel %vm701, %v2478, -1e+30
  %v2543 = vsel %vm702, %v2479, -1e+30
  %v2544 = vsel %vm703, %v2480, -1e+30
  %v2545 = vsel %vm704, %v2481, -1e+30
  %v2546 = vsel %vm705, %v2482, -1e+30
  %v2547 = vsel %vm706, %v2483, -1e+30
  %v2548 = vsel %vm707, %v2484, -1e+30
  %v2549 = vsel %vm708, %v2485, -1e+30
  %v2550 = vsel %vm709, %v2486, -1e+30
  %v2551 = vsel %vm710, %v2487, -1e+30
  %v2552 = vsel %vm711, %v2488, -1e+30
  %v2553 = vsel %vm712, %v2489, -1e+30
  %v2554 = vsel %vm713, %v2490, -1e+30
  %v2555 = vsel %vm714, %v2491, -1e+30
  %v2556 = vsel %vm715, %v2492, -1e+30
  %v2557 = vsel %vm716, %v2493, -1e+30
  %v2558 = vsel %vm717, %v2494, -1e+30
  %v2559 = vsel %vm718, %v2495, -1e+30
  %v2560 = vsel %vm719, %v2496, -1e+30
  %v2561 = vsel %vm720, %v2497, -1e+30
  %v2562 = vsel %vm721, %v2498, -1e+30
  %v2563 = vsel %vm722, %v2499, -1e+30
  %v2564 = vsel %vm723, %v2500, -1e+30
  %v2565 = vsel %vm724, %v2501, -1e+30
  %v2566 = vsel %vm725, %v2502, -1e+30
  %v2567 = vsel %vm726, %v2503, -1e+30
  %v2568 = vsel %vm727, %v2504, -1e+30
  %v2569 = vsel %vm728, %v2505, -1e+30
  %v2570 = vsel %vm729, %v2506, -1e+30
  %v2571 = vmax.f32 %v2507, %v2508
  %2572 = vmax.xlane.f32.xlu0 %v2571
  %v2573 = vpop.xlane.xlu0 %2572
  %v2574 = vmax.f32 %v2509, %v2510
  %2575 = vmax.xlane.f32.xlu0 %v2574
  %v2576 = vpop.xlane.xlu0 %2575
  %v2577 = vmax.f32 %v2511, %v2512
  %2578 = vmax.xlane.f32.xlu0 %v2577
  %v2579 = vpop.xlane.xlu0 %2578
  %v2580 = vmax.f32 %v2513, %v2514
  %2581 = vmax.xlane.f32.xlu0 %v2580
  %v2582 = vpop.xlane.xlu0 %2581
  %v2583 = vmax.f32 %v2515, %v2516
  %2584 = vmax.xlane.f32.xlu0 %v2583
  %v2585 = vpop.xlane.xlu0 %2584
  %v2586 = vmax.f32 %v2517, %v2518
  %2587 = vmax.xlane.f32.xlu0 %v2586
  %v2588 = vpop.xlane.xlu0 %2587
  %v2589 = vmax.f32 %v2519, %v2520
  %2590 = vmax.xlane.f32.xlu0 %v2589
  %v2591 = vpop.xlane.xlu0 %2590
  %v2592 = vmax.f32 %v2521, %v2522
  %2593 = vmax.xlane.f32.xlu0 %v2592
  %v2594 = vpop.xlane.xlu0 %2593
  %v2595 = vmax.f32 %v2523, %v2524
  %2596 = vmax.xlane.f32.xlu0 %v2595
  %v2597 = vpop.xlane.xlu0 %2596
  %v2598 = vmax.f32 %v2525, %v2526
  %2599 = vmax.xlane.f32.xlu0 %v2598
  %v2600 = vpop.xlane.xlu0 %2599
  %v2601 = vmax.f32 %v2527, %v2528
  %2602 = vmax.xlane.f32.xlu0 %v2601
  %v2603 = vpop.xlane.xlu0 %2602
  %v2604 = vmax.f32 %v2529, %v2530
  %2605 = vmax.xlane.f32.xlu0 %v2604
  %v2606 = vpop.xlane.xlu0 %2605
  %v2607 = vmax.f32 %v2531, %v2532
  %2608 = vmax.xlane.f32.xlu0 %v2607
  %v2609 = vpop.xlane.xlu0 %2608
  %v2610 = vmax.f32 %v2533, %v2534
  %2611 = vmax.xlane.f32.xlu0 %v2610
  %v2612 = vpop.xlane.xlu0 %2611
  %v2613 = vmax.f32 %v2535, %v2536
  %2614 = vmax.xlane.f32.xlu0 %v2613
  %v2615 = vpop.xlane.xlu0 %2614
  %v2616 = vmax.f32 %v2537, %v2538
  %2617 = vmax.xlane.f32.xlu0 %v2616
  %v2618 = vpop.xlane.xlu0 %2617
  %v2619 = vmax.f32 %v2539, %v2540
  %2620 = vmax.xlane.f32.xlu0 %v2619
  %v2621 = vpop.xlane.xlu0 %2620
  %v2622 = vmax.f32 %v2541, %v2542
  %2623 = vmax.xlane.f32.xlu0 %v2622
  %v2624 = vpop.xlane.xlu0 %2623
  %v2625 = vmax.f32 %v2543, %v2544
  %2626 = vmax.xlane.f32.xlu0 %v2625
  %v2627 = vpop.xlane.xlu0 %2626
  %v2628 = vmax.f32 %v2545, %v2546
  %2629 = vmax.xlane.f32.xlu0 %v2628
  %v2630 = vpop.xlane.xlu0 %2629
  %v2631 = vmax.f32 %v2547, %v2548
  %2632 = vmax.xlane.f32.xlu0 %v2631
  %v2633 = vpop.xlane.xlu0 %2632
  %v2634 = vmax.f32 %v2549, %v2550
  %2635 = vmax.xlane.f32.xlu0 %v2634
  %v2636 = vpop.xlane.xlu0 %2635
  %v2637 = vmax.f32 %v2551, %v2552
  %2638 = vmax.xlane.f32.xlu0 %v2637
  %v2639 = vpop.xlane.xlu0 %2638
  %v2640 = vmax.f32 %v2553, %v2554
  %2641 = vmax.xlane.f32.xlu0 %v2640
  %v2642 = vpop.xlane.xlu0 %2641
  %v2643 = vmax.f32 %v2555, %v2556
  %2644 = vmax.xlane.f32.xlu0 %v2643
  %v2645 = vpop.xlane.xlu0 %2644
  %v2646 = vmax.f32 %v2557, %v2558
  %2647 = vmax.xlane.f32.xlu0 %v2646
  %v2648 = vpop.xlane.xlu0 %2647
  %v2649 = vmax.f32 %v2559, %v2560
  %2650 = vmax.xlane.f32.xlu0 %v2649
  %v2651 = vpop.xlane.xlu0 %2650
  %v2652 = vmax.f32 %v2561, %v2562
  %2653 = vmax.xlane.f32.xlu0 %v2652
  %v2654 = vpop.xlane.xlu0 %2653
  %v2655 = vmax.f32 %v2563, %v2564
  %2656 = vmax.xlane.f32.xlu0 %v2655
  %v2657 = vpop.xlane.xlu0 %2656
  %v2658 = vmax.f32 %v2565, %v2566
  %2659 = vmax.xlane.f32.xlu0 %v2658
  %v2660 = vpop.xlane.xlu0 %2659
  %v2661 = vmax.f32 %v2567, %v2568
  %2662 = vmax.xlane.f32.xlu0 %v2661
  %v2663 = vpop.xlane.xlu0 %2662
  %v2664 = vmax.f32 %v2569, %v2570
  %2665 = vmax.xlane.f32.xlu0 %v2664
  %v2666 = vpop.xlane.xlu0 %2665
  %v2667 = vsub.f32 %v2507, %v2573
  %v2668 = vsub.f32 %v2508, %v2573
  %v2669 = vsub.f32 %v2509, %v2576
  %v2670 = vsub.f32 %v2510, %v2576
  %v2671 = vsub.f32 %v2511, %v2579
  %v2672 = vsub.f32 %v2512, %v2579
  %v2673 = vsub.f32 %v2513, %v2582
  %v2674 = vsub.f32 %v2514, %v2582
  %v2675 = vsub.f32 %v2515, %v2585
  %v2676 = vsub.f32 %v2516, %v2585
  %v2677 = vsub.f32 %v2517, %v2588
  %v2678 = vsub.f32 %v2518, %v2588
  %v2679 = vsub.f32 %v2519, %v2591
  %v2680 = vsub.f32 %v2520, %v2591
  %v2681 = vsub.f32 %v2521, %v2594
  %v2682 = vsub.f32 %v2522, %v2594
  %v2683 = vsub.f32 %v2523, %v2597
  %v2684 = vsub.f32 %v2524, %v2597
  %v2685 = vsub.f32 %v2525, %v2600
  %v2686 = vsub.f32 %v2526, %v2600
  %v2687 = vsub.f32 %v2527, %v2603
  %v2688 = vsub.f32 %v2528, %v2603
  %v2689 = vsub.f32 %v2529, %v2606
  %v2690 = vsub.f32 %v2530, %v2606
  %v2691 = vsub.f32 %v2531, %v2609
  %v2692 = vsub.f32 %v2532, %v2609
  %v2693 = vsub.f32 %v2533, %v2612
  %v2694 = vsub.f32 %v2534, %v2612
  %v2695 = vsub.f32 %v2535, %v2615
  %v2696 = vsub.f32 %v2536, %v2615
  %v2697 = vsub.f32 %v2537, %v2618
  %v2698 = vsub.f32 %v2538, %v2618
  %v2699 = vsub.f32 %v2539, %v2621
  %v2700 = vsub.f32 %v2540, %v2621
  %v2701 = vsub.f32 %v2541, %v2624
  %v2702 = vsub.f32 %v2542, %v2624
  %v2703 = vsub.f32 %v2543, %v2627
  %v2704 = vsub.f32 %v2544, %v2627
  %v2705 = vsub.f32 %v2545, %v2630
  %v2706 = vsub.f32 %v2546, %v2630
  %v2707 = vsub.f32 %v2547, %v2633
  %v2708 = vsub.f32 %v2548, %v2633
  %v2709 = vsub.f32 %v2549, %v2636
  %v2710 = vsub.f32 %v2550, %v2636
  %v2711 = vsub.f32 %v2551, %v2639
  %v2712 = vsub.f32 %v2552, %v2639
  %v2713 = vsub.f32 %v2553, %v2642
  %v2714 = vsub.f32 %v2554, %v2642
  %v2715 = vsub.f32 %v2555, %v2645
  %v2716 = vsub.f32 %v2556, %v2645
  %v2717 = vsub.f32 %v2557, %v2648
  %v2718 = vsub.f32 %v2558, %v2648
  %v2719 = vsub.f32 %v2559, %v2651
  %v2720 = vsub.f32 %v2560, %v2651
  %v2721 = vsub.f32 %v2561, %v2654
  %v2722 = vsub.f32 %v2562, %v2654
  %v2723 = vsub.f32 %v2563, %v2657
  %v2724 = vsub.f32 %v2564, %v2657
  %v2725 = vsub.f32 %v2565, %v2660
  %v2726 = vsub.f32 %v2566, %v2660
  %v2727 = vsub.f32 %v2567, %v2663
  %v2728 = vsub.f32 %v2568, %v2663
  %v2729 = vsub.f32 %v2569, %v2666
  %v2730 = vsub.f32 %v2570, %v2666
  %v2731 = vmul.f32 %v2667, 1.442695
  %v2732 = vpow.pop %v2731
  %v2733 = vmul.f32 %v2668, 1.442695
  %v2734 = vpow.pop %v2733
  %v2735 = vmul.f32 %v2669, 1.442695
  %v2736 = vpow.pop %v2735
  %v2737 = vmul.f32 %v2670, 1.442695
  %v2738 = vpow.pop %v2737
  %v2739 = vmul.f32 %v2671, 1.442695
  %v2740 = vpow.pop %v2739
  %v2741 = vmul.f32 %v2672, 1.442695
  %v2742 = vpow.pop %v2741
  %v2743 = vmul.f32 %v2673, 1.442695
  %v2744 = vpow.pop %v2743
  %v2745 = vmul.f32 %v2674, 1.442695
  %v2746 = vpow.pop %v2745
  %v2747 = vmul.f32 %v2675, 1.442695
  %v2748 = vpow.pop %v2747
  %v2749 = vmul.f32 %v2676, 1.442695
  %v2750 = vpow.pop %v2749
  %v2751 = vmul.f32 %v2677, 1.442695
  %v2752 = vpow.pop %v2751
  %v2753 = vmul.f32 %v2678, 1.442695
  %v2754 = vpow.pop %v2753
  %v2755 = vmul.f32 %v2679, 1.442695
  %v2756 = vpow.pop %v2755
  %v2757 = vmul.f32 %v2680, 1.442695
  %v2758 = vpow.pop %v2757
  %v2759 = vmul.f32 %v2681, 1.442695
  %v2760 = vpow.pop %v2759
  %v2761 = vmul.f32 %v2682, 1.442695
  %v2762 = vpow.pop %v2761
  %v2763 = vmul.f32 %v2683, 1.442695
  %v2764 = vpow.pop %v2763
  %v2765 = vmul.f32 %v2684, 1.442695
  %v2766 = vpow.pop %v2765
  %v2767 = vmul.f32 %v2685, 1.442695
  %v2768 = vpow.pop %v2767
  %v2769 = vmul.f32 %v2686, 1.442695
  %v2770 = vpow.pop %v2769
  %v2771 = vmul.f32 %v2687, 1.442695
  %v2772 = vpow.pop %v2771
  %v2773 = vmul.f32 %v2688, 1.442695
  %v2774 = vpow.pop %v2773
  %v2775 = vmul.f32 %v2689, 1.442695
  %v2776 = vpow.pop %v2775
  %v2777 = vmul.f32 %v2690, 1.442695
  %v2778 = vpow.pop %v2777
  %v2779 = vmul.f32 %v2691, 1.442695
  %v2780 = vpow.pop %v2779
  %v2781 = vmul.f32 %v2692, 1.442695
  %v2782 = vpow.pop %v2781
  %v2783 = vmul.f32 %v2693, 1.442695
  %v2784 = vpow.pop %v2783
  %v2785 = vmul.f32 %v2694, 1.442695
  %v2786 = vpow.pop %v2785
  %v2787 = vmul.f32 %v2695, 1.442695
  %v2788 = vpow.pop %v2787
  %v2789 = vmul.f32 %v2696, 1.442695
  %v2790 = vpow.pop %v2789
  %v2791 = vmul.f32 %v2697, 1.442695
  %v2792 = vpow.pop %v2791
  %v2793 = vmul.f32 %v2698, 1.442695
  %v2794 = vpow.pop %v2793
  %v2795 = vmul.f32 %v2699, 1.442695
  %v2796 = vpow.pop %v2795
  %v2797 = vmul.f32 %v2700, 1.442695
  %v2798 = vpow.pop %v2797
  %v2799 = vmul.f32 %v2701, 1.442695
  %v2800 = vpow.pop %v2799
  %v2801 = vmul.f32 %v2702, 1.442695
  %v2802 = vpow.pop %v2801
  %v2803 = vmul.f32 %v2703, 1.442695
  %v2804 = vpow.pop %v2803
  %v2805 = vmul.f32 %v2704, 1.442695
  %v2806 = vpow.pop %v2805
  %v2807 = vmul.f32 %v2705, 1.442695
  %v2808 = vpow.pop %v2807
  %v2809 = vmul.f32 %v2706, 1.442695
  %v2810 = vpow.pop %v2809
  %v2811 = vmul.f32 %v2707, 1.442695
  %v2812 = vpow.pop %v2811
  %v2813 = vmul.f32 %v2708, 1.442695
  %v2814 = vpow.pop %v2813
  %v2815 = vmul.f32 %v2709, 1.442695
  %v2816 = vpow.pop %v2815
  %v2817 = vmul.f32 %v2710, 1.442695
  %v2818 = vpow.pop %v2817
  %v2819 = vmul.f32 %v2711, 1.442695
  %v2820 = vpow.pop %v2819
  %v2821 = vmul.f32 %v2712, 1.442695
  %v2822 = vpow.pop %v2821
  %v2823 = vmul.f32 %v2713, 1.442695
  %v2824 = vpow.pop %v2823
  %v2825 = vmul.f32 %v2714, 1.442695
  %v2826 = vpow.pop %v2825
  %v2827 = vmul.f32 %v2715, 1.442695
  %v2828 = vpow.pop %v2827
  %v2829 = vmul.f32 %v2716, 1.442695
  %v2830 = vpow.pop %v2829
  %v2831 = vmul.f32 %v2717, 1.442695
  %v2832 = vpow.pop %v2831
  %v2833 = vmul.f32 %v2718, 1.442695
  %v2834 = vpow.pop %v2833
  %v2835 = vmul.f32 %v2719, 1.442695
  %v2836 = vpow.pop %v2835
  %v2837 = vmul.f32 %v2720, 1.442695
  %v2838 = vpow.pop %v2837
  %v2839 = vmul.f32 %v2721, 1.442695
  %v2840 = vpow.pop %v2839
  %v2841 = vmul.f32 %v2722, 1.442695
  %v2842 = vpow.pop %v2841
  %v2843 = vmul.f32 %v2723, 1.442695
  %v2844 = vpow.pop %v2843
  %v2845 = vmul.f32 %v2724, 1.442695
  %v2846 = vpow.pop %v2845
  %v2847 = vmul.f32 %v2725, 1.442695
  %v2848 = vpow.pop %v2847
  %v2849 = vmul.f32 %v2726, 1.442695
  %v2850 = vpow.pop %v2849
  %v2851 = vmul.f32 %v2727, 1.442695
  %v2852 = vpow.pop %v2851
  %v2853 = vmul.f32 %v2728, 1.442695
  %v2854 = vpow.pop %v2853
  %v2855 = vmul.f32 %v2729, 1.442695
  %v2856 = vpow.pop %v2855
  %v2857 = vmul.f32 %v2730, 1.442695
  %v2858 = vpow.pop %v2857
  %v2859 = vadd.f32 %v2732, %v2734
  %2860 = vadd.xlane.f32.xlu0 %v2859
  %v2861 = vpop.xlane.xlu0 %2860
  %v2862 = vadd.f32 %v2736, %v2738
  %2863 = vadd.xlane.f32.xlu0 %v2862
  %v2864 = vpop.xlane.xlu0 %2863
  %v2865 = vadd.f32 %v2740, %v2742
  %2866 = vadd.xlane.f32.xlu0 %v2865
  %v2867 = vpop.xlane.xlu0 %2866
  %v2868 = vadd.f32 %v2744, %v2746
  %2869 = vadd.xlane.f32.xlu0 %v2868
  %v2870 = vpop.xlane.xlu0 %2869
  %v2871 = vadd.f32 %v2748, %v2750
  %2872 = vadd.xlane.f32.xlu0 %v2871
  %v2873 = vpop.xlane.xlu0 %2872
  %v2874 = vadd.f32 %v2752, %v2754
  %2875 = vadd.xlane.f32.xlu0 %v2874
  %v2876 = vpop.xlane.xlu0 %2875
  %v2877 = vadd.f32 %v2756, %v2758
  %2878 = vadd.xlane.f32.xlu0 %v2877
  %v2879 = vpop.xlane.xlu0 %2878
  %v2880 = vadd.f32 %v2760, %v2762
  %2881 = vadd.xlane.f32.xlu0 %v2880
  %v2882 = vpop.xlane.xlu0 %2881
  %v2883 = vadd.f32 %v2764, %v2766
  %2884 = vadd.xlane.f32.xlu0 %v2883
  %v2885 = vpop.xlane.xlu0 %2884
  %v2886 = vadd.f32 %v2768, %v2770
  %2887 = vadd.xlane.f32.xlu0 %v2886
  %v2888 = vpop.xlane.xlu0 %2887
  %v2889 = vadd.f32 %v2772, %v2774
  %2890 = vadd.xlane.f32.xlu0 %v2889
  %v2891 = vpop.xlane.xlu0 %2890
  %v2892 = vadd.f32 %v2776, %v2778
  %2893 = vadd.xlane.f32.xlu0 %v2892
  %v2894 = vpop.xlane.xlu0 %2893
  %v2895 = vadd.f32 %v2780, %v2782
  %2896 = vadd.xlane.f32.xlu0 %v2895
  %v2897 = vpop.xlane.xlu0 %2896
  %v2898 = vadd.f32 %v2784, %v2786
  %2899 = vadd.xlane.f32.xlu0 %v2898
  %v2900 = vpop.xlane.xlu0 %2899
  %v2901 = vadd.f32 %v2788, %v2790
  %2902 = vadd.xlane.f32.xlu0 %v2901
  %v2903 = vpop.xlane.xlu0 %2902
  %v2904 = vadd.f32 %v2792, %v2794
  %2905 = vadd.xlane.f32.xlu0 %v2904
  %v2906 = vpop.xlane.xlu0 %2905
  %v2907 = vadd.f32 %v2796, %v2798
  %2908 = vadd.xlane.f32.xlu0 %v2907
  %v2909 = vpop.xlane.xlu0 %2908
  %v2910 = vadd.f32 %v2800, %v2802
  %2911 = vadd.xlane.f32.xlu0 %v2910
  %v2912 = vpop.xlane.xlu0 %2911
  %v2913 = vadd.f32 %v2804, %v2806
  %2914 = vadd.xlane.f32.xlu0 %v2913
  %v2915 = vpop.xlane.xlu0 %2914
  %v2916 = vadd.f32 %v2808, %v2810
  %2917 = vadd.xlane.f32.xlu0 %v2916
  %v2918 = vpop.xlane.xlu0 %2917
  %v2919 = vadd.f32 %v2812, %v2814
  %2920 = vadd.xlane.f32.xlu0 %v2919
  %v2921 = vpop.xlane.xlu0 %2920
  %v2922 = vadd.f32 %v2816, %v2818
  %2923 = vadd.xlane.f32.xlu0 %v2922
  %v2924 = vpop.xlane.xlu0 %2923
  %v2925 = vadd.f32 %v2820, %v2822
  %2926 = vadd.xlane.f32.xlu0 %v2925
  %v2927 = vpop.xlane.xlu0 %2926
  %v2928 = vadd.f32 %v2824, %v2826
  %2929 = vadd.xlane.f32.xlu0 %v2928
  %v2930 = vpop.xlane.xlu0 %2929
  %v2931 = vadd.f32 %v2828, %v2830
  %2932 = vadd.xlane.f32.xlu0 %v2931
  %v2933 = vpop.xlane.xlu0 %2932
  %v2934 = vadd.f32 %v2832, %v2834
  %2935 = vadd.xlane.f32.xlu0 %v2934
  %v2936 = vpop.xlane.xlu0 %2935
  %v2937 = vadd.f32 %v2836, %v2838
  %2938 = vadd.xlane.f32.xlu0 %v2937
  %v2939 = vpop.xlane.xlu0 %2938
  %v2940 = vadd.f32 %v2840, %v2842
  %2941 = vadd.xlane.f32.xlu0 %v2940
  %v2942 = vpop.xlane.xlu0 %2941
  %v2943 = vadd.f32 %v2844, %v2846
  %2944 = vadd.xlane.f32.xlu0 %v2943
  %v2945 = vpop.xlane.xlu0 %2944
  %v2946 = vadd.f32 %v2848, %v2850
  %2947 = vadd.xlane.f32.xlu0 %v2946
  %v2948 = vpop.xlane.xlu0 %2947
  %v2949 = vadd.f32 %v2852, %v2854
  %2950 = vadd.xlane.f32.xlu0 %v2949
  %v2951 = vpop.xlane.xlu0 %2950
  %v2952 = vadd.f32 %v2856, %v2858
  %2953 = vadd.xlane.f32.xlu0 %v2952
  %v2954 = vpop.xlane.xlu0 %2953
  %v2955 = vld [vmem:[%s0 + $0x8] sm:$0xff]
  %v2956 = vld [vmem:[%s0 + $0x18] sm:$0xff]
  %v2957 = vld [vmem:[%s0 + $0x28] sm:$0xff]
  %v2958 = vld [vmem:[%s0 + $0x38] sm:$0xff]
  %v2959 = vld [vmem:[%s0 + $0x48] sm:$0xff]
  %v2960 = vld [vmem:[%s0 + $0x58] sm:$0xff]
  %v2961 = vld [vmem:[%s0 + $0x68] sm:$0xff]
  %v2962 = vld [vmem:[%s0 + $0x78] sm:$0xff]
  %v2963 = vld [vmem:[%s0 + $0x88] sm:$0xff]
  %v2964 = vld [vmem:[%s0 + $0x98] sm:$0xff]
  %v2965 = vld [vmem:[%s0 + $0xa8] sm:$0xff]
  %v2966 = vld [vmem:[%s0 + $0xb8] sm:$0xff]
  %v2967 = vld [vmem:[%s0 + $0xc8] sm:$0xff]
  %v2968 = vld [vmem:[%s0 + $0xd8] sm:$0xff]
  %v2969 = vld [vmem:[%s0 + $0xe8] sm:$0xff]
  %v2970 = vld [vmem:[%s0 + $0xf8] sm:$0xff]
  %v2971 = vld [vmem:[%s0 + $0x108] sm:$0xff]
  %v2972 = vld [vmem:[%s0 + $0x118] sm:$0xff]
  %v2973 = vld [vmem:[%s0 + $0x128] sm:$0xff]
  %v2974 = vld [vmem:[%s0 + $0x138] sm:$0xff]
  %v2975 = vld [vmem:[%s0 + $0x148] sm:$0xff]
  %v2976 = vld [vmem:[%s0 + $0x158] sm:$0xff]
  %v2977 = vld [vmem:[%s0 + $0x168] sm:$0xff]
  %v2978 = vld [vmem:[%s0 + $0x178] sm:$0xff]
  %v2979 = vld [vmem:[%s0 + $0x188] sm:$0xff]
  %v2980 = vld [vmem:[%s0 + $0x198] sm:$0xff]
  %v2981 = vld [vmem:[%s0 + $0x1a8] sm:$0xff]
  %v2982 = vld [vmem:[%s0 + $0x1b8] sm:$0xff]
  %v2983 = vld [vmem:[%s0 + $0x1c8] sm:$0xff]
  %v2984 = vld [vmem:[%s0 + $0x1d8] sm:$0xff]
  %v2985 = vld [vmem:[%s0 + $0x1e8] sm:$0xff]
  %v2986 = vld [vmem:[%s0 + $0x1f8] sm:$0xff]
  %v2987 = vpack.c.bf16 %v2736, %v2732
  %v2988 = vpack.c.bf16 %v2738, %v2734
  %v2989 = vpack.c.bf16 %v2744, %v2740
  %v2990 = vpack.c.bf16 %v2746, %v2742
  %v2991 = vpack.c.bf16 %v2752, %v2748
  %v2992 = vpack.c.bf16 %v2754, %v2750
  %v2993 = vpack.c.bf16 %v2760, %v2756
  %v2994 = vpack.c.bf16 %v2762, %v2758
  %v2995 = vpack.c.bf16 %v2768, %v2764
  %v2996 = vpack.c.bf16 %v2770, %v2766
  %v2997 = vpack.c.bf16 %v2776, %v2772
  %v2998 = vpack.c.bf16 %v2778, %v2774
  %v2999 = vpack.c.bf16 %v2784, %v2780
  %v3000 = vpack.c.bf16 %v2786, %v2782
  %v3001 = vpack.c.bf16 %v2792, %v2788
  %v3002 = vpack.c.bf16 %v2794, %v2790
  %v3003 = vpack.c.bf16 %v2800, %v2796
  %v3004 = vpack.c.bf16 %v2802, %v2798
  %v3005 = vpack.c.bf16 %v2808, %v2804
  %v3006 = vpack.c.bf16 %v2810, %v2806
  %v3007 = vpack.c.bf16 %v2816, %v2812
  %v3008 = vpack.c.bf16 %v2818, %v2814
  %v3009 = vpack.c.bf16 %v2824, %v2820
  %v3010 = vpack.c.bf16 %v2826, %v2822
  %v3011 = vpack.c.bf16 %v2832, %v2828
  %v3012 = vpack.c.bf16 %v2834, %v2830
  %v3013 = vpack.c.bf16 %v2840, %v2836
  %v3014 = vpack.c.bf16 %v2842, %v2838
  %v3015 = vpack.c.bf16 %v2848, %v2844
  %v3016 = vpack.c.bf16 %v2850, %v2846
  %v3017 = vpack.c.bf16 %v2856, %v2852
  %v3018 = vpack.c.bf16 %v2858, %v2854
  %v3051 = vunpack.c.l.b16 %v2955
  %v3052 = vunpack.c.h.b16 %v2955
  %v3053 = vunpack.c.l.b16 %v2956
  %v3054 = vunpack.c.h.b16 %v2956
  %v3055 = vunpack.c.l.b16 %v2957
  %v3056 = vunpack.c.h.b16 %v2957
  %v3057 = vunpack.c.l.b16 %v2958
  %v3058 = vunpack.c.h.b16 %v2958
  %v3059 = vunpack.c.l.b16 %v2959
  %v3060 = vunpack.c.h.b16 %v2959
  %v3061 = vunpack.c.l.b16 %v2960
  %v3062 = vunpack.c.h.b16 %v2960
  %v3063 = vunpack.c.l.b16 %v2961
  %v3064 = vunpack.c.h.b16 %v2961
  %v3065 = vunpack.c.l.b16 %v2962
  %v3066 = vunpack.c.h.b16 %v2962
  %v3067 = vunpack.c.l.b16 %v2963
  %v3068 = vunpack.c.h.b16 %v2963
  %v3069 = vunpack.c.l.b16 %v2964
  %v3070 = vunpack.c.h.b16 %v2964
  %v3071 = vunpack.c.l.b16 %v2965
  %v3072 = vunpack.c.h.b16 %v2965
  %v3073 = vunpack.c.l.b16 %v2966
  %v3074 = vunpack.c.h.b16 %v2966
  %v3075 = vunpack.c.l.b16 %v2967
  %v3076 = vunpack.c.h.b16 %v2967
  %v3077 = vunpack.c.l.b16 %v2968
  %v3078 = vunpack.c.h.b16 %v2968
  %v3079 = vunpack.c.l.b16 %v2969
  %v3080 = vunpack.c.h.b16 %v2969
  %v3081 = vunpack.c.l.b16 %v2970
  %v3082 = vunpack.c.h.b16 %v2970
  %v3083 = vunpack.c.l.b16 %v2971
  %v3084 = vunpack.c.h.b16 %v2971
  %v3085 = vunpack.c.l.b16 %v2972
  %v3086 = vunpack.c.h.b16 %v2972
  %v3087 = vunpack.c.l.b16 %v2973
  %v3088 = vunpack.c.h.b16 %v2973
  %v3089 = vunpack.c.l.b16 %v2974
  %v3090 = vunpack.c.h.b16 %v2974
  %v3091 = vunpack.c.l.b16 %v2975
  %v3092 = vunpack.c.h.b16 %v2975
  %v3093 = vunpack.c.l.b16 %v2976
  %v3094 = vunpack.c.h.b16 %v2976
  %v3095 = vunpack.c.l.b16 %v2977
  %v3096 = vunpack.c.h.b16 %v2977
  %v3097 = vunpack.c.l.b16 %v2978
  %v3098 = vunpack.c.h.b16 %v2978
  %v3099 = vunpack.c.l.b16 %v2979
  %v3100 = vunpack.c.h.b16 %v2979
  %v3101 = vunpack.c.l.b16 %v2980
  %v3102 = vunpack.c.h.b16 %v2980
  %v3103 = vunpack.c.l.b16 %v2981
  %v3104 = vunpack.c.h.b16 %v2981
  %v3105 = vunpack.c.l.b16 %v2982
  %v3106 = vunpack.c.h.b16 %v2982
  %v3107 = vunpack.c.l.b16 %v2983
  %v3108 = vunpack.c.h.b16 %v2983
  %v3109 = vunpack.c.l.b16 %v2984
  %v3110 = vunpack.c.h.b16 %v2984
  %v3111 = vunpack.c.l.b16 %v2985
  %v3112 = vunpack.c.h.b16 %v2985
  %v3113 = vunpack.c.l.b16 %v2986
  %v3114 = vunpack.c.h.b16 %v2986
  %v3115 = vpack.c.b16 %v3053, %v3051
  %v3116 = vpack.c.b16 %v3054, %v3052
  %v3117 = vpack.c.b16 %v3057, %v3055
  %v3118 = vpack.c.b16 %v3058, %v3056
  %v3119 = vpack.c.b16 %v3061, %v3059
  %v3120 = vpack.c.b16 %v3062, %v3060
  %v3121 = vpack.c.b16 %v3065, %v3063
  %v3122 = vpack.c.b16 %v3066, %v3064
  %v3123 = vpack.c.b16 %v3069, %v3067
  %v3124 = vpack.c.b16 %v3070, %v3068
  %v3125 = vpack.c.b16 %v3073, %v3071
  %v3126 = vpack.c.b16 %v3074, %v3072
  %v3127 = vpack.c.b16 %v3077, %v3075
  %v3128 = vpack.c.b16 %v3078, %v3076
  %v3129 = vpack.c.b16 %v3081, %v3079
  %v3130 = vpack.c.b16 %v3082, %v3080
  %v3131 = vpack.c.b16 %v3085, %v3083
  %v3132 = vpack.c.b16 %v3086, %v3084
  %v3133 = vpack.c.b16 %v3089, %v3087
  %v3134 = vpack.c.b16 %v3090, %v3088
  %v3135 = vpack.c.b16 %v3093, %v3091
  %v3136 = vpack.c.b16 %v3094, %v3092
  %v3137 = vpack.c.b16 %v3097, %v3095
  %v3138 = vpack.c.b16 %v3098, %v3096
  %v3139 = vpack.c.b16 %v3101, %v3099
  %v3140 = vpack.c.b16 %v3102, %v3100
  %v3141 = vpack.c.b16 %v3105, %v3103
  %v3142 = vpack.c.b16 %v3106, %v3104
  %v3143 = vpack.c.b16 %v3109, %v3107
  %v3144 = vpack.c.b16 %v3110, %v3108
  %v3145 = vpack.c.b16 %v3113, %v3111
  %v3146 = vpack.c.b16 %v3114, %v3112
  %3179 = vmatpush.bf16.msra.mxu0 %v3129
  %3180 = vmatpush.bf16.msra.mxu0 %v3127
  %3181 = vmatpush.bf16.msra.mxu0 %v3125
  %3182 = vmatpush.bf16.msra.mxu0 %v3123
  %3183 = vmatpush.bf16.msra.mxu0 %v3121
  %3184 = vmatpush.bf16.msra.mxu0 %v3119
  %3185 = vmatpush.bf16.msra.mxu0 %v3117
  %3186 = vmatpush.bf16.msra.mxu0 %v3115
  %3187 = vmatmul.bf16.gmra.mxu0 %v2987
  %v3188 = vpop.f32.mrf.mxu0
  %v3189 = vadd.f32 0.0, %v3188
  %v3190 = vpop.f32.mrf.mxu0
  %v3191 = vadd.f32 0.0, %v3190
  %3192 = vmatmul.bf16.gmra.mxu0 %v2989
  %v3193 = vpop.f32.mrf.mxu0
  %v3194 = vadd.f32 0.0, %v3193
  %v3195 = vpop.f32.mrf.mxu0
  %v3196 = vadd.f32 0.0, %v3195
  %3197 = vmatmul.bf16.gmra.mxu0 %v2991
  %v3198 = vpop.f32.mrf.mxu0
  %v3199 = vadd.f32 0.0, %v3198
  %v3200 = vpop.f32.mrf.mxu0
  %v3201 = vadd.f32 0.0, %v3200
  %3202 = vmatmul.bf16.gmra.mxu0 %v2993
  %v3203 = vpop.f32.mrf.mxu0
  %v3204 = vadd.f32 0.0, %v3203
  %v3205 = vpop.f32.mrf.mxu0
  %v3206 = vadd.f32 0.0, %v3205
  %3207 = vmatmul.bf16.gmra.mxu0 %v2995
  %v3208 = vpop.f32.mrf.mxu0
  %v3209 = vadd.f32 0.0, %v3208
  %v3210 = vpop.f32.mrf.mxu0
  %v3211 = vadd.f32 0.0, %v3210
  %3212 = vmatmul.bf16.gmra.mxu0 %v2997
  %v3213 = vpop.f32.mrf.mxu0
  %v3214 = vadd.f32 0.0, %v3213
  %v3215 = vpop.f32.mrf.mxu0
  %v3216 = vadd.f32 0.0, %v3215
  %3217 = vmatmul.bf16.gmra.mxu0 %v2999
  %v3218 = vpop.f32.mrf.mxu0
  %v3219 = vadd.f32 0.0, %v3218
  %v3220 = vpop.f32.mrf.mxu0
  %v3221 = vadd.f32 0.0, %v3220
  %3222 = vmatmul.bf16.gmra.mxu0 %v3001
  %v3223 = vpop.f32.mrf.mxu0
  %v3224 = vadd.f32 0.0, %v3223
  %v3225 = vpop.f32.mrf.mxu0
  %v3226 = vadd.f32 0.0, %v3225
  %3227 = vmatmul.bf16.gmra.mxu0 %v3003
  %v3228 = vpop.f32.mrf.mxu0
  %v3229 = vadd.f32 0.0, %v3228
  %v3230 = vpop.f32.mrf.mxu0
  %v3231 = vadd.f32 0.0, %v3230
  %3232 = vmatmul.bf16.gmra.mxu0 %v3005
  %v3233 = vpop.f32.mrf.mxu0
  %v3234 = vadd.f32 0.0, %v3233
  %v3235 = vpop.f32.mrf.mxu0
  %v3236 = vadd.f32 0.0, %v3235
  %3237 = vmatmul.bf16.gmra.mxu0 %v3007
  %v3238 = vpop.f32.mrf.mxu0
  %v3239 = vadd.f32 0.0, %v3238
  %v3240 = vpop.f32.mrf.mxu0
  %v3241 = vadd.f32 0.0, %v3240
  %3242 = vmatmul.bf16.gmra.mxu0 %v3009
  %v3243 = vpop.f32.mrf.mxu0
  %v3244 = vadd.f32 0.0, %v3243
  %v3245 = vpop.f32.mrf.mxu0
  %v3246 = vadd.f32 0.0, %v3245
  %3247 = vmatmul.bf16.gmra.mxu0 %v3011
  %v3248 = vpop.f32.mrf.mxu0
  %v3249 = vadd.f32 0.0, %v3248
  %v3250 = vpop.f32.mrf.mxu0
  %v3251 = vadd.f32 0.0, %v3250
  %3252 = vmatmul.bf16.gmra.mxu0 %v3013
  %v3253 = vpop.f32.mrf.mxu0
  %v3254 = vadd.f32 0.0, %v3253
  %v3255 = vpop.f32.mrf.mxu0
  %v3256 = vadd.f32 0.0, %v3255
  %3257 = vmatmul.bf16.gmra.mxu0 %v3015
  %v3258 = vpop.f32.mrf.mxu0
  %v3259 = vadd.f32 0.0, %v3258
  %v3260 = vpop.f32.mrf.mxu0
  %v3261 = vadd.f32 0.0, %v3260
  %3262 = vmatmul.bf16.gmra.mxu0 %v3017
  %v3263 = vpop.f32.mrf.mxu0
  %v3264 = vadd.f32 0.0, %v3263
  %v3265 = vpop.f32.mrf.mxu0
  %v3266 = vadd.f32 0.0, %v3265
  %3267 = vdwg.mxu0
  %3268 = vmatpush.bf16.msra.mxu0 %v3145
  %3269 = vmatpush.bf16.msra.mxu0 %v3143
  %3270 = vmatpush.bf16.msra.mxu0 %v3141
  %3271 = vmatpush.bf16.msra.mxu0 %v3139
  %3272 = vmatpush.bf16.msra.mxu0 %v3137
  %3273 = vmatpush.bf16.msra.mxu0 %v3135
  %3274 = vmatpush.bf16.msra.mxu0 %v3133
  %3275 = vmatpush.bf16.msra.mxu0 %v3131
  %3276 = vmatmul.bf16.gmra.mxu0 %v2988
  %v3277 = vpop.f32.mrf.mxu0
  %v3278 = vadd.f32 %v3189, %v3277
  %v3279 = vpop.f32.mrf.mxu0
  %v3280 = vadd.f32 %v3191, %v3279
  %3281 = vmatmul.bf16.gmra.mxu0 %v2990
  %v3282 = vpop.f32.mrf.mxu0
  %v3283 = vadd.f32 %v3194, %v3282
  %v3284 = vpop.f32.mrf.mxu0
  %v3285 = vadd.f32 %v3196, %v3284
  %3286 = vmatmul.bf16.gmra.mxu0 %v2992
  %v3287 = vpop.f32.mrf.mxu0
  %v3288 = vadd.f32 %v3199, %v3287
  %v3289 = vpop.f32.mrf.mxu0
  %v3290 = vadd.f32 %v3201, %v3289
  %3291 = vmatmul.bf16.gmra.mxu0 %v2994
  %v3292 = vpop.f32.mrf.mxu0
  %v3293 = vadd.f32 %v3204, %v3292
  %v3294 = vpop.f32.mrf.mxu0
  %v3295 = vadd.f32 %v3206, %v3294
  %3296 = vmatmul.bf16.gmra.mxu0 %v2996
  %v3297 = vpop.f32.mrf.mxu0
  %v3298 = vadd.f32 %v3209, %v3297
  %v3299 = vpop.f32.mrf.mxu0
  %v3300 = vadd.f32 %v3211, %v3299
  %3301 = vmatmul.bf16.gmra.mxu0 %v2998
  %v3302 = vpop.f32.mrf.mxu0
  %v3303 = vadd.f32 %v3214, %v3302
  %v3304 = vpop.f32.mrf.mxu0
  %v3305 = vadd.f32 %v3216, %v3304
  %3306 = vmatmul.bf16.gmra.mxu0 %v3000
  %v3307 = vpop.f32.mrf.mxu0
  %v3308 = vadd.f32 %v3219, %v3307
  %v3309 = vpop.f32.mrf.mxu0
  %v3310 = vadd.f32 %v3221, %v3309
  %3311 = vmatmul.bf16.gmra.mxu0 %v3002
  %v3312 = vpop.f32.mrf.mxu0
  %v3313 = vadd.f32 %v3224, %v3312
  %v3314 = vpop.f32.mrf.mxu0
  %v3315 = vadd.f32 %v3226, %v3314
  %3316 = vmatmul.bf16.gmra.mxu0 %v3004
  %v3317 = vpop.f32.mrf.mxu0
  %v3318 = vadd.f32 %v3229, %v3317
  %v3319 = vpop.f32.mrf.mxu0
  %v3320 = vadd.f32 %v3231, %v3319
  %3321 = vmatmul.bf16.gmra.mxu0 %v3006
  %v3322 = vpop.f32.mrf.mxu0
  %v3323 = vadd.f32 %v3234, %v3322
  %v3324 = vpop.f32.mrf.mxu0
  %v3325 = vadd.f32 %v3236, %v3324
  %3326 = vmatmul.bf16.gmra.mxu0 %v3008
  %v3327 = vpop.f32.mrf.mxu0
  %v3328 = vadd.f32 %v3239, %v3327
  %v3329 = vpop.f32.mrf.mxu0
  %v3330 = vadd.f32 %v3241, %v3329
  %3331 = vmatmul.bf16.gmra.mxu0 %v3010
  %v3332 = vpop.f32.mrf.mxu0
  %v3333 = vadd.f32 %v3244, %v3332
  %v3334 = vpop.f32.mrf.mxu0
  %v3335 = vadd.f32 %v3246, %v3334
  %3336 = vmatmul.bf16.gmra.mxu0 %v3012
  %v3337 = vpop.f32.mrf.mxu0
  %v3338 = vadd.f32 %v3249, %v3337
  %v3339 = vpop.f32.mrf.mxu0
  %v3340 = vadd.f32 %v3251, %v3339
  %3341 = vmatmul.bf16.gmra.mxu0 %v3014
  %v3342 = vpop.f32.mrf.mxu0
  %v3343 = vadd.f32 %v3254, %v3342
  %v3344 = vpop.f32.mrf.mxu0
  %v3345 = vadd.f32 %v3256, %v3344
  %3346 = vmatmul.bf16.gmra.mxu0 %v3016
  %v3347 = vpop.f32.mrf.mxu0
  %v3348 = vadd.f32 %v3259, %v3347
  %v3349 = vpop.f32.mrf.mxu0
  %v3350 = vadd.f32 %v3261, %v3349
  %3351 = vmatmul.bf16.gmra.mxu0 %v3018
  %v3352 = vpop.f32.mrf.mxu0
  %v3353 = vadd.f32 %v3264, %v3352
  %v3354 = vpop.f32.mrf.mxu0
  %v3355 = vadd.f32 %v3266, %v3354
  %3356 = vdwg.mxu0
  %3357 = vmatpush.bf16.msra.mxu0 %v3130
  %3358 = vmatpush.bf16.msra.mxu0 %v3128
  %3359 = vmatpush.bf16.msra.mxu0 %v3126
  %3360 = vmatpush.bf16.msra.mxu0 %v3124
  %3361 = vmatpush.bf16.msra.mxu0 %v3122
  %3362 = vmatpush.bf16.msra.mxu0 %v3120
  %3363 = vmatpush.bf16.msra.mxu0 %v3118
  %3364 = vmatpush.bf16.msra.mxu0 %v3116
  %3365 = vmatmul.bf16.gmra.mxu0 %v2987
  %v3366 = vpop.f32.mrf.mxu0
  %v3367 = vadd.f32 0.0, %v3366
  %v3368 = vpop.f32.mrf.mxu0
  %v3369 = vadd.f32 0.0, %v3368
  %3370 = vmatmul.bf16.gmra.mxu0 %v2989
  %v3371 = vpop.f32.mrf.mxu0
  %v3372 = vadd.f32 0.0, %v3371
  %v3373 = vpop.f32.mrf.mxu0
  %v3374 = vadd.f32 0.0, %v3373
  %3375 = vmatmul.bf16.gmra.mxu0 %v2991
  %v3376 = vpop.f32.mrf.mxu0
  %v3377 = vadd.f32 0.0, %v3376
  %v3378 = vpop.f32.mrf.mxu0
  %v3379 = vadd.f32 0.0, %v3378
  %3380 = vmatmul.bf16.gmra.mxu0 %v2993
  %v3381 = vpop.f32.mrf.mxu0
  %v3382 = vadd.f32 0.0, %v3381
  %v3383 = vpop.f32.mrf.mxu0
  %v3384 = vadd.f32 0.0, %v3383
  %3385 = vmatmul.bf16.gmra.mxu0 %v2995
  %v3386 = vpop.f32.mrf.mxu0
  %v3387 = vadd.f32 0.0, %v3386
  %v3388 = vpop.f32.mrf.mxu0
  %v3389 = vadd.f32 0.0, %v3388
  %3390 = vmatmul.bf16.gmra.mxu0 %v2997
  %v3391 = vpop.f32.mrf.mxu0
  %v3392 = vadd.f32 0.0, %v3391
  %v3393 = vpop.f32.mrf.mxu0
  %v3394 = vadd.f32 0.0, %v3393
  %3395 = vmatmul.bf16.gmra.mxu0 %v2999
  %v3396 = vpop.f32.mrf.mxu0
  %v3397 = vadd.f32 0.0, %v3396
  %v3398 = vpop.f32.mrf.mxu0
  %v3399 = vadd.f32 0.0, %v3398
  %3400 = vmatmul.bf16.gmra.mxu0 %v3001
  %v3401 = vpop.f32.mrf.mxu0
  %v3402 = vadd.f32 0.0, %v3401
  %v3403 = vpop.f32.mrf.mxu0
  %v3404 = vadd.f32 0.0, %v3403
  %3405 = vmatmul.bf16.gmra.mxu0 %v3003
  %v3406 = vpop.f32.mrf.mxu0
  %v3407 = vadd.f32 0.0, %v3406
  %v3408 = vpop.f32.mrf.mxu0
  %v3409 = vadd.f32 0.0, %v3408
  %3410 = vmatmul.bf16.gmra.mxu0 %v3005
  %v3411 = vpop.f32.mrf.mxu0
  %v3412 = vadd.f32 0.0, %v3411
  %v3413 = vpop.f32.mrf.mxu0
  %v3414 = vadd.f32 0.0, %v3413
  %3415 = vmatmul.bf16.gmra.mxu0 %v3007
  %v3416 = vpop.f32.mrf.mxu0
  %v3417 = vadd.f32 0.0, %v3416
  %v3418 = vpop.f32.mrf.mxu0
  %v3419 = vadd.f32 0.0, %v3418
  %3420 = vmatmul.bf16.gmra.mxu0 %v3009
  %v3421 = vpop.f32.mrf.mxu0
  %v3422 = vadd.f32 0.0, %v3421
  %v3423 = vpop.f32.mrf.mxu0
  %v3424 = vadd.f32 0.0, %v3423
  %3425 = vmatmul.bf16.gmra.mxu0 %v3011
  %v3426 = vpop.f32.mrf.mxu0
  %v3427 = vadd.f32 0.0, %v3426
  %v3428 = vpop.f32.mrf.mxu0
  %v3429 = vadd.f32 0.0, %v3428
  %3430 = vmatmul.bf16.gmra.mxu0 %v3013
  %v3431 = vpop.f32.mrf.mxu0
  %v3432 = vadd.f32 0.0, %v3431
  %v3433 = vpop.f32.mrf.mxu0
  %v3434 = vadd.f32 0.0, %v3433
  %3435 = vmatmul.bf16.gmra.mxu0 %v3015
  %v3436 = vpop.f32.mrf.mxu0
  %v3437 = vadd.f32 0.0, %v3436
  %v3438 = vpop.f32.mrf.mxu0
  %v3439 = vadd.f32 0.0, %v3438
  %3440 = vmatmul.bf16.gmra.mxu0 %v3017
  %v3441 = vpop.f32.mrf.mxu0
  %v3442 = vadd.f32 0.0, %v3441
  %v3443 = vpop.f32.mrf.mxu0
  %v3444 = vadd.f32 0.0, %v3443
  %3445 = vdwg.mxu0
  %3446 = vmatpush.bf16.msra.mxu0 %v3146
  %3447 = vmatpush.bf16.msra.mxu0 %v3144
  %3448 = vmatpush.bf16.msra.mxu0 %v3142
  %3449 = vmatpush.bf16.msra.mxu0 %v3140
  %3450 = vmatpush.bf16.msra.mxu0 %v3138
  %3451 = vmatpush.bf16.msra.mxu0 %v3136
  %3452 = vmatpush.bf16.msra.mxu0 %v3134
  %3453 = vmatpush.bf16.msra.mxu0 %v3132
  %3454 = vmatmul.bf16.gmra.mxu0 %v2988
  %v3455 = vpop.f32.mrf.mxu0
  %v3456 = vadd.f32 %v3367, %v3455
  %v3457 = vpop.f32.mrf.mxu0
  %v3458 = vadd.f32 %v3369, %v3457
  %3459 = vmatmul.bf16.gmra.mxu0 %v2990
  %v3460 = vpop.f32.mrf.mxu0
  %v3461 = vadd.f32 %v3372, %v3460
  %v3462 = vpop.f32.mrf.mxu0
  %v3463 = vadd.f32 %v3374, %v3462
  %3464 = vmatmul.bf16.gmra.mxu0 %v2992
  %v3465 = vpop.f32.mrf.mxu0
  %v3466 = vadd.f32 %v3377, %v3465
  %v3467 = vpop.f32.mrf.mxu0
  %v3468 = vadd.f32 %v3379, %v3467
  %3469 = vmatmul.bf16.gmra.mxu0 %v2994
  %v3470 = vpop.f32.mrf.mxu0
  %v3471 = vadd.f32 %v3382, %v3470
  %v3472 = vpop.f32.mrf.mxu0
  %v3473 = vadd.f32 %v3384, %v3472
  %3474 = vmatmul.bf16.gmra.mxu0 %v2996
  %v3475 = vpop.f32.mrf.mxu0
  %v3476 = vadd.f32 %v3387, %v3475
  %v3477 = vpop.f32.mrf.mxu0
  %v3478 = vadd.f32 %v3389, %v3477
  %3479 = vmatmul.bf16.gmra.mxu0 %v2998
  %v3480 = vpop.f32.mrf.mxu0
  %v3481 = vadd.f32 %v3392, %v3480
  %v3482 = vpop.f32.mrf.mxu0
  %v3483 = vadd.f32 %v3394, %v3482
  %3484 = vmatmul.bf16.gmra.mxu0 %v3000
  %v3485 = vpop.f32.mrf.mxu0
  %v3486 = vadd.f32 %v3397, %v3485
  %v3487 = vpop.f32.mrf.mxu0
  %v3488 = vadd.f32 %v3399, %v3487
  %3489 = vmatmul.bf16.gmra.mxu0 %v3002
  %v3490 = vpop.f32.mrf.mxu0
  %v3491 = vadd.f32 %v3402, %v3490
  %v3492 = vpop.f32.mrf.mxu0
  %v3493 = vadd.f32 %v3404, %v3492
  %3494 = vmatmul.bf16.gmra.mxu0 %v3004
  %v3495 = vpop.f32.mrf.mxu0
  %v3496 = vadd.f32 %v3407, %v3495
  %v3497 = vpop.f32.mrf.mxu0
  %v3498 = vadd.f32 %v3409, %v3497
  %3499 = vmatmul.bf16.gmra.mxu0 %v3006
  %v3500 = vpop.f32.mrf.mxu0
  %v3501 = vadd.f32 %v3412, %v3500
  %v3502 = vpop.f32.mrf.mxu0
  %v3503 = vadd.f32 %v3414, %v3502
  %3504 = vmatmul.bf16.gmra.mxu0 %v3008
  %v3505 = vpop.f32.mrf.mxu0
  %v3506 = vadd.f32 %v3417, %v3505
  %v3507 = vpop.f32.mrf.mxu0
  %v3508 = vadd.f32 %v3419, %v3507
  %3509 = vmatmul.bf16.gmra.mxu0 %v3010
  %v3510 = vpop.f32.mrf.mxu0
  %v3511 = vadd.f32 %v3422, %v3510
  %v3512 = vpop.f32.mrf.mxu0
  %v3513 = vadd.f32 %v3424, %v3512
  %3514 = vmatmul.bf16.gmra.mxu0 %v3012
  %v3515 = vpop.f32.mrf.mxu0
  %v3516 = vadd.f32 %v3427, %v3515
  %v3517 = vpop.f32.mrf.mxu0
  %v3518 = vadd.f32 %v3429, %v3517
  %3519 = vmatmul.bf16.gmra.mxu0 %v3014
  %v3520 = vpop.f32.mrf.mxu0
  %v3521 = vadd.f32 %v3432, %v3520
  %v3522 = vpop.f32.mrf.mxu0
  %v3523 = vadd.f32 %v3434, %v3522
  %3524 = vmatmul.bf16.gmra.mxu0 %v3016
  %v3525 = vpop.f32.mrf.mxu0
  %v3526 = vadd.f32 %v3437, %v3525
  %v3527 = vpop.f32.mrf.mxu0
  %v3528 = vadd.f32 %v3439, %v3527
  %3529 = vmatmul.bf16.gmra.mxu0 %v3018
  %v3530 = vpop.f32.mrf.mxu0
  %v3531 = vadd.f32 %v3442, %v3530
  %v3532 = vpop.f32.mrf.mxu0
  %v3533 = vadd.f32 %v3444, %v3532
  %3534 = vdwg.mxu0
  %v3535 = vrcp.pop %v2861
  %v3536 = vrcp.pop %v2864
  %v3537 = vrcp.pop %v2867
  %v3538 = vrcp.pop %v2870
  %v3539 = vrcp.pop %v2873
  %v3540 = vrcp.pop %v2876
  %v3541 = vrcp.pop %v2879
  %v3542 = vrcp.pop %v2882
  %v3543 = vrcp.pop %v2885
  %v3544 = vrcp.pop %v2888
  %v3545 = vrcp.pop %v2891
  %v3546 = vrcp.pop %v2894
  %v3547 = vrcp.pop %v2897
  %v3548 = vrcp.pop %v2900
  %v3549 = vrcp.pop %v2903
  %v3550 = vrcp.pop %v2906
  %v3551 = vrcp.pop %v2909
  %v3552 = vrcp.pop %v2912
  %v3553 = vrcp.pop %v2915
  %v3554 = vrcp.pop %v2918
  %v3555 = vrcp.pop %v2921
  %v3556 = vrcp.pop %v2924
  %v3557 = vrcp.pop %v2927
  %v3558 = vrcp.pop %v2930
  %v3559 = vrcp.pop %v2933
  %v3560 = vrcp.pop %v2936
  %v3561 = vrcp.pop %v2939
  %v3562 = vrcp.pop %v2942
  %v3563 = vrcp.pop %v2945
  %v3564 = vrcp.pop %v2948
  %v3565 = vrcp.pop %v2951
  %v3566 = vrcp.pop %v2954
  %v3567 = vmul.f32 %v3278, %v3535
  %v3568 = vmul.f32 %v3456, %v3535
  %v3569 = vmul.f32 %v3280, %v3536
  %v3570 = vmul.f32 %v3458, %v3536
  %v3571 = vmul.f32 %v3283, %v3537
  %v3572 = vmul.f32 %v3461, %v3537
  %v3573 = vmul.f32 %v3285, %v3538
  %v3574 = vmul.f32 %v3463, %v3538
  %v3575 = vmul.f32 %v3288, %v3539
  %v3576 = vmul.f32 %v3466, %v3539
  %v3577 = vmul.f32 %v3290, %v3540
  %v3578 = vmul.f32 %v3468, %v3540
  %v3579 = vmul.f32 %v3293, %v3541
  %v3580 = vmul.f32 %v3471, %v3541
  %v3581 = vmul.f32 %v3295, %v3542
  %v3582 = vmul.f32 %v3473, %v3542
  %v3583 = vmul.f32 %v3298, %v3543
  %v3584 = vmul.f32 %v3476, %v3543
  %v3585 = vmul.f32 %v3300, %v3544
  %v3586 = vmul.f32 %v3478, %v3544
  %v3587 = vmul.f32 %v3303, %v3545
  %v3588 = vmul.f32 %v3481, %v3545
  %v3589 = vmul.f32 %v3305, %v3546
  %v3590 = vmul.f32 %v3483, %v3546
  %v3591 = vmul.f32 %v3308, %v3547
  %v3592 = vmul.f32 %v3486, %v3547
  %v3593 = vmul.f32 %v3310, %v3548
  %v3594 = vmul.f32 %v3488, %v3548
  %v3595 = vmul.f32 %v3313, %v3549
  %v3596 = vmul.f32 %v3491, %v3549
  %v3597 = vmul.f32 %v3315, %v3550
  %v3598 = vmul.f32 %v3493, %v3550
  %v3599 = vmul.f32 %v3318, %v3551
  %v3600 = vmul.f32 %v3496, %v3551
  %v3601 = vmul.f32 %v3320, %v3552
  %v3602 = vmul.f32 %v3498, %v3552
  %v3603 = vmul.f32 %v3323, %v3553
  %v3604 = vmul.f32 %v3501, %v3553
  %v3605 = vmul.f32 %v3325, %v3554
  %v3606 = vmul.f32 %v3503, %v3554
  %v3607 = vmul.f32 %v3328, %v3555
  %v3608 = vmul.f32 %v3506, %v3555
  %v3609 = vmul.f32 %v3330, %v3556
  %v3610 = vmul.f32 %v3508, %v3556
  %v3611 = vmul.f32 %v3333, %v3557
  %v3612 = vmul.f32 %v3511, %v3557
  %v3613 = vmul.f32 %v3335, %v3558
  %v3614 = vmul.f32 %v3513, %v3558
  %v3615 = vmul.f32 %v3338, %v3559
  %v3616 = vmul.f32 %v3516, %v3559
  %v3617 = vmul.f32 %v3340, %v3560
  %v3618 = vmul.f32 %v3518, %v3560
  %v3619 = vmul.f32 %v3343, %v3561
  %v3620 = vmul.f32 %v3521, %v3561
  %v3621 = vmul.f32 %v3345, %v3562
  %v3622 = vmul.f32 %v3523, %v3562
  %v3623 = vmul.f32 %v3348, %v3563
  %v3624 = vmul.f32 %v3526, %v3563
  %v3625 = vmul.f32 %v3350, %v3564
  %v3626 = vmul.f32 %v3528, %v3564
  %v3627 = vmul.f32 %v3353, %v3565
  %v3628 = vmul.f32 %v3531, %v3565
  %v3629 = vmul.f32 %v3355, %v3566
  %v3630 = vmul.f32 %v3533, %v3566
  %v3631 = vld [vmem:[%s4 + $0x2] sm:$0x3]
  %v3633 = vperm.slane %v3631, 0
  %v3634 = vperm.slane %v3631, 1
  %v3637 = vadd.f32 %v3567, %v3633
  %v3638 = vadd.f32 %v3568, %v3634
  %v3639 = vadd.f32 %v3569, %v3633
  %v3640 = vadd.f32 %v3570, %v3634
  %v3641 = vadd.f32 %v3571, %v3633
  %v3642 = vadd.f32 %v3572, %v3634
  %v3643 = vadd.f32 %v3573, %v3633
  %v3644 = vadd.f32 %v3574, %v3634
  %v3645 = vadd.f32 %v3575, %v3633
  %v3646 = vadd.f32 %v3576, %v3634
  %v3647 = vadd.f32 %v3577, %v3633
  %v3648 = vadd.f32 %v3578, %v3634
  %v3649 = vadd.f32 %v3579, %v3633
  %v3650 = vadd.f32 %v3580, %v3634
  %v3651 = vadd.f32 %v3581, %v3633
  %v3652 = vadd.f32 %v3582, %v3634
  %v3653 = vadd.f32 %v3583, %v3633
  %v3654 = vadd.f32 %v3584, %v3634
  %v3655 = vadd.f32 %v3585, %v3633
  %v3656 = vadd.f32 %v3586, %v3634
  %v3657 = vadd.f32 %v3587, %v3633
  %v3658 = vadd.f32 %v3588, %v3634
  %v3659 = vadd.f32 %v3589, %v3633
  %v3660 = vadd.f32 %v3590, %v3634
  %v3661 = vadd.f32 %v3591, %v3633
  %v3662 = vadd.f32 %v3592, %v3634
  %v3663 = vadd.f32 %v3593, %v3633
  %v3664 = vadd.f32 %v3594, %v3634
  %v3665 = vadd.f32 %v3595, %v3633
  %v3666 = vadd.f32 %v3596, %v3634
  %v3667 = vadd.f32 %v3597, %v3633
  %v3668 = vadd.f32 %v3598, %v3634
  %v3669 = vadd.f32 %v3599, %v3633
  %v3670 = vadd.f32 %v3600, %v3634
  %v3671 = vadd.f32 %v3601, %v3633
  %v3672 = vadd.f32 %v3602, %v3634
  %v3673 = vadd.f32 %v3603, %v3633
  %v3674 = vadd.f32 %v3604, %v3634
  %v3675 = vadd.f32 %v3605, %v3633
  %v3676 = vadd.f32 %v3606, %v3634
  %v3677 = vadd.f32 %v3607, %v3633
  %v3678 = vadd.f32 %v3608, %v3634
  %v3679 = vadd.f32 %v3609, %v3633
  %v3680 = vadd.f32 %v3610, %v3634
  %v3681 = vadd.f32 %v3611, %v3633
  %v3682 = vadd.f32 %v3612, %v3634
  %v3683 = vadd.f32 %v3613, %v3633
  %v3684 = vadd.f32 %v3614, %v3634
  %v3685 = vadd.f32 %v3615, %v3633
  %v3686 = vadd.f32 %v3616, %v3634
  %v3687 = vadd.f32 %v3617, %v3633
  %v3688 = vadd.f32 %v3618, %v3634
  %v3689 = vadd.f32 %v3619, %v3633
  %v3690 = vadd.f32 %v3620, %v3634
  %v3691 = vadd.f32 %v3621, %v3633
  %v3692 = vadd.f32 %v3622, %v3634
  %v3693 = vadd.f32 %v3623, %v3633
  %v3694 = vadd.f32 %v3624, %v3634
  %v3695 = vadd.f32 %v3625, %v3633
  %v3696 = vadd.f32 %v3626, %v3634
  %v3697 = vadd.f32 %v3627, %v3633
  %v3698 = vadd.f32 %v3628, %v3634
  %v3699 = vadd.f32 %v3629, %v3633
  %v3700 = vadd.f32 %v3630, %v3634
  %v3701 = vmax.f32 %v3637, 0.0
  %v3702 = vmax.f32 %v3638, 0.0
  %v3703 = vmax.f32 %v3639, 0.0
  %v3704 = vmax.f32 %v3640, 0.0
  %v3705 = vmax.f32 %v3641, 0.0
  %v3706 = vmax.f32 %v3642, 0.0
  %v3707 = vmax.f32 %v3643, 0.0
  %v3708 = vmax.f32 %v3644, 0.0
  %v3709 = vmax.f32 %v3645, 0.0
  %v3710 = vmax.f32 %v3646, 0.0
  %v3711 = vmax.f32 %v3647, 0.0
  %v3712 = vmax.f32 %v3648, 0.0
  %v3713 = vmax.f32 %v3649, 0.0
  %v3714 = vmax.f32 %v3650, 0.0
  %v3715 = vmax.f32 %v3651, 0.0
  %v3716 = vmax.f32 %v3652, 0.0
  %v3717 = vmax.f32 %v3653, 0.0
  %v3718 = vmax.f32 %v3654, 0.0
  %v3719 = vmax.f32 %v3655, 0.0
  %v3720 = vmax.f32 %v3656, 0.0
  %v3721 = vmax.f32 %v3657, 0.0
  %v3722 = vmax.f32 %v3658, 0.0
  %v3723 = vmax.f32 %v3659, 0.0
  %v3724 = vmax.f32 %v3660, 0.0
  %v3725 = vmax.f32 %v3661, 0.0
  %v3726 = vmax.f32 %v3662, 0.0
  %v3727 = vmax.f32 %v3663, 0.0
  %v3728 = vmax.f32 %v3664, 0.0
  %v3729 = vmax.f32 %v3665, 0.0
  %v3730 = vmax.f32 %v3666, 0.0
  %v3731 = vmax.f32 %v3667, 0.0
  %v3732 = vmax.f32 %v3668, 0.0
  %v3733 = vmax.f32 %v3669, 0.0
  %v3734 = vmax.f32 %v3670, 0.0
  %v3735 = vmax.f32 %v3671, 0.0
  %v3736 = vmax.f32 %v3672, 0.0
  %v3737 = vmax.f32 %v3673, 0.0
  %v3738 = vmax.f32 %v3674, 0.0
  %v3739 = vmax.f32 %v3675, 0.0
  %v3740 = vmax.f32 %v3676, 0.0
  %v3741 = vmax.f32 %v3677, 0.0
  %v3742 = vmax.f32 %v3678, 0.0
  %v3743 = vmax.f32 %v3679, 0.0
  %v3744 = vmax.f32 %v3680, 0.0
  %v3745 = vmax.f32 %v3681, 0.0
  %v3746 = vmax.f32 %v3682, 0.0
  %v3747 = vmax.f32 %v3683, 0.0
  %v3748 = vmax.f32 %v3684, 0.0
  %v3749 = vmax.f32 %v3685, 0.0
  %v3750 = vmax.f32 %v3686, 0.0
  %v3751 = vmax.f32 %v3687, 0.0
  %v3752 = vmax.f32 %v3688, 0.0
  %v3753 = vmax.f32 %v3689, 0.0
  %v3754 = vmax.f32 %v3690, 0.0
  %v3755 = vmax.f32 %v3691, 0.0
  %v3756 = vmax.f32 %v3692, 0.0
  %v3757 = vmax.f32 %v3693, 0.0
  %v3758 = vmax.f32 %v3694, 0.0
  %v3759 = vmax.f32 %v3695, 0.0
  %v3760 = vmax.f32 %v3696, 0.0
  %v3761 = vmax.f32 %v3697, 0.0
  %v3762 = vmax.f32 %v3698, 0.0
  %v3763 = vmax.f32 %v3699, 0.0
  %v3764 = vmax.f32 %v3700, 0.0
  %v3765 = vpack.c.bf16 %v3702, %v3701
  %v3766 = vpack.c.bf16 %v3704, %v3703
  %v3767 = vpack.c.bf16 %v3706, %v3705
  %v3768 = vpack.c.bf16 %v3708, %v3707
  %v3769 = vpack.c.bf16 %v3710, %v3709
  %v3770 = vpack.c.bf16 %v3712, %v3711
  %v3771 = vpack.c.bf16 %v3714, %v3713
  %v3772 = vpack.c.bf16 %v3716, %v3715
  %v3773 = vpack.c.bf16 %v3718, %v3717
  %v3774 = vpack.c.bf16 %v3720, %v3719
  %v3775 = vpack.c.bf16 %v3722, %v3721
  %v3776 = vpack.c.bf16 %v3724, %v3723
  %v3777 = vpack.c.bf16 %v3726, %v3725
  %v3778 = vpack.c.bf16 %v3728, %v3727
  %v3779 = vpack.c.bf16 %v3730, %v3729
  %v3780 = vpack.c.bf16 %v3732, %v3731
  %v3781 = vpack.c.bf16 %v3734, %v3733
  %v3782 = vpack.c.bf16 %v3736, %v3735
  %v3783 = vpack.c.bf16 %v3738, %v3737
  %v3784 = vpack.c.bf16 %v3740, %v3739
  %v3785 = vpack.c.bf16 %v3742, %v3741
  %v3786 = vpack.c.bf16 %v3744, %v3743
  %v3787 = vpack.c.bf16 %v3746, %v3745
  %v3788 = vpack.c.bf16 %v3748, %v3747
  %v3789 = vpack.c.bf16 %v3750, %v3749
  %v3790 = vpack.c.bf16 %v3752, %v3751
  %v3791 = vpack.c.bf16 %v3754, %v3753
  %v3792 = vpack.c.bf16 %v3756, %v3755
  %v3793 = vpack.c.bf16 %v3758, %v3757
  %v3794 = vpack.c.bf16 %v3760, %v3759
  %v3795 = vpack.c.bf16 %v3762, %v3761
  %v3796 = vpack.c.bf16 %v3764, %v3763
  %3797 = vst [vmem:[#allocation2 + $0x8] sm:$0xff] %v3765
  %3798 = vst [vmem:[#allocation2 + $0x18] sm:$0xff] %v3766
  %3799 = vst [vmem:[#allocation2 + $0x28] sm:$0xff] %v3767
  %3800 = vst [vmem:[#allocation2 + $0x38] sm:$0xff] %v3768
  %3801 = vst [vmem:[#allocation2 + $0x48] sm:$0xff] %v3769
  %3802 = vst [vmem:[#allocation2 + $0x58] sm:$0xff] %v3770
  %3803 = vst [vmem:[#allocation2 + $0x68] sm:$0xff] %v3771
  %3804 = vst [vmem:[#allocation2 + $0x78] sm:$0xff] %v3772
  %3805 = vst [vmem:[#allocation2 + $0x88] sm:$0xff] %v3773
  %3806 = vst [vmem:[#allocation2 + $0x98] sm:$0xff] %v3774
  %3807 = vst [vmem:[#allocation2 + $0xa8] sm:$0xff] %v3775
  %3808 = vst [vmem:[#allocation2 + $0xb8] sm:$0xff] %v3776
  %3809 = vst [vmem:[#allocation2 + $0xc8] sm:$0xff] %v3777
  %3810 = vst [vmem:[#allocation2 + $0xd8] sm:$0xff] %v3778
  %3811 = vst [vmem:[#allocation2 + $0xe8] sm:$0xff] %v3779
  %3812 = vst [vmem:[#allocation2 + $0xf8] sm:$0xff] %v3780
  %3813 = vst [vmem:[#allocation2 + $0x108] sm:$0xff] %v3781
  %3814 = vst [vmem:[#allocation2 + $0x118] sm:$0xff] %v3782
  %3815 = vst [vmem:[#allocation2 + $0x128] sm:$0xff] %v3783
  %3816 = vst [vmem:[#allocation2 + $0x138] sm:$0xff] %v3784
  %3817 = vst [vmem:[#allocation2 + $0x148] sm:$0xff] %v3785
  %3818 = vst [vmem:[#allocation2 + $0x158] sm:$0xff] %v3786
  %3819 = vst [vmem:[#allocation2 + $0x168] sm:$0xff] %v3787
  %3820 = vst [vmem:[#allocation2 + $0x178] sm:$0xff] %v3788
  %3821 = vst [vmem:[#allocation2 + $0x188] sm:$0xff] %v3789
  %3822 = vst [vmem:[#allocation2 + $0x198] sm:$0xff] %v3790
  %3823 = vst [vmem:[#allocation2 + $0x1a8] sm:$0xff] %v3791
  %3824 = vst [vmem:[#allocation2 + $0x1b8] sm:$0xff] %v3792
  %3825 = vst [vmem:[#allocation2 + $0x1c8] sm:$0xff] %v3793
  %3826 = vst [vmem:[#allocation2 + $0x1d8] sm:$0xff] %v3794
  %3827 = vst [vmem:[#allocation2 + $0x1e8] sm:$0xff] %v3795
  %3828 = vst [vmem:[#allocation2 + $0x1f8] sm:$0xff] %v3796
  %v3829 = vld [vmem:[#allocation2] sm:$0xff]
  %v3830 = vld [vmem:[#allocation2 + $0x8] sm:$0xff]
  %v3831 = vld [vmem:[#allocation2 + $0x10] sm:$0xff]
  %v3832 = vld [vmem:[#allocation2 + $0x18] sm:$0xff]
  %v3833 = vld [vmem:[#allocation2 + $0x20] sm:$0xff]
  %v3834 = vld [vmem:[#allocation2 + $0x28] sm:$0xff]
  %v3835 = vld [vmem:[#allocation2 + $0x30] sm:$0xff]
  %v3836 = vld [vmem:[#allocation2 + $0x38] sm:$0xff]
  %v3837 = vld [vmem:[#allocation2 + $0x40] sm:$0xff]
  %v3838 = vld [vmem:[#allocation2 + $0x48] sm:$0xff]
  %v3839 = vld [vmem:[#allocation2 + $0x50] sm:$0xff]
  %v3840 = vld [vmem:[#allocation2 + $0x58] sm:$0xff]
  %v3841 = vld [vmem:[#allocation2 + $0x60] sm:$0xff]
  %v3842 = vld [vmem:[#allocation2 + $0x68] sm:$0xff]
  %v3843 = vld [vmem:[#allocation2 + $0x70] sm:$0xff]
  %v3844 = vld [vmem:[#allocation2 + $0x78] sm:$0xff]
  %v3845 = vld [vmem:[#allocation2 + $0x80] sm:$0xff]
  %v3846 = vld [vmem:[#allocation2 + $0x88] sm:$0xff]
  %v3847 = vld [vmem:[#allocation2 + $0x90] sm:$0xff]
  %v3848 = vld [vmem:[#allocation2 + $0x98] sm:$0xff]
  %v3849 = vld [vmem:[#allocation2 + $0xa0] sm:$0xff]
  %v3850 = vld [vmem:[#allocation2 + $0xa8] sm:$0xff]
  %v3851 = vld [vmem:[#allocation2 + $0xb0] sm:$0xff]
  %v3852 = vld [vmem:[#allocation2 + $0xb8] sm:$0xff]
  %v3853 = vld [vmem:[#allocation2 + $0xc0] sm:$0xff]
  %v3854 = vld [vmem:[#allocation2 + $0xc8] sm:$0xff]
  %v3855 = vld [vmem:[#allocation2 + $0xd0] sm:$0xff]
  %v3856 = vld [vmem:[#allocation2 + $0xd8] sm:$0xff]
  %v3857 = vld [vmem:[#allocation2 + $0xe0] sm:$0xff]
  %v3858 = vld [vmem:[#allocation2 + $0xe8] sm:$0xff]
  %v3859 = vld [vmem:[#allocation2 + $0xf0] sm:$0xff]
  %v3860 = vld [vmem:[#allocation2 + $0xf8] sm:$0xff]
  %v3861 = vld [vmem:[#allocation2 + $0x100] sm:$0xff]
  %v3862 = vld [vmem:[#allocation2 + $0x108] sm:$0xff]
  %v3863 = vld [vmem:[#allocation2 + $0x110] sm:$0xff]
  %v3864 = vld [vmem:[#allocation2 + $0x118] sm:$0xff]
  %v3865 = vld [vmem:[#allocation2 + $0x120] sm:$0xff]
  %v3866 = vld [vmem:[#allocation2 + $0x128] sm:$0xff]
  %v3867 = vld [vmem:[#allocation2 + $0x130] sm:$0xff]
  %v3868 = vld [vmem:[#allocation2 + $0x138] sm:$0xff]
  %v3869 = vld [vmem:[#allocation2 + $0x140] sm:$0xff]
  %v3870 = vld [vmem:[#allocation2 + $0x148] sm:$0xff]
  %v3871 = vld [vmem:[#allocation2 + $0x150] sm:$0xff]
  %v3872 = vld [vmem:[#allocation2 + $0x158] sm:$0xff]
  %v3873 = vld [vmem:[#allocation2 + $0x160] sm:$0xff]
  %v3874 = vld [vmem:[#allocation2 + $0x168] sm:$0xff]
  %v3875 = vld [vmem:[#allocation2 + $0x170] sm:$0xff]
  %v3876 = vld [vmem:[#allocation2 + $0x178] sm:$0xff]
  %v3877 = vld [vmem:[#allocation2 + $0x180] sm:$0xff]
  %v3878 = vld [vmem:[#allocation2 + $0x188] sm:$0xff]
  %v3879 = vld [vmem:[#allocation2 + $0x190] sm:$0xff]
  %v3880 = vld [vmem:[#allocation2 + $0x198] sm:$0xff]
  %v3881 = vld [vmem:[#allocation2 + $0x1a0] sm:$0xff]
  %v3882 = vld [vmem:[#allocation2 + $0x1a8] sm:$0xff]
  %v3883 = vld [vmem:[#allocation2 + $0x1b0] sm:$0xff]
  %v3884 = vld [vmem:[#allocation2 + $0x1b8] sm:$0xff]
  %v3885 = vld [vmem:[#allocation2 + $0x1c0] sm:$0xff]
  %v3886 = vld [vmem:[#allocation2 + $0x1c8] sm:$0xff]
  %v3887 = vld [vmem:[#allocation2 + $0x1d0] sm:$0xff]
  %v3888 = vld [vmem:[#allocation2 + $0x1d8] sm:$0xff]
  %v3889 = vld [vmem:[#allocation2 + $0x1e0] sm:$0xff]
  %v3890 = vld [vmem:[#allocation2 + $0x1e8] sm:$0xff]
  %v3891 = vld [vmem:[#allocation2 + $0x1f0] sm:$0xff]
  %v3892 = vld [vmem:[#allocation2 + $0x1f8] sm:$0xff]
  %v3893 = vld [vmem:[%s5] sm:$0xff]
  %v3894 = vld [vmem:[%s5 + $0x8] sm:$0xff]
  %v3895 = vld [vmem:[%s5 + $0x10] sm:$0xff]
  %v3896 = vld [vmem:[%s5 + $0x18] sm:$0xff]
  %v3897 = vld [vmem:[%s5 + $0x20] sm:$0xff]
  %v3898 = vld [vmem:[%s5 + $0x28] sm:$0xff]
  %v3899 = vld [vmem:[%s5 + $0x30] sm:$0xff]
  %v3900 = vld [vmem:[%s5 + $0x38] sm:$0xff]
  %v3901 = vld [vmem:[%s5 + $0x40] sm:$0xff]
  %v3902 = vld [vmem:[%s5 + $0x48] sm:$0xff]
  %v3903 = vld [vmem:[%s5 + $0x50] sm:$0xff]
  %v3904 = vld [vmem:[%s5 + $0x58] sm:$0xff]
  %v3905 = vld [vmem:[%s5 + $0x60] sm:$0xff]
  %v3906 = vld [vmem:[%s5 + $0x68] sm:$0xff]
  %v3907 = vld [vmem:[%s5 + $0x70] sm:$0xff]
  %v3908 = vld [vmem:[%s5 + $0x78] sm:$0xff]
  %v3909 = vld [vmem:[%s5 + $0x80] sm:$0xff]
  %v3910 = vld [vmem:[%s5 + $0x88] sm:$0xff]
  %v3911 = vld [vmem:[%s5 + $0x90] sm:$0xff]
  %v3912 = vld [vmem:[%s5 + $0x98] sm:$0xff]
  %v3913 = vld [vmem:[%s5 + $0xa0] sm:$0xff]
  %v3914 = vld [vmem:[%s5 + $0xa8] sm:$0xff]
  %v3915 = vld [vmem:[%s5 + $0xb0] sm:$0xff]
  %v3916 = vld [vmem:[%s5 + $0xb8] sm:$0xff]
  %v3917 = vld [vmem:[%s5 + $0xc0] sm:$0xff]
  %v3918 = vld [vmem:[%s5 + $0xc8] sm:$0xff]
  %v3919 = vld [vmem:[%s5 + $0xd0] sm:$0xff]
  %v3920 = vld [vmem:[%s5 + $0xd8] sm:$0xff]
  %v3921 = vld [vmem:[%s5 + $0xe0] sm:$0xff]
  %v3922 = vld [vmem:[%s5 + $0xe8] sm:$0xff]
  %v3923 = vld [vmem:[%s5 + $0xf0] sm:$0xff]
  %v3924 = vld [vmem:[%s5 + $0xf8] sm:$0xff]
  %v3925 = vld [vmem:[%s5 + $0x100] sm:$0xff]
  %v3926 = vld [vmem:[%s5 + $0x108] sm:$0xff]
  %v3927 = vld [vmem:[%s5 + $0x110] sm:$0xff]
  %v3928 = vld [vmem:[%s5 + $0x118] sm:$0xff]
  %v3929 = vld [vmem:[%s5 + $0x120] sm:$0xff]
  %v3930 = vld [vmem:[%s5 + $0x128] sm:$0xff]
  %v3931 = vld [vmem:[%s5 + $0x130] sm:$0xff]
  %v3932 = vld [vmem:[%s5 + $0x138] sm:$0xff]
  %v3933 = vld [vmem:[%s5 + $0x140] sm:$0xff]
  %v3934 = vld [vmem:[%s5 + $0x148] sm:$0xff]
  %v3935 = vld [vmem:[%s5 + $0x150] sm:$0xff]
  %v3936 = vld [vmem:[%s5 + $0x158] sm:$0xff]
  %v3937 = vld [vmem:[%s5 + $0x160] sm:$0xff]
  %v3938 = vld [vmem:[%s5 + $0x168] sm:$0xff]
  %v3939 = vld [vmem:[%s5 + $0x170] sm:$0xff]
  %v3940 = vld [vmem:[%s5 + $0x178] sm:$0xff]
  %v3941 = vld [vmem:[%s5 + $0x180] sm:$0xff]
  %v3942 = vld [vmem:[%s5 + $0x188] sm:$0xff]
  %v3943 = vld [vmem:[%s5 + $0x190] sm:$0xff]
  %v3944 = vld [vmem:[%s5 + $0x198] sm:$0xff]
  %v3945 = vld [vmem:[%s5 + $0x1a0] sm:$0xff]
  %v3946 = vld [vmem:[%s5 + $0x1a8] sm:$0xff]
  %v3947 = vld [vmem:[%s5 + $0x1b0] sm:$0xff]
  %v3948 = vld [vmem:[%s5 + $0x1b8] sm:$0xff]
  %v3949 = vld [vmem:[%s5 + $0x1c0] sm:$0xff]
  %v3950 = vld [vmem:[%s5 + $0x1c8] sm:$0xff]
  %v3951 = vld [vmem:[%s5 + $0x1d0] sm:$0xff]
  %v3952 = vld [vmem:[%s5 + $0x1d8] sm:$0xff]
  %v3953 = vld [vmem:[%s5 + $0x1e0] sm:$0xff]
  %v3954 = vld [vmem:[%s5 + $0x1e8] sm:$0xff]
  %v3955 = vld [vmem:[%s5 + $0x1f0] sm:$0xff]
  %v3956 = vld [vmem:[%s5 + $0x1f8] sm:$0xff]
  %v3957 = vld [vmem:[%s6] sm:$0x3]
  %v3959 = vperm.slane %v3957, 0
  %v3960 = vperm.slane %v3957, 1
  %v4027 = vunpack.c.l.b16 %v3829
  %v4028 = vunpack.c.h.b16 %v3829
  %v4029 = vunpack.c.l.b16 %v3830
  %v4030 = vunpack.c.h.b16 %v3830
  %v4031 = vunpack.c.l.b16 %v3831
  %v4032 = vunpack.c.h.b16 %v3831
  %v4033 = vunpack.c.l.b16 %v3832
  %v4034 = vunpack.c.h.b16 %v3832
  %v4035 = vunpack.c.l.b16 %v3833
  %v4036 = vunpack.c.h.b16 %v3833
  %v4037 = vunpack.c.l.b16 %v3834
  %v4038 = vunpack.c.h.b16 %v3834
  %v4039 = vunpack.c.l.b16 %v3835
  %v4040 = vunpack.c.h.b16 %v3835
  %v4041 = vunpack.c.l.b16 %v3836
  %v4042 = vunpack.c.h.b16 %v3836
  %v4043 = vunpack.c.l.b16 %v3837
  %v4044 = vunpack.c.h.b16 %v3837
  %v4045 = vunpack.c.l.b16 %v3838
  %v4046 = vunpack.c.h.b16 %v3838
  %v4047 = vunpack.c.l.b16 %v3839
  %v4048 = vunpack.c.h.b16 %v3839
  %v4049 = vunpack.c.l.b16 %v3840
  %v4050 = vunpack.c.h.b16 %v3840
  %v4051 = vunpack.c.l.b16 %v3841
  %v4052 = vunpack.c.h.b16 %v3841
  %v4053 = vunpack.c.l.b16 %v3842
  %v4054 = vunpack.c.h.b16 %v3842
  %v4055 = vunpack.c.l.b16 %v3843
  %v4056 = vunpack.c.h.b16 %v3843
  %v4057 = vunpack.c.l.b16 %v3844
  %v4058 = vunpack.c.h.b16 %v3844
  %v4059 = vunpack.c.l.b16 %v3845
  %v4060 = vunpack.c.h.b16 %v3845
  %v4061 = vunpack.c.l.b16 %v3846
  %v4062 = vunpack.c.h.b16 %v3846
  %v4063 = vunpack.c.l.b16 %v3847
  %v4064 = vunpack.c.h.b16 %v3847
  %v4065 = vunpack.c.l.b16 %v3848
  %v4066 = vunpack.c.h.b16 %v3848
  %v4067 = vunpack.c.l.b16 %v3849
  %v4068 = vunpack.c.h.b16 %v3849
  %v4069 = vunpack.c.l.b16 %v3850
  %v4070 = vunpack.c.h.b16 %v3850
  %v4071 = vunpack.c.l.b16 %v3851
  %v4072 = vunpack.c.h.b16 %v3851
  %v4073 = vunpack.c.l.b16 %v3852
  %v4074 = vunpack.c.h.b16 %v3852
  %v4075 = vunpack.c.l.b16 %v3853
  %v4076 = vunpack.c.h.b16 %v3853
  %v4077 = vunpack.c.l.b16 %v3854
  %v4078 = vunpack.c.h.b16 %v3854
  %v4079 = vunpack.c.l.b16 %v3855
  %v4080 = vunpack.c.h.b16 %v3855
  %v4081 = vunpack.c.l.b16 %v3856
  %v4082 = vunpack.c.h.b16 %v3856
  %v4083 = vunpack.c.l.b16 %v3857
  %v4084 = vunpack.c.h.b16 %v3857
  %v4085 = vunpack.c.l.b16 %v3858
  %v4086 = vunpack.c.h.b16 %v3858
  %v4087 = vunpack.c.l.b16 %v3859
  %v4088 = vunpack.c.h.b16 %v3859
  %v4089 = vunpack.c.l.b16 %v3860
  %v4090 = vunpack.c.h.b16 %v3860
  %v4091 = vunpack.c.l.b16 %v3861
  %v4092 = vunpack.c.h.b16 %v3861
  %v4093 = vunpack.c.l.b16 %v3862
  %v4094 = vunpack.c.h.b16 %v3862
  %v4095 = vunpack.c.l.b16 %v3863
  %v4096 = vunpack.c.h.b16 %v3863
  %v4097 = vunpack.c.l.b16 %v3864
  %v4098 = vunpack.c.h.b16 %v3864
  %v4099 = vunpack.c.l.b16 %v3865
  %v4100 = vunpack.c.h.b16 %v3865
  %v4101 = vunpack.c.l.b16 %v3866
  %v4102 = vunpack.c.h.b16 %v3866
  %v4103 = vunpack.c.l.b16 %v3867
  %v4104 = vunpack.c.h.b16 %v3867
  %v4105 = vunpack.c.l.b16 %v3868
  %v4106 = vunpack.c.h.b16 %v3868
  %v4107 = vunpack.c.l.b16 %v3869
  %v4108 = vunpack.c.h.b16 %v3869
  %v4109 = vunpack.c.l.b16 %v3870
  %v4110 = vunpack.c.h.b16 %v3870
  %v4111 = vunpack.c.l.b16 %v3871
  %v4112 = vunpack.c.h.b16 %v3871
  %v4113 = vunpack.c.l.b16 %v3872
  %v4114 = vunpack.c.h.b16 %v3872
  %v4115 = vunpack.c.l.b16 %v3873
  %v4116 = vunpack.c.h.b16 %v3873
  %v4117 = vunpack.c.l.b16 %v3874
  %v4118 = vunpack.c.h.b16 %v3874
  %v4119 = vunpack.c.l.b16 %v3875
  %v4120 = vunpack.c.h.b16 %v3875
  %v4121 = vunpack.c.l.b16 %v3876
  %v4122 = vunpack.c.h.b16 %v3876
  %v4123 = vunpack.c.l.b16 %v3877
  %v4124 = vunpack.c.h.b16 %v3877
  %v4125 = vunpack.c.l.b16 %v3878
  %v4126 = vunpack.c.h.b16 %v3878
  %v4127 = vunpack.c.l.b16 %v3879
  %v4128 = vunpack.c.h.b16 %v3879
  %v4129 = vunpack.c.l.b16 %v3880
  %v4130 = vunpack.c.h.b16 %v3880
  %v4131 = vunpack.c.l.b16 %v3881
  %v4132 = vunpack.c.h.b16 %v3881
  %v4133 = vunpack.c.l.b16 %v3882
  %v4134 = vunpack.c.h.b16 %v3882
  %v4135 = vunpack.c.l.b16 %v3883
  %v4136 = vunpack.c.h.b16 %v3883
  %v4137 = vunpack.c.l.b16 %v3884
  %v4138 = vunpack.c.h.b16 %v3884
  %v4139 = vunpack.c.l.b16 %v3885
  %v4140 = vunpack.c.h.b16 %v3885
  %v4141 = vunpack.c.l.b16 %v3886
  %v4142 = vunpack.c.h.b16 %v3886
  %v4143 = vunpack.c.l.b16 %v3887
  %v4144 = vunpack.c.h.b16 %v3887
  %v4145 = vunpack.c.l.b16 %v3888
  %v4146 = vunpack.c.h.b16 %v3888
  %v4147 = vunpack.c.l.b16 %v3889
  %v4148 = vunpack.c.h.b16 %v3889
  %v4149 = vunpack.c.l.b16 %v3890
  %v4150 = vunpack.c.h.b16 %v3890
  %v4151 = vunpack.c.l.b16 %v3891
  %v4152 = vunpack.c.h.b16 %v3891
  %v4153 = vunpack.c.l.b16 %v3892
  %v4154 = vunpack.c.h.b16 %v3892
  %v4155 = vpack.c.b16 %v4031, %v4027
  %v4156 = vpack.c.b16 %v4032, %v4028
  %v4157 = vpack.c.b16 %v4033, %v4029
  %v4158 = vpack.c.b16 %v4034, %v4030
  %v4159 = vpack.c.b16 %v4039, %v4035
  %v4160 = vpack.c.b16 %v4040, %v4036
  %v4161 = vpack.c.b16 %v4041, %v4037
  %v4162 = vpack.c.b16 %v4042, %v4038
  %v4163 = vpack.c.b16 %v4047, %v4043
  %v4164 = vpack.c.b16 %v4048, %v4044
  %v4165 = vpack.c.b16 %v4049, %v4045
  %v4166 = vpack.c.b16 %v4050, %v4046
  %v4167 = vpack.c.b16 %v4055, %v4051
  %v4168 = vpack.c.b16 %v4056, %v4052
  %v4169 = vpack.c.b16 %v4057, %v4053
  %v4170 = vpack.c.b16 %v4058, %v4054
  %v4171 = vpack.c.b16 %v4063, %v4059
  %v4172 = vpack.c.b16 %v4064, %v4060
  %v4173 = vpack.c.b16 %v4065, %v4061
  %v4174 = vpack.c.b16 %v4066, %v4062
  %v4175 = vpack.c.b16 %v4071, %v4067
  %v4176 = vpack.c.b16 %v4072, %v4068
  %v4177 = vpack.c.b16 %v4073, %v4069
  %v4178 = vpack.c.b16 %v4074, %v4070
  %v4179 = vpack.c.b16 %v4079, %v4075
  %v4180 = vpack.c.b16 %v4080, %v4076
  %v4181 = vpack.c.b16 %v4081, %v4077
  %v4182 = vpack.c.b16 %v4082, %v4078
  %v4183 = vpack.c.b16 %v4087, %v4083
  %v4184 = vpack.c.b16 %v4088, %v4084
  %v4185 = vpack.c.b16 %v4089, %v4085
  %v4186 = vpack.c.b16 %v4090, %v4086
  %v4187 = vpack.c.b16 %v4095, %v4091
  %v4188 = vpack.c.b16 %v4096, %v4092
  %v4189 = vpack.c.b16 %v4097, %v4093
  %v4190 = vpack.c.b16 %v4098, %v4094
  %v4191 = vpack.c.b16 %v4103, %v4099
  %v4192 = vpack.c.b16 %v4104, %v4100
  %v4193 = vpack.c.b16 %v4105, %v4101
  %v4194 = vpack.c.b16 %v4106, %v4102
  %v4195 = vpack.c.b16 %v4111, %v4107
  %v4196 = vpack.c.b16 %v4112, %v4108
  %v4197 = vpack.c.b16 %v4113, %v4109
  %v4198 = vpack.c.b16 %v4114, %v4110
  %v4199 = vpack.c.b16 %v4119, %v4115
  %v4200 = vpack.c.b16 %v4120, %v4116
  %v4201 = vpack.c.b16 %v4121, %v4117
  %v4202 = vpack.c.b16 %v4122, %v4118
  %v4203 = vpack.c.b16 %v4127, %v4123
  %v4204 = vpack.c.b16 %v4128, %v4124
  %v4205 = vpack.c.b16 %v4129, %v4125
  %v4206 = vpack.c.b16 %v4130, %v4126
  %v4207 = vpack.c.b16 %v4135, %v4131
  %v4208 = vpack.c.b16 %v4136, %v4132
  %v4209 = vpack.c.b16 %v4137, %v4133
  %v4210 = vpack.c.b16 %v4138, %v4134
  %v4211 = vpack.c.b16 %v4143, %v4139
  %v4212 = vpack.c.b16 %v4144, %v4140
  %v4213 = vpack.c.b16 %v4145, %v4141
  %v4214 = vpack.c.b16 %v4146, %v4142
  %v4215 = vpack.c.b16 %v4151, %v4147
  %v4216 = vpack.c.b16 %v4152, %v4148
  %v4217 = vpack.c.b16 %v4153, %v4149
  %v4218 = vpack.c.b16 %v4154, %v4150
  %v4347 = vunpack.c.l.b16 %v3893
  %v4348 = vunpack.c.h.b16 %v3893
  %v4349 = vunpack.c.l.b16 %v3894
  %v4350 = vunpack.c.h.b16 %v3894
  %v4351 = vunpack.c.l.b16 %v3895
  %v4352 = vunpack.c.h.b16 %v3895
  %v4353 = vunpack.c.l.b16 %v3896
  %v4354 = vunpack.c.h.b16 %v3896
  %v4355 = vunpack.c.l.b16 %v3897
  %v4356 = vunpack.c.h.b16 %v3897
  %v4357 = vunpack.c.l.b16 %v3898
  %v4358 = vunpack.c.h.b16 %v3898
  %v4359 = vunpack.c.l.b16 %v3899
  %v4360 = vunpack.c.h.b16 %v3899
  %v4361 = vunpack.c.l.b16 %v3900
  %v4362 = vunpack.c.h.b16 %v3900
  %v4363 = vunpack.c.l.b16 %v3901
  %v4364 = vunpack.c.h.b16 %v3901
  %v4365 = vunpack.c.l.b16 %v3902
  %v4366 = vunpack.c.h.b16 %v3902
  %v4367 = vunpack.c.l.b16 %v3903
  %v4368 = vunpack.c.h.b16 %v3903
  %v4369 = vunpack.c.l.b16 %v3904
  %v4370 = vunpack.c.h.b16 %v3904
  %v4371 = vunpack.c.l.b16 %v3905
  %v4372 = vunpack.c.h.b16 %v3905
  %v4373 = vunpack.c.l.b16 %v3906
  %v4374 = vunpack.c.h.b16 %v3906
  %v4375 = vunpack.c.l.b16 %v3907
  %v4376 = vunpack.c.h.b16 %v3907
  %v4377 = vunpack.c.l.b16 %v3908
  %v4378 = vunpack.c.h.b16 %v3908
  %v4379 = vunpack.c.l.b16 %v3909
  %v4380 = vunpack.c.h.b16 %v3909
  %v4381 = vunpack.c.l.b16 %v3910
  %v4382 = vunpack.c.h.b16 %v3910
  %v4383 = vunpack.c.l.b16 %v3911
  %v4384 = vunpack.c.h.b16 %v3911
  %v4385 = vunpack.c.l.b16 %v3912
  %v4386 = vunpack.c.h.b16 %v3912
  %v4387 = vunpack.c.l.b16 %v3913
  %v4388 = vunpack.c.h.b16 %v3913
  %v4389 = vunpack.c.l.b16 %v3914
  %v4390 = vunpack.c.h.b16 %v3914
  %v4391 = vunpack.c.l.b16 %v3915
  %v4392 = vunpack.c.h.b16 %v3915
  %v4393 = vunpack.c.l.b16 %v3916
  %v4394 = vunpack.c.h.b16 %v3916
  %v4395 = vunpack.c.l.b16 %v3917
  %v4396 = vunpack.c.h.b16 %v3917
  %v4397 = vunpack.c.l.b16 %v3918
  %v4398 = vunpack.c.h.b16 %v3918
  %v4399 = vunpack.c.l.b16 %v3919
  %v4400 = vunpack.c.h.b16 %v3919
  %v4401 = vunpack.c.l.b16 %v3920
  %v4402 = vunpack.c.h.b16 %v3920
  %v4403 = vunpack.c.l.b16 %v3921
  %v4404 = vunpack.c.h.b16 %v3921
  %v4405 = vunpack.c.l.b16 %v3922
  %v4406 = vunpack.c.h.b16 %v3922
  %v4407 = vunpack.c.l.b16 %v3923
  %v4408 = vunpack.c.h.b16 %v3923
  %v4409 = vunpack.c.l.b16 %v3924
  %v4410 = vunpack.c.h.b16 %v3924
  %v4411 = vunpack.c.l.b16 %v3925
  %v4412 = vunpack.c.h.b16 %v3925
  %v4413 = vunpack.c.l.b16 %v3926
  %v4414 = vunpack.c.h.b16 %v3926
  %v4415 = vunpack.c.l.b16 %v3927
  %v4416 = vunpack.c.h.b16 %v3927
  %v4417 = vunpack.c.l.b16 %v3928
  %v4418 = vunpack.c.h.b16 %v3928
  %v4419 = vunpack.c.l.b16 %v3929
  %v4420 = vunpack.c.h.b16 %v3929
  %v4421 = vunpack.c.l.b16 %v3930
  %v4422 = vunpack.c.h.b16 %v3930
  %v4423 = vunpack.c.l.b16 %v3931
  %v4424 = vunpack.c.h.b16 %v3931
  %v4425 = vunpack.c.l.b16 %v3932
  %v4426 = vunpack.c.h.b16 %v3932
  %v4427 = vunpack.c.l.b16 %v3933
  %v4428 = vunpack.c.h.b16 %v3933
  %v4429 = vunpack.c.l.b16 %v3934
  %v4430 = vunpack.c.h.b16 %v3934
  %v4431 = vunpack.c.l.b16 %v3935
  %v4432 = vunpack.c.h.b16 %v3935
  %v4433 = vunpack.c.l.b16 %v3936
  %v4434 = vunpack.c.h.b16 %v3936
  %v4435 = vunpack.c.l.b16 %v3937
  %v4436 = vunpack.c.h.b16 %v3937
  %v4437 = vunpack.c.l.b16 %v3938
  %v4438 = vunpack.c.h.b16 %v3938
  %v4439 = vunpack.c.l.b16 %v3939
  %v4440 = vunpack.c.h.b16 %v3939
  %v4441 = vunpack.c.l.b16 %v3940
  %v4442 = vunpack.c.h.b16 %v3940
  %v4443 = vunpack.c.l.b16 %v3941
  %v4444 = vunpack.c.h.b16 %v3941
  %v4445 = vunpack.c.l.b16 %v3942
  %v4446 = vunpack.c.h.b16 %v3942
  %v4447 = vunpack.c.l.b16 %v3943
  %v4448 = vunpack.c.h.b16 %v3943
  %v4449 = vunpack.c.l.b16 %v3944
  %v4450 = vunpack.c.h.b16 %v3944
  %v4451 = vunpack.c.l.b16 %v3945
  %v4452 = vunpack.c.h.b16 %v3945
  %v4453 = vunpack.c.l.b16 %v3946
  %v4454 = vunpack.c.h.b16 %v3946
  %v4455 = vunpack.c.l.b16 %v3947
  %v4456 = vunpack.c.h.b16 %v3947
  %v4457 = vunpack.c.l.b16 %v3948
  %v4458 = vunpack.c.h.b16 %v3948
  %v4459 = vunpack.c.l.b16 %v3949
  %v4460 = vunpack.c.h.b16 %v3949
  %v4461 = vunpack.c.l.b16 %v3950
  %v4462 = vunpack.c.h.b16 %v3950
  %v4463 = vunpack.c.l.b16 %v3951
  %v4464 = vunpack.c.h.b16 %v3951
  %v4465 = vunpack.c.l.b16 %v3952
  %v4466 = vunpack.c.h.b16 %v3952
  %v4467 = vunpack.c.l.b16 %v3953
  %v4468 = vunpack.c.h.b16 %v3953
  %v4469 = vunpack.c.l.b16 %v3954
  %v4470 = vunpack.c.h.b16 %v3954
  %v4471 = vunpack.c.l.b16 %v3955
  %v4472 = vunpack.c.h.b16 %v3955
  %v4473 = vunpack.c.l.b16 %v3956
  %v4474 = vunpack.c.h.b16 %v3956
  %v4475 = vpack.c.b16 %v4349, %v4347
  %v4476 = vpack.c.b16 %v4350, %v4348
  %v4477 = vpack.c.b16 %v4353, %v4351
  %v4478 = vpack.c.b16 %v4354, %v4352
  %v4479 = vpack.c.b16 %v4357, %v4355
  %v4480 = vpack.c.b16 %v4358, %v4356
  %v4481 = vpack.c.b16 %v4361, %v4359
  %v4482 = vpack.c.b16 %v4362, %v4360
  %v4483 = vpack.c.b16 %v4365, %v4363
  %v4484 = vpack.c.b16 %v4366, %v4364
  %v4485 = vpack.c.b16 %v4369, %v4367
  %v4486 = vpack.c.b16 %v4370, %v4368
  %v4487 = vpack.c.b16 %v4373, %v4371
  %v4488 = vpack.c.b16 %v4374, %v4372
  %v4489 = vpack.c.b16 %v4377, %v4375
  %v4490 = vpack.c.b16 %v4378, %v4376
  %v4491 = vpack.c.b16 %v4381, %v4379
  %v4492 = vpack.c.b16 %v4382, %v4380
  %v4493 = vpack.c.b16 %v4385, %v4383
  %v4494 = vpack.c.b16 %v4386, %v4384
  %v4495 = vpack.c.b16 %v4389, %v4387
  %v4496 = vpack.c.b16 %v4390, %v4388
  %v4497 = vpack.c.b16 %v4393, %v4391
  %v4498 = vpack.c.b16 %v4394, %v4392
  %v4499 = vpack.c.b16 %v4397, %v4395
  %v4500 = vpack.c.b16 %v4398, %v4396
  %v4501 = vpack.c.b16 %v4401, %v4399
  %v4502 = vpack.c.b16 %v4402, %v4400
  %v4503 = vpack.c.b16 %v4405, %v4403
  %v4504 = vpack.c.b16 %v4406, %v4404
  %v4505 = vpack.c.b16 %v4409, %v4407
  %v4506 = vpack.c.b16 %v4410, %v4408
  %v4507 = vpack.c.b16 %v4413, %v4411
  %v4508 = vpack.c.b16 %v4414, %v4412
  %v4509 = vpack.c.b16 %v4417, %v4415
  %v4510 = vpack.c.b16 %v4418, %v4416
  %v4511 = vpack.c.b16 %v4421, %v4419
  %v4512 = vpack.c.b16 %v4422, %v4420
  %v4513 = vpack.c.b16 %v4425, %v4423
  %v4514 = vpack.c.b16 %v4426, %v4424
  %v4515 = vpack.c.b16 %v4429, %v4427
  %v4516 = vpack.c.b16 %v4430, %v4428
  %v4517 = vpack.c.b16 %v4433, %v4431
  %v4518 = vpack.c.b16 %v4434, %v4432
  %v4519 = vpack.c.b16 %v4437, %v4435
  %v4520 = vpack.c.b16 %v4438, %v4436
  %v4521 = vpack.c.b16 %v4441, %v4439
  %v4522 = vpack.c.b16 %v4442, %v4440
  %v4523 = vpack.c.b16 %v4445, %v4443
  %v4524 = vpack.c.b16 %v4446, %v4444
  %v4525 = vpack.c.b16 %v4449, %v4447
  %v4526 = vpack.c.b16 %v4450, %v4448
  %v4527 = vpack.c.b16 %v4453, %v4451
  %v4528 = vpack.c.b16 %v4454, %v4452
  %v4529 = vpack.c.b16 %v4457, %v4455
  %v4530 = vpack.c.b16 %v4458, %v4456
  %v4531 = vpack.c.b16 %v4461, %v4459
  %v4532 = vpack.c.b16 %v4462, %v4460
  %v4533 = vpack.c.b16 %v4465, %v4463
  %v4534 = vpack.c.b16 %v4466, %v4464
  %v4535 = vpack.c.b16 %v4469, %v4467
  %v4536 = vpack.c.b16 %v4470, %v4468
  %v4537 = vpack.c.b16 %v4473, %v4471
  %v4538 = vpack.c.b16 %v4474, %v4472
  %4603 = vmatpush.bf16.msra.mxu0 %v4489
  %4604 = vmatpush.bf16.msra.mxu0 %v4487
  %4605 = vmatpush.bf16.msra.mxu0 %v4485
  %4606 = vmatpush.bf16.msra.mxu0 %v4483
  %4607 = vmatpush.bf16.msra.mxu0 %v4481
  %4608 = vmatpush.bf16.msra.mxu0 %v4479
  %4609 = vmatpush.bf16.msra.mxu0 %v4477
  %4610 = vmatpush.bf16.msra.mxu0 %v4475
  %4611 = vmatmul.bf16.gmra.mxu0 %v4155
  %v4612 = vpop.f32.mrf.mxu0
  %v4613 = vadd.f32 %v3959, %v4612
  %v4614 = vpop.f32.mrf.mxu0
  %v4615 = vadd.f32 %v3959, %v4614
  %4616 = vmatmul.bf16.gmra.mxu0 %v4159
  %v4617 = vpop.f32.mrf.mxu0
  %v4618 = vadd.f32 %v3959, %v4617
  %v4619 = vpop.f32.mrf.mxu0
  %v4620 = vadd.f32 %v3959, %v4619
  %4621 = vmatmul.bf16.gmra.mxu0 %v4163
  %v4622 = vpop.f32.mrf.mxu0
  %v4623 = vadd.f32 %v3959, %v4622
  %v4624 = vpop.f32.mrf.mxu0
  %v4625 = vadd.f32 %v3959, %v4624
  %4626 = vmatmul.bf16.gmra.mxu0 %v4167
  %v4627 = vpop.f32.mrf.mxu0
  %v4628 = vadd.f32 %v3959, %v4627
  %v4629 = vpop.f32.mrf.mxu0
  %v4630 = vadd.f32 %v3959, %v4629
  %4631 = vmatmul.bf16.gmra.mxu0 %v4171
  %v4632 = vpop.f32.mrf.mxu0
  %v4633 = vadd.f32 %v3959, %v4632
  %v4634 = vpop.f32.mrf.mxu0
  %v4635 = vadd.f32 %v3959, %v4634
  %4636 = vmatmul.bf16.gmra.mxu0 %v4175
  %v4637 = vpop.f32.mrf.mxu0
  %v4638 = vadd.f32 %v3959, %v4637
  %v4639 = vpop.f32.mrf.mxu0
  %v4640 = vadd.f32 %v3959, %v4639
  %4641 = vmatmul.bf16.gmra.mxu0 %v4179
  %v4642 = vpop.f32.mrf.mxu0
  %v4643 = vadd.f32 %v3959, %v4642
  %v4644 = vpop.f32.mrf.mxu0
  %v4645 = vadd.f32 %v3959, %v4644
  %4646 = vmatmul.bf16.gmra.mxu0 %v4183
  %v4647 = vpop.f32.mrf.mxu0
  %v4648 = vadd.f32 %v3959, %v4647
  %v4649 = vpop.f32.mrf.mxu0
  %v4650 = vadd.f32 %v3959, %v4649
  %4651 = vmatmul.bf16.gmra.mxu0 %v4187
  %v4652 = vpop.f32.mrf.mxu0
  %v4653 = vadd.f32 %v3959, %v4652
  %v4654 = vpop.f32.mrf.mxu0
  %v4655 = vadd.f32 %v3959, %v4654
  %4656 = vmatmul.bf16.gmra.mxu0 %v4191
  %v4657 = vpop.f32.mrf.mxu0
  %v4658 = vadd.f32 %v3959, %v4657
  %v4659 = vpop.f32.mrf.mxu0
  %v4660 = vadd.f32 %v3959, %v4659
  %4661 = vmatmul.bf16.gmra.mxu0 %v4195
  %v4662 = vpop.f32.mrf.mxu0
  %v4663 = vadd.f32 %v3959, %v4662
  %v4664 = vpop.f32.mrf.mxu0
  %v4665 = vadd.f32 %v3959, %v4664
  %4666 = vmatmul.bf16.gmra.mxu0 %v4199
  %v4667 = vpop.f32.mrf.mxu0
  %v4668 = vadd.f32 %v3959, %v4667
  %v4669 = vpop.f32.mrf.mxu0
  %v4670 = vadd.f32 %v3959, %v4669
  %4671 = vmatmul.bf16.gmra.mxu0 %v4203
  %v4672 = vpop.f32.mrf.mxu0
  %v4673 = vadd.f32 %v3959, %v4672
  %v4674 = vpop.f32.mrf.mxu0
  %v4675 = vadd.f32 %v3959, %v4674
  %4676 = vmatmul.bf16.gmra.mxu0 %v4207
  %v4677 = vpop.f32.mrf.mxu0
  %v4678 = vadd.f32 %v3959, %v4677
  %v4679 = vpop.f32.mrf.mxu0
  %v4680 = vadd.f32 %v3959, %v4679
  %4681 = vmatmul.bf16.gmra.mxu0 %v4211
  %v4682 = vpop.f32.mrf.mxu0
  %v4683 = vadd.f32 %v3959, %v4682
  %v4684 = vpop.f32.mrf.mxu0
  %v4685 = vadd.f32 %v3959, %v4684
  %4686 = vmatmul.bf16.gmra.mxu0 %v4215
  %v4687 = vpop.f32.mrf.mxu0
  %v4688 = vadd.f32 %v3959, %v4687
  %v4689 = vpop.f32.mrf.mxu0
  %v4690 = vadd.f32 %v3959, %v4689
  %4691 = vdwg.mxu0
  %4692 = vmatpush.bf16.msra.mxu0 %v4505
  %4693 = vmatpush.bf16.msra.mxu0 %v4503
  %4694 = vmatpush.bf16.msra.mxu0 %v4501
  %4695 = vmatpush.bf16.msra.mxu0 %v4499
  %4696 = vmatpush.bf16.msra.mxu0 %v4497
  %4697 = vmatpush.bf16.msra.mxu0 %v4495
  %4698 = vmatpush.bf16.msra.mxu0 %v4493
  %4699 = vmatpush.bf16.msra.mxu0 %v4491
  %4700 = vmatmul.bf16.gmra.mxu0 %v4156
  %v4701 = vpop.f32.mrf.mxu0
  %v4702 = vadd.f32 %v4613, %v4701
  %v4703 = vpop.f32.mrf.mxu0
  %v4704 = vadd.f32 %v4615, %v4703
  %4705 = vmatmul.bf16.gmra.mxu0 %v4160
  %v4706 = vpop.f32.mrf.mxu0
  %v4707 = vadd.f32 %v4618, %v4706
  %v4708 = vpop.f32.mrf.mxu0
  %v4709 = vadd.f32 %v4620, %v4708
  %4710 = vmatmul.bf16.gmra.mxu0 %v4164
  %v4711 = vpop.f32.mrf.mxu0
  %v4712 = vadd.f32 %v4623, %v4711
  %v4713 = vpop.f32.mrf.mxu0
  %v4714 = vadd.f32 %v4625, %v4713
  %4715 = vmatmul.bf16.gmra.mxu0 %v4168
  %v4716 = vpop.f32.mrf.mxu0
  %v4717 = vadd.f32 %v4628, %v4716
  %v4718 = vpop.f32.mrf.mxu0
  %v4719 = vadd.f32 %v4630, %v4718
  %4720 = vmatmul.bf16.gmra.mxu0 %v4172
  %v4721 = vpop.f32.mrf.mxu0
  %v4722 = vadd.f32 %v4633, %v4721
  %v4723 = vpop.f32.mrf.mxu0
  %v4724 = vadd.f32 %v4635, %v4723
  %4725 = vmatmul.bf16.gmra.mxu0 %v4176
  %v4726 = vpop.f32.mrf.mxu0
  %v4727 = vadd.f32 %v4638, %v4726
  %v4728 = vpop.f32.mrf.mxu0
  %v4729 = vadd.f32 %v4640, %v4728
  %4730 = vmatmul.bf16.gmra.mxu0 %v4180
  %v4731 = vpop.f32.mrf.mxu0
  %v4732 = vadd.f32 %v4643, %v4731
  %v4733 = vpop.f32.mrf.mxu0
  %v4734 = vadd.f32 %v4645, %v4733
  %4735 = vmatmul.bf16.gmra.mxu0 %v4184
  %v4736 = vpop.f32.mrf.mxu0
  %v4737 = vadd.f32 %v4648, %v4736
  %v4738 = vpop.f32.mrf.mxu0
  %v4739 = vadd.f32 %v4650, %v4738
  %4740 = vmatmul.bf16.gmra.mxu0 %v4188
  %v4741 = vpop.f32.mrf.mxu0
  %v4742 = vadd.f32 %v4653, %v4741
  %v4743 = vpop.f32.mrf.mxu0
  %v4744 = vadd.f32 %v4655, %v4743
  %4745 = vmatmul.bf16.gmra.mxu0 %v4192
  %v4746 = vpop.f32.mrf.mxu0
  %v4747 = vadd.f32 %v4658, %v4746
  %v4748 = vpop.f32.mrf.mxu0
  %v4749 = vadd.f32 %v4660, %v4748
  %4750 = vmatmul.bf16.gmra.mxu0 %v4196
  %v4751 = vpop.f32.mrf.mxu0
  %v4752 = vadd.f32 %v4663, %v4751
  %v4753 = vpop.f32.mrf.mxu0
  %v4754 = vadd.f32 %v4665, %v4753
  %4755 = vmatmul.bf16.gmra.mxu0 %v4200
  %v4756 = vpop.f32.mrf.mxu0
  %v4757 = vadd.f32 %v4668, %v4756
  %v4758 = vpop.f32.mrf.mxu0
  %v4759 = vadd.f32 %v4670, %v4758
  %4760 = vmatmul.bf16.gmra.mxu0 %v4204
  %v4761 = vpop.f32.mrf.mxu0
  %v4762 = vadd.f32 %v4673, %v4761
  %v4763 = vpop.f32.mrf.mxu0
  %v4764 = vadd.f32 %v4675, %v4763
  %4765 = vmatmul.bf16.gmra.mxu0 %v4208
  %v4766 = vpop.f32.mrf.mxu0
  %v4767 = vadd.f32 %v4678, %v4766
  %v4768 = vpop.f32.mrf.mxu0
  %v4769 = vadd.f32 %v4680, %v4768
  %4770 = vmatmul.bf16.gmra.mxu0 %v4212
  %v4771 = vpop.f32.mrf.mxu0
  %v4772 = vadd.f32 %v4683, %v4771
  %v4773 = vpop.f32.mrf.mxu0
  %v4774 = vadd.f32 %v4685, %v4773
  %4775 = vmatmul.bf16.gmra.mxu0 %v4216
  %v4776 = vpop.f32.mrf.mxu0
  %v4777 = vadd.f32 %v4688, %v4776
  %v4778 = vpop.f32.mrf.mxu0
  %v4779 = vadd.f32 %v4690, %v4778
  %4780 = vdwg.mxu0
  %4781 = vmatpush.bf16.msra.mxu0 %v4521
  %4782 = vmatpush.bf16.msra.mxu0 %v4519
  %4783 = vmatpush.bf16.msra.mxu0 %v4517
  %4784 = vmatpush.bf16.msra.mxu0 %v4515
  %4785 = vmatpush.bf16.msra.mxu0 %v4513
  %4786 = vmatpush.bf16.msra.mxu0 %v4511
  %4787 = vmatpush.bf16.msra.mxu0 %v4509
  %4788 = vmatpush.bf16.msra.mxu0 %v4507
  %4789 = vmatmul.bf16.gmra.mxu0 %v4157
  %v4790 = vpop.f32.mrf.mxu0
  %v4791 = vadd.f32 %v4702, %v4790
  %v4792 = vpop.f32.mrf.mxu0
  %v4793 = vadd.f32 %v4704, %v4792
  %4794 = vmatmul.bf16.gmra.mxu0 %v4161
  %v4795 = vpop.f32.mrf.mxu0
  %v4796 = vadd.f32 %v4707, %v4795
  %v4797 = vpop.f32.mrf.mxu0
  %v4798 = vadd.f32 %v4709, %v4797
  %4799 = vmatmul.bf16.gmra.mxu0 %v4165
  %v4800 = vpop.f32.mrf.mxu0
  %v4801 = vadd.f32 %v4712, %v4800
  %v4802 = vpop.f32.mrf.mxu0
  %v4803 = vadd.f32 %v4714, %v4802
  %4804 = vmatmul.bf16.gmra.mxu0 %v4169
  %v4805 = vpop.f32.mrf.mxu0
  %v4806 = vadd.f32 %v4717, %v4805
  %v4807 = vpop.f32.mrf.mxu0
  %v4808 = vadd.f32 %v4719, %v4807
  %4809 = vmatmul.bf16.gmra.mxu0 %v4173
  %v4810 = vpop.f32.mrf.mxu0
  %v4811 = vadd.f32 %v4722, %v4810
  %v4812 = vpop.f32.mrf.mxu0
  %v4813 = vadd.f32 %v4724, %v4812
  %4814 = vmatmul.bf16.gmra.mxu0 %v4177
  %v4815 = vpop.f32.mrf.mxu0
  %v4816 = vadd.f32 %v4727, %v4815
  %v4817 = vpop.f32.mrf.mxu0
  %v4818 = vadd.f32 %v4729, %v4817
  %4819 = vmatmul.bf16.gmra.mxu0 %v4181
  %v4820 = vpop.f32.mrf.mxu0
  %v4821 = vadd.f32 %v4732, %v4820
  %v4822 = vpop.f32.mrf.mxu0
  %v4823 = vadd.f32 %v4734, %v4822
  %4824 = vmatmul.bf16.gmra.mxu0 %v4185
  %v4825 = vpop.f32.mrf.mxu0
  %v4826 = vadd.f32 %v4737, %v4825
  %v4827 = vpop.f32.mrf.mxu0
  %v4828 = vadd.f32 %v4739, %v4827
  %4829 = vmatmul.bf16.gmra.mxu0 %v4189
  %v4830 = vpop.f32.mrf.mxu0
  %v4831 = vadd.f32 %v4742, %v4830
  %v4832 = vpop.f32.mrf.mxu0
  %v4833 = vadd.f32 %v4744, %v4832
  %4834 = vmatmul.bf16.gmra.mxu0 %v4193
  %v4835 = vpop.f32.mrf.mxu0
  %v4836 = vadd.f32 %v4747, %v4835
  %v4837 = vpop.f32.mrf.mxu0
  %v4838 = vadd.f32 %v4749, %v4837
  %4839 = vmatmul.bf16.gmra.mxu0 %v4197
  %v4840 = vpop.f32.mrf.mxu0
  %v4841 = vadd.f32 %v4752, %v4840
  %v4842 = vpop.f32.mrf.mxu0
  %v4843 = vadd.f32 %v4754, %v4842
  %4844 = vmatmul.bf16.gmra.mxu0 %v4201
  %v4845 = vpop.f32.mrf.mxu0
  %v4846 = vadd.f32 %v4757, %v4845
  %v4847 = vpop.f32.mrf.mxu0
  %v4848 = vadd.f32 %v4759, %v4847
  %4849 = vmatmul.bf16.gmra.mxu0 %v4205
  %v4850 = vpop.f32.mrf.mxu0
  %v4851 = vadd.f32 %v4762, %v4850
  %v4852 = vpop.f32.mrf.mxu0
  %v4853 = vadd.f32 %v4764, %v4852
  %4854 = vmatmul.bf16.gmra.mxu0 %v4209
  %v4855 = vpop.f32.mrf.mxu0
  %v4856 = vadd.f32 %v4767, %v4855
  %v4857 = vpop.f32.mrf.mxu0
  %v4858 = vadd.f32 %v4769, %v4857
  %4859 = vmatmul.bf16.gmra.mxu0 %v4213
  %v4860 = vpop.f32.mrf.mxu0
  %v4861 = vadd.f32 %v4772, %v4860
  %v4862 = vpop.f32.mrf.mxu0
  %v4863 = vadd.f32 %v4774, %v4862
  %4864 = vmatmul.bf16.gmra.mxu0 %v4217
  %v4865 = vpop.f32.mrf.mxu0
  %v4866 = vadd.f32 %v4777, %v4865
  %v4867 = vpop.f32.mrf.mxu0
  %v4868 = vadd.f32 %v4779, %v4867
  %4869 = vdwg.mxu0
  %4870 = vmatpush.bf16.msra.mxu0 %v4537
  %4871 = vmatpush.bf16.msra.mxu0 %v4535
  %4872 = vmatpush.bf16.msra.mxu0 %v4533
  %4873 = vmatpush.bf16.msra.mxu0 %v4531
  %4874 = vmatpush.bf16.msra.mxu0 %v4529
  %4875 = vmatpush.bf16.msra.mxu0 %v4527
  %4876 = vmatpush.bf16.msra.mxu0 %v4525
  %4877 = vmatpush.bf16.msra.mxu0 %v4523
  %4878 = vmatmul.bf16.gmra.mxu0 %v4158
  %v4879 = vpop.f32.mrf.mxu0
  %v4880 = vadd.f32 %v4791, %v4879
  %v4881 = vpop.f32.mrf.mxu0
  %v4882 = vadd.f32 %v4793, %v4881
  %4883 = vmatmul.bf16.gmra.mxu0 %v4162
  %v4884 = vpop.f32.mrf.mxu0
  %v4885 = vadd.f32 %v4796, %v4884
  %v4886 = vpop.f32.mrf.mxu0
  %v4887 = vadd.f32 %v4798, %v4886
  %4888 = vmatmul.bf16.gmra.mxu0 %v4166
  %v4889 = vpop.f32.mrf.mxu0
  %v4890 = vadd.f32 %v4801, %v4889
  %v4891 = vpop.f32.mrf.mxu0
  %v4892 = vadd.f32 %v4803, %v4891
  %4893 = vmatmul.bf16.gmra.mxu0 %v4170
  %v4894 = vpop.f32.mrf.mxu0
  %v4895 = vadd.f32 %v4806, %v4894
  %v4896 = vpop.f32.mrf.mxu0
  %v4897 = vadd.f32 %v4808, %v4896
  %4898 = vmatmul.bf16.gmra.mxu0 %v4174
  %v4899 = vpop.f32.mrf.mxu0
  %v4900 = vadd.f32 %v4811, %v4899
  %v4901 = vpop.f32.mrf.mxu0
  %v4902 = vadd.f32 %v4813, %v4901
  %4903 = vmatmul.bf16.gmra.mxu0 %v4178
  %v4904 = vpop.f32.mrf.mxu0
  %v4905 = vadd.f32 %v4816, %v4904
  %v4906 = vpop.f32.mrf.mxu0
  %v4907 = vadd.f32 %v4818, %v4906
  %4908 = vmatmul.bf16.gmra.mxu0 %v4182
  %v4909 = vpop.f32.mrf.mxu0
  %v4910 = vadd.f32 %v4821, %v4909
  %v4911 = vpop.f32.mrf.mxu0
  %v4912 = vadd.f32 %v4823, %v4911
  %4913 = vmatmul.bf16.gmra.mxu0 %v4186
  %v4914 = vpop.f32.mrf.mxu0
  %v4915 = vadd.f32 %v4826, %v4914
  %v4916 = vpop.f32.mrf.mxu0
  %v4917 = vadd.f32 %v4828, %v4916
  %4918 = vmatmul.bf16.gmra.mxu0 %v4190
  %v4919 = vpop.f32.mrf.mxu0
  %v4920 = vadd.f32 %v4831, %v4919
  %v4921 = vpop.f32.mrf.mxu0
  %v4922 = vadd.f32 %v4833, %v4921
  %4923 = vmatmul.bf16.gmra.mxu0 %v4194
  %v4924 = vpop.f32.mrf.mxu0
  %v4925 = vadd.f32 %v4836, %v4924
  %v4926 = vpop.f32.mrf.mxu0
  %v4927 = vadd.f32 %v4838, %v4926
  %4928 = vmatmul.bf16.gmra.mxu0 %v4198
  %v4929 = vpop.f32.mrf.mxu0
  %v4930 = vadd.f32 %v4841, %v4929
  %v4931 = vpop.f32.mrf.mxu0
  %v4932 = vadd.f32 %v4843, %v4931
  %4933 = vmatmul.bf16.gmra.mxu0 %v4202
  %v4934 = vpop.f32.mrf.mxu0
  %v4935 = vadd.f32 %v4846, %v4934
  %v4936 = vpop.f32.mrf.mxu0
  %v4937 = vadd.f32 %v4848, %v4936
  %4938 = vmatmul.bf16.gmra.mxu0 %v4206
  %v4939 = vpop.f32.mrf.mxu0
  %v4940 = vadd.f32 %v4851, %v4939
  %v4941 = vpop.f32.mrf.mxu0
  %v4942 = vadd.f32 %v4853, %v4941
  %4943 = vmatmul.bf16.gmra.mxu0 %v4210
  %v4944 = vpop.f32.mrf.mxu0
  %v4945 = vadd.f32 %v4856, %v4944
  %v4946 = vpop.f32.mrf.mxu0
  %v4947 = vadd.f32 %v4858, %v4946
  %4948 = vmatmul.bf16.gmra.mxu0 %v4214
  %v4949 = vpop.f32.mrf.mxu0
  %v4950 = vadd.f32 %v4861, %v4949
  %v4951 = vpop.f32.mrf.mxu0
  %v4952 = vadd.f32 %v4863, %v4951
  %4953 = vmatmul.bf16.gmra.mxu0 %v4218
  %v4954 = vpop.f32.mrf.mxu0
  %v4955 = vadd.f32 %v4866, %v4954
  %v4956 = vpop.f32.mrf.mxu0
  %v4957 = vadd.f32 %v4868, %v4956
  %4958 = vdwg.mxu0
  %4959 = vmatpush.bf16.msra.mxu0 %v4490
  %4960 = vmatpush.bf16.msra.mxu0 %v4488
  %4961 = vmatpush.bf16.msra.mxu0 %v4486
  %4962 = vmatpush.bf16.msra.mxu0 %v4484
  %4963 = vmatpush.bf16.msra.mxu0 %v4482
  %4964 = vmatpush.bf16.msra.mxu0 %v4480
  %4965 = vmatpush.bf16.msra.mxu0 %v4478
  %4966 = vmatpush.bf16.msra.mxu0 %v4476
  %4967 = vmatmul.bf16.gmra.mxu0 %v4155
  %v4968 = vpop.f32.mrf.mxu0
  %v4969 = vadd.f32 %v3960, %v4968
  %v4970 = vpop.f32.mrf.mxu0
  %v4971 = vadd.f32 %v3960, %v4970
  %4972 = vmatmul.bf16.gmra.mxu0 %v4159
  %v4973 = vpop.f32.mrf.mxu0
  %v4974 = vadd.f32 %v3960, %v4973
  %v4975 = vpop.f32.mrf.mxu0
  %v4976 = vadd.f32 %v3960, %v4975
  %4977 = vmatmul.bf16.gmra.mxu0 %v4163
  %v4978 = vpop.f32.mrf.mxu0
  %v4979 = vadd.f32 %v3960, %v4978
  %v4980 = vpop.f32.mrf.mxu0
  %v4981 = vadd.f32 %v3960, %v4980
  %4982 = vmatmul.bf16.gmra.mxu0 %v4167
  %v4983 = vpop.f32.mrf.mxu0
  %v4984 = vadd.f32 %v3960, %v4983
  %v4985 = vpop.f32.mrf.mxu0
  %v4986 = vadd.f32 %v3960, %v4985
  %4987 = vmatmul.bf16.gmra.mxu0 %v4171
  %v4988 = vpop.f32.mrf.mxu0
  %v4989 = vadd.f32 %v3960, %v4988
  %v4990 = vpop.f32.mrf.mxu0
  %v4991 = vadd.f32 %v3960, %v4990
  %4992 = vmatmul.bf16.gmra.mxu0 %v4175
  %v4993 = vpop.f32.mrf.mxu0
  %v4994 = vadd.f32 %v3960, %v4993
  %v4995 = vpop.f32.mrf.mxu0
  %v4996 = vadd.f32 %v3960, %v4995
  %4997 = vmatmul.bf16.gmra.mxu0 %v4179
  %v4998 = vpop.f32.mrf.mxu0
  %v4999 = vadd.f32 %v3960, %v4998
  %v5000 = vpop.f32.mrf.mxu0
  %v5001 = vadd.f32 %v3960, %v5000
  %5002 = vmatmul.bf16.gmra.mxu0 %v4183
  %v5003 = vpop.f32.mrf.mxu0
  %v5004 = vadd.f32 %v3960, %v5003
  %v5005 = vpop.f32.mrf.mxu0
  %v5006 = vadd.f32 %v3960, %v5005
  %5007 = vmatmul.bf16.gmra.mxu0 %v4187
  %v5008 = vpop.f32.mrf.mxu0
  %v5009 = vadd.f32 %v3960, %v5008
  %v5010 = vpop.f32.mrf.mxu0
  %v5011 = vadd.f32 %v3960, %v5010
  %5012 = vmatmul.bf16.gmra.mxu0 %v4191
  %v5013 = vpop.f32.mrf.mxu0
  %v5014 = vadd.f32 %v3960, %v5013
  %v5015 = vpop.f32.mrf.mxu0
  %v5016 = vadd.f32 %v3960, %v5015
  %5017 = vmatmul.bf16.gmra.mxu0 %v4195
  %v5018 = vpop.f32.mrf.mxu0
  %v5019 = vadd.f32 %v3960, %v5018
  %v5020 = vpop.f32.mrf.mxu0
  %v5021 = vadd.f32 %v3960, %v5020
  %5022 = vmatmul.bf16.gmra.mxu0 %v4199
  %v5023 = vpop.f32.mrf.mxu0
  %v5024 = vadd.f32 %v3960, %v5023
  %v5025 = vpop.f32.mrf.mxu0
  %v5026 = vadd.f32 %v3960, %v5025
  %5027 = vmatmul.bf16.gmra.mxu0 %v4203
  %v5028 = vpop.f32.mrf.mxu0
  %v5029 = vadd.f32 %v3960, %v5028
  %v5030 = vpop.f32.mrf.mxu0
  %v5031 = vadd.f32 %v3960, %v5030
  %5032 = vmatmul.bf16.gmra.mxu0 %v4207
  %v5033 = vpop.f32.mrf.mxu0
  %v5034 = vadd.f32 %v3960, %v5033
  %v5035 = vpop.f32.mrf.mxu0
  %v5036 = vadd.f32 %v3960, %v5035
  %5037 = vmatmul.bf16.gmra.mxu0 %v4211
  %v5038 = vpop.f32.mrf.mxu0
  %v5039 = vadd.f32 %v3960, %v5038
  %v5040 = vpop.f32.mrf.mxu0
  %v5041 = vadd.f32 %v3960, %v5040
  %5042 = vmatmul.bf16.gmra.mxu0 %v4215
  %v5043 = vpop.f32.mrf.mxu0
  %v5044 = vadd.f32 %v3960, %v5043
  %v5045 = vpop.f32.mrf.mxu0
  %v5046 = vadd.f32 %v3960, %v5045
  %5047 = vdwg.mxu0
  %5048 = vmatpush.bf16.msra.mxu0 %v4506
  %5049 = vmatpush.bf16.msra.mxu0 %v4504
  %5050 = vmatpush.bf16.msra.mxu0 %v4502
  %5051 = vmatpush.bf16.msra.mxu0 %v4500
  %5052 = vmatpush.bf16.msra.mxu0 %v4498
  %5053 = vmatpush.bf16.msra.mxu0 %v4496
  %5054 = vmatpush.bf16.msra.mxu0 %v4494
  %5055 = vmatpush.bf16.msra.mxu0 %v4492
  %5056 = vmatmul.bf16.gmra.mxu0 %v4156
  %v5057 = vpop.f32.mrf.mxu0
  %v5058 = vadd.f32 %v4969, %v5057
  %v5059 = vpop.f32.mrf.mxu0
  %v5060 = vadd.f32 %v4971, %v5059
  %5061 = vmatmul.bf16.gmra.mxu0 %v4160
  %v5062 = vpop.f32.mrf.mxu0
  %v5063 = vadd.f32 %v4974, %v5062
  %v5064 = vpop.f32.mrf.mxu0
  %v5065 = vadd.f32 %v4976, %v5064
  %5066 = vmatmul.bf16.gmra.mxu0 %v4164
  %v5067 = vpop.f32.mrf.mxu0
  %v5068 = vadd.f32 %v4979, %v5067
  %v5069 = vpop.f32.mrf.mxu0
  %v5070 = vadd.f32 %v4981, %v5069
  %5071 = vmatmul.bf16.gmra.mxu0 %v4168
  %v5072 = vpop.f32.mrf.mxu0
  %v5073 = vadd.f32 %v4984, %v5072
  %v5074 = vpop.f32.mrf.mxu0
  %v5075 = vadd.f32 %v4986, %v5074
  %5076 = vmatmul.bf16.gmra.mxu0 %v4172
  %v5077 = vpop.f32.mrf.mxu0
  %v5078 = vadd.f32 %v4989, %v5077
  %v5079 = vpop.f32.mrf.mxu0
  %v5080 = vadd.f32 %v4991, %v5079
  %5081 = vmatmul.bf16.gmra.mxu0 %v4176
  %v5082 = vpop.f32.mrf.mxu0
  %v5083 = vadd.f32 %v4994, %v5082
  %v5084 = vpop.f32.mrf.mxu0
  %v5085 = vadd.f32 %v4996, %v5084
  %5086 = vmatmul.bf16.gmra.mxu0 %v4180
  %v5087 = vpop.f32.mrf.mxu0
  %v5088 = vadd.f32 %v4999, %v5087
  %v5089 = vpop.f32.mrf.mxu0
  %v5090 = vadd.f32 %v5001, %v5089
  %5091 = vmatmul.bf16.gmra.mxu0 %v4184
  %v5092 = vpop.f32.mrf.mxu0
  %v5093 = vadd.f32 %v5004, %v5092
  %v5094 = vpop.f32.mrf.mxu0
  %v5095 = vadd.f32 %v5006, %v5094
  %5096 = vmatmul.bf16.gmra.mxu0 %v4188
  %v5097 = vpop.f32.mrf.mxu0
  %v5098 = vadd.f32 %v5009, %v5097
  %v5099 = vpop.f32.mrf.mxu0
  %v5100 = vadd.f32 %v5011, %v5099
  %5101 = vmatmul.bf16.gmra.mxu0 %v4192
  %v5102 = vpop.f32.mrf.mxu0
  %v5103 = vadd.f32 %v5014, %v5102
  %v5104 = vpop.f32.mrf.mxu0
  %v5105 = vadd.f32 %v5016, %v5104
  %5106 = vmatmul.bf16.gmra.mxu0 %v4196
  %v5107 = vpop.f32.mrf.mxu0
  %v5108 = vadd.f32 %v5019, %v5107
  %v5109 = vpop.f32.mrf.mxu0
  %v5110 = vadd.f32 %v5021, %v5109
  %5111 = vmatmul.bf16.gmra.mxu0 %v4200
  %v5112 = vpop.f32.mrf.mxu0
  %v5113 = vadd.f32 %v5024, %v5112
  %v5114 = vpop.f32.mrf.mxu0
  %v5115 = vadd.f32 %v5026, %v5114
  %5116 = vmatmul.bf16.gmra.mxu0 %v4204
  %v5117 = vpop.f32.mrf.mxu0
  %v5118 = vadd.f32 %v5029, %v5117
  %v5119 = vpop.f32.mrf.mxu0
  %v5120 = vadd.f32 %v5031, %v5119
  %5121 = vmatmul.bf16.gmra.mxu0 %v4208
  %v5122 = vpop.f32.mrf.mxu0
  %v5123 = vadd.f32 %v5034, %v5122
  %v5124 = vpop.f32.mrf.mxu0
  %v5125 = vadd.f32 %v5036, %v5124
  %5126 = vmatmul.bf16.gmra.mxu0 %v4212
  %v5127 = vpop.f32.mrf.mxu0
  %v5128 = vadd.f32 %v5039, %v5127
  %v5129 = vpop.f32.mrf.mxu0
  %v5130 = vadd.f32 %v5041, %v5129
  %5131 = vmatmul.bf16.gmra.mxu0 %v4216
  %v5132 = vpop.f32.mrf.mxu0
  %v5133 = vadd.f32 %v5044, %v5132
  %v5134 = vpop.f32.mrf.mxu0
  %v5135 = vadd.f32 %v5046, %v5134
  %5136 = vdwg.mxu0
  %5137 = vmatpush.bf16.msra.mxu0 %v4522
  %5138 = vmatpush.bf16.msra.mxu0 %v4520
  %5139 = vmatpush.bf16.msra.mxu0 %v4518
  %5140 = vmatpush.bf16.msra.mxu0 %v4516
  %5141 = vmatpush.bf16.msra.mxu0 %v4514
  %5142 = vmatpush.bf16.msra.mxu0 %v4512
  %5143 = vmatpush.bf16.msra.mxu0 %v4510
  %5144 = vmatpush.bf16.msra.mxu0 %v4508
  %5145 = vmatmul.bf16.gmra.mxu0 %v4157
  %v5146 = vpop.f32.mrf.mxu0
  %v5147 = vadd.f32 %v5058, %v5146
  %v5148 = vpop.f32.mrf.mxu0
  %v5149 = vadd.f32 %v5060, %v5148
  %5150 = vmatmul.bf16.gmra.mxu0 %v4161
  %v5151 = vpop.f32.mrf.mxu0
  %v5152 = vadd.f32 %v5063, %v5151
  %v5153 = vpop.f32.mrf.mxu0
  %v5154 = vadd.f32 %v5065, %v5153
  %5155 = vmatmul.bf16.gmra.mxu0 %v4165
  %v5156 = vpop.f32.mrf.mxu0
  %v5157 = vadd.f32 %v5068, %v5156
  %v5158 = vpop.f32.mrf.mxu0
  %v5159 = vadd.f32 %v5070, %v5158
  %5160 = vmatmul.bf16.gmra.mxu0 %v4169
  %v5161 = vpop.f32.mrf.mxu0
  %v5162 = vadd.f32 %v5073, %v5161
  %v5163 = vpop.f32.mrf.mxu0
  %v5164 = vadd.f32 %v5075, %v5163
  %5165 = vmatmul.bf16.gmra.mxu0 %v4173
  %v5166 = vpop.f32.mrf.mxu0
  %v5167 = vadd.f32 %v5078, %v5166
  %v5168 = vpop.f32.mrf.mxu0
  %v5169 = vadd.f32 %v5080, %v5168
  %5170 = vmatmul.bf16.gmra.mxu0 %v4177
  %v5171 = vpop.f32.mrf.mxu0
  %v5172 = vadd.f32 %v5083, %v5171
  %v5173 = vpop.f32.mrf.mxu0
  %v5174 = vadd.f32 %v5085, %v5173
  %5175 = vmatmul.bf16.gmra.mxu0 %v4181
  %v5176 = vpop.f32.mrf.mxu0
  %v5177 = vadd.f32 %v5088, %v5176
  %v5178 = vpop.f32.mrf.mxu0
  %v5179 = vadd.f32 %v5090, %v5178
  %5180 = vmatmul.bf16.gmra.mxu0 %v4185
  %v5181 = vpop.f32.mrf.mxu0
  %v5182 = vadd.f32 %v5093, %v5181
  %v5183 = vpop.f32.mrf.mxu0
  %v5184 = vadd.f32 %v5095, %v5183
  %5185 = vmatmul.bf16.gmra.mxu0 %v4189
  %v5186 = vpop.f32.mrf.mxu0
  %v5187 = vadd.f32 %v5098, %v5186
  %v5188 = vpop.f32.mrf.mxu0
  %v5189 = vadd.f32 %v5100, %v5188
  %5190 = vmatmul.bf16.gmra.mxu0 %v4193
  %v5191 = vpop.f32.mrf.mxu0
  %v5192 = vadd.f32 %v5103, %v5191
  %v5193 = vpop.f32.mrf.mxu0
  %v5194 = vadd.f32 %v5105, %v5193
  %5195 = vmatmul.bf16.gmra.mxu0 %v4197
  %v5196 = vpop.f32.mrf.mxu0
  %v5197 = vadd.f32 %v5108, %v5196
  %v5198 = vpop.f32.mrf.mxu0
  %v5199 = vadd.f32 %v5110, %v5198
  %5200 = vmatmul.bf16.gmra.mxu0 %v4201
  %v5201 = vpop.f32.mrf.mxu0
  %v5202 = vadd.f32 %v5113, %v5201
  %v5203 = vpop.f32.mrf.mxu0
  %v5204 = vadd.f32 %v5115, %v5203
  %5205 = vmatmul.bf16.gmra.mxu0 %v4205
  %v5206 = vpop.f32.mrf.mxu0
  %v5207 = vadd.f32 %v5118, %v5206
  %v5208 = vpop.f32.mrf.mxu0
  %v5209 = vadd.f32 %v5120, %v5208
  %5210 = vmatmul.bf16.gmra.mxu0 %v4209
  %v5211 = vpop.f32.mrf.mxu0
  %v5212 = vadd.f32 %v5123, %v5211
  %v5213 = vpop.f32.mrf.mxu0
  %v5214 = vadd.f32 %v5125, %v5213
  %5215 = vmatmul.bf16.gmra.mxu0 %v4213
  %v5216 = vpop.f32.mrf.mxu0
  %v5217 = vadd.f32 %v5128, %v5216
  %v5218 = vpop.f32.mrf.mxu0
  %v5219 = vadd.f32 %v5130, %v5218
  %5220 = vmatmul.bf16.gmra.mxu0 %v4217
  %v5221 = vpop.f32.mrf.mxu0
  %v5222 = vadd.f32 %v5133, %v5221
  %v5223 = vpop.f32.mrf.mxu0
  %v5224 = vadd.f32 %v5135, %v5223
  %5225 = vdwg.mxu0
  %5226 = vmatpush.bf16.msra.mxu0 %v4538
  %5227 = vmatpush.bf16.msra.mxu0 %v4536
  %5228 = vmatpush.bf16.msra.mxu0 %v4534
  %5229 = vmatpush.bf16.msra.mxu0 %v4532
  %5230 = vmatpush.bf16.msra.mxu0 %v4530
  %5231 = vmatpush.bf16.msra.mxu0 %v4528
  %5232 = vmatpush.bf16.msra.mxu0 %v4526
  %5233 = vmatpush.bf16.msra.mxu0 %v4524
  %5234 = vmatmul.bf16.gmra.mxu0 %v4158
  %v5235 = vpop.f32.mrf.mxu0
  %v5236 = vadd.f32 %v5147, %v5235
  %v5237 = vpop.f32.mrf.mxu0
  %v5238 = vadd.f32 %v5149, %v5237
  %5239 = vmatmul.bf16.gmra.mxu0 %v4162
  %v5240 = vpop.f32.mrf.mxu0
  %v5241 = vadd.f32 %v5152, %v5240
  %v5242 = vpop.f32.mrf.mxu0
  %v5243 = vadd.f32 %v5154, %v5242
  %5244 = vmatmul.bf16.gmra.mxu0 %v4166
  %v5245 = vpop.f32.mrf.mxu0
  %v5246 = vadd.f32 %v5157, %v5245
  %v5247 = vpop.f32.mrf.mxu0
  %v5248 = vadd.f32 %v5159, %v5247
  %5249 = vmatmul.bf16.gmra.mxu0 %v4170
  %v5250 = vpop.f32.mrf.mxu0
  %v5251 = vadd.f32 %v5162, %v5250
  %v5252 = vpop.f32.mrf.mxu0
  %v5253 = vadd.f32 %v5164, %v5252
  %5254 = vmatmul.bf16.gmra.mxu0 %v4174
  %v5255 = vpop.f32.mrf.mxu0
  %v5256 = vadd.f32 %v5167, %v5255
  %v5257 = vpop.f32.mrf.mxu0
  %v5258 = vadd.f32 %v5169, %v5257
  %5259 = vmatmul.bf16.gmra.mxu0 %v4178
  %v5260 = vpop.f32.mrf.mxu0
  %v5261 = vadd.f32 %v5172, %v5260
  %v5262 = vpop.f32.mrf.mxu0
  %v5263 = vadd.f32 %v5174, %v5262
  %5264 = vmatmul.bf16.gmra.mxu0 %v4182
  %v5265 = vpop.f32.mrf.mxu0
  %v5266 = vadd.f32 %v5177, %v5265
  %v5267 = vpop.f32.mrf.mxu0
  %v5268 = vadd.f32 %v5179, %v5267
  %5269 = vmatmul.bf16.gmra.mxu0 %v4186
  %v5270 = vpop.f32.mrf.mxu0
  %v5271 = vadd.f32 %v5182, %v5270
  %v5272 = vpop.f32.mrf.mxu0
  %v5273 = vadd.f32 %v5184, %v5272
  %5274 = vmatmul.bf16.gmra.mxu0 %v4190
  %v5275 = vpop.f32.mrf.mxu0
  %v5276 = vadd.f32 %v5187, %v5275
  %v5277 = vpop.f32.mrf.mxu0
  %v5278 = vadd.f32 %v5189, %v5277
  %5279 = vmatmul.bf16.gmra.mxu0 %v4194
  %v5280 = vpop.f32.mrf.mxu0
  %v5281 = vadd.f32 %v5192, %v5280
  %v5282 = vpop.f32.mrf.mxu0
  %v5283 = vadd.f32 %v5194, %v5282
  %5284 = vmatmul.bf16.gmra.mxu0 %v4198
  %v5285 = vpop.f32.mrf.mxu0
  %v5286 = vadd.f32 %v5197, %v5285
  %v5287 = vpop.f32.mrf.mxu0
  %v5288 = vadd.f32 %v5199, %v5287
  %5289 = vmatmul.bf16.gmra.mxu0 %v4202
  %v5290 = vpop.f32.mrf.mxu0
  %v5291 = vadd.f32 %v5202, %v5290
  %v5292 = vpop.f32.mrf.mxu0
  %v5293 = vadd.f32 %v5204, %v5292
  %5294 = vmatmul.bf16.gmra.mxu0 %v4206
  %v5295 = vpop.f32.mrf.mxu0
  %v5296 = vadd.f32 %v5207, %v5295
  %v5297 = vpop.f32.mrf.mxu0
  %v5298 = vadd.f32 %v5209, %v5297
  %5299 = vmatmul.bf16.gmra.mxu0 %v4210
  %v5300 = vpop.f32.mrf.mxu0
  %v5301 = vadd.f32 %v5212, %v5300
  %v5302 = vpop.f32.mrf.mxu0
  %v5303 = vadd.f32 %v5214, %v5302
  %5304 = vmatmul.bf16.gmra.mxu0 %v4214
  %v5305 = vpop.f32.mrf.mxu0
  %v5306 = vadd.f32 %v5217, %v5305
  %v5307 = vpop.f32.mrf.mxu0
  %v5308 = vadd.f32 %v5219, %v5307
  %5309 = vmatmul.bf16.gmra.mxu0 %v4218
  %v5310 = vpop.f32.mrf.mxu0
  %v5311 = vadd.f32 %v5222, %v5310
  %v5312 = vpop.f32.mrf.mxu0
  %v5313 = vadd.f32 %v5224, %v5312
  %5314 = vdwg.mxu0
  %v5315 = vmax.f32 %v4880, 0.0
  %v5316 = vmax.f32 %v5236, 0.0
  %v5317 = vmax.f32 %v4882, 0.0
  %v5318 = vmax.f32 %v5238, 0.0
  %v5319 = vmax.f32 %v4885, 0.0
  %v5320 = vmax.f32 %v5241, 0.0
  %v5321 = vmax.f32 %v4887, 0.0
  %v5322 = vmax.f32 %v5243, 0.0
  %v5323 = vmax.f32 %v4890, 0.0
  %v5324 = vmax.f32 %v5246, 0.0
  %v5325 = vmax.f32 %v4892, 0.0
  %v5326 = vmax.f32 %v5248, 0.0
  %v5327 = vmax.f32 %v4895, 0.0
  %v5328 = vmax.f32 %v5251, 0.0
  %v5329 = vmax.f32 %v4897, 0.0
  %v5330 = vmax.f32 %v5253, 0.0
  %v5331 = vmax.f32 %v4900, 0.0
  %v5332 = vmax.f32 %v5256, 0.0
  %v5333 = vmax.f32 %v4902, 0.0
  %v5334 = vmax.f32 %v5258, 0.0
  %v5335 = vmax.f32 %v4905, 0.0
  %v5336 = vmax.f32 %v5261, 0.0
  %v5337 = vmax.f32 %v4907, 0.0
  %v5338 = vmax.f32 %v5263, 0.0
  %v5339 = vmax.f32 %v4910, 0.0
  %v5340 = vmax.f32 %v5266, 0.0
  %v5341 = vmax.f32 %v4912, 0.0
  %v5342 = vmax.f32 %v5268, 0.0
  %v5343 = vmax.f32 %v4915, 0.0
  %v5344 = vmax.f32 %v5271, 0.0
  %v5345 = vmax.f32 %v4917, 0.0
  %v5346 = vmax.f32 %v5273, 0.0
  %v5347 = vmax.f32 %v4920, 0.0
  %v5348 = vmax.f32 %v5276, 0.0
  %v5349 = vmax.f32 %v4922, 0.0
  %v5350 = vmax.f32 %v5278, 0.0
  %v5351 = vmax.f32 %v4925, 0.0
  %v5352 = vmax.f32 %v5281, 0.0
  %v5353 = vmax.f32 %v4927, 0.0
  %v5354 = vmax.f32 %v5283, 0.0
  %v5355 = vmax.f32 %v4930, 0.0
  %v5356 = vmax.f32 %v5286, 0.0
  %v5357 = vmax.f32 %v4932, 0.0
  %v5358 = vmax.f32 %v5288, 0.0
  %v5359 = vmax.f32 %v4935, 0.0
  %v5360 = vmax.f32 %v5291, 0.0
  %v5361 = vmax.f32 %v4937, 0.0
  %v5362 = vmax.f32 %v5293, 0.0
  %v5363 = vmax.f32 %v4940, 0.0
  %v5364 = vmax.f32 %v5296, 0.0
  %v5365 = vmax.f32 %v4942, 0.0
  %v5366 = vmax.f32 %v5298, 0.0
  %v5367 = vmax.f32 %v4945, 0.0
  %v5368 = vmax.f32 %v5301, 0.0
  %v5369 = vmax.f32 %v4947, 0.0
  %v5370 = vmax.f32 %v5303, 0.0
  %v5371 = vmax.f32 %v4950, 0.0
  %v5372 = vmax.f32 %v5306, 0.0
  %v5373 = vmax.f32 %v4952, 0.0
  %v5374 = vmax.f32 %v5308, 0.0
  %v5375 = vmax.f32 %v4955, 0.0
  %v5376 = vmax.f32 %v5311, 0.0
  %v5377 = vmax.f32 %v4957, 0.0
  %v5378 = vmax.f32 %v5313, 0.0
  %v5379 = vpack.c.bf16 %v5317, %v5315
  %v5380 = vpack.c.bf16 %v5318, %v5316
  %v5381 = vpack.c.bf16 %v5321, %v5319
  %v5382 = vpack.c.bf16 %v5322, %v5320
  %v5383 = vpack.c.bf16 %v5325, %v5323
  %v5384 = vpack.c.bf16 %v5326, %v5324
  %v5385 = vpack.c.bf16 %v5329, %v5327
  %v5386 = vpack.c.bf16 %v5330, %v5328
  %v5387 = vpack.c.bf16 %v5333, %v5331
  %v5388 = vpack.c.bf16 %v5334, %v5332
  %v5389 = vpack.c.bf16 %v5337, %v5335
  %v5390 = vpack.c.bf16 %v5338, %v5336
  %v5391 = vpack.c.bf16 %v5341, %v5339
  %v5392 = vpack.c.bf16 %v5342, %v5340
  %v5393 = vpack.c.bf16 %v5345, %v5343
  %v5394 = vpack.c.bf16 %v5346, %v5344
  %v5395 = vpack.c.bf16 %v5349, %v5347
  %v5396 = vpack.c.bf16 %v5350, %v5348
  %v5397 = vpack.c.bf16 %v5353, %v5351
  %v5398 = vpack.c.bf16 %v5354, %v5352
  %v5399 = vpack.c.bf16 %v5357, %v5355
  %v5400 = vpack.c.bf16 %v5358, %v5356
  %v5401 = vpack.c.bf16 %v5361, %v5359
  %v5402 = vpack.c.bf16 %v5362, %v5360
  %v5403 = vpack.c.bf16 %v5365, %v5363
  %v5404 = vpack.c.bf16 %v5366, %v5364
  %v5405 = vpack.c.bf16 %v5369, %v5367
  %v5406 = vpack.c.bf16 %v5370, %v5368
  %v5407 = vpack.c.bf16 %v5373, %v5371
  %v5408 = vpack.c.bf16 %v5374, %v5372
  %v5409 = vpack.c.bf16 %v5377, %v5375
  %v5410 = vpack.c.bf16 %v5378, %v5376
  %v5411 = vld [vmem:[%s7] sm:$0xf]
  %v5412 = vld [vmem:[%s7 + $0x4] sm:$0xf]
  %v5413 = vld [vmem:[%s7 + $0x8] sm:$0xf]
  %v5414 = vld [vmem:[%s7 + $0xc] sm:$0xf]
  %v5415 = vld [vmem:[%s7 + $0x10] sm:$0xf]
  %v5416 = vld [vmem:[%s7 + $0x14] sm:$0xf]
  %v5417 = vld [vmem:[%s7 + $0x18] sm:$0xf]
  %v5418 = vld [vmem:[%s7 + $0x1c] sm:$0xf]
  %v5419 = vld [vmem:[%s7 + $0x20] sm:$0xf]
  %v5420 = vld [vmem:[%s7 + $0x24] sm:$0xf]
  %v5421 = vld [vmem:[%s7 + $0x28] sm:$0xf]
  %v5422 = vld [vmem:[%s7 + $0x2c] sm:$0xf]
  %v5423 = vld [vmem:[%s7 + $0x30] sm:$0xf]
  %v5424 = vld [vmem:[%s7 + $0x34] sm:$0xf]
  %v5425 = vld [vmem:[%s7 + $0x38] sm:$0xf]
  %v5426 = vld [vmem:[%s7 + $0x3c] sm:$0xf]
  %v5427 = vld [vmem:[%s7 + $0x40] sm:$0xf]
  %v5428 = vld [vmem:[%s7 + $0x44] sm:$0xf]
  %v5429 = vld [vmem:[%s7 + $0x48] sm:$0xf]
  %v5430 = vld [vmem:[%s7 + $0x4c] sm:$0xf]
  %v5431 = vld [vmem:[%s7 + $0x50] sm:$0xf]
  %v5432 = vld [vmem:[%s7 + $0x54] sm:$0xf]
  %v5433 = vld [vmem:[%s7 + $0x58] sm:$0xf]
  %v5434 = vld [vmem:[%s7 + $0x5c] sm:$0xf]
  %v5435 = vld [vmem:[%s7 + $0x60] sm:$0xf]
  %v5436 = vld [vmem:[%s7 + $0x64] sm:$0xf]
  %v5437 = vld [vmem:[%s7 + $0x68] sm:$0xf]
  %v5438 = vld [vmem:[%s7 + $0x6c] sm:$0xf]
  %v5439 = vld [vmem:[%s7 + $0x70] sm:$0xf]
  %v5440 = vld [vmem:[%s7 + $0x74] sm:$0xf]
  %v5441 = vld [vmem:[%s7 + $0x78] sm:$0xf]
  %v5442 = vld [vmem:[%s7 + $0x7c] sm:$0xf]
  %v5443 = vld [vmem:[%s8] sm:$0x1]
  %v5445 = vperm.slane %v5443, 0
  %v5479 = vunpack.c.l.b16 %v5411
  %v5480 = vunpack.c.l.b16 %v5412
  %v5481 = vunpack.c.l.b16 %v5413
  %v5482 = vunpack.c.l.b16 %v5414
  %v5483 = vunpack.c.l.b16 %v5415
  %v5484 = vunpack.c.l.b16 %v5416
  %v5485 = vunpack.c.l.b16 %v5417
  %v5486 = vunpack.c.l.b16 %v5418
  %v5487 = vunpack.c.l.b16 %v5419
  %v5488 = vunpack.c.l.b16 %v5420
  %v5489 = vunpack.c.l.b16 %v5421
  %v5490 = vunpack.c.l.b16 %v5422
  %v5491 = vunpack.c.l.b16 %v5423
  %v5492 = vunpack.c.l.b16 %v5424
  %v5493 = vunpack.c.l.b16 %v5425
  %v5494 = vunpack.c.l.b16 %v5426
  %v5495 = vunpack.c.l.b16 %v5427
  %v5496 = vunpack.c.l.b16 %v5428
  %v5497 = vunpack.c.l.b16 %v5429
  %v5498 = vunpack.c.l.b16 %v5430
  %v5499 = vunpack.c.l.b16 %v5431
  %v5500 = vunpack.c.l.b16 %v5432
  %v5501 = vunpack.c.l.b16 %v5433
  %v5502 = vunpack.c.l.b16 %v5434
  %v5503 = vunpack.c.l.b16 %v5435
  %v5504 = vunpack.c.l.b16 %v5436
  %v5505 = vunpack.c.l.b16 %v5437
  %v5506 = vunpack.c.l.b16 %v5438
  %v5507 = vunpack.c.l.b16 %v5439
  %v5508 = vunpack.c.l.b16 %v5440
  %v5509 = vunpack.c.l.b16 %v5441
  %v5510 = vunpack.c.l.b16 %v5442
  %v5511 = vpack.c.b16 %v5480, %v5479
  %v5512 = vpack.c.b16 %v5482, %v5481
  %v5513 = vpack.c.b16 %v5484, %v5483
  %v5514 = vpack.c.b16 %v5486, %v5485
  %v5515 = vpack.c.b16 %v5488, %v5487
  %v5516 = vpack.c.b16 %v5490, %v5489
  %v5517 = vpack.c.b16 %v5492, %v5491
  %v5518 = vpack.c.b16 %v5494, %v5493
  %v5519 = vpack.c.b16 %v5496, %v5495
  %v5520 = vpack.c.b16 %v5498, %v5497
  %v5521 = vpack.c.b16 %v5500, %v5499
  %v5522 = vpack.c.b16 %v5502, %v5501
  %v5523 = vpack.c.b16 %v5504, %v5503
  %v5524 = vpack.c.b16 %v5506, %v5505
  %v5525 = vpack.c.b16 %v5508, %v5507
  %v5526 = vpack.c.b16 %v5510, %v5509
  %5543 = vmatpush.bf16.msra.mxu0 %v5518
  %5544 = vmatpush.bf16.msra.mxu0 %v5517
  %5545 = vmatpush.bf16.msra.mxu0 %v5516
  %5546 = vmatpush.bf16.msra.mxu0 %v5515
  %5547 = vmatpush.bf16.msra.mxu0 %v5514
  %5548 = vmatpush.bf16.msra.mxu0 %v5513
  %5549 = vmatpush.bf16.msra.mxu0 %v5512
  %5550 = vmatpush.bf16.msra.mxu0 %v5511
  %5551 = vmatmul.bf16.gmra.mxu0 %v5379
  %v5552 = vpop.f32.mrf.mxu0
  %v5553 = vadd.f32 %v5445, %v5552
  %v5554 = vpop.f32.mrf.mxu0
  %v5555 = vadd.f32 %v5445, %v5554
  %5556 = vmatmul.bf16.gmra.mxu0 %v5381
  %v5557 = vpop.f32.mrf.mxu0
  %v5558 = vadd.f32 %v5445, %v5557
  %v5559 = vpop.f32.mrf.mxu0
  %v5560 = vadd.f32 %v5445, %v5559
  %5561 = vmatmul.bf16.gmra.mxu0 %v5383
  %v5562 = vpop.f32.mrf.mxu0
  %v5563 = vadd.f32 %v5445, %v5562
  %v5564 = vpop.f32.mrf.mxu0
  %v5565 = vadd.f32 %v5445, %v5564
  %5566 = vmatmul.bf16.gmra.mxu0 %v5385
  %v5567 = vpop.f32.mrf.mxu0
  %v5568 = vadd.f32 %v5445, %v5567
  %v5569 = vpop.f32.mrf.mxu0
  %v5570 = vadd.f32 %v5445, %v5569
  %5571 = vmatmul.bf16.gmra.mxu0 %v5387
  %v5572 = vpop.f32.mrf.mxu0
  %v5573 = vadd.f32 %v5445, %v5572
  %v5574 = vpop.f32.mrf.mxu0
  %v5575 = vadd.f32 %v5445, %v5574
  %5576 = vmatmul.bf16.gmra.mxu0 %v5389
  %v5577 = vpop.f32.mrf.mxu0
  %v5578 = vadd.f32 %v5445, %v5577
  %v5579 = vpop.f32.mrf.mxu0
  %v5580 = vadd.f32 %v5445, %v5579
  %5581 = vmatmul.bf16.gmra.mxu0 %v5391
  %v5582 = vpop.f32.mrf.mxu0
  %v5583 = vadd.f32 %v5445, %v5582
  %v5584 = vpop.f32.mrf.mxu0
  %v5585 = vadd.f32 %v5445, %v5584
  %5586 = vmatmul.bf16.gmra.mxu0 %v5393
  %v5587 = vpop.f32.mrf.mxu0
  %v5588 = vadd.f32 %v5445, %v5587
  %v5589 = vpop.f32.mrf.mxu0
  %v5590 = vadd.f32 %v5445, %v5589
  %5591 = vmatmul.bf16.gmra.mxu0 %v5395
  %v5592 = vpop.f32.mrf.mxu0
  %v5593 = vadd.f32 %v5445, %v5592
  %v5594 = vpop.f32.mrf.mxu0
  %v5595 = vadd.f32 %v5445, %v5594
  %5596 = vmatmul.bf16.gmra.mxu0 %v5397
  %v5597 = vpop.f32.mrf.mxu0
  %v5598 = vadd.f32 %v5445, %v5597
  %v5599 = vpop.f32.mrf.mxu0
  %v5600 = vadd.f32 %v5445, %v5599
  %5601 = vmatmul.bf16.gmra.mxu0 %v5399
  %v5602 = vpop.f32.mrf.mxu0
  %v5603 = vadd.f32 %v5445, %v5602
  %v5604 = vpop.f32.mrf.mxu0
  %v5605 = vadd.f32 %v5445, %v5604
  %5606 = vmatmul.bf16.gmra.mxu0 %v5401
  %v5607 = vpop.f32.mrf.mxu0
  %v5608 = vadd.f32 %v5445, %v5607
  %v5609 = vpop.f32.mrf.mxu0
  %v5610 = vadd.f32 %v5445, %v5609
  %5611 = vmatmul.bf16.gmra.mxu0 %v5403
  %v5612 = vpop.f32.mrf.mxu0
  %v5613 = vadd.f32 %v5445, %v5612
  %v5614 = vpop.f32.mrf.mxu0
  %v5615 = vadd.f32 %v5445, %v5614
  %5616 = vmatmul.bf16.gmra.mxu0 %v5405
  %v5617 = vpop.f32.mrf.mxu0
  %v5618 = vadd.f32 %v5445, %v5617
  %v5619 = vpop.f32.mrf.mxu0
  %v5620 = vadd.f32 %v5445, %v5619
  %5621 = vmatmul.bf16.gmra.mxu0 %v5407
  %v5622 = vpop.f32.mrf.mxu0
  %v5623 = vadd.f32 %v5445, %v5622
  %v5624 = vpop.f32.mrf.mxu0
  %v5625 = vadd.f32 %v5445, %v5624
  %5626 = vmatmul.bf16.gmra.mxu0 %v5409
  %v5627 = vpop.f32.mrf.mxu0
  %v5628 = vadd.f32 %v5445, %v5627
  %v5629 = vpop.f32.mrf.mxu0
  %v5630 = vadd.f32 %v5445, %v5629
  %5631 = vdwg.mxu0
  %5632 = vmatpush.bf16.msra.mxu0 %v5526
  %5633 = vmatpush.bf16.msra.mxu0 %v5525
  %5634 = vmatpush.bf16.msra.mxu0 %v5524
  %5635 = vmatpush.bf16.msra.mxu0 %v5523
  %5636 = vmatpush.bf16.msra.mxu0 %v5522
  %5637 = vmatpush.bf16.msra.mxu0 %v5521
  %5638 = vmatpush.bf16.msra.mxu0 %v5520
  %5639 = vmatpush.bf16.msra.mxu0 %v5519
  %5640 = vmatmul.bf16.gmra.mxu0 %v5380
  %v5641 = vpop.f32.mrf.mxu0
  %v5642 = vadd.f32 %v5553, %v5641
  %v5643 = vpop.f32.mrf.mxu0
  %v5644 = vadd.f32 %v5555, %v5643
  %5645 = vmatmul.bf16.gmra.mxu0 %v5382
  %v5646 = vpop.f32.mrf.mxu0
  %v5647 = vadd.f32 %v5558, %v5646
  %v5648 = vpop.f32.mrf.mxu0
  %v5649 = vadd.f32 %v5560, %v5648
  %5650 = vmatmul.bf16.gmra.mxu0 %v5384
  %v5651 = vpop.f32.mrf.mxu0
  %v5652 = vadd.f32 %v5563, %v5651
  %v5653 = vpop.f32.mrf.mxu0
  %v5654 = vadd.f32 %v5565, %v5653
  %5655 = vmatmul.bf16.gmra.mxu0 %v5386
  %v5656 = vpop.f32.mrf.mxu0
  %v5657 = vadd.f32 %v5568, %v5656
  %v5658 = vpop.f32.mrf.mxu0
  %v5659 = vadd.f32 %v5570, %v5658
  %5660 = vmatmul.bf16.gmra.mxu0 %v5388
  %v5661 = vpop.f32.mrf.mxu0
  %v5662 = vadd.f32 %v5573, %v5661
  %v5663 = vpop.f32.mrf.mxu0
  %v5664 = vadd.f32 %v5575, %v5663
  %5665 = vmatmul.bf16.gmra.mxu0 %v5390
  %v5666 = vpop.f32.mrf.mxu0
  %v5667 = vadd.f32 %v5578, %v5666
  %v5668 = vpop.f32.mrf.mxu0
  %v5669 = vadd.f32 %v5580, %v5668
  %5670 = vmatmul.bf16.gmra.mxu0 %v5392
  %v5671 = vpop.f32.mrf.mxu0
  %v5672 = vadd.f32 %v5583, %v5671
  %v5673 = vpop.f32.mrf.mxu0
  %v5674 = vadd.f32 %v5585, %v5673
  %5675 = vmatmul.bf16.gmra.mxu0 %v5394
  %v5676 = vpop.f32.mrf.mxu0
  %v5677 = vadd.f32 %v5588, %v5676
  %v5678 = vpop.f32.mrf.mxu0
  %v5679 = vadd.f32 %v5590, %v5678
  %5680 = vmatmul.bf16.gmra.mxu0 %v5396
  %v5681 = vpop.f32.mrf.mxu0
  %v5682 = vadd.f32 %v5593, %v5681
  %v5683 = vpop.f32.mrf.mxu0
  %v5684 = vadd.f32 %v5595, %v5683
  %5685 = vmatmul.bf16.gmra.mxu0 %v5398
  %v5686 = vpop.f32.mrf.mxu0
  %v5687 = vadd.f32 %v5598, %v5686
  %v5688 = vpop.f32.mrf.mxu0
  %v5689 = vadd.f32 %v5600, %v5688
  %5690 = vmatmul.bf16.gmra.mxu0 %v5400
  %v5691 = vpop.f32.mrf.mxu0
  %v5692 = vadd.f32 %v5603, %v5691
  %v5693 = vpop.f32.mrf.mxu0
  %v5694 = vadd.f32 %v5605, %v5693
  %5695 = vmatmul.bf16.gmra.mxu0 %v5402
  %v5696 = vpop.f32.mrf.mxu0
  %v5697 = vadd.f32 %v5608, %v5696
  %v5698 = vpop.f32.mrf.mxu0
  %v5699 = vadd.f32 %v5610, %v5698
  %5700 = vmatmul.bf16.gmra.mxu0 %v5404
  %v5701 = vpop.f32.mrf.mxu0
  %v5702 = vadd.f32 %v5613, %v5701
  %v5703 = vpop.f32.mrf.mxu0
  %v5704 = vadd.f32 %v5615, %v5703
  %5705 = vmatmul.bf16.gmra.mxu0 %v5406
  %v5706 = vpop.f32.mrf.mxu0
  %v5707 = vadd.f32 %v5618, %v5706
  %v5708 = vpop.f32.mrf.mxu0
  %v5709 = vadd.f32 %v5620, %v5708
  %5710 = vmatmul.bf16.gmra.mxu0 %v5408
  %v5711 = vpop.f32.mrf.mxu0
  %v5712 = vadd.f32 %v5623, %v5711
  %v5713 = vpop.f32.mrf.mxu0
  %v5714 = vadd.f32 %v5625, %v5713
  %5715 = vmatmul.bf16.gmra.mxu0 %v5410
  %v5716 = vpop.f32.mrf.mxu0
  %v5717 = vadd.f32 %v5628, %v5716
  %v5718 = vpop.f32.mrf.mxu0
  %v5719 = vadd.f32 %v5630, %v5718
  %5720 = vdwg.mxu0
  %v5721 = vmax.f32 %v5642, 0.0
  %v5722 = vmax.f32 %v5644, 0.0
  %v5723 = vmax.f32 %v5647, 0.0
  %v5724 = vmax.f32 %v5649, 0.0
  %v5725 = vmax.f32 %v5652, 0.0
  %v5726 = vmax.f32 %v5654, 0.0
  %v5727 = vmax.f32 %v5657, 0.0
  %v5728 = vmax.f32 %v5659, 0.0
  %v5729 = vmax.f32 %v5662, 0.0
  %v5730 = vmax.f32 %v5664, 0.0
  %v5731 = vmax.f32 %v5667, 0.0
  %v5732 = vmax.f32 %v5669, 0.0
  %v5733 = vmax.f32 %v5672, 0.0
  %v5734 = vmax.f32 %v5674, 0.0
  %v5735 = vmax.f32 %v5677, 0.0
  %v5736 = vmax.f32 %v5679, 0.0
  %v5737 = vmax.f32 %v5682, 0.0
  %v5738 = vmax.f32 %v5684, 0.0
  %v5739 = vmax.f32 %v5687, 0.0
  %v5740 = vmax.f32 %v5689, 0.0
  %v5741 = vmax.f32 %v5692, 0.0
  %v5742 = vmax.f32 %v5694, 0.0
  %v5743 = vmax.f32 %v5697, 0.0
  %v5744 = vmax.f32 %v5699, 0.0
  %v5745 = vmax.f32 %v5702, 0.0
  %v5746 = vmax.f32 %v5704, 0.0
  %v5747 = vmax.f32 %v5707, 0.0
  %v5748 = vmax.f32 %v5709, 0.0
  %v5749 = vmax.f32 %v5712, 0.0
  %v5750 = vmax.f32 %v5714, 0.0
  %v5751 = vmax.f32 %v5717, 0.0
  %v5752 = vmax.f32 %v5719, 0.0
  %v5753 = vpack.c.bf16 %v5722, %v5721
  %v5754 = vpack.c.bf16 %v5724, %v5723
  %v5755 = vpack.c.bf16 %v5726, %v5725
  %v5756 = vpack.c.bf16 %v5728, %v5727
  %v5757 = vpack.c.bf16 %v5730, %v5729
  %v5758 = vpack.c.bf16 %v5732, %v5731
  %v5759 = vpack.c.bf16 %v5734, %v5733
  %v5760 = vpack.c.bf16 %v5736, %v5735
  %v5761 = vpack.c.bf16 %v5738, %v5737
  %v5762 = vpack.c.bf16 %v5740, %v5739
  %v5763 = vpack.c.bf16 %v5742, %v5741
  %v5764 = vpack.c.bf16 %v5744, %v5743
  %v5765 = vpack.c.bf16 %v5746, %v5745
  %v5766 = vpack.c.bf16 %v5748, %v5747
  %v5767 = vpack.c.bf16 %v5750, %v5749
  %v5768 = vpack.c.bf16 %v5752, %v5751
  %v5769 = vld [vmem:[%s9] sm:$0xf]
  %v5770 = vld [vmem:[%s9 + $0x4] sm:$0xf]
  %v5771 = vld [vmem:[%s9 + $0x8] sm:$0xf]
  %v5772 = vld [vmem:[%s9 + $0xc] sm:$0xf]
  %v5773 = vld [vmem:[%s9 + $0x10] sm:$0xf]
  %v5774 = vld [vmem:[%s9 + $0x14] sm:$0xf]
  %v5775 = vld [vmem:[%s9 + $0x18] sm:$0xf]
  %v5776 = vld [vmem:[%s9 + $0x1c] sm:$0xf]
  %v5777 = vld [vmem:[%s9 + $0x20] sm:$0xf]
  %v5778 = vld [vmem:[%s9 + $0x24] sm:$0xf]
  %v5779 = vld [vmem:[%s9 + $0x28] sm:$0xf]
  %v5780 = vld [vmem:[%s9 + $0x2c] sm:$0xf]
  %v5781 = vld [vmem:[%s9 + $0x30] sm:$0xf]
  %v5782 = vld [vmem:[%s9 + $0x34] sm:$0xf]
  %v5783 = vld [vmem:[%s9 + $0x38] sm:$0xf]
  %v5784 = vld [vmem:[%s9 + $0x3c] sm:$0xf]
  %v5785 = vld [vmem:[%s10] sm:$0x1]
  %v5787 = vperm.slane %v5785, 0
  %v5805 = vunpack.c.l.b16 %v5769
  %v5806 = vunpack.c.l.b16 %v5770
  %v5807 = vunpack.c.l.b16 %v5771
  %v5808 = vunpack.c.l.b16 %v5772
  %v5809 = vunpack.c.l.b16 %v5773
  %v5810 = vunpack.c.l.b16 %v5774
  %v5811 = vunpack.c.l.b16 %v5775
  %v5812 = vunpack.c.l.b16 %v5776
  %v5813 = vunpack.c.l.b16 %v5777
  %v5814 = vunpack.c.l.b16 %v5778
  %v5815 = vunpack.c.l.b16 %v5779
  %v5816 = vunpack.c.l.b16 %v5780
  %v5817 = vunpack.c.l.b16 %v5781
  %v5818 = vunpack.c.l.b16 %v5782
  %v5819 = vunpack.c.l.b16 %v5783
  %v5820 = vunpack.c.l.b16 %v5784
  %v5821 = vpack.c.b16 %v5806, %v5805
  %v5822 = vpack.c.b16 %v5808, %v5807
  %v5823 = vpack.c.b16 %v5810, %v5809
  %v5824 = vpack.c.b16 %v5812, %v5811
  %v5825 = vpack.c.b16 %v5814, %v5813
  %v5826 = vpack.c.b16 %v5816, %v5815
  %v5827 = vpack.c.b16 %v5818, %v5817
  %v5828 = vpack.c.b16 %v5820, %v5819
  %5837 = vmatpush.bf16.msra.mxu0 %v5828
  %5838 = vmatpush.bf16.msra.mxu0 %v5827
  %5839 = vmatpush.bf16.msra.mxu0 %v5826
  %5840 = vmatpush.bf16.msra.mxu0 %v5825
  %5841 = vmatpush.bf16.msra.mxu0 %v5824
  %5842 = vmatpush.bf16.msra.mxu0 %v5823
  %5843 = vmatpush.bf16.msra.mxu0 %v5822
  %5844 = vmatpush.bf16.msra.mxu0 %v5821
  %5845 = vmatmul.bf16.gmra.mxu0 %v5753
  %v5846 = vpop.f32.mrf.mxu0
  %v5847 = vadd.f32 %v5787, %v5846
  %v5848 = vpop.f32.mrf.mxu0
  %v5849 = vadd.f32 %v5787, %v5848
  %5850 = vmatmul.bf16.gmra.mxu0 %v5754
  %v5851 = vpop.f32.mrf.mxu0
  %v5852 = vadd.f32 %v5787, %v5851
  %v5853 = vpop.f32.mrf.mxu0
  %v5854 = vadd.f32 %v5787, %v5853
  %5855 = vmatmul.bf16.gmra.mxu0 %v5755
  %v5856 = vpop.f32.mrf.mxu0
  %v5857 = vadd.f32 %v5787, %v5856
  %v5858 = vpop.f32.mrf.mxu0
  %v5859 = vadd.f32 %v5787, %v5858
  %5860 = vmatmul.bf16.gmra.mxu0 %v5756
  %v5861 = vpop.f32.mrf.mxu0
  %v5862 = vadd.f32 %v5787, %v5861
  %v5863 = vpop.f32.mrf.mxu0
  %v5864 = vadd.f32 %v5787, %v5863
  %5865 = vmatmul.bf16.gmra.mxu0 %v5757
  %v5866 = vpop.f32.mrf.mxu0
  %v5867 = vadd.f32 %v5787, %v5866
  %v5868 = vpop.f32.mrf.mxu0
  %v5869 = vadd.f32 %v5787, %v5868
  %5870 = vmatmul.bf16.gmra.mxu0 %v5758
  %v5871 = vpop.f32.mrf.mxu0
  %v5872 = vadd.f32 %v5787, %v5871
  %v5873 = vpop.f32.mrf.mxu0
  %v5874 = vadd.f32 %v5787, %v5873
  %5875 = vmatmul.bf16.gmra.mxu0 %v5759
  %v5876 = vpop.f32.mrf.mxu0
  %v5877 = vadd.f32 %v5787, %v5876
  %v5878 = vpop.f32.mrf.mxu0
  %v5879 = vadd.f32 %v5787, %v5878
  %5880 = vmatmul.bf16.gmra.mxu0 %v5760
  %v5881 = vpop.f32.mrf.mxu0
  %v5882 = vadd.f32 %v5787, %v5881
  %v5883 = vpop.f32.mrf.mxu0
  %v5884 = vadd.f32 %v5787, %v5883
  %5885 = vmatmul.bf16.gmra.mxu0 %v5761
  %v5886 = vpop.f32.mrf.mxu0
  %v5887 = vadd.f32 %v5787, %v5886
  %v5888 = vpop.f32.mrf.mxu0
  %v5889 = vadd.f32 %v5787, %v5888
  %5890 = vmatmul.bf16.gmra.mxu0 %v5762
  %v5891 = vpop.f32.mrf.mxu0
  %v5892 = vadd.f32 %v5787, %v5891
  %v5893 = vpop.f32.mrf.mxu0
  %v5894 = vadd.f32 %v5787, %v5893
  %5895 = vmatmul.bf16.gmra.mxu0 %v5763
  %v5896 = vpop.f32.mrf.mxu0
  %v5897 = vadd.f32 %v5787, %v5896
  %v5898 = vpop.f32.mrf.mxu0
  %v5899 = vadd.f32 %v5787, %v5898
  %5900 = vmatmul.bf16.gmra.mxu0 %v5764
  %v5901 = vpop.f32.mrf.mxu0
  %v5902 = vadd.f32 %v5787, %v5901
  %v5903 = vpop.f32.mrf.mxu0
  %v5904 = vadd.f32 %v5787, %v5903
  %5905 = vmatmul.bf16.gmra.mxu0 %v5765
  %v5906 = vpop.f32.mrf.mxu0
  %v5907 = vadd.f32 %v5787, %v5906
  %v5908 = vpop.f32.mrf.mxu0
  %v5909 = vadd.f32 %v5787, %v5908
  %5910 = vmatmul.bf16.gmra.mxu0 %v5766
  %v5911 = vpop.f32.mrf.mxu0
  %v5912 = vadd.f32 %v5787, %v5911
  %v5913 = vpop.f32.mrf.mxu0
  %v5914 = vadd.f32 %v5787, %v5913
  %5915 = vmatmul.bf16.gmra.mxu0 %v5767
  %v5916 = vpop.f32.mrf.mxu0
  %v5917 = vadd.f32 %v5787, %v5916
  %v5918 = vpop.f32.mrf.mxu0
  %v5919 = vadd.f32 %v5787, %v5918
  %5920 = vmatmul.bf16.gmra.mxu0 %v5768
  %v5921 = vpop.f32.mrf.mxu0
  %v5922 = vadd.f32 %v5787, %v5921
  %v5923 = vpop.f32.mrf.mxu0
  %v5924 = vadd.f32 %v5787, %v5923
  %5925 = vdwg.mxu0
  %v5926 = vmax.f32 %v5847, 0.0
  %v5927 = vmax.f32 %v5849, 0.0
  %v5928 = vmax.f32 %v5852, 0.0
  %v5929 = vmax.f32 %v5854, 0.0
  %v5930 = vmax.f32 %v5857, 0.0
  %v5931 = vmax.f32 %v5859, 0.0
  %v5932 = vmax.f32 %v5862, 0.0
  %v5933 = vmax.f32 %v5864, 0.0
  %v5934 = vmax.f32 %v5867, 0.0
  %v5935 = vmax.f32 %v5869, 0.0
  %v5936 = vmax.f32 %v5872, 0.0
  %v5937 = vmax.f32 %v5874, 0.0
  %v5938 = vmax.f32 %v5877, 0.0
  %v5939 = vmax.f32 %v5879, 0.0
  %v5940 = vmax.f32 %v5882, 0.0
  %v5941 = vmax.f32 %v5884, 0.0
  %v5942 = vmax.f32 %v5887, 0.0
  %v5943 = vmax.f32 %v5889, 0.0
  %v5944 = vmax.f32 %v5892, 0.0
  %v5945 = vmax.f32 %v5894, 0.0
  %v5946 = vmax.f32 %v5897, 0.0
  %v5947 = vmax.f32 %v5899, 0.0
  %v5948 = vmax.f32 %v5902, 0.0
  %v5949 = vmax.f32 %v5904, 0.0
  %v5950 = vmax.f32 %v5907, 0.0
  %v5951 = vmax.f32 %v5909, 0.0
  %v5952 = vmax.f32 %v5912, 0.0
  %v5953 = vmax.f32 %v5914, 0.0
  %v5954 = vmax.f32 %v5917, 0.0
  %v5955 = vmax.f32 %v5919, 0.0
  %v5956 = vmax.f32 %v5922, 0.0
  %v5957 = vmax.f32 %v5924, 0.0
  %v5958 = vpack.c.bf16 %v5927, %v5926
  %v5959 = vpack.c.bf16 %v5929, %v5928
  %v5960 = vpack.c.bf16 %v5931, %v5930
  %v5961 = vpack.c.bf16 %v5933, %v5932
  %v5962 = vpack.c.bf16 %v5935, %v5934
  %v5963 = vpack.c.bf16 %v5937, %v5936
  %v5964 = vpack.c.bf16 %v5939, %v5938
  %v5965 = vpack.c.bf16 %v5941, %v5940
  %v5966 = vpack.c.bf16 %v5943, %v5942
  %v5967 = vpack.c.bf16 %v5945, %v5944
  %v5968 = vpack.c.bf16 %v5947, %v5946
  %v5969 = vpack.c.bf16 %v5949, %v5948
  %v5970 = vpack.c.bf16 %v5951, %v5950
  %v5971 = vpack.c.bf16 %v5953, %v5952
  %v5972 = vpack.c.bf16 %v5955, %v5954
  %v5973 = vpack.c.bf16 %v5957, %v5956
  %v5974 = vld [vmem:[%s11] sm:$0xf]
  %v5975 = vld [vmem:[%s11 + $0x4] sm:$0xf]
  %v5976 = vld [vmem:[%s11 + $0x8] sm:$0xf]
  %v5977 = vld [vmem:[%s11 + $0xc] sm:$0xf]
  %v5978 = vld [vmem:[%s11 + $0x10] sm:$0xf]
  %v5979 = vld [vmem:[%s11 + $0x14] sm:$0xf]
  %v5980 = vld [vmem:[%s11 + $0x18] sm:$0xf]
  %v5981 = vld [vmem:[%s11 + $0x1c] sm:$0xf]
  %v5982 = vld [vmem:[%s11 + $0x20] sm:$0xf]
  %v5983 = vld [vmem:[%s11 + $0x24] sm:$0xf]
  %v5984 = vld [vmem:[%s11 + $0x28] sm:$0xf]
  %v5985 = vld [vmem:[%s11 + $0x2c] sm:$0xf]
  %v5986 = vld [vmem:[%s11 + $0x30] sm:$0xf]
  %v5987 = vld [vmem:[%s11 + $0x34] sm:$0xf]
  %v5988 = vld [vmem:[%s11 + $0x38] sm:$0xf]
  %v5989 = vld [vmem:[%s11 + $0x3c] sm:$0xf]
  %v5990 = vld [vmem:[%s12] sm:$0x1]
  %v5992 = vperm.slane %v5990, 0
  %v6010 = vunpack.c.l.b16 %v5974
  %v6011 = vunpack.c.l.b16 %v5975
  %v6012 = vunpack.c.l.b16 %v5976
  %v6013 = vunpack.c.l.b16 %v5977
  %v6014 = vunpack.c.l.b16 %v5978
  %v6015 = vunpack.c.l.b16 %v5979
  %v6016 = vunpack.c.l.b16 %v5980
  %v6017 = vunpack.c.l.b16 %v5981
  %v6018 = vunpack.c.l.b16 %v5982
  %v6019 = vunpack.c.l.b16 %v5983
  %v6020 = vunpack.c.l.b16 %v5984
  %v6021 = vunpack.c.l.b16 %v5985
  %v6022 = vunpack.c.l.b16 %v5986
  %v6023 = vunpack.c.l.b16 %v5987
  %v6024 = vunpack.c.l.b16 %v5988
  %v6025 = vunpack.c.l.b16 %v5989
  %v6026 = vpack.c.b16 %v6011, %v6010
  %v6027 = vpack.c.b16 %v6013, %v6012
  %v6028 = vpack.c.b16 %v6015, %v6014
  %v6029 = vpack.c.b16 %v6017, %v6016
  %v6030 = vpack.c.b16 %v6019, %v6018
  %v6031 = vpack.c.b16 %v6021, %v6020
  %v6032 = vpack.c.b16 %v6023, %v6022
  %v6033 = vpack.c.b16 %v6025, %v6024
  %6042 = vmatpush.bf16.msra.mxu0 %v6033
  %6043 = vmatpush.bf16.msra.mxu0 %v6032
  %6044 = vmatpush.bf16.msra.mxu0 %v6031
  %6045 = vmatpush.bf16.msra.mxu0 %v6030
  %6046 = vmatpush.bf16.msra.mxu0 %v6029
  %6047 = vmatpush.bf16.msra.mxu0 %v6028
  %6048 = vmatpush.bf16.msra.mxu0 %v6027
  %6049 = vmatpush.bf16.msra.mxu0 %v6026
  %6050 = vmatmul.bf16.gmra.mxu0 %v5958
  %v6051 = vpop.f32.mrf.mxu0
  %v6052 = vadd.f32 %v5992, %v6051
  %v6053 = vpop.f32.mrf.mxu0
  %v6054 = vadd.f32 %v5992, %v6053
  %6055 = vmatmul.bf16.gmra.mxu0 %v5959
  %v6056 = vpop.f32.mrf.mxu0
  %v6057 = vadd.f32 %v5992, %v6056
  %v6058 = vpop.f32.mrf.mxu0
  %v6059 = vadd.f32 %v5992, %v6058
  %6060 = vmatmul.bf16.gmra.mxu0 %v5960
  %v6061 = vpop.f32.mrf.mxu0
  %v6062 = vadd.f32 %v5992, %v6061
  %v6063 = vpop.f32.mrf.mxu0
  %v6064 = vadd.f32 %v5992, %v6063
  %6065 = vmatmul.bf16.gmra.mxu0 %v5961
  %v6066 = vpop.f32.mrf.mxu0
  %v6067 = vadd.f32 %v5992, %v6066
  %v6068 = vpop.f32.mrf.mxu0
  %v6069 = vadd.f32 %v5992, %v6068
  %6070 = vmatmul.bf16.gmra.mxu0 %v5962
  %v6071 = vpop.f32.mrf.mxu0
  %v6072 = vadd.f32 %v5992, %v6071
  %v6073 = vpop.f32.mrf.mxu0
  %v6074 = vadd.f32 %v5992, %v6073
  %6075 = vmatmul.bf16.gmra.mxu0 %v5963
  %v6076 = vpop.f32.mrf.mxu0
  %v6077 = vadd.f32 %v5992, %v6076
  %v6078 = vpop.f32.mrf.mxu0
  %v6079 = vadd.f32 %v5992, %v6078
  %6080 = vmatmul.bf16.gmra.mxu0 %v5964
  %v6081 = vpop.f32.mrf.mxu0
  %v6082 = vadd.f32 %v5992, %v6081
  %v6083 = vpop.f32.mrf.mxu0
  %v6084 = vadd.f32 %v5992, %v6083
  %6085 = vmatmul.bf16.gmra.mxu0 %v5965
  %v6086 = vpop.f32.mrf.mxu0
  %v6087 = vadd.f32 %v5992, %v6086
  %v6088 = vpop.f32.mrf.mxu0
  %v6089 = vadd.f32 %v5992, %v6088
  %6090 = vmatmul.bf16.gmra.mxu0 %v5966
  %v6091 = vpop.f32.mrf.mxu0
  %v6092 = vadd.f32 %v5992, %v6091
  %v6093 = vpop.f32.mrf.mxu0
  %v6094 = vadd.f32 %v5992, %v6093
  %6095 = vmatmul.bf16.gmra.mxu0 %v5967
  %v6096 = vpop.f32.mrf.mxu0
  %v6097 = vadd.f32 %v5992, %v6096
  %v6098 = vpop.f32.mrf.mxu0
  %v6099 = vadd.f32 %v5992, %v6098
  %6100 = vmatmul.bf16.gmra.mxu0 %v5968
  %v6101 = vpop.f32.mrf.mxu0
  %v6102 = vadd.f32 %v5992, %v6101
  %v6103 = vpop.f32.mrf.mxu0
  %v6104 = vadd.f32 %v5992, %v6103
  %6105 = vmatmul.bf16.gmra.mxu0 %v5969
  %v6106 = vpop.f32.mrf.mxu0
  %v6107 = vadd.f32 %v5992, %v6106
  %v6108 = vpop.f32.mrf.mxu0
  %v6109 = vadd.f32 %v5992, %v6108
  %6110 = vmatmul.bf16.gmra.mxu0 %v5970
  %v6111 = vpop.f32.mrf.mxu0
  %v6112 = vadd.f32 %v5992, %v6111
  %v6113 = vpop.f32.mrf.mxu0
  %v6114 = vadd.f32 %v5992, %v6113
  %6115 = vmatmul.bf16.gmra.mxu0 %v5971
  %v6116 = vpop.f32.mrf.mxu0
  %v6117 = vadd.f32 %v5992, %v6116
  %v6118 = vpop.f32.mrf.mxu0
  %v6119 = vadd.f32 %v5992, %v6118
  %6120 = vmatmul.bf16.gmra.mxu0 %v5972
  %v6121 = vpop.f32.mrf.mxu0
  %v6122 = vadd.f32 %v5992, %v6121
  %v6123 = vpop.f32.mrf.mxu0
  %v6124 = vadd.f32 %v5992, %v6123
  %6125 = vmatmul.bf16.gmra.mxu0 %v5973
  %v6126 = vpop.f32.mrf.mxu0
  %v6127 = vadd.f32 %v5992, %v6126
  %v6128 = vpop.f32.mrf.mxu0
  %v6129 = vadd.f32 %v5992, %v6128
  %6130 = vdwg.mxu0
  %v6131 = vmax.f32 %v6052, 0.0
  %v6132 = vmax.f32 %v6054, 0.0
  %v6133 = vmax.f32 %v6057, 0.0
  %v6134 = vmax.f32 %v6059, 0.0
  %v6135 = vmax.f32 %v6062, 0.0
  %v6136 = vmax.f32 %v6064, 0.0
  %v6137 = vmax.f32 %v6067, 0.0
  %v6138 = vmax.f32 %v6069, 0.0
  %v6139 = vmax.f32 %v6072, 0.0
  %v6140 = vmax.f32 %v6074, 0.0
  %v6141 = vmax.f32 %v6077, 0.0
  %v6142 = vmax.f32 %v6079, 0.0
  %v6143 = vmax.f32 %v6082, 0.0
  %v6144 = vmax.f32 %v6084, 0.0
  %v6145 = vmax.f32 %v6087, 0.0
  %v6146 = vmax.f32 %v6089, 0.0
  %v6147 = vmax.f32 %v6092, 0.0
  %v6148 = vmax.f32 %v6094, 0.0
  %v6149 = vmax.f32 %v6097, 0.0
  %v6150 = vmax.f32 %v6099, 0.0
  %v6151 = vmax.f32 %v6102, 0.0
  %v6152 = vmax.f32 %v6104, 0.0
  %v6153 = vmax.f32 %v6107, 0.0
  %v6154 = vmax.f32 %v6109, 0.0
  %v6155 = vmax.f32 %v6112, 0.0
  %v6156 = vmax.f32 %v6114, 0.0
  %v6157 = vmax.f32 %v6117, 0.0
  %v6158 = vmax.f32 %v6119, 0.0
  %v6159 = vmax.f32 %v6122, 0.0
  %v6160 = vmax.f32 %v6124, 0.0
  %v6161 = vmax.f32 %v6127, 0.0
  %v6162 = vmax.f32 %v6129, 0.0
  %v6163 = vpack.c.bf16 %v6132, %v6131
  %v6164 = vpack.c.bf16 %v6134, %v6133
  %v6165 = vpack.c.bf16 %v6136, %v6135
  %v6166 = vpack.c.bf16 %v6138, %v6137
  %v6167 = vpack.c.bf16 %v6140, %v6139
  %v6168 = vpack.c.bf16 %v6142, %v6141
  %v6169 = vpack.c.bf16 %v6144, %v6143
  %v6170 = vpack.c.bf16 %v6146, %v6145
  %v6171 = vpack.c.bf16 %v6148, %v6147
  %v6172 = vpack.c.bf16 %v6150, %v6149
  %v6173 = vpack.c.bf16 %v6152, %v6151
  %v6174 = vpack.c.bf16 %v6154, %v6153
  %v6175 = vpack.c.bf16 %v6156, %v6155
  %v6176 = vpack.c.bf16 %v6158, %v6157
  %v6177 = vpack.c.bf16 %v6160, %v6159
  %v6178 = vpack.c.bf16 %v6162, %v6161
  %v6179 = vld [vmem:[%s13] sm:$0xf]
  %v6180 = vld [vmem:[%s13 + $0x4] sm:$0xf]
  %v6181 = vld [vmem:[%s13 + $0x8] sm:$0xf]
  %v6182 = vld [vmem:[%s13 + $0xc] sm:$0xf]
  %v6183 = vld [vmem:[%s13 + $0x10] sm:$0xf]
  %v6184 = vld [vmem:[%s13 + $0x14] sm:$0xf]
  %v6185 = vld [vmem:[%s13 + $0x18] sm:$0xf]
  %v6186 = vld [vmem:[%s13 + $0x1c] sm:$0xf]
  %v6187 = vld [vmem:[%s13 + $0x20] sm:$0xf]
  %v6188 = vld [vmem:[%s13 + $0x24] sm:$0xf]
  %v6189 = vld [vmem:[%s13 + $0x28] sm:$0xf]
  %v6190 = vld [vmem:[%s13 + $0x2c] sm:$0xf]
  %v6191 = vld [vmem:[%s13 + $0x30] sm:$0xf]
  %v6192 = vld [vmem:[%s13 + $0x34] sm:$0xf]
  %v6193 = vld [vmem:[%s13 + $0x38] sm:$0xf]
  %v6194 = vld [vmem:[%s13 + $0x3c] sm:$0xf]
  %v6195 = vld [vmem:[%s14] sm:$0x1]
  %v6197 = vperm.slane %v6195, 0
  %v6215 = vunpack.c.l.b16 %v6179
  %v6216 = vunpack.c.l.b16 %v6180
  %v6217 = vunpack.c.l.b16 %v6181
  %v6218 = vunpack.c.l.b16 %v6182
  %v6219 = vunpack.c.l.b16 %v6183
  %v6220 = vunpack.c.l.b16 %v6184
  %v6221 = vunpack.c.l.b16 %v6185
  %v6222 = vunpack.c.l.b16 %v6186
  %v6223 = vunpack.c.l.b16 %v6187
  %v6224 = vunpack.c.l.b16 %v6188
  %v6225 = vunpack.c.l.b16 %v6189
  %v6226 = vunpack.c.l.b16 %v6190
  %v6227 = vunpack.c.l.b16 %v6191
  %v6228 = vunpack.c.l.b16 %v6192
  %v6229 = vunpack.c.l.b16 %v6193
  %v6230 = vunpack.c.l.b16 %v6194
  %v6231 = vpack.c.b16 %v6216, %v6215
  %v6232 = vpack.c.b16 %v6218, %v6217
  %v6233 = vpack.c.b16 %v6220, %v6219
  %v6234 = vpack.c.b16 %v6222, %v6221
  %v6235 = vpack.c.b16 %v6224, %v6223
  %v6236 = vpack.c.b16 %v6226, %v6225
  %v6237 = vpack.c.b16 %v6228, %v6227
  %v6238 = vpack.c.b16 %v6230, %v6229
  %6247 = vmatpush.bf16.msra.mxu0 %v6238
  %6248 = vmatpush.bf16.msra.mxu0 %v6237
  %6249 = vmatpush.bf16.msra.mxu0 %v6236
  %6250 = vmatpush.bf16.msra.mxu0 %v6235
  %6251 = vmatpush.bf16.msra.mxu0 %v6234
  %6252 = vmatpush.bf16.msra.mxu0 %v6233
  %6253 = vmatpush.bf16.msra.mxu0 %v6232
  %6254 = vmatpush.bf16.msra.mxu0 %v6231
  %6255 = vmatmul.bf16.gmra.mxu0 %v6163
  %v6256 = vpop.f32.mrf.mxu0
  %v6257 = vadd.f32 %v6197, %v6256
  %v6258 = vpop.f32.mrf.mxu0
  %v6259 = vadd.f32 %v6197, %v6258
  %6260 = vmatmul.bf16.gmra.mxu0 %v6164
  %v6261 = vpop.f32.mrf.mxu0
  %v6262 = vadd.f32 %v6197, %v6261
  %v6263 = vpop.f32.mrf.mxu0
  %v6264 = vadd.f32 %v6197, %v6263
  %6265 = vmatmul.bf16.gmra.mxu0 %v6165
  %v6266 = vpop.f32.mrf.mxu0
  %v6267 = vadd.f32 %v6197, %v6266
  %v6268 = vpop.f32.mrf.mxu0
  %v6269 = vadd.f32 %v6197, %v6268
  %6270 = vmatmul.bf16.gmra.mxu0 %v6166
  %v6271 = vpop.f32.mrf.mxu0
  %v6272 = vadd.f32 %v6197, %v6271
  %v6273 = vpop.f32.mrf.mxu0
  %v6274 = vadd.f32 %v6197, %v6273
  %6275 = vmatmul.bf16.gmra.mxu0 %v6167
  %v6276 = vpop.f32.mrf.mxu0
  %v6277 = vadd.f32 %v6197, %v6276
  %v6278 = vpop.f32.mrf.mxu0
  %v6279 = vadd.f32 %v6197, %v6278
  %6280 = vmatmul.bf16.gmra.mxu0 %v6168
  %v6281 = vpop.f32.mrf.mxu0
  %v6282 = vadd.f32 %v6197, %v6281
  %v6283 = vpop.f32.mrf.mxu0
  %v6284 = vadd.f32 %v6197, %v6283
  %6285 = vmatmul.bf16.gmra.mxu0 %v6169
  %v6286 = vpop.f32.mrf.mxu0
  %v6287 = vadd.f32 %v6197, %v6286
  %v6288 = vpop.f32.mrf.mxu0
  %v6289 = vadd.f32 %v6197, %v6288
  %6290 = vmatmul.bf16.gmra.mxu0 %v6170
  %v6291 = vpop.f32.mrf.mxu0
  %v6292 = vadd.f32 %v6197, %v6291
  %v6293 = vpop.f32.mrf.mxu0
  %v6294 = vadd.f32 %v6197, %v6293
  %6295 = vmatmul.bf16.gmra.mxu0 %v6171
  %v6296 = vpop.f32.mrf.mxu0
  %v6297 = vadd.f32 %v6197, %v6296
  %v6298 = vpop.f32.mrf.mxu0
  %v6299 = vadd.f32 %v6197, %v6298
  %6300 = vmatmul.bf16.gmra.mxu0 %v6172
  %v6301 = vpop.f32.mrf.mxu0
  %v6302 = vadd.f32 %v6197, %v6301
  %v6303 = vpop.f32.mrf.mxu0
  %v6304 = vadd.f32 %v6197, %v6303
  %6305 = vmatmul.bf16.gmra.mxu0 %v6173
  %v6306 = vpop.f32.mrf.mxu0
  %v6307 = vadd.f32 %v6197, %v6306
  %v6308 = vpop.f32.mrf.mxu0
  %v6309 = vadd.f32 %v6197, %v6308
  %6310 = vmatmul.bf16.gmra.mxu0 %v6174
  %v6311 = vpop.f32.mrf.mxu0
  %v6312 = vadd.f32 %v6197, %v6311
  %v6313 = vpop.f32.mrf.mxu0
  %v6314 = vadd.f32 %v6197, %v6313
  %6315 = vmatmul.bf16.gmra.mxu0 %v6175
  %v6316 = vpop.f32.mrf.mxu0
  %v6317 = vadd.f32 %v6197, %v6316
  %v6318 = vpop.f32.mrf.mxu0
  %v6319 = vadd.f32 %v6197, %v6318
  %6320 = vmatmul.bf16.gmra.mxu0 %v6176
  %v6321 = vpop.f32.mrf.mxu0
  %v6322 = vadd.f32 %v6197, %v6321
  %v6323 = vpop.f32.mrf.mxu0
  %v6324 = vadd.f32 %v6197, %v6323
  %6325 = vmatmul.bf16.gmra.mxu0 %v6177
  %v6326 = vpop.f32.mrf.mxu0
  %v6327 = vadd.f32 %v6197, %v6326
  %v6328 = vpop.f32.mrf.mxu0
  %v6329 = vadd.f32 %v6197, %v6328
  %6330 = vmatmul.bf16.gmra.mxu0 %v6178
  %v6331 = vpop.f32.mrf.mxu0
  %v6332 = vadd.f32 %v6197, %v6331
  %v6333 = vpop.f32.mrf.mxu0
  %v6334 = vadd.f32 %v6197, %v6333
  %6335 = vdwg.mxu0
  %6336 = vst [vmem:[%s15] sm:$0xff] %v6257
  %6337 = vst [vmem:[%s15 + $0x8] sm:$0xff] %v6259
  %6338 = vst [vmem:[%s15 + $0x10] sm:$0xff] %v6262
  %6339 = vst [vmem:[%s15 + $0x18] sm:$0xff] %v6264
  %6340 = vst [vmem:[%s15 + $0x20] sm:$0xff] %v6267
  %6341 = vst [vmem:[%s15 + $0x28] sm:$0xff] %v6269
  %6342 = vst [vmem:[%s15 + $0x30] sm:$0xff] %v6272
  %6343 = vst [vmem:[%s15 + $0x38] sm:$0xff] %v6274
  %6344 = vst [vmem:[%s15 + $0x40] sm:$0xff] %v6277
  %6345 = vst [vmem:[%s15 + $0x48] sm:$0xff] %v6279
  %6346 = vst [vmem:[%s15 + $0x50] sm:$0xff] %v6282
  %6347 = vst [vmem:[%s15 + $0x58] sm:$0xff] %v6284
  %6348 = vst [vmem:[%s15 + $0x60] sm:$0xff] %v6287
  %6349 = vst [vmem:[%s15 + $0x68] sm:$0xff] %v6289
  %6350 = vst [vmem:[%s15 + $0x70] sm:$0xff] %v6292
  %6351 = vst [vmem:[%s15 + $0x78] sm:$0xff] %v6294
  %6352 = vst [vmem:[%s15 + $0x80] sm:$0xff] %v6297
  %6353 = vst [vmem:[%s15 + $0x88] sm:$0xff] %v6299
  %6354 = vst [vmem:[%s15 + $0x90] sm:$0xff] %v6302
  %6355 = vst [vmem:[%s15 + $0x98] sm:$0xff] %v6304
  %6356 = vst [vmem:[%s15 + $0xa0] sm:$0xff] %v6307
  %6357 = vst [vmem:[%s15 + $0xa8] sm:$0xff] %v6309
  %6358 = vst [vmem:[%s15 + $0xb0] sm:$0xff] %v6312
  %6359 = vst [vmem:[%s15 + $0xb8] sm:$0xff] %v6314
  %6360 = vst [vmem:[%s15 + $0xc0] sm:$0xff] %v6317
  %6361 = vst [vmem:[%s15 + $0xc8] sm:$0xff] %v6319
  %6362 = vst [vmem:[%s15 + $0xd0] sm:$0xff] %v6322
  %6363 = vst [vmem:[%s15 + $0xd8] sm:$0xff] %v6324
  %6364 = vst [vmem:[%s15 + $0xe0] sm:$0xff] %v6327
  %6365 = vst [vmem:[%s15 + $0xe8] sm:$0xff] %v6329
  %6366 = vst [vmem:[%s15 + $0xf0] sm:$0xff] %v6332
  %6367 = vst [vmem:[%s15 + $0xf8] sm:$0xff] %v6334
  // Predicated region
  $region62: #{gat_forward.4} parent=0 // pred_check
    _
  $region63: #{gat_forward.4} parent=0 // pred_check_branch
    %6369 = sbr.rel (0) target = $region65
  $region64: #{gat_forward.4} parent=0 // pred_region
    _
  $region65: #{gat_forward.4} parent=0 // pred_fallthru
    _
  // Predicated region
  $region66: #{gat_forward.4} parent=0 // pred_check
    _
  $region67: #{gat_forward.4} parent=0 // pred_check_branch
    %6371 = sbr.rel (0) target = $region69
  $region68: #{gat_forward.4} parent=0 // pred_region
    _
  $region69: #{gat_forward.4} parent=0 // pred_fallthru
    _

</llo_original>
